<compile_context>
chip_gen: v5e
topology: v5e:2x2
jax: 0.10.0
libtpu: 0.0.40
codegen_flags: <defaults>
</compile_context>

<pallas_src>
import functools

import jax
import jax.numpy as jnp
from jax.experimental import pallas as pl
from jax.experimental.pallas import tpu as pltpu


NHID = 300          # logical LSTM hidden size (matches the PyTorch module)
NHID_PAD = 384      # padded to a multiple of 128 lanes; columns [NHID:] are zero


# ----------------------------------------------------------------------------
# Small helpers
# ----------------------------------------------------------------------------
def _ceil_to(x, m):
    return (x + m - 1) // m * m


def _full_spec(shape):
    """Whole-array BlockSpec for a grid=(1,) call."""
    zeros = (0,) * len(shape)
    return pl.BlockSpec(shape, lambda i, z=zeros: z)


def _im2col_nhwc(x, kh, kw, stride):
    """x: (N,H,W,C) -> (N*Ho*Wo, kh*kw*C); rows ordered (b,h,w), features (kh,kw,C)."""
    N, H, W, C = x.shape
    Ho = (H - kh) // stride + 1
    Wo = (W - kw) // stride + 1
    cols = []
    for i in range(kh):
        for j in range(kw):
            cols.append(x[:, i:i + stride * (Ho - 1) + 1:stride,
                          j:j + stride * (Wo - 1) + 1:stride, :])     # (N,Ho,Wo,C)
    patches = jnp.concatenate(cols, axis=-1)                          # (N,Ho,Wo,kh*kw*C)
    return patches.reshape(N * Ho * Wo, kh * kw * C), Ho, Wo


# ----------------------------------------------------------------------------
# conv1: tiled matmul + bias + ReLU kernel (full 8-aligned tiles, parallel M)
# ----------------------------------------------------------------------------
def _mm_bias_relu_kernel(x_ref, w_ref, b_ref, o_ref):
    acc = jnp.dot(x_ref[...], w_ref[...], preferred_element_type=jnp.float32)
    o_ref[...] = jnp.maximum(acc + b_ref[...], 0.0).astype(o_ref.dtype)


def conv_gemm(patches, w, b, tm_target=512):
    """relu(patches @ w + b); patches:(M,K) bf16, w:(K,N) bf16, b:(1,N) f32 -> (M,N) bf16."""
    M, K = patches.shape
    N = w.shape[1]
    # Pick n_tiles so every tile is full and 8-aligned (e.g. M=800 -> tm=400, 2 tiles).
    n_tiles = max(1, pl.cdiv(M, tm_target))
    tm = _ceil_to(pl.cdiv(M, n_tiles), 8)
    Mp = tm * n_tiles
    if Mp != M:
        patches = jnp.pad(patches, ((0, Mp - M), (0, 0)))
    out = pl.pallas_call(
        _mm_bias_relu_kernel,
        out_shape=jax.ShapeDtypeStruct((Mp, N), jnp.bfloat16),
        grid=(n_tiles,),
        in_specs=[
            pl.BlockSpec((tm, K), lambda i: (i, 0)),
            pl.BlockSpec((K, N), lambda i: (0, 0)),
            pl.BlockSpec((1, N), lambda i: (0, 0)),
        ],
        out_specs=pl.BlockSpec((tm, N), lambda i: (i, 0)),
        compiler_params=pltpu.CompilerParams(
            dimension_semantics=("parallel",)),
    )(patches, w, b)
    return out[:M] if Mp != M else out


def conv1_forward(x_nhwc, w_mat, b):
    """x NHWC bf16 (B,84,84,1) -> (B,20,20,32) bf16."""
    B = x_nhwc.shape[0]
    patches, Ho, Wo = _im2col_nhwc(x_nhwc, 8, 8, 4)                   # (B*400, 64)
    out = conv_gemm(patches, w_mat, b)                                # (B*400, 32)
    return out.reshape(B, Ho, Wo, w_mat.shape[1])


# ----------------------------------------------------------------------------
# conv2 + conv3 fused in one pallas_call
#   conv2: im2col GEMM (patches built wrapper-side from the tiny conv1 output)
#   conv3: 9 row-shifted GEMM accumulations on the VMEM-resident conv2 output.
#          Output rows follow conv2's (b, h, w) row order; the wrapper keeps the
#          valid 7x7 window per batch (shifted reads never cross batches there).
# ----------------------------------------------------------------------------
def _conv23_kernel(p2_ref, w2_ref, b2_ref, w3_ref, b3_ref, o_ref, x2_s,
                   *, row_stride):
    # conv2: GEMM + bias + ReLU -> VMEM scratch (bf16, MXU-ready)
    x2 = jnp.maximum(
        jnp.dot(p2_ref[...], w2_ref[...], preferred_element_type=jnp.float32)
        + b2_ref[...], 0.0)
    x2_s[...] = x2.astype(jnp.bfloat16)

    # conv3 (3x3, stride 1): accumulate one (cin,cout) tap per (ki,kj) offset.
    out_rows, cout = o_ref.shape
    acc = jnp.zeros((out_rows, cout), jnp.float32)
    for k in range(9):
        ki, kj = divmod(k, 3)
        off = ki * row_stride + kj
        acc = acc + jnp.dot(x2_s[pl.ds(off, out_rows), :], w3_ref[k],
                            preferred_element_type=jnp.float32)
    o_ref[...] = jnp.maximum(acc + b3_ref[...], 0.0).astype(o_ref.dtype)


def conv23_forward(x1, params):
    """x1: (B,20,20,32) bf16 -> (B, 7*7*64) bf16 flattened in (h, w, c) order."""
    B = x1.shape[0]
    c2 = params["conv2_w"].shape[1]
    c3 = params["conv3_w"].shape[2]
    patches, Ho, Wo = _im2col_nhwc(x1, 4, 4, 2)                       # (B*81, 512), Ho=Wo=9
    R2 = B * Ho * Wo
    out_rows = _ceil_to(R2, 8)                                        # overlapped conv3 rows
    max_off = 2 * Wo + 2                                              # largest (ki,kj) row shift
    x2_rows = _ceil_to(out_rows + max_off, 8)                         # conv2 rows in scratch
    patches = jnp.pad(patches, ((0, x2_rows - R2), (0, 0)))           # zero pad rows

    out = pl.pallas_call(
        functools.partial(_conv23_kernel, row_stride=Wo),
        out_shape=jax.ShapeDtypeStruct((out_rows, c3), jnp.bfloat16),
        grid=(1,),
        in_specs=[_full_spec(patches.shape),
                  _full_spec(params["conv2_w"].shape),
                  _full_spec(params["conv2_b"].shape),
                  _full_spec(params["conv3_w"].shape),
                  _full_spec(params["conv3_b"].shape)],
        out_specs=_full_spec((out_rows, c3)),
        scratch_shapes=[pltpu.VMEM((x2_rows, c2), jnp.bfloat16)],
        compiler_params=pltpu.CompilerParams(
            dimension_semantics=("arbitrary",)),
    )(patches, params["conv2_w"], params["conv2_b"],
      params["conv3_w"], params["conv3_b"])

    # Keep only the valid 7x7 conv3 window per batch; flatten in (h, w, c) order.
    y = out[:R2].reshape(B, Ho, Wo, c3)[:, :Ho - 2, :Wo - 2, :]
    return y.reshape(B, (Ho - 2) * (Wo - 2) * c3)


# ----------------------------------------------------------------------------
# Fused post-conv head: fc4 -> {fc5_1 -> logits -> softmax}
#                            -> {fc5_2 -> LSTMCell -> post-LSTM -> values}
# ----------------------------------------------------------------------------
def _head_kernel(x_ref, h0_ref, c0_ref,
                 fc4_w_ref, fc4_b_ref,
                 fc51_w_ref, fc51_b_ref,
                 lg_w_ref, lg_b_ref,
                 fc52_w_ref, fc52_b_ref,
                 lstm_w_ref, lstm_b_ref,
                 pw_ref, pb_ref, vw_ref, vb_ref,
                 values_ref, probs_ref, h1_ref, c1_ref):
    H = NHID_PAD
    xb = x_ref[...]                                                   # (B, 3136) bf16
    feat = jnp.maximum(
        jnp.dot(xb, fc4_w_ref[...], preferred_element_type=jnp.float32)
        + fc4_b_ref[...], 0.0)                                        # (B, 512) f32
    featb = feat.astype(jnp.bfloat16)

    # ---- policy branch ----
    x1 = jnp.maximum(
        jnp.dot(featb, fc51_w_ref[...], preferred_element_type=jnp.float32)
        + fc51_b_ref[...], 0.0)
    logits = (jnp.dot(x1.astype(jnp.bfloat16), lg_w_ref[...],
                      preferred_element_type=jnp.float32) + lg_b_ref[...])
    m = jnp.max(logits, axis=1, keepdims=True)
    e = jnp.exp(logits - m)
    inv = pl.reciprocal(jnp.sum(e, axis=1, keepdims=True), approx=True)
    probs_ref[...] = e * inv

    # ---- value branch: fc5_2 -> LSTMCell (single wide gate matmul, order i,f,g,o) ----
    x2 = jnp.maximum(
        jnp.dot(featb, fc52_w_ref[...], preferred_element_type=jnp.float32)
        + fc52_b_ref[...], 0.0)
    xz = jnp.concatenate(
        [x2.astype(jnp.bfloat16), h0_ref[...].astype(jnp.bfloat16)], axis=1)   # (B, 512)
    gates = (jnp.dot(xz, lstm_w_ref[...], preferred_element_type=jnp.float32)
             + lstm_b_ref[...])                                        # (B, 4*H) f32
    i_g = jax.nn.sigmoid(gates[:, 0 * H:1 * H])
    f_g = jax.nn.sigmoid(gates[:, 1 * H:2 * H])
    g_g = jnp.tanh(gates[:, 2 * H:3 * H])
    o_g = jax.nn.sigmoid(gates[:, 3 * H:4 * H])
    c1 = f_g * c0_ref[...] + i_g * g_g
    h1 = o_g * jnp.tanh(c1)
    c1_ref[...] = c1
    h1_ref[...] = h1

    x3 = jnp.maximum(
        jnp.dot(h1.astype(jnp.bfloat16), pw_ref[...],
                preferred_element_type=jnp.float32) + pb_ref[...], 0.0)
    values_ref[...] = (jnp.dot(x3.astype(jnp.bfloat16), vw_ref[...],
                               preferred_element_type=jnp.float32) + vb_ref[...])


def head_forward(params, x_flat, h0, c0):
    """x_flat:(B, 3136) bf16; h0,c0:(B, NHID_PAD) f32."""
    B = x_flat.shape[0]
    A = params["logits_w"].shape[1]
    operands = [
        x_flat, h0, c0,
        params["fc4_w"], params["fc4_b"],
        params["fc5_1_w"], params["fc5_1_b"],
        params["logits_w"], params["logits_b"],
        params["fc5_2_w"], params["fc5_2_b"],
        params["lstm_w"], params["lstm_b"],
        params["post_w"], params["post_b"],
        params["values_w"], params["values_b"],
    ]
    out_shapes = (jax.ShapeDtypeStruct((B, 1), jnp.float32),
                  jax.ShapeDtypeStruct((B, A), jnp.float32),
                  jax.ShapeDtypeStruct((B, NHID_PAD), jnp.float32),
                  jax.ShapeDtypeStruct((B, NHID_PAD), jnp.float32))
    # TODO(synk): for RL rollouts, a T-step variant (leading "arbitrary" time grid
    #             axis, weights on constant index_maps, h/c carried in VMEM scratch)
    #             would keep the ~5 MB of head weights resident across steps; kept
    #             per-step here to match the module's forward() semantics.
    values, probs, h1, c1 = pl.pallas_call(
        _head_kernel,
        out_shape=out_shapes,
        grid=(1,),
        in_specs=[_full_spec(op.shape) for op in operands],
        out_specs=tuple(_full_spec(s.shape) for s in out_shapes),
        compiler_params=pltpu.CompilerParams(
            dimension_semantics=("arbitrary",),
            vmem_limit_bytes=32 * 1024 * 1024),   # ~10.5 MB footprint: fits v7x's 64 MiB too
    )(*operands)
    return values, probs, h1, c1


# ----------------------------------------------------------------------------
# Parameter construction (deterministic, synthetic; stored in kernel layout)
# ----------------------------------------------------------------------------
def init_params(key, outputs):
    ks = jax.random.split(key, 12)
    s = 0.05

    def conv_w_mat(k, cout, cin, ksz):
        w = s * jax.random.normal(k, (cout, cin, ksz, ksz), jnp.float32)   # torch layout
        # -> (kh, kw, Cin, Cout) -> (kh*kw*Cin, Cout): matches _im2col_nhwc feature order
        return w.transpose(2, 3, 1, 0).reshape(ksz * ksz * cin, cout).astype(jnp.bfloat16)

    p = {}
    p["conv1_w"] = conv_w_mat(ks[0], 32, 1, 8)
    p["conv1_b"] = jnp.zeros((1, 32), jnp.float32)
    p["conv2_w"] = conv_w_mat(ks[1], 64, 32, 4)
    p["conv2_b"] = jnp.zeros((1, 64), jnp.float32)
    # conv3 kept as (kh*kw, cin, cout) so the fused kernel indexes one tap per (ki,kj).
    w3 = s * jax.random.normal(ks[2], (64, 64, 3, 3), jnp.float32)         # torch layout
    p["conv3_w"] = w3.transpose(2, 3, 1, 0).reshape(9, 64, 64).astype(jnp.bfloat16)
    p["conv3_b"] = jnp.zeros((1, 64), jnp.float32)

    # fc4 rows are in NHWC (h, w, c) flatten order.
    # TODO(synk): when loading a real PyTorch checkpoint, permute fc4 weight rows
    #             from the C-major (c, h, w) .view order to this (h, w, c) order.
    p["fc4_w"] = (s * jax.random.normal(ks[3], (7 * 7 * 64, 512), jnp.float32)).astype(jnp.bfloat16)
    p["fc4_b"] = jnp.zeros((1, 512), jnp.float32)
    p["fc5_1_w"] = (s * jax.random.normal(ks[4], (512, 128), jnp.float32)).astype(jnp.bfloat16)
    p["fc5_1_b"] = jnp.zeros((1, 128), jnp.float32)
    p["logits_w"] = (s * jax.random.normal(ks[5], (128, outputs), jnp.float32)).astype(jnp.bfloat16)
    p["logits_b"] = jnp.zeros((1, outputs), jnp.float32)
    p["fc5_2_w"] = (s * jax.random.normal(ks[6], (512, 128), jnp.float32)).astype(jnp.bfloat16)
    p["fc5_2_b"] = jnp.zeros((1, 128), jnp.float32)

    # LSTMCell(128, 300), xavier_normal-ish weights, lane-padded to NHID_PAD and
    # stacked into ONE gate weight: rows [0:128]=W_ih, rows [128:512]=W_hh (pad rows 0),
    # gate order (i, f, g, o) along the columns.
    xav_ih = (2.0 / (128 + 4 * NHID)) ** 0.5
    xav_hh = (2.0 / (NHID + 4 * NHID)) ** 0.5
    wih = xav_ih * jax.random.normal(ks[7], (128, 4, NHID), jnp.float32)
    wih = jnp.pad(wih, ((0, 0), (0, 0), (0, NHID_PAD - NHID))).reshape(128, 4 * NHID_PAD)
    whh = xav_hh * jax.random.normal(ks[8], (NHID, 4, NHID), jnp.float32)
    whh = jnp.pad(whh, ((0, NHID_PAD - NHID), (0, 0),
                        (0, NHID_PAD - NHID))).reshape(NHID_PAD, 4 * NHID_PAD)
    p["lstm_w"] = jnp.concatenate([wih, whh], axis=0).astype(jnp.bfloat16)   # (512, 1536)
    # b_ih + b_hh, each constant-initialized to 1.0 -> combined 2.0 on valid lanes.
    # TODO(synk): with real checkpoint weights, sum b_ih and b_hh explicitly.
    lb = jnp.zeros((4, NHID_PAD), jnp.float32).at[:, :NHID].set(2.0)
    p["lstm_b"] = lb.reshape(1, 4 * NHID_PAD)

    pw = s * jax.random.normal(ks[9], (NHID, 128), jnp.float32)
    p["post_w"] = jnp.pad(pw, ((0, NHID_PAD - NHID), (0, 0))).astype(jnp.bfloat16)
    p["post_b"] = jnp.zeros((1, 128), jnp.float32)
    p["values_w"] = (s * jax.random.normal(ks[10], (128, 1), jnp.float32)).astype(jnp.bfloat16)
    p["values_b"] = jnp.zeros((1, 1), jnp.float32)
    return p


# ----------------------------------------------------------------------------
# Forward pass (matches ActorCriticNetwork.forward)
# ----------------------------------------------------------------------------
def forward(params, x, hidden):
    """x: (B, 1, 84, 84) NCHW f32.  hidden: (h, c) each (B, NHID_PAD) f32.
    Returns (values, action_probs, new_hidden).  Hidden columns [NHID:] are zero pad."""
    h0, c0 = hidden
    x = x.transpose(0, 2, 3, 1).astype(jnp.bfloat16)                   # NCHW -> NHWC, bf16
    x = conv1_forward(x, params["conv1_w"], params["conv1_b"])         # (B, 20, 20, 32)
    x = conv23_forward(x, params)                                      # (B, 3136) bf16, (h,w,c)
    values, action_probs, h1, c1 = head_forward(params, x, h0, c0)
    # TODO(synk): torch.distributions.Categorical has no Pallas equivalent;
    #             returning its probability parameters instead.
    return values, action_probs, (h1, c1)


# ----------------------------------------------------------------------------
# Pure-jnp f32 reference of the same math (same padded params) — used as a
# tolerance check against the bf16 Pallas path.
# ----------------------------------------------------------------------------
def reference_forward(params, x, hidden):
    h0, c0 = hidden
    f32 = lambda a: a.astype(jnp.float32)

    def conv(xn, w_mat, b, k, s_):
        patches, Ho, Wo = _im2col_nhwc(xn, k, k, s_)
        y = jnp.maximum(f32(patches) @ f32(w_mat) + b, 0.0)
        return y.reshape(xn.shape[0], Ho, Wo, -1)

    xh = x.transpose(0, 2, 3, 1)
    x1 = conv(xh, params["conv1_w"], params["conv1_b"], 8, 4)
    x2 = conv(x1, params["conv2_w"], params["conv2_b"], 4, 2)
    x3 = conv(x2, f32(params["conv3_w"]).reshape(3 * 3 * 64, 64),
              params["conv3_b"], 3, 1)
    feat = jnp.maximum(x3.reshape(x3.shape[0], -1) @ f32(params["fc4_w"])
                       + params["fc4_b"], 0.0)
    a1 = jnp.maximum(feat @ f32(params["fc5_1_w"]) + params["fc5_1_b"], 0.0)
    logits = a1 @ f32(params["logits_w"]) + params["logits_b"]
    probs = jax.nn.softmax(logits, axis=1)
    a2 = jnp.maximum(feat @ f32(params["fc5_2_w"]) + params["fc5_2_b"], 0.0)
    gates = jnp.concatenate([a2, h0], axis=1) @ f32(params["lstm_w"]) + params["lstm_b"]
    H = NHID_PAD
    i_g = jax.nn.sigmoid(gates[:, :H])
    f_g = jax.nn.sigmoid(gates[:, H:2 * H])
    g_g = jnp.tanh(gates[:, 2 * H:3 * H])
    o_g = jax.nn.sigmoid(gates[:, 3 * H:])
    c1 = f_g * c0 + i_g * g_g
    h1 = o_g * jnp.tanh(c1)
    x4 = jnp.maximum(h1 @ f32(params["post_w"]) + params["post_b"], 0.0)
    values = x4 @ f32(params["values_w"]) + params["values_b"]
    return values, probs, (h1, c1)


# ----------------------------------------------------------------------------
if __name__ == "__main__":
    BATCH = 2       # per the perf review, B should ideally be a multiple of 8;
    OUTPUTS = 6     # kept at 2 to match the reference spec's small-batch usage.

    key = jax.random.PRNGKey(0)
    k_params, k_x = jax.random.split(key)

    params = init_params(k_params, OUTPUTS)
    # fc4 expects 7*7*64 features => conv stack implies 84x84 single-channel input
    x = jax.random.uniform(k_x, (BATCH, 1, 84, 84), jnp.float32)
    hidden = (jnp.zeros((BATCH, NHID_PAD), jnp.float32),
              jnp.zeros((BATCH, NHID_PAD), jnp.float32))

    fwd = jax.jit(forward)
    values, action_probs, new_hidden = fwd(params, x, hidden)
    jax.block_until_ready((values, action_probs, new_hidden))

    assert values.shape == (BATCH, 1)
    assert action_probs.shape == (BATCH, OUTPUTS)
    assert new_hidden[0].shape == (BATCH, NHID_PAD)
    assert new_hidden[1].shape == (BATCH, NHID_PAD)
    # softmax rows sum to ~1 (approx reciprocal -> loose tolerance)
    assert bool(jnp.all(jnp.abs(jnp.sum(action_probs, axis=1) - 1.0) < 5e-3))
    # padded LSTM lanes stay zero (holds when callers pass zero pad columns in h/c)
    assert bool(jnp.all(jnp.abs(new_hidden[0][:, NHID:]) < 1e-6))
    assert bool(jnp.all(jnp.abs(new_hidden[1][:, NHID:]) < 1e-6))
    assert bool(jnp.all(jnp.isfinite(values))) and bool(jnp.all(jnp.isfinite(action_probs)))

    # f32 reference comparison: catches layout / fusion bugs and bounds bf16 drift.
    r_values, r_probs, (r_h, r_c) = jax.jit(reference_forward)(params, x, hidden)
    assert float(jnp.max(jnp.abs(action_probs - r_probs))) < 3e-2
    assert float(jnp.max(jnp.abs(values - r_values))) < 3e-2
    assert float(jnp.max(jnp.abs(new_hidden[0] - r_h))) < 3e-2
    assert float(jnp.max(jnp.abs(new_hidden[1] - r_c))) < 3e-2

    print("KERNEL_OK")
</pallas_src>

<mosaic_0001>
module attributes {stable_mosaic.version = 11 : i64} {
  func.func @_mm_bias_relu_kernel(%arg0: i32, %arg1: memref<400x64xbf16, #tpu.memory_space<vmem>>, %arg2: memref<64x32xbf16, #tpu.memory_space<vmem>>, %arg3: memref<1x32xf32, #tpu.memory_space<vmem>>, %arg4: memref<400x32xbf16, #tpu.memory_space<vmem>>) attributes {dimension_semantics = [#tpu.dimension_semantics<parallel>], iteration_bounds = array<i64: 2>, scalar_prefetch = 0 : i64, scratch_operands = 0 : i64, tpu.core_type = #tpu.core_type<tc>, window_params = [{transform_indices = @transform_0, window_bounds = array<i64: 400, 64>}, {pipeline_mode = #tpu.pipeline_mode<synchronous>, transform_indices = @transform_1, window_bounds = array<i64: 64, 32>}, {pipeline_mode = #tpu.pipeline_mode<synchronous>, transform_indices = @transform_2, window_bounds = array<i64: 1, 32>}, {transform_indices = @transform_3, window_bounds = array<i64: 400, 32>}]} {
    %c0 = arith.constant 0 : index
    %c0_0 = arith.constant 0 : index
    %0 = vector.load %arg1[%c0, %c0_0] : memref<400x64xbf16, #tpu.memory_space<vmem>>, vector<400x64xbf16>
    %c0_1 = arith.constant 0 : index
    %c0_2 = arith.constant 0 : index
    %1 = vector.load %arg2[%c0_1, %c0_2] : memref<64x32xbf16, #tpu.memory_space<vmem>>, vector<64x32xbf16>
    %cst = arith.constant dense<0.000000e+00> : vector<400x32xf32>
    %2 = tpu.matmul %0, %1, %cst {dimension_numbers = #tpu.dot_dimension_numbers<[1], [0], [0], [1], [0, 0, 1, 1], [], []>} : vector<400x64xbf16>, vector<64x32xbf16>, vector<400x32xf32> -> vector<400x32xf32>
    %c0_3 = arith.constant 0 : index
    %c0_4 = arith.constant 0 : index
    %3 = vector.load %arg3[%c0_3, %c0_4] : memref<1x32xf32, #tpu.memory_space<vmem>>, vector<1x32xf32>
    %4 = vector.broadcast %3 : vector<1x32xf32> to vector<400x32xf32>
    %5 = arith.addf %2, %4 : vector<400x32xf32>
    %cst_5 = arith.constant 0.000000e+00 : f32
    %6 = vector.broadcast %cst_5 : f32 to vector<400x32xf32>
    %7 = arith.maximumf %5, %6 : vector<400x32xf32>
    %8 = arith.truncf %7 : vector<400x32xf32> to vector<400x32xbf16>
    %c0_6 = arith.constant 0 : index
    %c0_7 = arith.constant 0 : index
    %9 = vector.load %arg4[%c0_6, %c0_7] : memref<400x32xbf16, #tpu.memory_space<vmem>>, vector<400x32xbf16>
    tpu.vector_store %arg4[%c0_6, %c0_7], %8 {strides = array<i32>} : memref<400x32xbf16, #tpu.memory_space<vmem>>, vector<400x32xbf16>,
    return
  }
  func.func @transform_0(%arg0: i32) -> (i32, i32) {
    %c0_i32 = arith.constant 0 : i32
    %c0_i32_0 = arith.constant 0 : i32
    return %arg0, %c0_i32 : i32, i32
  }
  func.func @transform_1(%arg0: i32) -> (i32, i32) {
    %c0_i32 = arith.constant 0 : i32
    %c0_i32_0 = arith.constant 0 : i32
    %c0_i32_1 = arith.constant 0 : i32
    return %c0_i32, %c0_i32_0 : i32, i32
  }
  func.func @transform_2(%arg0: i32) -> (i32, i32) {
    %c0_i32 = arith.constant 0 : i32
    %c0_i32_0 = arith.constant 0 : i32
    %c0_i32_1 = arith.constant 0 : i32
    return %c0_i32, %c0_i32_0 : i32, i32
  }
  func.func @transform_3(%arg0: i32) -> (i32, i32) {
    %c0_i32 = arith.constant 0 : i32
    %c0_i32_0 = arith.constant 0 : i32
    return %arg0, %c0_i32 : i32, i32
  }
}

module attributes {stable_mosaic.version = 11 : i64} {
  func.func @_conv23_kernel(%arg0: i32, %arg1: memref<192x512xbf16, #tpu.memory_space<vmem>>, %arg2: memref<512x64xbf16, #tpu.memory_space<vmem>>, %arg3: memref<1x64xf32, #tpu.memory_space<vmem>>, %arg4: memref<9x64x64xbf16, #tpu.memory_space<vmem>>, %arg5: memref<1x64xf32, #tpu.memory_space<vmem>>, %arg6: memref<168x64xbf16, #tpu.memory_space<vmem>>, %arg7: memref<192x64xbf16, #tpu.memory_space<vmem>>) attributes {dimension_semantics = [#tpu.dimension_semantics<arbitrary>], iteration_bounds = array<i64: 1>, scalar_prefetch = 0 : i64, scratch_operands = 1 : i64, tpu.core_type = #tpu.core_type<tc>, window_params = [{pipeline_mode = #tpu.pipeline_mode<synchronous>, transform_indices = @transform_0, window_bounds = array<i64: 192, 512>}, {pipeline_mode = #tpu.pipeline_mode<synchronous>, transform_indices = @transform_1, window_bounds = array<i64: 512, 64>}, {pipeline_mode = #tpu.pipeline_mode<synchronous>, transform_indices = @transform_2, window_bounds = array<i64: 1, 64>}, {pipeline_mode = #tpu.pipeline_mode<synchronous>, transform_indices = @transform_3, window_bounds = array<i64: 9, 64, 64>}, {pipeline_mode = #tpu.pipeline_mode<synchronous>, transform_indices = @transform_4, window_bounds = array<i64: 1, 64>}, {pipeline_mode = #tpu.pipeline_mode<synchronous>, transform_indices = @transform_5, window_bounds = array<i64: 168, 64>}]} {
    %c0 = arith.constant 0 : index
    %c0_0 = arith.constant 0 : index
    %0 = vector.load %arg1[%c0, %c0_0] : memref<192x512xbf16, #tpu.memory_space<vmem>>, vector<192x512xbf16>
    %c0_1 = arith.constant 0 : index
    %c0_2 = arith.constant 0 : index
    %1 = vector.load %arg2[%c0_1, %c0_2] : memref<512x64xbf16, #tpu.memory_space<vmem>>, vector<512x64xbf16>
    %cst = arith.constant dense<0.000000e+00> : vector<192x64xf32>
    %2 = tpu.matmul %0, %1, %cst {dimension_numbers = #tpu.dot_dimension_numbers<[1], [0], [0], [1], [0, 0, 1, 1], [], []>} : vector<192x512xbf16>, vector<512x64xbf16>, vector<192x64xf32> -> vector<192x64xf32>
    %c0_3 = arith.constant 0 : index
    %c0_4 = arith.constant 0 : index
    %3 = vector.load %arg3[%c0_3, %c0_4] : memref<1x64xf32, #tpu.memory_space<vmem>>, vector<1x64xf32>
    %4 = vector.broadcast %3 : vector<1x64xf32> to vector<192x64xf32>
    %5 = arith.addf %2, %4 : vector<192x64xf32>
    %cst_5 = arith.constant 0.000000e+00 : f32
    %6 = vector.broadcast %cst_5 : f32 to vector<192x64xf32>
    %7 = arith.maximumf %5, %6 : vector<192x64xf32>
    %8 = arith.truncf %7 : vector<192x64xf32> to vector<192x64xbf16>
    %c0_6 = arith.constant 0 : index
    %c0_7 = arith.constant 0 : index
    %9 = vector.load %arg7[%c0_6, %c0_7] : memref<192x64xbf16, #tpu.memory_space<vmem>>, vector<192x64xbf16>
    tpu.vector_store %arg7[%c0_6, %c0_7], %8 {strides = array<i32>} : memref<192x64xbf16, #tpu.memory_space<vmem>>, vector<192x64xbf16>,
    %cst_8 = arith.constant 0.000000e+00 : f32
    %10 = vector.broadcast %cst_8 : f32 to vector<168x64xf32>
    %c0_9 = arith.constant 0 : index
    %c0_10 = arith.constant 0 : index
    %11 = vector.load %arg7[%c0_9, %c0_10] : memref<192x64xbf16, #tpu.memory_space<vmem>>, vector<168x64xbf16>
    %c0_11 = arith.constant 0 : index
    %c0_12 = arith.constant 0 : index
    %c0_13 = arith.constant 0 : index
    %12 = vector.load %arg4[%c0_11, %c0_12, %c0_13] : memref<9x64x64xbf16, #tpu.memory_space<vmem>>, vector<1x64x64xbf16>
    %13 = vector.shape_cast %12 : vector<1x64x64xbf16> to vector<64x64xbf16>
    %cst_14 = arith.constant dense<0.000000e+00> : vector<168x64xf32>
    %14 = tpu.matmul %11, %13, %cst_14 {dimension_numbers = #tpu.dot_dimension_numbers<[1], [0], [0], [1], [0, 0, 1, 1], [], []>} : vector<168x64xbf16>, vector<64x64xbf16>, vector<168x64xf32> -> vector<168x64xf32>
    %15 = arith.addf %10, %14 : vector<168x64xf32>
    %c1 = arith.constant 1 : index
    %c0_15 = arith.constant 0 : index
    %16 = vector.load %arg7[%c1, %c0_15] : memref<192x64xbf16, #tpu.memory_space<vmem>>, vector<168x64xbf16>
    %c1_16 = arith.constant 1 : index
    %c0_17 = arith.constant 0 : index
    %c0_18 = arith.constant 0 : index
    %17 = vector.load %arg4[%c1_16, %c0_17, %c0_18] : memref<9x64x64xbf16, #tpu.memory_space<vmem>>, vector<1x64x64xbf16>
    %18 = vector.shape_cast %17 : vector<1x64x64xbf16> to vector<64x64xbf16>
    %cst_19 = arith.constant dense<0.000000e+00> : vector<168x64xf32>
    %19 = tpu.matmul %16, %18, %cst_19 {dimension_numbers = #tpu.dot_dimension_numbers<[1], [0], [0], [1], [0, 0, 1, 1], [], []>} : vector<168x64xbf16>, vector<64x64xbf16>, vector<168x64xf32> -> vector<168x64xf32>
    %20 = arith.addf %15, %19 : vector<168x64xf32>
    %c2 = arith.constant 2 : index
    %c0_20 = arith.constant 0 : index
    %21 = vector.load %arg7[%c2, %c0_20] : memref<192x64xbf16, #tpu.memory_space<vmem>>, vector<168x64xbf16>
    %c2_21 = arith.constant 2 : index
    %c0_22 = arith.constant 0 : index
    %c0_23 = arith.constant 0 : index
    %22 = vector.load %arg4[%c2_21, %c0_22, %c0_23] : memref<9x64x64xbf16, #tpu.memory_space<vmem>>, vector<1x64x64xbf16>
    %23 = vector.shape_cast %22 : vector<1x64x64xbf16> to vector<64x64xbf16>
    %cst_24 = arith.constant dense<0.000000e+00> : vector<168x64xf32>
    %24 = tpu.matmul %21, %23, %cst_24 {dimension_numbers = #tpu.dot_dimension_numbers<[1], [0], [0], [1], [0, 0, 1, 1], [], []>} : vector<168x64xbf16>, vector<64x64xbf16>, vector<168x64xf32> -> vector<168x64xf32>
    %25 = arith.addf %20, %24 : vector<168x64xf32>
    %c9 = arith.constant 9 : index
    %c0_25 = arith.constant 0 : index
    %26 = vector.load %arg7[%c9, %c0_25] : memref<192x64xbf16, #tpu.memory_space<vmem>>, vector<168x64xbf16>
    %c3 = arith.constant 3 : index
    %c0_26 = arith.constant 0 : index
    %c0_27 = arith.constant 0 : index
    %27 = vector.load %arg4[%c3, %c0_26, %c0_27] : memref<9x64x64xbf16, #tpu.memory_space<vmem>>, vector<1x64x64xbf16>
    %28 = vector.shape_cast %27 : vector<1x64x64xbf16> to vector<64x64xbf16>
    %cst_28 = arith.constant dense<0.000000e+00> : vector<168x64xf32>
    %29 = tpu.matmul %26, %28, %cst_28 {dimension_numbers = #tpu.dot_dimension_numbers<[1], [0], [0], [1], [0, 0, 1, 1], [], []>} : vector<168x64xbf16>, vector<64x64xbf16>, vector<168x64xf32> -> vector<168x64xf32>
    %30 = arith.addf %25, %29 : vector<168x64xf32>
    %c10 = arith.constant 10 : index
    %c0_29 = arith.constant 0 : index
    %31 = vector.load %arg7[%c10, %c0_29] : memref<192x64xbf16, #tpu.memory_space<vmem>>, vector<168x64xbf16>
    %c4 = arith.constant 4 : index
    %c0_30 = arith.constant 0 : index
    %c0_31 = arith.constant 0 : index
    %32 = vector.load %arg4[%c4, %c0_30, %c0_31] : memref<9x64x64xbf16, #tpu.memory_space<vmem>>, vector<1x64x64xbf16>
    %33 = vector.shape_cast %32 : vector<1x64x64xbf16> to vector<64x64xbf16>
    %cst_32 = arith.constant dense<0.000000e+00> : vector<168x64xf32>
    %34 = tpu.matmul %31, %33, %cst_32 {dimension_numbers = #tpu.dot_dimension_numbers<[1], [0], [0], [1], [0, 0, 1, 1], [], []>} : vector<168x64xbf16>, vector<64x64xbf16>, vector<168x64xf32> -> vector<168x64xf32>
    %35 = arith.addf %30, %34 : vector<168x64xf32>
    %c11 = arith.constant 11 : index
    %c0_33 = arith.constant 0 : index
    %36 = vector.load %arg7[%c11, %c0_33] : memref<192x64xbf16, #tpu.memory_space<vmem>>, vector<168x64xbf16>
    %c5 = arith.constant 5 : index
    %c0_34 = arith.constant 0 : index
    %c0_35 = arith.constant 0 : index
    %37 = vector.load %arg4[%c5, %c0_34, %c0_35] : memref<9x64x64xbf16, #tpu.memory_space<vmem>>, vector<1x64x64xbf16>
    %38 = vector.shape_cast %37 : vector<1x64x64xbf16> to vector<64x64xbf16>
    %cst_36 = arith.constant dense<0.000000e+00> : vector<168x64xf32>
    %39 = tpu.matmul %36, %38, %cst_36 {dimension_numbers = #tpu.dot_dimension_numbers<[1], [0], [0], [1], [0, 0, 1, 1], [], []>} : vector<168x64xbf16>, vector<64x64xbf16>, vector<168x64xf32> -> vector<168x64xf32>
    %40 = arith.addf %35, %39 : vector<168x64xf32>
    %c18 = arith.constant 18 : index
    %c0_37 = arith.constant 0 : index
    %41 = vector.load %arg7[%c18, %c0_37] : memref<192x64xbf16, #tpu.memory_space<vmem>>, vector<168x64xbf16>
    %c6 = arith.constant 6 : index
    %c0_38 = arith.constant 0 : index
    %c0_39 = arith.constant 0 : index
    %42 = vector.load %arg4[%c6, %c0_38, %c0_39] : memref<9x64x64xbf16, #tpu.memory_space<vmem>>, vector<1x64x64xbf16>
    %43 = vector.shape_cast %42 : vector<1x64x64xbf16> to vector<64x64xbf16>
    %cst_40 = arith.constant dense<0.000000e+00> : vector<168x64xf32>
    %44 = tpu.matmul %41, %43, %cst_40 {dimension_numbers = #tpu.dot_dimension_numbers<[1], [0], [0], [1], [0, 0, 1, 1], [], []>} : vector<168x64xbf16>, vector<64x64xbf16>, vector<168x64xf32> -> vector<168x64xf32>
    %45 = arith.addf %40, %44 : vector<168x64xf32>
    %c19 = arith.constant 19 : index
    %c0_41 = arith.constant 0 : index
    %46 = vector.load %arg7[%c19, %c0_41] : memref<192x64xbf16, #tpu.memory_space<vmem>>, vector<168x64xbf16>
    %c7 = arith.constant 7 : index
    %c0_42 = arith.constant 0 : index
    %c0_43 = arith.constant 0 : index
    %47 = vector.load %arg4[%c7, %c0_42, %c0_43] : memref<9x64x64xbf16, #tpu.memory_space<vmem>>, vector<1x64x64xbf16>
    %48 = vector.shape_cast %47 : vector<1x64x64xbf16> to vector<64x64xbf16>
    %cst_44 = arith.constant dense<0.000000e+00> : vector<168x64xf32>
    %49 = tpu.matmul %46, %48, %cst_44 {dimension_numbers = #tpu.dot_dimension_numbers<[1], [0], [0], [1], [0, 0, 1, 1], [], []>} : vector<168x64xbf16>, vector<64x64xbf16>, vector<168x64xf32> -> vector<168x64xf32>
    %50 = arith.addf %45, %49 : vector<168x64xf32>
    %c20 = arith.constant 20 : index
    %c0_45 = arith.constant 0 : index
    %51 = vector.load %arg7[%c20, %c0_45] : memref<192x64xbf16, #tpu.memory_space<vmem>>, vector<168x64xbf16>
    %c8 = arith.constant 8 : index
    %c0_46 = arith.constant 0 : index
    %c0_47 = arith.constant 0 : index
    %52 = vector.load %arg4[%c8, %c0_46, %c0_47] : memref<9x64x64xbf16, #tpu.memory_space<vmem>>, vector<1x64x64xbf16>
    %53 = vector.shape_cast %52 : vector<1x64x64xbf16> to vector<64x64xbf16>
    %cst_48 = arith.constant dense<0.000000e+00> : vector<168x64xf32>
    %54 = tpu.matmul %51, %53, %cst_48 {dimension_numbers = #tpu.dot_dimension_numbers<[1], [0], [0], [1], [0, 0, 1, 1], [], []>} : vector<168x64xbf16>, vector<64x64xbf16>, vector<168x64xf32> -> vector<168x64xf32>
    %55 = arith.addf %50, %54 : vector<168x64xf32>
    %c0_49 = arith.constant 0 : index
    %c0_50 = arith.constant 0 : index
    %56 = vector.load %arg5[%c0_49, %c0_50] : memref<1x64xf32, #tpu.memory_space<vmem>>, vector<1x64xf32>
    %57 = vector.broadcast %56 : vector<1x64xf32> to vector<168x64xf32>
    %58 = arith.addf %55, %57 : vector<168x64xf32>
    %cst_51 = arith.constant 0.000000e+00 : f32
    %59 = vector.broadcast %cst_51 : f32 to vector<168x64xf32>
    %60 = arith.maximumf %58, %59 : vector<168x64xf32>
    %61 = arith.truncf %60 : vector<168x64xf32> to vector<168x64xbf16>
    %c0_52 = arith.constant 0 : index
    %c0_53 = arith.constant 0 : index
    %62 = vector.load %arg6[%c0_52, %c0_53] : memref<168x64xbf16, #tpu.memory_space<vmem>>, vector<168x64xbf16>
    tpu.vector_store %arg6[%c0_52, %c0_53], %61 {strides = array<i32>} : memref<168x64xbf16, #tpu.memory_space<vmem>>, vector<168x64xbf16>,
    return
  }
  func.func @transform_0(%arg0: i32) -> (i32, i32) {
    %c0_i32 = arith.constant 0 : i32
    %c0_i32_0 = arith.constant 0 : i32
    %c0_i32_1 = arith.constant 0 : i32
    return %c0_i32, %c0_i32_0 : i32, i32
  }
  func.func @transform_1(%arg0: i32) -> (i32, i32) {
    %c0_i32 = arith.constant 0 : i32
    %c0_i32_0 = arith.constant 0 : i32
    %c0_i32_1 = arith.constant 0 : i32
    return %c0_i32, %c0_i32_0 : i32, i32
  }
  func.func @transform_2(%arg0: i32) -> (i32, i32) {
    %c0_i32 = arith.constant 0 : i32
    %c0_i32_0 = arith.constant 0 : i32
    %c0_i32_1 = arith.constant 0 : i32
    return %c0_i32, %c0_i32_0 : i32, i32
  }
  func.func @transform_3(%arg0: i32) -> (i32, i32, i32) {
    %c0_i32 = arith.constant 0 : i32
    %c0_i32_0 = arith.constant 0 : i32
    %c0_i32_1 = arith.constant 0 : i32
    %c0_i32_2 = arith.constant 0 : i32
    return %c0_i32, %c0_i32_0, %c0_i32_1 : i32, i32, i32
  }
  func.func @transform_4(%arg0: i32) -> (i32, i32) {
    %c0_i32 = arith.constant 0 : i32
    %c0_i32_0 = arith.constant 0 : i32
    %c0_i32_1 = arith.constant 0 : i32
    return %c0_i32, %c0_i32_0 : i32, i32
  }
  func.func @transform_5(%arg0: i32) -> (i32, i32) {
    %c0_i32 = arith.constant 0 : i32
    %c0_i32_0 = arith.constant 0 : i32
    %c0_i32_1 = arith.constant 0 : i32
    return %c0_i32, %c0_i32_0 : i32, i32
  }
}

module attributes {stable_mosaic.version = 11 : i64} {
  func.func @_head_kernel(%arg0: i32, %arg1: memref<2x3136xbf16, #tpu.memory_space<vmem>>, %arg2: memref<2x384xf32, #tpu.memory_space<vmem>>, %arg3: memref<2x384xf32, #tpu.memory_space<vmem>>, %arg4: memref<3136x512xbf16, #tpu.memory_space<vmem>>, %arg5: memref<1x512xf32, #tpu.memory_space<vmem>>, %arg6: memref<512x128xbf16, #tpu.memory_space<vmem>>, %arg7: memref<1x128xf32, #tpu.memory_space<vmem>>, %arg8: memref<128x6xbf16, #tpu.memory_space<vmem>>, %arg9: memref<1x6xf32, #tpu.memory_space<vmem>>, %arg10: memref<512x128xbf16, #tpu.memory_space<vmem>>, %arg11: memref<1x128xf32, #tpu.memory_space<vmem>>, %arg12: memref<512x1536xbf16, #tpu.memory_space<vmem>>, %arg13: memref<1x1536xf32, #tpu.memory_space<vmem>>, %arg14: memref<384x128xbf16, #tpu.memory_space<vmem>>, %arg15: memref<1x128xf32, #tpu.memory_space<vmem>>, %arg16: memref<128x1xbf16, #tpu.memory_space<vmem>>, %arg17: memref<1x1xf32, #tpu.memory_space<vmem>>, %arg18: memref<2x1xf32, #tpu.memory_space<vmem>>, %arg19: memref<2x6xf32, #tpu.memory_space<vmem>>, %arg20: memref<2x384xf32, #tpu.memory_space<vmem>>, %arg21: memref<2x384xf32, #tpu.memory_space<vmem>>) attributes {dimension_semantics = [#tpu.dimension_semantics<arbitrary>], iteration_bounds = array<i64: 1>, scalar_prefetch = 0 : i64, scratch_operands = 0 : i64, tpu.core_type = #tpu.core_type<tc>, window_params = [{pipeline_mode = #tpu.pipeline_mode<synchronous>, transform_indices = @transform_0, window_bounds = array<i64: 2, 3136>}, {pipeline_mode = #tpu.pipeline_mode<synchronous>, transform_indices = @transform_1, window_bounds = array<i64: 2, 384>}, {pipeline_mode = #tpu.pipeline_mode<synchronous>, transform_indices = @transform_2, window_bounds = array<i64: 2, 384>}, {pipeline_mode = #tpu.pipeline_mode<synchronous>, transform_indices = @transform_3, window_bounds = array<i64: 3136, 512>}, {pipeline_mode = #tpu.pipeline_mode<synchronous>, transform_indices = @transform_4, window_bounds = array<i64: 1, 512>}, {pipeline_mode = #tpu.pipeline_mode<synchronous>, transform_indices = @transform_5, window_bounds = array<i64: 512, 128>}, {pipeline_mode = #tpu.pipeline_mode<synchronous>, transform_indices = @transform_6, window_bounds = array<i64: 1, 128>}, {pipeline_mode = #tpu.pipeline_mode<synchronous>, transform_indices = @transform_7, window_bounds = array<i64: 128, 6>}, {pipeline_mode = #tpu.pipeline_mode<synchronous>, transform_indices = @transform_8, window_bounds = array<i64: 1, 6>}, {pipeline_mode = #tpu.pipeline_mode<synchronous>, transform_indices = @transform_9, window_bounds = array<i64: 512, 128>}, {pipeline_mode = #tpu.pipeline_mode<synchronous>, transform_indices = @transform_10, window_bounds = array<i64: 1, 128>}, {pipeline_mode = #tpu.pipeline_mode<synchronous>, transform_indices = @transform_11, window_bounds = array<i64: 512, 1536>}, {pipeline_mode = #tpu.pipeline_mode<synchronous>, transform_indices = @transform_12, window_bounds = array<i64: 1, 1536>}, {pipeline_mode = #tpu.pipeline_mode<synchronous>, transform_indices = @transform_13, window_bounds = array<i64: 384, 128>}, {pipeline_mode = #tpu.pipeline_mode<synchronous>, transform_indices = @transform_14, window_bounds = array<i64: 1, 128>}, {pipeline_mode = #tpu.pipeline_mode<synchronous>, transform_indices = @transform_15, window_bounds = array<i64: 128, 1>}, {pipeline_mode = #tpu.pipeline_mode<synchronous>, transform_indices = @transform_16, window_bounds = array<i64: 1, 1>}, {pipeline_mode = #tpu.pipeline_mode<synchronous>, transform_indices = @transform_17, window_bounds = array<i64: 2, 1>}, {pipeline_mode = #tpu.pipeline_mode<synchronous>, transform_indices = @transform_18, window_bounds = array<i64: 2, 6>}, {pipeline_mode = #tpu.pipeline_mode<synchronous>, transform_indices = @transform_19, window_bounds = array<i64: 2, 384>}, {pipeline_mode = #tpu.pipeline_mode<synchronous>, transform_indices = @transform_20, window_bounds = array<i64: 2, 384>}]} {
    %c0 = arith.constant 0 : index
    %c0_0 = arith.constant 0 : index
    %0 = vector.load %arg1[%c0, %c0_0] : memref<2x3136xbf16, #tpu.memory_space<vmem>>, vector<2x3136xbf16>
    %c0_1 = arith.constant 0 : index
    %c0_2 = arith.constant 0 : index
    %1 = vector.load %arg4[%c0_1, %c0_2] : memref<3136x512xbf16, #tpu.memory_space<vmem>>, vector<3136x512xbf16>
    %cst = arith.constant dense<0.000000e+00> : vector<2x512xf32>
    %2 = tpu.matmul %0, %1, %cst {dimension_numbers = #tpu.dot_dimension_numbers<[1], [0], [0], [1], [0, 0, 1, 1], [], []>} : vector<2x3136xbf16>, vector<3136x512xbf16>, vector<2x512xf32> -> vector<2x512xf32>
    %c0_3 = arith.constant 0 : index
    %c0_4 = arith.constant 0 : index
    %3 = vector.load %arg5[%c0_3, %c0_4] : memref<1x512xf32, #tpu.memory_space<vmem>>, vector<1x512xf32>
    %4 = vector.broadcast %3 : vector<1x512xf32> to vector<2x512xf32>
    %5 = arith.addf %2, %4 : vector<2x512xf32>
    %cst_5 = arith.constant 0.000000e+00 : f32
    %6 = vector.broadcast %cst_5 : f32 to vector<2x512xf32>
    %7 = arith.maximumf %5, %6 : vector<2x512xf32>
    %8 = arith.truncf %7 : vector<2x512xf32> to vector<2x512xbf16>
    %c0_6 = arith.constant 0 : index
    %c0_7 = arith.constant 0 : index
    %9 = vector.load %arg6[%c0_6, %c0_7] : memref<512x128xbf16, #tpu.memory_space<vmem>>, vector<512x128xbf16>
    %cst_8 = arith.constant dense<0.000000e+00> : vector<2x128xf32>
    %10 = tpu.matmul %8, %9, %cst_8 {dimension_numbers = #tpu.dot_dimension_numbers<[1], [0], [0], [1], [0, 0, 1, 1], [], []>} : vector<2x512xbf16>, vector<512x128xbf16>, vector<2x128xf32> -> vector<2x128xf32>
    %c0_9 = arith.constant 0 : index
    %c0_10 = arith.constant 0 : index
    %11 = vector.load %arg7[%c0_9, %c0_10] : memref<1x128xf32, #tpu.memory_space<vmem>>, vector<1x128xf32>
    %12 = vector.broadcast %11 : vector<1x128xf32> to vector<2x128xf32>
    %13 = arith.addf %10, %12 : vector<2x128xf32>
    %cst_11 = arith.constant 0.000000e+00 : f32
    %14 = vector.broadcast %cst_11 : f32 to vector<2x128xf32>
    %15 = arith.maximumf %13, %14 : vector<2x128xf32>
    %16 = arith.truncf %15 : vector<2x128xf32> to vector<2x128xbf16>
    %c0_12 = arith.constant 0 : index
    %c0_13 = arith.constant 0 : index
    %17 = vector.load %arg8[%c0_12, %c0_13] : memref<128x6xbf16, #tpu.memory_space<vmem>>, vector<128x6xbf16>
    %cst_14 = arith.constant dense<0.000000e+00> : vector<2x6xf32>
    %18 = tpu.matmul %16, %17, %cst_14 {dimension_numbers = #tpu.dot_dimension_numbers<[1], [0], [0], [1], [0, 0, 1, 1], [], []>} : vector<2x128xbf16>, vector<128x6xbf16>, vector<2x6xf32> -> vector<2x6xf32>
    %c0_15 = arith.constant 0 : index
    %c0_16 = arith.constant 0 : index
    %19 = vector.load %arg9[%c0_15, %c0_16] : memref<1x6xf32, #tpu.memory_space<vmem>>, vector<1x6xf32>
    %20 = vector.broadcast %19 : vector<1x6xf32> to vector<2x6xf32>
    %21 = arith.addf %18, %20 : vector<2x6xf32>
    %cst_17 = arith.constant dense<0xFF800000> : vector<2xf32>
    %22 = vector.multi_reduction <maximumf>, %21, %cst_17 [1] : vector<2x6xf32> to vector<2xf32>
    %23 = vector.shape_cast %22 : vector<2xf32> to vector<2x1xf32>
    %24 = vector.broadcast %23 : vector<2x1xf32> to vector<2x6xf32>
    %25 = arith.subf %21, %24 : vector<2x6xf32>
    %26 = math.exp %25 : vector<2x6xf32>
    %cst_18 = arith.constant dense<0.000000e+00> : vector<2xf32>
    %27 = vector.multi_reduction <add>, %26, %cst_18 [1] : vector<2x6xf32> to vector<2xf32>
    %28 = vector.shape_cast %27 : vector<2xf32> to vector<2x1xf32>
    %29 = tpu.reciprocal %28 {approx = true} : vector<2x1xf32> -> vector<2x1xf32>
    %30 = vector.broadcast %29 : vector<2x1xf32> to vector<2x6xf32>
    %31 = arith.mulf %26, %30 : vector<2x6xf32>
    %c0_19 = arith.constant 0 : index
    %c0_20 = arith.constant 0 : index
    %32 = vector.load %arg19[%c0_19, %c0_20] : memref<2x6xf32, #tpu.memory_space<vmem>>, vector<2x6xf32>
    tpu.vector_store %arg19[%c0_19, %c0_20], %31 {strides = array<i32>} : memref<2x6xf32, #tpu.memory_space<vmem>>, vector<2x6xf32>,
    %c0_21 = arith.constant 0 : index
    %c0_22 = arith.constant 0 : index
    %33 = vector.load %arg10[%c0_21, %c0_22] : memref<512x128xbf16, #tpu.memory_space<vmem>>, vector<512x128xbf16>
    %cst_23 = arith.constant dense<0.000000e+00> : vector<2x128xf32>
    %34 = tpu.matmul %8, %33, %cst_23 {dimension_numbers = #tpu.dot_dimension_numbers<[1], [0], [0], [1], [0, 0, 1, 1], [], []>} : vector<2x512xbf16>, vector<512x128xbf16>, vector<2x128xf32> -> vector<2x128xf32>
    %c0_24 = arith.constant 0 : index
    %c0_25 = arith.constant 0 : index
    %35 = vector.load %arg11[%c0_24, %c0_25] : memref<1x128xf32, #tpu.memory_space<vmem>>, vector<1x128xf32>
    %36 = vector.broadcast %35 : vector<1x128xf32> to vector<2x128xf32>
    %37 = arith.addf %34, %36 : vector<2x128xf32>
    %cst_26 = arith.constant 0.000000e+00 : f32
    %38 = vector.broadcast %cst_26 : f32 to vector<2x128xf32>
    %39 = arith.maximumf %37, %38 : vector<2x128xf32>
    %40 = arith.truncf %39 : vector<2x128xf32> to vector<2x128xbf16>
    %c0_27 = arith.constant 0 : index
    %c0_28 = arith.constant 0 : index
    %41 = vector.load %arg2[%c0_27, %c0_28] : memref<2x384xf32, #tpu.memory_space<vmem>>, vector<2x384xf32>
    %42 = arith.truncf %41 : vector<2x384xf32> to vector<2x384xbf16>
    %43 = tpu.concatenate %40, %42 in 1 : vector<2x128xbf16>, vector<2x384xbf16> -> vector<2x512xbf16>
    %c0_29 = arith.constant 0 : index
    %c0_30 = arith.constant 0 : index
    %44 = vector.load %arg12[%c0_29, %c0_30] : memref<512x1536xbf16, #tpu.memory_space<vmem>>, vector<512x1536xbf16>
    %cst_31 = arith.constant dense<0.000000e+00> : vector<2x1536xf32>
    %45 = tpu.matmul %43, %44, %cst_31 {dimension_numbers = #tpu.dot_dimension_numbers<[1], [0], [0], [1], [0, 0, 1, 1], [], []>} : vector<2x512xbf16>, vector<512x1536xbf16>, vector<2x1536xf32> -> vector<2x1536xf32>
    %c0_32 = arith.constant 0 : index
    %c0_33 = arith.constant 0 : index
    %46 = vector.load %arg13[%c0_32, %c0_33] : memref<1x1536xf32, #tpu.memory_space<vmem>>, vector<1x1536xf32>
    %47 = vector.broadcast %46 : vector<1x1536xf32> to vector<2x1536xf32>
    %48 = arith.addf %45, %47 : vector<2x1536xf32>
    %49 = vector.extract_strided_slice %48 {offsets = [0, 0], sizes = [2, 384], strides = [1, 1]} : vector<2x1536xf32> to vector<2x384xf32>
    %50 = arith.negf %49 : vector<2x384xf32>
    %51 = math.exp %50 : vector<2x384xf32>
    %cst_34 = arith.constant 1.000000e+00 : f32
    %52 = vector.broadcast %cst_34 : f32 to vector<2x384xf32>
    %53 = arith.addf %52, %51 : vector<2x384xf32>
    %54 = arith.divf %52, %53 : vector<2x384xf32>
    %55 = vector.extract_strided_slice %48 {offsets = [0, 384], sizes = [2, 384], strides = [1, 1]} : vector<2x1536xf32> to vector<2x384xf32>
    %56 = arith.negf %55 : vector<2x384xf32>
    %57 = math.exp %56 : vector<2x384xf32>
    %cst_35 = arith.constant 1.000000e+00 : f32
    %58 = vector.broadcast %cst_35 : f32 to vector<2x384xf32>
    %59 = arith.addf %58, %57 : vector<2x384xf32>
    %60 = arith.divf %58, %59 : vector<2x384xf32>
    %61 = vector.extract_strided_slice %48 {offsets = [0, 768], sizes = [2, 384], strides = [1, 1]} : vector<2x1536xf32> to vector<2x384xf32>
    %62 = math.tanh %61 : vector<2x384xf32>
    %63 = vector.extract_strided_slice %48 {offsets = [0, 1152], sizes = [2, 384], strides = [1, 1]} : vector<2x1536xf32> to vector<2x384xf32>
    %64 = arith.negf %63 : vector<2x384xf32>
    %65 = math.exp %64 : vector<2x384xf32>
    %cst_36 = arith.constant 1.000000e+00 : f32
    %66 = vector.broadcast %cst_36 : f32 to vector<2x384xf32>
    %67 = arith.addf %66, %65 : vector<2x384xf32>
    %68 = arith.divf %66, %67 : vector<2x384xf32>
    %c0_37 = arith.constant 0 : index
    %c0_38 = arith.constant 0 : index
    %69 = vector.load %arg3[%c0_37, %c0_38] : memref<2x384xf32, #tpu.memory_space<vmem>>, vector<2x384xf32>
    %70 = arith.mulf %60, %69 : vector<2x384xf32>
    %71 = arith.mulf %54, %62 : vector<2x384xf32>
    %72 = arith.addf %70, %71 : vector<2x384xf32>
    %73 = math.tanh %72 : vector<2x384xf32>
    %74 = arith.mulf %68, %73 : vector<2x384xf32>
    %c0_39 = arith.constant 0 : index
    %c0_40 = arith.constant 0 : index
    %75 = vector.load %arg21[%c0_39, %c0_40] : memref<2x384xf32, #tpu.memory_space<vmem>>, vector<2x384xf32>
    tpu.vector_store %arg21[%c0_39, %c0_40], %72 {strides = array<i32>} : memref<2x384xf32, #tpu.memory_space<vmem>>, vector<2x384xf32>,
    %c0_41 = arith.constant 0 : index
    %c0_42 = arith.constant 0 : index
    %76 = vector.load %arg20[%c0_41, %c0_42] : memref<2x384xf32, #tpu.memory_space<vmem>>, vector<2x384xf32>
    tpu.vector_store %arg20[%c0_41, %c0_42], %74 {strides = array<i32>} : memref<2x384xf32, #tpu.memory_space<vmem>>, vector<2x384xf32>,
    %77 = arith.truncf %74 : vector<2x384xf32> to vector<2x384xbf16>
    %c0_43 = arith.constant 0 : index
    %c0_44 = arith.constant 0 : index
    %78 = vector.load %arg14[%c0_43, %c0_44] : memref<384x128xbf16, #tpu.memory_space<vmem>>, vector<384x128xbf16>
    %cst_45 = arith.constant dense<0.000000e+00> : vector<2x128xf32>
    %79 = tpu.matmul %77, %78, %cst_45 {dimension_numbers = #tpu.dot_dimension_numbers<[1], [0], [0], [1], [0, 0, 1, 1], [], []>} : vector<2x384xbf16>, vector<384x128xbf16>, vector<2x128xf32> -> vector<2x128xf32>
    %c0_46 = arith.constant 0 : index
    %c0_47 = arith.constant 0 : index
    %80 = vector.load %arg15[%c0_46, %c0_47] : memref<1x128xf32, #tpu.memory_space<vmem>>, vector<1x128xf32>
    %81 = vector.broadcast %80 : vector<1x128xf32> to vector<2x128xf32>
    %82 = arith.addf %79, %81 : vector<2x128xf32>
    %cst_48 = arith.constant 0.000000e+00 : f32
    %83 = vector.broadcast %cst_48 : f32 to vector<2x128xf32>
    %84 = arith.maximumf %82, %83 : vector<2x128xf32>
    %85 = arith.truncf %84 : vector<2x128xf32> to vector<2x128xbf16>
    %c0_49 = arith.constant 0 : index
    %c0_50 = arith.constant 0 : index
    %86 = vector.load %arg16[%c0_49, %c0_50] : memref<128x1xbf16, #tpu.memory_space<vmem>>, vector<128x1xbf16>
    %cst_51 = arith.constant dense<0.000000e+00> : vector<2x1xf32>
    %87 = tpu.matmul %85, %86, %cst_51 {dimension_numbers = #tpu.dot_dimension_numbers<[1], [0], [0], [1], [0, 0, 1, 1], [], []>} : vector<2x128xbf16>, vector<128x1xbf16>, vector<2x1xf32> -> vector<2x1xf32>
    %c0_52 = arith.constant 0 : index
    %c0_53 = arith.constant 0 : index
    %88 = vector.load %arg17[%c0_52, %c0_53] : memref<1x1xf32, #tpu.memory_space<vmem>>, vector<1x1xf32>
    %89 = vector.broadcast %88 : vector<1x1xf32> to vector<2x1xf32>
    %90 = arith.addf %87, %89 : vector<2x1xf32>
    %c0_54 = arith.constant 0 : index
    %c0_55 = arith.constant 0 : index
    %91 = vector.load %arg18[%c0_54, %c0_55] : memref<2x1xf32, #tpu.memory_space<vmem>>, vector<2x1xf32>
    tpu.vector_store %arg18[%c0_54, %c0_55], %90 {strides = array<i32>} : memref<2x1xf32, #tpu.memory_space<vmem>>, vector<2x1xf32>,
    return
  }
  func.func @transform_0(%arg0: i32) -> (i32, i32) {
    %c0_i32 = arith.constant 0 : i32
    %c0_i32_0 = arith.constant 0 : i32
    %c0_i32_1 = arith.constant 0 : i32
    return %c0_i32, %c0_i32_0 : i32, i32
  }
  func.func @transform_1(%arg0: i32) -> (i32, i32) {
    %c0_i32 = arith.constant 0 : i32
    %c0_i32_0 = arith.constant 0 : i32
    %c0_i32_1 = arith.constant 0 : i32
    return %c0_i32, %c0_i32_0 : i32, i32
  }
  func.func @transform_2(%arg0: i32) -> (i32, i32) {
    %c0_i32 = arith.constant 0 : i32
    %c0_i32_0 = arith.constant 0 : i32
    %c0_i32_1 = arith.constant 0 : i32
    return %c0_i32, %c0_i32_0 : i32, i32
  }
  func.func @transform_3(%arg0: i32) -> (i32, i32) {
    %c0_i32 = arith.constant 0 : i32
    %c0_i32_0 = arith.constant 0 : i32
    %c0_i32_1 = arith.constant 0 : i32
    return %c0_i32, %c0_i32_0 : i32, i32
  }
  func.func @transform_4(%arg0: i32) -> (i32, i32) {
    %c0_i32 = arith.constant 0 : i32
    %c0_i32_0 = arith.constant 0 : i32
    %c0_i32_1 = arith.constant 0 : i32
    return %c0_i32, %c0_i32_0 : i32, i32
  }
  func.func @transform_5(%arg0: i32) -> (i32, i32) {
    %c0_i32 = arith.constant 0 : i32
    %c0_i32_0 = arith.constant 0 : i32
    %c0_i32_1 = arith.constant 0 : i32
    return %c0_i32, %c0_i32_0 : i32, i32
  }
  func.func @transform_6(%arg0: i32) -> (i32, i32) {
    %c0_i32 = arith.constant 0 : i32
    %c0_i32_0 = arith.constant 0 : i32
    %c0_i32_1 = arith.constant 0 : i32
    return %c0_i32, %c0_i32_0 : i32, i32
  }
  func.func @transform_7(%arg0: i32) -> (i32, i32) {
    %c0_i32 = arith.constant 0 : i32
    %c0_i32_0 = arith.constant 0 : i32
    %c0_i32_1 = arith.constant 0 : i32
    return %c0_i32, %c0_i32_0 : i32, i32
  }
  func.func @transform_8(%arg0: i32) -> (i32, i32) {
    %c0_i32 = arith.constant 0 : i32
    %c0_i32_0 = arith.constant 0 : i32
    %c0_i32_1 = arith.constant 0 : i32
    return %c0_i32, %c0_i32_0 : i32, i32
  }
  func.func @transform_9(%arg0: i32) -> (i32, i32) {
    %c0_i32 = arith.constant 0 : i32
    %c0_i32_0 = arith.constant 0 : i32
    %c0_i32_1 = arith.constant 0 : i32
    return %c0_i32, %c0_i32_0 : i32, i32
  }
  func.func @transform_10(%arg0: i32) -> (i32, i32) {
    %c0_i32 = arith.constant 0 : i32
    %c0_i32_0 = arith.constant 0 : i32
    %c0_i32_1 = arith.constant 0 : i32
    return %c0_i32, %c0_i32_0 : i32, i32
  }
  func.func @transform_11(%arg0: i32) -> (i32, i32) {
    %c0_i32 = arith.constant 0 : i32
    %c0_i32_0 = arith.constant 0 : i32
    %c0_i32_1 = arith.constant 0 : i32
    return %c0_i32, %c0_i32_0 : i32, i32
  }
  func.func @transform_12(%arg0: i32) -> (i32, i32) {
    %c0_i32 = arith.constant 0 : i32
    %c0_i32_0 = arith.constant 0 : i32
    %c0_i32_1 = arith.constant 0 : i32
    return %c0_i32, %c0_i32_0 : i32, i32
  }
  func.func @transform_13(%arg0: i32) -> (i32, i32) {
    %c0_i32 = arith.constant 0 : i32
    %c0_i32_0 = arith.constant 0 : i32
    %c0_i32_1 = arith.constant 0 : i32
    return %c0_i32, %c0_i32_0 : i32, i32
  }
  func.func @transform_14(%arg0: i32) -> (i32, i32) {
    %c0_i32 = arith.constant 0 : i32
    %c0_i32_0 = arith.constant 0 : i32
    %c0_i32_1 = arith.constant 0 : i32
    return %c0_i32, %c0_i32_0 : i32, i32
  }
  func.func @transform_15(%arg0: i32) -> (i32, i32) {
    %c0_i32 = arith.constant 0 : i32
    %c0_i32_0 = arith.constant 0 : i32
    %c0_i32_1 = arith.constant 0 : i32
    return %c0_i32, %c0_i32_0 : i32, i32
  }
  func.func @transform_16(%arg0: i32) -> (i32, i32) {
    %c0_i32 = arith.constant 0 : i32
    %c0_i32_0 = arith.constant 0 : i32
    %c0_i32_1 = arith.constant 0 : i32
    return %c0_i32, %c0_i32_0 : i32, i32
  }
  func.func @transform_17(%arg0: i32) -> (i32, i32) {
    %c0_i32 = arith.constant 0 : i32
    %c0_i32_0 = arith.constant 0 : i32
    %c0_i32_1 = arith.constant 0 : i32
    return %c0_i32, %c0_i32_0 : i32, i32
  }
  func.func @transform_18(%arg0: i32) -> (i32, i32) {
    %c0_i32 = arith.constant 0 : i32
    %c0_i32_0 = arith.constant 0 : i32
    %c0_i32_1 = arith.constant 0 : i32
    return %c0_i32, %c0_i32_0 : i32, i32
  }
  func.func @transform_19(%arg0: i32) -> (i32, i32) {
    %c0_i32 = arith.constant 0 : i32
    %c0_i32_0 = arith.constant 0 : i32
    %c0_i32_1 = arith.constant 0 : i32
    return %c0_i32, %c0_i32_0 : i32, i32
  }
  func.func @transform_20(%arg0: i32) -> (i32, i32) {
    %c0_i32 = arith.constant 0 : i32
    %c0_i32_0 = arith.constant 0 : i32
    %c0_i32_1 = arith.constant 0 : i32
    return %c0_i32, %c0_i32_0 : i32, i32
  }
}

</mosaic_0001>

<llo_original>
// kernel: forward.3
$region0: #{forward.3}
  #allocation0 [shape = 'u32[]', space=smem, size = 0x4, offset = 0x4, fixed_abs, tag = 'smem constant byte address 0x4 - core index']
  #allocation1 [shape = 'u32[72,128]{1,0:T(1,128)}', space=vmem, size = 0x9000, scoped, tag = 'internal scratch']
  %s0 = inlined_call_operand.vmem [shape: bf16[800,64], index: 0, kind: input, shape index: {}]
  %s1 = inlined_call_operand.vmem [shape: bf16[64,32], index: 1, kind: input, shape index: {}]
  %s2 = inlined_call_operand.vmem [shape: f32[1,32], index: 2, kind: input, shape index: {}]
  %s3 = inlined_call_operand.vmem [shape: bf16[800,32], index: 3, kind: output, shape index: {}]
  %s4 = sld [smem:[#allocation0]]
  $region45: #{forward.3} parent=0
    _
  %s6 = ssub.s32 1, %s4
  %s7 = scalar_select 0, %s6, %s4
  loop: start=0, step=1, limit=4
  $region2: #{forward.3} parent=0 // loop_pre_header
    _
  $region3: #{forward.3} parent=0 // loop_header
    %s9 = sphi 0, %s13
    %p10 = scmp.ge.s32.totalorder %s9, 4
    %s19 = sphi 0, %s21
    %s22 = sphi 0, %s19
    %s23 = sphi 0, %s22
    %s39 = sphi 0, %s23
    %s43 = sphi 0, %s43
    %s45 = sphi 0, %s43
    %s46 = sphi 0, %s45
    %s60 = sphi 0, %s46
    %s64 = sphi 0, %s64
    %s66 = sphi 0, %s64
    %s67 = sphi 0, %s66
    %s81 = sphi 0, %s67
    %s87 = sphi 0, %s89
    %s90 = sphi 0, %s87
    %s91 = sphi 0, %s90
    %s107 = sphi 0, %s91
  $region4: #{forward.3} parent=0 // loop_header_branch
    %12 = sbr.rel (%p10) target = $region8
  $region5: #{forward.3} parent=0 // loop_body
    %s14 = ssub.s32 %s9, 1
    %s15 = ssub.s32 %s9, 2
    %s16 = sadd.s32 %s9, 1
    %s17 = ssub.s32 %s9, %s16
    %p18 = scmp.eq.s32.totalorder %s17, 0
    %s20 = sadd.s32 %s19, 1
    %s21 = scalar_select %p18, %s19, %s20
    %p24 = pneg %p18
    %p25 = scmp.eq.s32.totalorder %s9, 1
    %p26 = por %p24, %p25
    %p27 = scmp.ne.s32.totalorder %s19, %s22
    %p28 = scmp.eq.s32.totalorder %s9, 0
    %p29 = por %p27, %p28
    %p30 = scmp.ne.s32.totalorder %s19, %s22
    %p31 = scmp.eq.s32.totalorder %s14, 1
    %p32 = por %p30, %p31
    %p33 = scmp.ne.s32.totalorder %s22, %s23
    %p34 = scmp.eq.s32.totalorder %s14, 0
    %p35 = por %p33, %p34
    %p36 = scmp.ne.s32.totalorder %s22, %s23
    %p37 = scmp.eq.s32.totalorder %s15, 1
    %p38 = por %p36, %p37
    %p40 = scmp.ne.s32.totalorder %s23, %s39
    %p41 = scmp.eq.s32.totalorder %s15, 0
    %p42 = por %p40, %p41
    %s44 = sadd.s32 %s43, 1
    %p47 = scmp.eq.s32.totalorder %s9, 1
    %p48 = scmp.ne.s32.totalorder %s43, %s45
    %p49 = scmp.eq.s32.totalorder %s9, 0
    %p50 = por %p48, %p49
    %p51 = scmp.ne.s32.totalorder %s43, %s45
    %p52 = scmp.eq.s32.totalorder %s14, 1
    %p53 = por %p51, %p52
    %p54 = scmp.ne.s32.totalorder %s45, %s46
    %p55 = scmp.eq.s32.totalorder %s14, 0
    %p56 = por %p54, %p55
    %p57 = scmp.ne.s32.totalorder %s45, %s46
    %p58 = scmp.eq.s32.totalorder %s15, 1
    %p59 = por %p57, %p58
    %p61 = scmp.ne.s32.totalorder %s46, %s60
    %p62 = scmp.eq.s32.totalorder %s15, 0
    %p63 = por %p61, %p62
    %s65 = sadd.s32 %s64, 1
    %p68 = scmp.eq.s32.totalorder %s9, 1
    %p69 = scmp.ne.s32.totalorder %s64, %s66
    %p70 = scmp.eq.s32.totalorder %s9, 0
    %p71 = por %p69, %p70
    %p72 = scmp.ne.s32.totalorder %s64, %s66
    %p73 = scmp.eq.s32.totalorder %s14, 1
    %p74 = por %p72, %p73
    %p75 = scmp.ne.s32.totalorder %s66, %s67
    %p76 = scmp.eq.s32.totalorder %s14, 0
    %p77 = por %p75, %p76
    %p78 = scmp.ne.s32.totalorder %s66, %s67
    %p79 = scmp.eq.s32.totalorder %s15, 1
    %p80 = por %p78, %p79
    %p82 = scmp.ne.s32.totalorder %s67, %s81
    %p83 = scmp.eq.s32.totalorder %s15, 0
    %p84 = por %p82, %p83
    %s85 = ssub.s32 %s9, %s16
    %p86 = scmp.eq.s32.totalorder %s85, 0
    %s88 = sadd.s32 %s87, 1
    %s89 = scalar_select %p86, %s87, %s88
    %p92 = pneg %p86
    %p93 = scmp.eq.s32.totalorder %s9, 1
    %p94 = por %p92, %p93
    %p95 = scmp.ne.s32.totalorder %s87, %s90
    %p96 = scmp.eq.s32.totalorder %s9, 0
    %p97 = por %p95, %p96
    %p98 = scmp.ne.s32.totalorder %s87, %s90
    %p99 = scmp.eq.s32.totalorder %s14, 1
    %p100 = por %p98, %p99
    %p101 = scmp.ne.s32.totalorder %s90, %s91
    %p102 = scmp.eq.s32.totalorder %s14, 0
    %p103 = por %p101, %p102
    %p104 = scmp.ne.s32.totalorder %s90, %s91
    %p105 = scmp.eq.s32.totalorder %s15, 1
    %p106 = por %p104, %p105
    %p108 = scmp.ne.s32.totalorder %s91, %s107
    %p109 = scmp.eq.s32.totalorder %s15, 0
    %p110 = por %p108, %p109
    %p111 = scmp.le.s32.totalorder 1, %s9
    %p112 = scmp.lt.s32.totalorder %s9, 3
    %p113 = pnand %p111, %p112
    %p114 = pneg %p113
    // Predicated region
    $region9: #{forward.3} parent=5 // pred_check
      _
    $region10: #{forward.3} parent=5 // pred_check_branch
      %116 = sbr.rel (%p113) target = $region12
    $region11: #{forward.3} parent=5 // pred_region
      %s117 = ssub.s32 %s9, 1
      // Predicated region
      $region13: #{forward.3} parent=11 // pred_check
        %p118 = pneg %p56
      $region14: #{forward.3} parent=11 // pred_check_branch
        %120 = sbr.rel (%p118) target = $region16
      $region15: #{forward.3} parent=11 // pred_region
        _
      $region16: #{forward.3} parent=11 // pred_fallthru
        _
      // Predicated region
      $region17: #{forward.3} parent=11 // pred_check
        %p121 = pneg %p77
      $region18: #{forward.3} parent=11 // pred_check_branch
        %123 = sbr.rel (%p121) target = $region20
      $region19: #{forward.3} parent=11 // pred_region
        _
      $region20: #{forward.3} parent=11 // pred_fallthru
        _
    $region12: #{forward.3} parent=5 // pred_fallthru
      _
    %p124 = scmp.lt.s32.totalorder %s9, 2
    // Predicated region
    $region21: #{forward.3} parent=5 // pred_check
      %p125 = pneg %p124
    $region22: #{forward.3} parent=5 // pred_check_branch
      %127 = sbr.rel (%p125) target = $region24
    $region23: #{forward.3} parent=5 // pred_region
      // Predicated region
      $region25: #{forward.3} parent=23 // pred_check
        %p128 = pneg %p29
      $region26: #{forward.3} parent=23 // pred_check_branch
        %130 = sbr.rel (%p128) target = $region28
      $region27: #{forward.3} parent=23 // pred_region
        %s131 = smul.u32 50, %s9
        %p132 = scmp.lt.s32.totalorder %s131, 99
        %s133 = scalar_select %p132, %s131, 99
        %s134 = smul.addr %s133, 4
        %s135 = scalar_lea.vmem %s0, %s134
        %s136 = smul.u32 50, %s9
      $region28: #{forward.3} parent=23 // pred_fallthru
        _
    $region24: #{forward.3} parent=5 // pred_fallthru
      _
    %p137 = scmp.le.s32.totalorder 1, %s9
    %p138 = scmp.lt.s32.totalorder %s9, 3
    %p139 = pnand %p137, %p138
    %p140 = pneg %p139
    // Predicated region
    $region29: #{forward.3} parent=5 // pred_check
      _
    $region30: #{forward.3} parent=5 // pred_check_branch
      %142 = sbr.rel (%p139) target = $region32
    $region31: #{forward.3} parent=5 // pred_region
      %s143 = ssub.s32 %s9, 1
      %s144 = smul.u32 50, %s14
      %p145 = scmp.lt.s32.totalorder %s144, 99
      %s146 = scalar_select %p145, %s144, 99
      %s147 = smul.addr %s146, 4
      %s148 = scalar_lea.vmem %s0, %s147
      %p149 = pneg %p35
      %p150 = pneg %p32
      %p151 = pneg %p56
      %p152 = pneg %p53
      %p153 = pneg %p77
      %p154 = pneg %p74
      %p155 = pneg %p103
      %p156 = pneg %p100
      %s157 = smul.u32 50, %s14
      %p158 = scmp.lt.s32.totalorder %s157, 99
      %s159 = scalar_select %p158, %s157, 99
      %s160 = smul.addr %s159, 4
      %s161 = scalar_lea.vmem %s3, %s160
      %s162 = smul.u32 50, %s14
      %p163 = scmp.lt.s32.totalorder %s162, 99
      %s164 = scalar_select %p163, %s162, 99
      %s165 = smul.addr %s164, 4
      %s166 = scalar_lea.vmem %s0, %s165
      %s167 = smul.u32 50, %s14
      %s168 = smul.u32 50, %s14
      %p169 = scmp.lt.s32.totalorder %s168, 99
      %s170 = scalar_select %p169, %s168, 99
      %s171 = smul.addr %s170, 4
      %s172 = scalar_lea.vmem %s3, %s171
      %s173 = smul.u32 50, %s14
      %v175 = vld [vmem:[%s166] sm:$0xf]
      %v176 = vld [vmem:[%s166 + $0x4] sm:$0xf]
      %v177 = vld [vmem:[%s166 + $0x8] sm:$0xf]
      %v178 = vld [vmem:[%s166 + $0xc] sm:$0xf]
      %v179 = vld [vmem:[%s166 + $0x10] sm:$0xf]
      %v180 = vld [vmem:[%s166 + $0x14] sm:$0xf]
      %v181 = vld [vmem:[%s166 + $0x18] sm:$0xf]
      %v182 = vld [vmem:[%s166 + $0x1c] sm:$0xf]
      %v183 = vld [vmem:[%s166 + $0x20] sm:$0xf]
      %v184 = vld [vmem:[%s166 + $0x24] sm:$0xf]
      %v185 = vld [vmem:[%s166 + $0x28] sm:$0xf]
      %v186 = vld [vmem:[%s166 + $0x2c] sm:$0xf]
      %v187 = vld [vmem:[%s166 + $0x30] sm:$0xf]
      %v188 = vld [vmem:[%s166 + $0x34] sm:$0xf]
      %v189 = vld [vmem:[%s166 + $0x38] sm:$0xf]
      %v190 = vld [vmem:[%s166 + $0x3c] sm:$0xf]
      %v191 = vld [vmem:[%s166 + $0x40] sm:$0xf]
      %v192 = vld [vmem:[%s166 + $0x44] sm:$0xf]
      %v193 = vld [vmem:[%s166 + $0x48] sm:$0xf]
      %v194 = vld [vmem:[%s166 + $0x4c] sm:$0xf]
      %v195 = vld [vmem:[%s166 + $0x50] sm:$0xf]
      %v196 = vld [vmem:[%s166 + $0x54] sm:$0xf]
      %v197 = vld [vmem:[%s166 + $0x58] sm:$0xf]
      %v198 = vld [vmem:[%s166 + $0x5c] sm:$0xf]
      %v199 = vld [vmem:[%s166 + $0x60] sm:$0xf]
      %v200 = vld [vmem:[%s166 + $0x64] sm:$0xf]
      %v201 = vld [vmem:[%s166 + $0x68] sm:$0xf]
      %v202 = vld [vmem:[%s166 + $0x6c] sm:$0xf]
      %v203 = vld [vmem:[%s166 + $0x70] sm:$0xf]
      %v204 = vld [vmem:[%s166 + $0x74] sm:$0xf]
      %v205 = vld [vmem:[%s166 + $0x78] sm:$0xf]
      %v206 = vld [vmem:[%s166 + $0x7c] sm:$0xf]
      %v207 = vld [vmem:[%s166 + $0x80] sm:$0xf]
      %v208 = vld [vmem:[%s166 + $0x84] sm:$0xf]
      %v209 = vld [vmem:[%s166 + $0x88] sm:$0xf]
      %v210 = vld [vmem:[%s166 + $0x8c] sm:$0xf]
      %v211 = vld [vmem:[%s166 + $0x90] sm:$0xf]
      %v212 = vld [vmem:[%s166 + $0x94] sm:$0xf]
      %v213 = vld [vmem:[%s166 + $0x98] sm:$0xf]
      %v214 = vld [vmem:[%s166 + $0x9c] sm:$0xf]
      %v215 = vld [vmem:[%s166 + $0xa0] sm:$0xf]
      %v216 = vld [vmem:[%s166 + $0xa4] sm:$0xf]
      %v217 = vld [vmem:[%s166 + $0xa8] sm:$0xf]
      %v218 = vld [vmem:[%s166 + $0xac] sm:$0xf]
      %v219 = vld [vmem:[%s166 + $0xb0] sm:$0xf]
      %v220 = vld [vmem:[%s166 + $0xb4] sm:$0xf]
      %v221 = vld [vmem:[%s166 + $0xb8] sm:$0xf]
      %v222 = vld [vmem:[%s166 + $0xbc] sm:$0xf]
      %v223 = vld [vmem:[%s166 + $0xc0] sm:$0xf]
      %v224 = vld [vmem:[%s166 + $0xc4] sm:$0xf]
      %v225 = vld [vmem:[%s1] sm:$0xf]
      %v226 = vld [vmem:[%s1 + $0x4] sm:$0xf]
      %v227 = vld [vmem:[%s1 + $0x8] sm:$0xf]
      %v228 = vld [vmem:[%s1 + $0xc] sm:$0xf]
      %v229 = vld [vmem:[%s1 + $0x10] sm:$0xf]
      %v230 = vld [vmem:[%s1 + $0x14] sm:$0xf]
      %v231 = vld [vmem:[%s1 + $0x18] sm:$0xf]
      %v232 = vld [vmem:[%s1 + $0x1c] sm:$0xf]
      %v233 = vld [vmem:[%s2] sm:$0x1]
      %v235 = vperm.slane %v233, 0
      %v287 = vunpack.c.l.b16 %v175
      %v288 = vunpack.c.l.b16 %v176
      %v289 = vunpack.c.l.b16 %v177
      %v290 = vunpack.c.l.b16 %v178
      %v291 = vunpack.c.l.b16 %v179
      %v292 = vunpack.c.l.b16 %v180
      %v293 = vunpack.c.l.b16 %v181
      %v294 = vunpack.c.l.b16 %v182
      %v295 = vunpack.c.l.b16 %v183
      %v296 = vunpack.c.l.b16 %v184
      %v297 = vunpack.c.l.b16 %v185
      %v298 = vunpack.c.l.b16 %v186
      %v299 = vunpack.c.l.b16 %v187
      %v300 = vunpack.c.l.b16 %v188
      %v301 = vunpack.c.l.b16 %v189
      %v302 = vunpack.c.l.b16 %v190
      %v303 = vunpack.c.l.b16 %v191
      %v304 = vunpack.c.l.b16 %v192
      %v305 = vunpack.c.l.b16 %v193
      %v306 = vunpack.c.l.b16 %v194
      %v307 = vunpack.c.l.b16 %v195
      %v308 = vunpack.c.l.b16 %v196
      %v309 = vunpack.c.l.b16 %v197
      %v310 = vunpack.c.l.b16 %v198
      %v311 = vunpack.c.l.b16 %v199
      %v312 = vunpack.c.l.b16 %v200
      %v313 = vunpack.c.l.b16 %v201
      %v314 = vunpack.c.l.b16 %v202
      %v315 = vunpack.c.l.b16 %v203
      %v316 = vunpack.c.l.b16 %v204
      %v317 = vunpack.c.l.b16 %v205
      %v318 = vunpack.c.l.b16 %v206
      %v319 = vunpack.c.l.b16 %v207
      %v320 = vunpack.c.l.b16 %v208
      %v321 = vunpack.c.l.b16 %v209
      %v322 = vunpack.c.l.b16 %v210
      %v323 = vunpack.c.l.b16 %v211
      %v324 = vunpack.c.l.b16 %v212
      %v325 = vunpack.c.l.b16 %v213
      %v326 = vunpack.c.l.b16 %v214
      %v327 = vunpack.c.l.b16 %v215
      %v328 = vunpack.c.l.b16 %v216
      %v329 = vunpack.c.l.b16 %v217
      %v330 = vunpack.c.l.b16 %v218
      %v331 = vunpack.c.l.b16 %v219
      %v332 = vunpack.c.l.b16 %v220
      %v333 = vunpack.c.l.b16 %v221
      %v334 = vunpack.c.l.b16 %v222
      %v335 = vunpack.c.l.b16 %v223
      %v336 = vunpack.c.l.b16 %v224
      %v337 = vpack.c.b16 %v288, %v287
      %v338 = vpack.c.b16 %v290, %v289
      %v339 = vpack.c.b16 %v292, %v291
      %v340 = vpack.c.b16 %v294, %v293
      %v341 = vpack.c.b16 %v296, %v295
      %v342 = vpack.c.b16 %v298, %v297
      %v343 = vpack.c.b16 %v300, %v299
      %v344 = vpack.c.b16 %v302, %v301
      %v345 = vpack.c.b16 %v304, %v303
      %v346 = vpack.c.b16 %v306, %v305
      %v347 = vpack.c.b16 %v308, %v307
      %v348 = vpack.c.b16 %v310, %v309
      %v349 = vpack.c.b16 %v312, %v311
      %v350 = vpack.c.b16 %v314, %v313
      %v351 = vpack.c.b16 %v316, %v315
      %v352 = vpack.c.b16 %v318, %v317
      %v353 = vpack.c.b16 %v320, %v319
      %v354 = vpack.c.b16 %v322, %v321
      %v355 = vpack.c.b16 %v324, %v323
      %v356 = vpack.c.b16 %v326, %v325
      %v357 = vpack.c.b16 %v328, %v327
      %v358 = vpack.c.b16 %v330, %v329
      %v359 = vpack.c.b16 %v332, %v331
      %v360 = vpack.c.b16 %v334, %v333
      %v361 = vpack.c.b16 %v336, %v335
      %v370 = vunpack.c.l.b16 %v225
      %v371 = vunpack.c.l.b16 %v226
      %v372 = vunpack.c.l.b16 %v227
      %v373 = vunpack.c.l.b16 %v228
      %v374 = vunpack.c.l.b16 %v229
      %v375 = vunpack.c.l.b16 %v230
      %v376 = vunpack.c.l.b16 %v231
      %v377 = vunpack.c.l.b16 %v232
      %v378 = vpack.c.b16 %v371, %v370
      %v379 = vpack.c.b16 %v373, %v372
      %v380 = vpack.c.b16 %v375, %v374
      %v381 = vpack.c.b16 %v377, %v376
      %vm386 = vcmask 523264
      %v388 = vsel %vm386, %v337, 0
      %v391 = vsel %vm386, %v338, 0
      %v394 = vsel %vm386, %v339, 0
      %v397 = vsel %vm386, %v340, 0
      %v400 = vsel %vm386, %v341, 0
      %v403 = vsel %vm386, %v342, 0
      %v406 = vsel %vm386, %v343, 0
      %v409 = vsel %vm386, %v344, 0
      %v412 = vsel %vm386, %v345, 0
      %v415 = vsel %vm386, %v346, 0
      %v418 = vsel %vm386, %v347, 0
      %v421 = vsel %vm386, %v348, 0
      %v424 = vsel %vm386, %v349, 0
      %v427 = vsel %vm386, %v350, 0
      %v430 = vsel %vm386, %v351, 0
      %v433 = vsel %vm386, %v352, 0
      %v436 = vsel %vm386, %v353, 0
      %v439 = vsel %vm386, %v354, 0
      %v442 = vsel %vm386, %v355, 0
      %v445 = vsel %vm386, %v356, 0
      %v448 = vsel %vm386, %v357, 0
      %v451 = vsel %vm386, %v358, 0
      %v454 = vsel %vm386, %v359, 0
      %v457 = vsel %vm386, %v360, 0
      %v460 = vsel %vm386, %v361, 0
      %462 = vmatpush.bf16.msra.mxu0 0
      %463 = vmatpush.bf16.msra.mxu0 0
      %464 = vmatpush.bf16.msra.mxu0 0
      %465 = vmatpush.bf16.msra.mxu0 0
      %466 = vmatpush.bf16.msra.mxu0 %v381
      %467 = vmatpush.bf16.msra.mxu0 %v380
      %468 = vmatpush.bf16.msra.mxu0 %v379
      %469 = vmatpush.bf16.msra.mxu0 %v378
      %470 = vmatmul.bf16.gmra.mxu0 %v388
      %v471 = vpop.f32.mrf.mxu0
      %v472 = vadd.f32 %v235, %v471
      %v473 = vpop.f32.mrf.mxu0
      %v474 = vadd.f32 %v235, %v473
      %475 = vmatmul.bf16.gmra.mxu0 %v391
      %v476 = vpop.f32.mrf.mxu0
      %v477 = vadd.f32 %v235, %v476
      %v478 = vpop.f32.mrf.mxu0
      %v479 = vadd.f32 %v235, %v478
      %480 = vmatmul.bf16.gmra.mxu0 %v394
      %v481 = vpop.f32.mrf.mxu0
      %v482 = vadd.f32 %v235, %v481
      %v483 = vpop.f32.mrf.mxu0
      %v484 = vadd.f32 %v235, %v483
      %485 = vmatmul.bf16.gmra.mxu0 %v397
      %v486 = vpop.f32.mrf.mxu0
      %v487 = vadd.f32 %v235, %v486
      %v488 = vpop.f32.mrf.mxu0
      %v489 = vadd.f32 %v235, %v488
      %490 = vmatmul.bf16.gmra.mxu0 %v400
      %v491 = vpop.f32.mrf.mxu0
      %v492 = vadd.f32 %v235, %v491
      %v493 = vpop.f32.mrf.mxu0
      %v494 = vadd.f32 %v235, %v493
      %495 = vmatmul.bf16.gmra.mxu0 %v403
      %v496 = vpop.f32.mrf.mxu0
      %v497 = vadd.f32 %v235, %v496
      %v498 = vpop.f32.mrf.mxu0
      %v499 = vadd.f32 %v235, %v498
      %500 = vmatmul.bf16.gmra.mxu0 %v406
      %v501 = vpop.f32.mrf.mxu0
      %v502 = vadd.f32 %v235, %v501
      %v503 = vpop.f32.mrf.mxu0
      %v504 = vadd.f32 %v235, %v503
      %505 = vmatmul.bf16.gmra.mxu0 %v409
      %v506 = vpop.f32.mrf.mxu0
      %v507 = vadd.f32 %v235, %v506
      %v508 = vpop.f32.mrf.mxu0
      %v509 = vadd.f32 %v235, %v508
      %510 = vmatmul.bf16.gmra.mxu0 %v412
      %v511 = vpop.f32.mrf.mxu0
      %v512 = vadd.f32 %v235, %v511
      %v513 = vpop.f32.mrf.mxu0
      %v514 = vadd.f32 %v235, %v513
      %515 = vmatmul.bf16.gmra.mxu0 %v415
      %v516 = vpop.f32.mrf.mxu0
      %v517 = vadd.f32 %v235, %v516
      %v518 = vpop.f32.mrf.mxu0
      %v519 = vadd.f32 %v235, %v518
      %520 = vmatmul.bf16.gmra.mxu0 %v418
      %v521 = vpop.f32.mrf.mxu0
      %v522 = vadd.f32 %v235, %v521
      %v523 = vpop.f32.mrf.mxu0
      %v524 = vadd.f32 %v235, %v523
      %525 = vmatmul.bf16.gmra.mxu0 %v421
      %v526 = vpop.f32.mrf.mxu0
      %v527 = vadd.f32 %v235, %v526
      %v528 = vpop.f32.mrf.mxu0
      %v529 = vadd.f32 %v235, %v528
      %530 = vmatmul.bf16.gmra.mxu0 %v424
      %v531 = vpop.f32.mrf.mxu0
      %v532 = vadd.f32 %v235, %v531
      %v533 = vpop.f32.mrf.mxu0
      %v534 = vadd.f32 %v235, %v533
      %535 = vmatmul.bf16.gmra.mxu0 %v427
      %v536 = vpop.f32.mrf.mxu0
      %v537 = vadd.f32 %v235, %v536
      %v538 = vpop.f32.mrf.mxu0
      %v539 = vadd.f32 %v235, %v538
      %540 = vmatmul.bf16.gmra.mxu0 %v430
      %v541 = vpop.f32.mrf.mxu0
      %v542 = vadd.f32 %v235, %v541
      %v543 = vpop.f32.mrf.mxu0
      %v544 = vadd.f32 %v235, %v543
      %545 = vmatmul.bf16.gmra.mxu0 %v433
      %v546 = vpop.f32.mrf.mxu0
      %v547 = vadd.f32 %v235, %v546
      %v548 = vpop.f32.mrf.mxu0
      %v549 = vadd.f32 %v235, %v548
      %550 = vmatmul.bf16.gmra.mxu0 %v436
      %v551 = vpop.f32.mrf.mxu0
      %v552 = vadd.f32 %v235, %v551
      %v553 = vpop.f32.mrf.mxu0
      %v554 = vadd.f32 %v235, %v553
      %555 = vmatmul.bf16.gmra.mxu0 %v439
      %v556 = vpop.f32.mrf.mxu0
      %v557 = vadd.f32 %v235, %v556
      %v558 = vpop.f32.mrf.mxu0
      %v559 = vadd.f32 %v235, %v558
      %560 = vmatmul.bf16.gmra.mxu0 %v442
      %v561 = vpop.f32.mrf.mxu0
      %v562 = vadd.f32 %v235, %v561
      %v563 = vpop.f32.mrf.mxu0
      %v564 = vadd.f32 %v235, %v563
      %565 = vmatmul.bf16.gmra.mxu0 %v445
      %v566 = vpop.f32.mrf.mxu0
      %v567 = vadd.f32 %v235, %v566
      %v568 = vpop.f32.mrf.mxu0
      %v569 = vadd.f32 %v235, %v568
      %570 = vmatmul.bf16.gmra.mxu0 %v448
      %v571 = vpop.f32.mrf.mxu0
      %v572 = vadd.f32 %v235, %v571
      %v573 = vpop.f32.mrf.mxu0
      %v574 = vadd.f32 %v235, %v573
      %575 = vmatmul.bf16.gmra.mxu0 %v451
      %v576 = vpop.f32.mrf.mxu0
      %v577 = vadd.f32 %v235, %v576
      %v578 = vpop.f32.mrf.mxu0
      %v579 = vadd.f32 %v235, %v578
      %580 = vmatmul.bf16.gmra.mxu0 %v454
      %v581 = vpop.f32.mrf.mxu0
      %v582 = vadd.f32 %v235, %v581
      %v583 = vpop.f32.mrf.mxu0
      %v584 = vadd.f32 %v235, %v583
      %585 = vmatmul.bf16.gmra.mxu0 %v457
      %v586 = vpop.f32.mrf.mxu0
      %v587 = vadd.f32 %v235, %v586
      %v588 = vpop.f32.mrf.mxu0
      %v589 = vadd.f32 %v235, %v588
      %590 = vmatmul.bf16.gmra.mxu0 %v460
      %v591 = vpop.f32.mrf.mxu0
      %v592 = vadd.f32 %v235, %v591
      %v593 = vpop.f32.mrf.mxu0
      %v594 = vadd.f32 %v235, %v593
      %595 = vdwg.mxu0
      %v596 = vmax.f32 %v472, 0.0
      %v597 = vmax.f32 %v474, 0.0
      %v598 = vmax.f32 %v477, 0.0
      %v599 = vmax.f32 %v479, 0.0
      %v600 = vmax.f32 %v482, 0.0
      %v601 = vmax.f32 %v484, 0.0
      %v602 = vmax.f32 %v487, 0.0
      %v603 = vmax.f32 %v489, 0.0
      %v604 = vmax.f32 %v492, 0.0
      %v605 = vmax.f32 %v494, 0.0
      %v606 = vmax.f32 %v497, 0.0
      %v607 = vmax.f32 %v499, 0.0
      %v608 = vmax.f32 %v502, 0.0
      %v609 = vmax.f32 %v504, 0.0
      %v610 = vmax.f32 %v507, 0.0
      %v611 = vmax.f32 %v509, 0.0
      %v612 = vmax.f32 %v512, 0.0
      %v613 = vmax.f32 %v514, 0.0
      %v614 = vmax.f32 %v517, 0.0
      %v615 = vmax.f32 %v519, 0.0
      %v616 = vmax.f32 %v522, 0.0
      %v617 = vmax.f32 %v524, 0.0
      %v618 = vmax.f32 %v527, 0.0
      %v619 = vmax.f32 %v529, 0.0
      %v620 = vmax.f32 %v532, 0.0
      %v621 = vmax.f32 %v534, 0.0
      %v622 = vmax.f32 %v537, 0.0
      %v623 = vmax.f32 %v539, 0.0
      %v624 = vmax.f32 %v542, 0.0
      %v625 = vmax.f32 %v544, 0.0
      %v626 = vmax.f32 %v547, 0.0
      %v627 = vmax.f32 %v549, 0.0
      %v628 = vmax.f32 %v552, 0.0
      %v629 = vmax.f32 %v554, 0.0
      %v630 = vmax.f32 %v557, 0.0
      %v631 = vmax.f32 %v559, 0.0
      %v632 = vmax.f32 %v562, 0.0
      %v633 = vmax.f32 %v564, 0.0
      %v634 = vmax.f32 %v567, 0.0
      %v635 = vmax.f32 %v569, 0.0
      %v636 = vmax.f32 %v572, 0.0
      %v637 = vmax.f32 %v574, 0.0
      %v638 = vmax.f32 %v577, 0.0
      %v639 = vmax.f32 %v579, 0.0
      %v640 = vmax.f32 %v582, 0.0
      %v641 = vmax.f32 %v584, 0.0
      %v642 = vmax.f32 %v587, 0.0
      %v643 = vmax.f32 %v589, 0.0
      %v644 = vmax.f32 %v592, 0.0
      %v645 = vmax.f32 %v594, 0.0
      %v646 = vpack.c.bf16 %v596, %v596
      %v647 = vpack.c.bf16 %v597, %v597
      %v648 = vpack.c.bf16 %v598, %v598
      %v649 = vpack.c.bf16 %v599, %v599
      %v650 = vpack.c.bf16 %v600, %v600
      %v651 = vpack.c.bf16 %v601, %v601
      %v652 = vpack.c.bf16 %v602, %v602
      %v653 = vpack.c.bf16 %v603, %v603
      %v654 = vpack.c.bf16 %v604, %v604
      %v655 = vpack.c.bf16 %v605, %v605
      %v656 = vpack.c.bf16 %v606, %v606
      %v657 = vpack.c.bf16 %v607, %v607
      %v658 = vpack.c.bf16 %v608, %v608
      %v659 = vpack.c.bf16 %v609, %v609
      %v660 = vpack.c.bf16 %v610, %v610
      %v661 = vpack.c.bf16 %v611, %v611
      %v662 = vpack.c.bf16 %v612, %v612
      %v663 = vpack.c.bf16 %v613, %v613
      %v664 = vpack.c.bf16 %v614, %v614
      %v665 = vpack.c.bf16 %v615, %v615
      %v666 = vpack.c.bf16 %v616, %v616
      %v667 = vpack.c.bf16 %v617, %v617
      %v668 = vpack.c.bf16 %v618, %v618
      %v669 = vpack.c.bf16 %v619, %v619
      %v670 = vpack.c.bf16 %v620, %v620
      %v671 = vpack.c.bf16 %v621, %v621
      %v672 = vpack.c.bf16 %v622, %v622
      %v673 = vpack.c.bf16 %v623, %v623
      %v674 = vpack.c.bf16 %v624, %v624
      %v675 = vpack.c.bf16 %v625, %v625
      %v676 = vpack.c.bf16 %v626, %v626
      %v677 = vpack.c.bf16 %v627, %v627
      %v678 = vpack.c.bf16 %v628, %v628
      %v679 = vpack.c.bf16 %v629, %v629
      %v680 = vpack.c.bf16 %v630, %v630
      %v681 = vpack.c.bf16 %v631, %v631
      %v682 = vpack.c.bf16 %v632, %v632
      %v683 = vpack.c.bf16 %v633, %v633
      %v684 = vpack.c.bf16 %v634, %v634
      %v685 = vpack.c.bf16 %v635, %v635
      %v686 = vpack.c.bf16 %v636, %v636
      %v687 = vpack.c.bf16 %v637, %v637
      %v688 = vpack.c.bf16 %v638, %v638
      %v689 = vpack.c.bf16 %v639, %v639
      %v690 = vpack.c.bf16 %v640, %v640
      %v691 = vpack.c.bf16 %v641, %v641
      %v692 = vpack.c.bf16 %v642, %v642
      %v693 = vpack.c.bf16 %v643, %v643
      %v694 = vpack.c.bf16 %v644, %v644
      %v695 = vpack.c.bf16 %v645, %v645
      %vm696 = vcmask 257024
      %697 = vst.msk [vmem:[%s172] sm:$0xf] %vm696, %v646
      %698 = vst.msk [vmem:[%s172 + $0x4] sm:$0xf] %vm696, %v647
      %699 = vst.msk [vmem:[%s172 + $0x8] sm:$0xf] %vm696, %v648
      %700 = vst.msk [vmem:[%s172 + $0xc] sm:$0xf] %vm696, %v649
      %701 = vst.msk [vmem:[%s172 + $0x10] sm:$0xf] %vm696, %v650
      %702 = vst.msk [vmem:[%s172 + $0x14] sm:$0xf] %vm696, %v651
      %703 = vst.msk [vmem:[%s172 + $0x18] sm:$0xf] %vm696, %v652
      %704 = vst.msk [vmem:[%s172 + $0x1c] sm:$0xf] %vm696, %v653
      %705 = vst.msk [vmem:[%s172 + $0x20] sm:$0xf] %vm696, %v654
      %706 = vst.msk [vmem:[%s172 + $0x24] sm:$0xf] %vm696, %v655
      %707 = vst.msk [vmem:[%s172 + $0x28] sm:$0xf] %vm696, %v656
      %708 = vst.msk [vmem:[%s172 + $0x2c] sm:$0xf] %vm696, %v657
      %709 = vst.msk [vmem:[%s172 + $0x30] sm:$0xf] %vm696, %v658
      %710 = vst.msk [vmem:[%s172 + $0x34] sm:$0xf] %vm696, %v659
      %711 = vst.msk [vmem:[%s172 + $0x38] sm:$0xf] %vm696, %v660
      %712 = vst.msk [vmem:[%s172 + $0x3c] sm:$0xf] %vm696, %v661
      %713 = vst.msk [vmem:[%s172 + $0x40] sm:$0xf] %vm696, %v662
      %714 = vst.msk [vmem:[%s172 + $0x44] sm:$0xf] %vm696, %v663
      %715 = vst.msk [vmem:[%s172 + $0x48] sm:$0xf] %vm696, %v664
      %716 = vst.msk [vmem:[%s172 + $0x4c] sm:$0xf] %vm696, %v665
      %717 = vst.msk [vmem:[%s172 + $0x50] sm:$0xf] %vm696, %v666
      %718 = vst.msk [vmem:[%s172 + $0x54] sm:$0xf] %vm696, %v667
      %719 = vst.msk [vmem:[%s172 + $0x58] sm:$0xf] %vm696, %v668
      %720 = vst.msk [vmem:[%s172 + $0x5c] sm:$0xf] %vm696, %v669
      %721 = vst.msk [vmem:[%s172 + $0x60] sm:$0xf] %vm696, %v670
      %722 = vst.msk [vmem:[%s172 + $0x64] sm:$0xf] %vm696, %v671
      %723 = vst.msk [vmem:[%s172 + $0x68] sm:$0xf] %vm696, %v672
      %724 = vst.msk [vmem:[%s172 + $0x6c] sm:$0xf] %vm696, %v673
      %725 = vst.msk [vmem:[%s172 + $0x70] sm:$0xf] %vm696, %v674
      %726 = vst.msk [vmem:[%s172 + $0x74] sm:$0xf] %vm696, %v675
      %727 = vst.msk [vmem:[%s172 + $0x78] sm:$0xf] %vm696, %v676
      %728 = vst.msk [vmem:[%s172 + $0x7c] sm:$0xf] %vm696, %v677
      %729 = vst.msk [vmem:[%s172 + $0x80] sm:$0xf] %vm696, %v678
      %730 = vst.msk [vmem:[%s172 + $0x84] sm:$0xf] %vm696, %v679
      %731 = vst.msk [vmem:[%s172 + $0x88] sm:$0xf] %vm696, %v680
      %732 = vst.msk [vmem:[%s172 + $0x8c] sm:$0xf] %vm696, %v681
      %733 = vst.msk [vmem:[%s172 + $0x90] sm:$0xf] %vm696, %v682
      %734 = vst.msk [vmem:[%s172 + $0x94] sm:$0xf] %vm696, %v683
      %735 = vst.msk [vmem:[%s172 + $0x98] sm:$0xf] %vm696, %v684
      %736 = vst.msk [vmem:[%s172 + $0x9c] sm:$0xf] %vm696, %v685
      %737 = vst.msk [vmem:[%s172 + $0xa0] sm:$0xf] %vm696, %v686
      %738 = vst.msk [vmem:[%s172 + $0xa4] sm:$0xf] %vm696, %v687
      %739 = vst.msk [vmem:[%s172 + $0xa8] sm:$0xf] %vm696, %v688
      %740 = vst.msk [vmem:[%s172 + $0xac] sm:$0xf] %vm696, %v689
      %741 = vst.msk [vmem:[%s172 + $0xb0] sm:$0xf] %vm696, %v690
      %742 = vst.msk [vmem:[%s172 + $0xb4] sm:$0xf] %vm696, %v691
      %743 = vst.msk [vmem:[%s172 + $0xb8] sm:$0xf] %vm696, %v692
      %744 = vst.msk [vmem:[%s172 + $0xbc] sm:$0xf] %vm696, %v693
      %745 = vst.msk [vmem:[%s172 + $0xc0] sm:$0xf] %vm696, %v694
      %746 = vst.msk [vmem:[%s172 + $0xc4] sm:$0xf] %vm696, %v695
      %s747 = smul.u32 50, %s14
      %p748 = scmp.lt.s32.totalorder %s747, 99
      %s749 = scalar_select %p748, %s747, 99
      %s750 = smul.addr %s749, 4
      %s751 = scalar_lea.vmem %s3, %s750
      // Predicated region
      $region33: #{forward.3} parent=31 // pred_check
        %p752 = pneg %p100
      $region34: #{forward.3} parent=31 // pred_check_branch
        %754 = sbr.rel (%p752) target = $region36
      $region35: #{forward.3} parent=31 // pred_region
        %s755 = smul.u32 50, %s14
      $region36: #{forward.3} parent=31 // pred_fallthru
        _
    $region32: #{forward.3} parent=5 // pred_fallthru
      _
    %p756 = scmp.le.s32.totalorder 2, %s9
    // Predicated region
    $region37: #{forward.3} parent=5 // pred_check
      %p757 = pneg %p756
    $region38: #{forward.3} parent=5 // pred_check_branch
      %759 = sbr.rel (%p757) target = $region40
    $region39: #{forward.3} parent=5 // pred_region
      %s760 = ssub.s32 %s9, 2
      // Predicated region
      $region41: #{forward.3} parent=39 // pred_check
        %p761 = pneg %p106
      $region42: #{forward.3} parent=39 // pred_check_branch
        %763 = sbr.rel (%p761) target = $region44
      $region43: #{forward.3} parent=39 // pred_region
        %s764 = smul.u32 50, %s15
        %p765 = scmp.lt.s32.totalorder %s764, 99
        %s766 = scalar_select %p765, %s764, 99
        %s767 = smul.addr %s766, 4
        %s768 = scalar_lea.vmem %s3, %s767
      $region44: #{forward.3} parent=39 // pred_fallthru
        _
    $region40: #{forward.3} parent=5 // pred_fallthru
      _
  $region6: #{forward.3} parent=0 // loop_footer
    %s13 = sadd.s32 1, %s9
  $region7: #{forward.3} parent=0 // loop_footer_branch
    %8 = sbr.rel target = $region3
  $region8: #{forward.3} parent=0 // loop_exit
    _

// kernel: forward.4
$region0: #{forward.4}
  #allocation0 [shape = 'u32[]', space=smem, size = 0x4, offset = 0x4, fixed_abs, tag = 'smem constant byte address 0x4 - core index']
  #allocation1 [shape = 'u32[72,128]{1,0:T(1,128)}', space=vmem, size = 0x9000, scoped, tag = 'internal scratch']
  #allocation2 [shape = 'bf16[192,64]{1,0:T(8,128)(2,1)}', space=vmem, size = 0xc000, scoped, tag = 'scratch operand']
  %s0 = inlined_call_operand.vmem [shape: bf16[192,512], index: 0, kind: input, shape index: {}]
  %s1 = inlined_call_operand.vmem [shape: bf16[512,64], index: 1, kind: input, shape index: {}]
  %s2 = inlined_call_operand.vmem [shape: f32[1,64], index: 2, kind: input, shape index: {}]
  %s3 = inlined_call_operand.vmem [shape: bf16[9,64,64], index: 3, kind: input, shape index: {}]
  %s4 = inlined_call_operand.vmem [shape: f32[1,64], index: 4, kind: input, shape index: {}]
  %s5 = inlined_call_operand.vmem [shape: bf16[168,64], index: 5, kind: output, shape index: {}]
  %s6 = sld [smem:[#allocation0]]
  $region30: #{forward.4} parent=0
    _
  %s8 = ssub.s32 1, %s6
  %s9 = scalar_select 0, %s8, %s6
  // Predicated region
  $region2: #{forward.4} parent=0 // pred_check
    _
  $region3: #{forward.4} parent=0 // pred_check_branch
    %11 = sbr.rel (0) target = $region5
  $region4: #{forward.4} parent=0 // pred_region
    _
  $region5: #{forward.4} parent=0 // pred_fallthru
    _
  // Predicated region
  $region6: #{forward.4} parent=0 // pred_check
    _
  $region7: #{forward.4} parent=0 // pred_check_branch
    %13 = sbr.rel (0) target = $region9
  $region8: #{forward.4} parent=0 // pred_region
    _
  $region9: #{forward.4} parent=0 // pred_fallthru
    _
  // Predicated region
  $region10: #{forward.4} parent=0 // pred_check
    _
  $region11: #{forward.4} parent=0 // pred_check_branch
    %15 = sbr.rel (0) target = $region13
  $region12: #{forward.4} parent=0 // pred_region
    _
  $region13: #{forward.4} parent=0 // pred_fallthru
    _
  // Predicated region
  $region14: #{forward.4} parent=0 // pred_check
    _
  $region15: #{forward.4} parent=0 // pred_check_branch
    %17 = sbr.rel (0) target = $region17
  $region16: #{forward.4} parent=0 // pred_region
    _
  $region17: #{forward.4} parent=0 // pred_fallthru
    _
  // Predicated region
  $region18: #{forward.4} parent=0 // pred_check
    _
  $region19: #{forward.4} parent=0 // pred_check_branch
    %19 = sbr.rel (0) target = $region21
  $region20: #{forward.4} parent=0 // pred_region
    _
  $region21: #{forward.4} parent=0 // pred_fallthru
    _
  %v21 = vld [vmem:[%s0] sm:$0xff]
  %v22 = vld [vmem:[%s0 + $0x8] sm:$0xff]
  %v23 = vld [vmem:[%s0 + $0x10] sm:$0xff]
  %v24 = vld [vmem:[%s0 + $0x18] sm:$0xff]
  %v25 = vld [vmem:[%s0 + $0x20] sm:$0xff]
  %v26 = vld [vmem:[%s0 + $0x28] sm:$0xff]
  %v27 = vld [vmem:[%s0 + $0x30] sm:$0xff]
  %v28 = vld [vmem:[%s0 + $0x38] sm:$0xff]
  %v29 = vld [vmem:[%s0 + $0x40] sm:$0xff]
  %v30 = vld [vmem:[%s0 + $0x48] sm:$0xff]
  %v31 = vld [vmem:[%s0 + $0x50] sm:$0xff]
  %v32 = vld [vmem:[%s0 + $0x58] sm:$0xff]
  %v33 = vld [vmem:[%s0 + $0x60] sm:$0xff]
  %v34 = vld [vmem:[%s0 + $0x68] sm:$0xff]
  %v35 = vld [vmem:[%s0 + $0x70] sm:$0xff]
  %v36 = vld [vmem:[%s0 + $0x78] sm:$0xff]
  %v37 = vld [vmem:[%s0 + $0x80] sm:$0xff]
  %v38 = vld [vmem:[%s0 + $0x88] sm:$0xff]
  %v39 = vld [vmem:[%s0 + $0x90] sm:$0xff]
  %v40 = vld [vmem:[%s0 + $0x98] sm:$0xff]
  %v41 = vld [vmem:[%s0 + $0xa0] sm:$0xff]
  %v42 = vld [vmem:[%s0 + $0xa8] sm:$0xff]
  %v43 = vld [vmem:[%s0 + $0xb0] sm:$0xff]
  %v44 = vld [vmem:[%s0 + $0xb8] sm:$0xff]
  %v45 = vld [vmem:[%s0 + $0xc0] sm:$0xff]
  %v46 = vld [vmem:[%s0 + $0xc8] sm:$0xff]
  %v47 = vld [vmem:[%s0 + $0xd0] sm:$0xff]
  %v48 = vld [vmem:[%s0 + $0xd8] sm:$0xff]
  %v49 = vld [vmem:[%s0 + $0xe0] sm:$0xff]
  %v50 = vld [vmem:[%s0 + $0xe8] sm:$0xff]
  %v51 = vld [vmem:[%s0 + $0xf0] sm:$0xff]
  %v52 = vld [vmem:[%s0 + $0xf8] sm:$0xff]
  %v53 = vld [vmem:[%s0 + $0x100] sm:$0xff]
  %v54 = vld [vmem:[%s0 + $0x108] sm:$0xff]
  %v55 = vld [vmem:[%s0 + $0x110] sm:$0xff]
  %v56 = vld [vmem:[%s0 + $0x118] sm:$0xff]
  %v57 = vld [vmem:[%s0 + $0x120] sm:$0xff]
  %v58 = vld [vmem:[%s0 + $0x128] sm:$0xff]
  %v59 = vld [vmem:[%s0 + $0x130] sm:$0xff]
  %v60 = vld [vmem:[%s0 + $0x138] sm:$0xff]
  %v61 = vld [vmem:[%s0 + $0x140] sm:$0xff]
  %v62 = vld [vmem:[%s0 + $0x148] sm:$0xff]
  %v63 = vld [vmem:[%s0 + $0x150] sm:$0xff]
  %v64 = vld [vmem:[%s0 + $0x158] sm:$0xff]
  %v65 = vld [vmem:[%s0 + $0x160] sm:$0xff]
  %v66 = vld [vmem:[%s0 + $0x168] sm:$0xff]
  %v67 = vld [vmem:[%s0 + $0x170] sm:$0xff]
  %v68 = vld [vmem:[%s0 + $0x178] sm:$0xff]
  %v69 = vld [vmem:[%s1] sm:$0xf]
  %v70 = vld [vmem:[%s1 + $0x4] sm:$0xf]
  %v71 = vld [vmem:[%s1 + $0x8] sm:$0xf]
  %v72 = vld [vmem:[%s1 + $0xc] sm:$0xf]
  %v73 = vld [vmem:[%s1 + $0x10] sm:$0xf]
  %v74 = vld [vmem:[%s1 + $0x14] sm:$0xf]
  %v75 = vld [vmem:[%s1 + $0x18] sm:$0xf]
  %v76 = vld [vmem:[%s1 + $0x1c] sm:$0xf]
  %v77 = vld [vmem:[%s1 + $0x20] sm:$0xf]
  %v78 = vld [vmem:[%s1 + $0x24] sm:$0xf]
  %v79 = vld [vmem:[%s1 + $0x28] sm:$0xf]
  %v80 = vld [vmem:[%s1 + $0x2c] sm:$0xf]
  %v81 = vld [vmem:[%s1 + $0x30] sm:$0xf]
  %v82 = vld [vmem:[%s1 + $0x34] sm:$0xf]
  %v83 = vld [vmem:[%s1 + $0x38] sm:$0xf]
  %v84 = vld [vmem:[%s1 + $0x3c] sm:$0xf]
  %v85 = vld [vmem:[%s1 + $0x40] sm:$0xf]
  %v86 = vld [vmem:[%s1 + $0x44] sm:$0xf]
  %v87 = vld [vmem:[%s1 + $0x48] sm:$0xf]
  %v88 = vld [vmem:[%s1 + $0x4c] sm:$0xf]
  %v89 = vld [vmem:[%s1 + $0x50] sm:$0xf]
  %v90 = vld [vmem:[%s1 + $0x54] sm:$0xf]
  %v91 = vld [vmem:[%s1 + $0x58] sm:$0xf]
  %v92 = vld [vmem:[%s1 + $0x5c] sm:$0xf]
  %v93 = vld [vmem:[%s1 + $0x60] sm:$0xf]
  %v94 = vld [vmem:[%s1 + $0x64] sm:$0xf]
  %v95 = vld [vmem:[%s1 + $0x68] sm:$0xf]
  %v96 = vld [vmem:[%s1 + $0x6c] sm:$0xf]
  %v97 = vld [vmem:[%s1 + $0x70] sm:$0xf]
  %v98 = vld [vmem:[%s1 + $0x74] sm:$0xf]
  %v99 = vld [vmem:[%s1 + $0x78] sm:$0xf]
  %v100 = vld [vmem:[%s1 + $0x7c] sm:$0xf]
  %v101 = vld [vmem:[%s1 + $0x80] sm:$0xf]
  %v102 = vld [vmem:[%s1 + $0x84] sm:$0xf]
  %v103 = vld [vmem:[%s1 + $0x88] sm:$0xf]
  %v104 = vld [vmem:[%s1 + $0x8c] sm:$0xf]
  %v105 = vld [vmem:[%s1 + $0x90] sm:$0xf]
  %v106 = vld [vmem:[%s1 + $0x94] sm:$0xf]
  %v107 = vld [vmem:[%s1 + $0x98] sm:$0xf]
  %v108 = vld [vmem:[%s1 + $0x9c] sm:$0xf]
  %v109 = vld [vmem:[%s1 + $0xa0] sm:$0xf]
  %v110 = vld [vmem:[%s1 + $0xa4] sm:$0xf]
  %v111 = vld [vmem:[%s1 + $0xa8] sm:$0xf]
  %v112 = vld [vmem:[%s1 + $0xac] sm:$0xf]
  %v113 = vld [vmem:[%s1 + $0xb0] sm:$0xf]
  %v114 = vld [vmem:[%s1 + $0xb4] sm:$0xf]
  %v115 = vld [vmem:[%s1 + $0xb8] sm:$0xf]
  %v116 = vld [vmem:[%s1 + $0xbc] sm:$0xf]
  %v117 = vld [vmem:[%s1 + $0xc0] sm:$0xf]
  %v118 = vld [vmem:[%s1 + $0xc4] sm:$0xf]
  %v119 = vld [vmem:[%s1 + $0xc8] sm:$0xf]
  %v120 = vld [vmem:[%s1 + $0xcc] sm:$0xf]
  %v121 = vld [vmem:[%s1 + $0xd0] sm:$0xf]
  %v122 = vld [vmem:[%s1 + $0xd4] sm:$0xf]
  %v123 = vld [vmem:[%s1 + $0xd8] sm:$0xf]
  %v124 = vld [vmem:[%s1 + $0xdc] sm:$0xf]
  %v125 = vld [vmem:[%s1 + $0xe0] sm:$0xf]
  %v126 = vld [vmem:[%s1 + $0xe4] sm:$0xf]
  %v127 = vld [vmem:[%s1 + $0xe8] sm:$0xf]
  %v128 = vld [vmem:[%s1 + $0xec] sm:$0xf]
  %v129 = vld [vmem:[%s1 + $0xf0] sm:$0xf]
  %v130 = vld [vmem:[%s1 + $0xf4] sm:$0xf]
  %v131 = vld [vmem:[%s1 + $0xf8] sm:$0xf]
  %v132 = vld [vmem:[%s1 + $0xfc] sm:$0xf]
  %v133 = vld [vmem:[%s2] sm:$0x1]
  %v135 = vperm.slane %v133, 0
  %v185 = vunpack.c.l.b16 %v21
  %v186 = vunpack.c.h.b16 %v21
  %v187 = vunpack.c.l.b16 %v22
  %v188 = vunpack.c.h.b16 %v22
  %v189 = vunpack.c.l.b16 %v23
  %v190 = vunpack.c.h.b16 %v23
  %v191 = vunpack.c.l.b16 %v24
  %v192 = vunpack.c.h.b16 %v24
  %v193 = vunpack.c.l.b16 %v25
  %v194 = vunpack.c.h.b16 %v25
  %v195 = vunpack.c.l.b16 %v26
  %v196 = vunpack.c.h.b16 %v26
  %v197 = vunpack.c.l.b16 %v27
  %v198 = vunpack.c.h.b16 %v27
  %v199 = vunpack.c.l.b16 %v28
  %v200 = vunpack.c.h.b16 %v28
  %v201 = vunpack.c.l.b16 %v29
  %v202 = vunpack.c.h.b16 %v29
  %v203 = vunpack.c.l.b16 %v30
  %v204 = vunpack.c.h.b16 %v30
  %v205 = vunpack.c.l.b16 %v31
  %v206 = vunpack.c.h.b16 %v31
  %v207 = vunpack.c.l.b16 %v32
  %v208 = vunpack.c.h.b16 %v32
  %v209 = vunpack.c.l.b16 %v33
  %v210 = vunpack.c.h.b16 %v33
  %v211 = vunpack.c.l.b16 %v34
  %v212 = vunpack.c.h.b16 %v34
  %v213 = vunpack.c.l.b16 %v35
  %v214 = vunpack.c.h.b16 %v35
  %v215 = vunpack.c.l.b16 %v36
  %v216 = vunpack.c.h.b16 %v36
  %v217 = vunpack.c.l.b16 %v37
  %v218 = vunpack.c.h.b16 %v37
  %v219 = vunpack.c.l.b16 %v38
  %v220 = vunpack.c.h.b16 %v38
  %v221 = vunpack.c.l.b16 %v39
  %v222 = vunpack.c.h.b16 %v39
  %v223 = vunpack.c.l.b16 %v40
  %v224 = vunpack.c.h.b16 %v40
  %v225 = vunpack.c.l.b16 %v41
  %v226 = vunpack.c.h.b16 %v41
  %v227 = vunpack.c.l.b16 %v42
  %v228 = vunpack.c.h.b16 %v42
  %v229 = vunpack.c.l.b16 %v43
  %v230 = vunpack.c.h.b16 %v43
  %v231 = vunpack.c.l.b16 %v44
  %v232 = vunpack.c.h.b16 %v44
  %v233 = vunpack.c.l.b16 %v45
  %v234 = vunpack.c.h.b16 %v45
  %v235 = vunpack.c.l.b16 %v46
  %v236 = vunpack.c.h.b16 %v46
  %v237 = vunpack.c.l.b16 %v47
  %v238 = vunpack.c.h.b16 %v47
  %v239 = vunpack.c.l.b16 %v48
  %v240 = vunpack.c.h.b16 %v48
  %v241 = vunpack.c.l.b16 %v49
  %v242 = vunpack.c.h.b16 %v49
  %v243 = vunpack.c.l.b16 %v50
  %v244 = vunpack.c.h.b16 %v50
  %v245 = vunpack.c.l.b16 %v51
  %v246 = vunpack.c.h.b16 %v51
  %v247 = vunpack.c.l.b16 %v52
  %v248 = vunpack.c.h.b16 %v52
  %v249 = vunpack.c.l.b16 %v53
  %v250 = vunpack.c.h.b16 %v53
  %v251 = vunpack.c.l.b16 %v54
  %v252 = vunpack.c.h.b16 %v54
  %v253 = vunpack.c.l.b16 %v55
  %v254 = vunpack.c.h.b16 %v55
  %v255 = vunpack.c.l.b16 %v56
  %v256 = vunpack.c.h.b16 %v56
  %v257 = vunpack.c.l.b16 %v57
  %v258 = vunpack.c.h.b16 %v57
  %v259 = vunpack.c.l.b16 %v58
  %v260 = vunpack.c.h.b16 %v58
  %v261 = vunpack.c.l.b16 %v59
  %v262 = vunpack.c.h.b16 %v59
  %v263 = vunpack.c.l.b16 %v60
  %v264 = vunpack.c.h.b16 %v60
  %v265 = vunpack.c.l.b16 %v61
  %v266 = vunpack.c.h.b16 %v61
  %v267 = vunpack.c.l.b16 %v62
  %v268 = vunpack.c.h.b16 %v62
  %v269 = vunpack.c.l.b16 %v63
  %v270 = vunpack.c.h.b16 %v63
  %v271 = vunpack.c.l.b16 %v64
  %v272 = vunpack.c.h.b16 %v64
  %v273 = vunpack.c.l.b16 %v65
  %v274 = vunpack.c.h.b16 %v65
  %v275 = vunpack.c.l.b16 %v66
  %v276 = vunpack.c.h.b16 %v66
  %v277 = vunpack.c.l.b16 %v67
  %v278 = vunpack.c.h.b16 %v67
  %v279 = vunpack.c.l.b16 %v68
  %v280 = vunpack.c.h.b16 %v68
  %v281 = vpack.c.b16 %v189, %v185
  %v282 = vpack.c.b16 %v190, %v186
  %v283 = vpack.c.b16 %v191, %v187
  %v284 = vpack.c.b16 %v192, %v188
  %v285 = vpack.c.b16 %v197, %v193
  %v286 = vpack.c.b16 %v198, %v194
  %v287 = vpack.c.b16 %v199, %v195
  %v288 = vpack.c.b16 %v200, %v196
  %v289 = vpack.c.b16 %v205, %v201
  %v290 = vpack.c.b16 %v206, %v202
  %v291 = vpack.c.b16 %v207, %v203
  %v292 = vpack.c.b16 %v208, %v204
  %v293 = vpack.c.b16 %v213, %v209
  %v294 = vpack.c.b16 %v214, %v210
  %v295 = vpack.c.b16 %v215, %v211
  %v296 = vpack.c.b16 %v216, %v212
  %v297 = vpack.c.b16 %v221, %v217
  %v298 = vpack.c.b16 %v222, %v218
  %v299 = vpack.c.b16 %v223, %v219
  %v300 = vpack.c.b16 %v224, %v220
  %v301 = vpack.c.b16 %v229, %v225
  %v302 = vpack.c.b16 %v230, %v226
  %v303 = vpack.c.b16 %v231, %v227
  %v304 = vpack.c.b16 %v232, %v228
  %v305 = vpack.c.b16 %v237, %v233
  %v306 = vpack.c.b16 %v238, %v234
  %v307 = vpack.c.b16 %v239, %v235
  %v308 = vpack.c.b16 %v240, %v236
  %v309 = vpack.c.b16 %v245, %v241
  %v310 = vpack.c.b16 %v246, %v242
  %v311 = vpack.c.b16 %v247, %v243
  %v312 = vpack.c.b16 %v248, %v244
  %v313 = vpack.c.b16 %v253, %v249
  %v314 = vpack.c.b16 %v254, %v250
  %v315 = vpack.c.b16 %v255, %v251
  %v316 = vpack.c.b16 %v256, %v252
  %v317 = vpack.c.b16 %v261, %v257
  %v318 = vpack.c.b16 %v262, %v258
  %v319 = vpack.c.b16 %v263, %v259
  %v320 = vpack.c.b16 %v264, %v260
  %v321 = vpack.c.b16 %v269, %v265
  %v322 = vpack.c.b16 %v270, %v266
  %v323 = vpack.c.b16 %v271, %v267
  %v324 = vpack.c.b16 %v272, %v268
  %v325 = vpack.c.b16 %v277, %v273
  %v326 = vpack.c.b16 %v278, %v274
  %v327 = vpack.c.b16 %v279, %v275
  %v328 = vpack.c.b16 %v280, %v276
  %v441 = vunpack.c.l.b16 %v69
  %v442 = vunpack.c.l.b16 %v70
  %v443 = vunpack.c.l.b16 %v71
  %v444 = vunpack.c.l.b16 %v72
  %v445 = vunpack.c.l.b16 %v73
  %v446 = vunpack.c.l.b16 %v74
  %v447 = vunpack.c.l.b16 %v75
  %v448 = vunpack.c.l.b16 %v76
  %v449 = vunpack.c.l.b16 %v77
  %v450 = vunpack.c.l.b16 %v78
  %v451 = vunpack.c.l.b16 %v79
  %v452 = vunpack.c.l.b16 %v80
  %v453 = vunpack.c.l.b16 %v81
  %v454 = vunpack.c.l.b16 %v82
  %v455 = vunpack.c.l.b16 %v83
  %v456 = vunpack.c.l.b16 %v84
  %v457 = vunpack.c.l.b16 %v85
  %v458 = vunpack.c.l.b16 %v86
  %v459 = vunpack.c.l.b16 %v87
  %v460 = vunpack.c.l.b16 %v88
  %v461 = vunpack.c.l.b16 %v89
  %v462 = vunpack.c.l.b16 %v90
  %v463 = vunpack.c.l.b16 %v91
  %v464 = vunpack.c.l.b16 %v92
  %v465 = vunpack.c.l.b16 %v93
  %v466 = vunpack.c.l.b16 %v94
  %v467 = vunpack.c.l.b16 %v95
  %v468 = vunpack.c.l.b16 %v96
  %v469 = vunpack.c.l.b16 %v97
  %v470 = vunpack.c.l.b16 %v98
  %v471 = vunpack.c.l.b16 %v99
  %v472 = vunpack.c.l.b16 %v100
  %v473 = vunpack.c.l.b16 %v101
  %v474 = vunpack.c.l.b16 %v102
  %v475 = vunpack.c.l.b16 %v103
  %v476 = vunpack.c.l.b16 %v104
  %v477 = vunpack.c.l.b16 %v105
  %v478 = vunpack.c.l.b16 %v106
  %v479 = vunpack.c.l.b16 %v107
  %v480 = vunpack.c.l.b16 %v108
  %v481 = vunpack.c.l.b16 %v109
  %v482 = vunpack.c.l.b16 %v110
  %v483 = vunpack.c.l.b16 %v111
  %v484 = vunpack.c.l.b16 %v112
  %v485 = vunpack.c.l.b16 %v113
  %v486 = vunpack.c.l.b16 %v114
  %v487 = vunpack.c.l.b16 %v115
  %v488 = vunpack.c.l.b16 %v116
  %v489 = vunpack.c.l.b16 %v117
  %v490 = vunpack.c.l.b16 %v118
  %v491 = vunpack.c.l.b16 %v119
  %v492 = vunpack.c.l.b16 %v120
  %v493 = vunpack.c.l.b16 %v121
  %v494 = vunpack.c.l.b16 %v122
  %v495 = vunpack.c.l.b16 %v123
  %v496 = vunpack.c.l.b16 %v124
  %v497 = vunpack.c.l.b16 %v125
  %v498 = vunpack.c.l.b16 %v126
  %v499 = vunpack.c.l.b16 %v127
  %v500 = vunpack.c.l.b16 %v128
  %v501 = vunpack.c.l.b16 %v129
  %v502 = vunpack.c.l.b16 %v130
  %v503 = vunpack.c.l.b16 %v131
  %v504 = vunpack.c.l.b16 %v132
  %v505 = vpack.c.b16 %v442, %v441
  %v506 = vpack.c.b16 %v444, %v443
  %v507 = vpack.c.b16 %v446, %v445
  %v508 = vpack.c.b16 %v448, %v447
  %v509 = vpack.c.b16 %v450, %v449
  %v510 = vpack.c.b16 %v452, %v451
  %v511 = vpack.c.b16 %v454, %v453
  %v512 = vpack.c.b16 %v456, %v455
  %v513 = vpack.c.b16 %v458, %v457
  %v514 = vpack.c.b16 %v460, %v459
  %v515 = vpack.c.b16 %v462, %v461
  %v516 = vpack.c.b16 %v464, %v463
  %v517 = vpack.c.b16 %v466, %v465
  %v518 = vpack.c.b16 %v468, %v467
  %v519 = vpack.c.b16 %v470, %v469
  %v520 = vpack.c.b16 %v472, %v471
  %v521 = vpack.c.b16 %v474, %v473
  %v522 = vpack.c.b16 %v476, %v475
  %v523 = vpack.c.b16 %v478, %v477
  %v524 = vpack.c.b16 %v480, %v479
  %v525 = vpack.c.b16 %v482, %v481
  %v526 = vpack.c.b16 %v484, %v483
  %v527 = vpack.c.b16 %v486, %v485
  %v528 = vpack.c.b16 %v488, %v487
  %v529 = vpack.c.b16 %v490, %v489
  %v530 = vpack.c.b16 %v492, %v491
  %v531 = vpack.c.b16 %v494, %v493
  %v532 = vpack.c.b16 %v496, %v495
  %v533 = vpack.c.b16 %v498, %v497
  %v534 = vpack.c.b16 %v500, %v499
  %v535 = vpack.c.b16 %v502, %v501
  %v536 = vpack.c.b16 %v504, %v503
  %569 = vmatpush.bf16.msra.mxu0 %v512
  %570 = vmatpush.bf16.msra.mxu0 %v511
  %571 = vmatpush.bf16.msra.mxu0 %v510
  %572 = vmatpush.bf16.msra.mxu0 %v509
  %573 = vmatpush.bf16.msra.mxu0 %v508
  %574 = vmatpush.bf16.msra.mxu0 %v507
  %575 = vmatpush.bf16.msra.mxu0 %v506
  %576 = vmatpush.bf16.msra.mxu0 %v505
  %577 = vmatmul.bf16.gmra.mxu0 %v281
  %v578 = vpop.f32.mrf.mxu0
  %v579 = vadd.f32 %v135, %v578
  %v580 = vpop.f32.mrf.mxu0
  %v581 = vadd.f32 %v135, %v580
  %582 = vmatmul.bf16.gmra.mxu0 %v285
  %v583 = vpop.f32.mrf.mxu0
  %v584 = vadd.f32 %v135, %v583
  %v585 = vpop.f32.mrf.mxu0
  %v586 = vadd.f32 %v135, %v585
  %587 = vmatmul.bf16.gmra.mxu0 %v289
  %v588 = vpop.f32.mrf.mxu0
  %v589 = vadd.f32 %v135, %v588
  %v590 = vpop.f32.mrf.mxu0
  %v591 = vadd.f32 %v135, %v590
  %592 = vmatmul.bf16.gmra.mxu0 %v293
  %v593 = vpop.f32.mrf.mxu0
  %v594 = vadd.f32 %v135, %v593
  %v595 = vpop.f32.mrf.mxu0
  %v596 = vadd.f32 %v135, %v595
  %597 = vmatmul.bf16.gmra.mxu0 %v297
  %v598 = vpop.f32.mrf.mxu0
  %v599 = vadd.f32 %v135, %v598
  %v600 = vpop.f32.mrf.mxu0
  %v601 = vadd.f32 %v135, %v600
  %602 = vmatmul.bf16.gmra.mxu0 %v301
  %v603 = vpop.f32.mrf.mxu0
  %v604 = vadd.f32 %v135, %v603
  %v605 = vpop.f32.mrf.mxu0
  %v606 = vadd.f32 %v135, %v605
  %607 = vmatmul.bf16.gmra.mxu0 %v305
  %v608 = vpop.f32.mrf.mxu0
  %v609 = vadd.f32 %v135, %v608
  %v610 = vpop.f32.mrf.mxu0
  %v611 = vadd.f32 %v135, %v610
  %612 = vmatmul.bf16.gmra.mxu0 %v309
  %v613 = vpop.f32.mrf.mxu0
  %v614 = vadd.f32 %v135, %v613
  %v615 = vpop.f32.mrf.mxu0
  %v616 = vadd.f32 %v135, %v615
  %617 = vmatmul.bf16.gmra.mxu0 %v313
  %v618 = vpop.f32.mrf.mxu0
  %v619 = vadd.f32 %v135, %v618
  %v620 = vpop.f32.mrf.mxu0
  %v621 = vadd.f32 %v135, %v620
  %622 = vmatmul.bf16.gmra.mxu0 %v317
  %v623 = vpop.f32.mrf.mxu0
  %v624 = vadd.f32 %v135, %v623
  %v625 = vpop.f32.mrf.mxu0
  %v626 = vadd.f32 %v135, %v625
  %627 = vmatmul.bf16.gmra.mxu0 %v321
  %v628 = vpop.f32.mrf.mxu0
  %v629 = vadd.f32 %v135, %v628
  %v630 = vpop.f32.mrf.mxu0
  %v631 = vadd.f32 %v135, %v630
  %632 = vmatmul.bf16.gmra.mxu0 %v325
  %v633 = vpop.f32.mrf.mxu0
  %v634 = vadd.f32 %v135, %v633
  %v635 = vpop.f32.mrf.mxu0
  %v636 = vadd.f32 %v135, %v635
  %637 = vdwg.mxu0
  %638 = vmatpush.bf16.msra.mxu0 %v520
  %639 = vmatpush.bf16.msra.mxu0 %v519
  %640 = vmatpush.bf16.msra.mxu0 %v518
  %641 = vmatpush.bf16.msra.mxu0 %v517
  %642 = vmatpush.bf16.msra.mxu0 %v516
  %643 = vmatpush.bf16.msra.mxu0 %v515
  %644 = vmatpush.bf16.msra.mxu0 %v514
  %645 = vmatpush.bf16.msra.mxu0 %v513
  %646 = vmatmul.bf16.gmra.mxu0 %v282
  %v647 = vpop.f32.mrf.mxu0
  %v648 = vadd.f32 %v579, %v647
  %v649 = vpop.f32.mrf.mxu0
  %v650 = vadd.f32 %v581, %v649
  %651 = vmatmul.bf16.gmra.mxu0 %v286
  %v652 = vpop.f32.mrf.mxu0
  %v653 = vadd.f32 %v584, %v652
  %v654 = vpop.f32.mrf.mxu0
  %v655 = vadd.f32 %v586, %v654
  %656 = vmatmul.bf16.gmra.mxu0 %v290
  %v657 = vpop.f32.mrf.mxu0
  %v658 = vadd.f32 %v589, %v657
  %v659 = vpop.f32.mrf.mxu0
  %v660 = vadd.f32 %v591, %v659
  %661 = vmatmul.bf16.gmra.mxu0 %v294
  %v662 = vpop.f32.mrf.mxu0
  %v663 = vadd.f32 %v594, %v662
  %v664 = vpop.f32.mrf.mxu0
  %v665 = vadd.f32 %v596, %v664
  %666 = vmatmul.bf16.gmra.mxu0 %v298
  %v667 = vpop.f32.mrf.mxu0
  %v668 = vadd.f32 %v599, %v667
  %v669 = vpop.f32.mrf.mxu0
  %v670 = vadd.f32 %v601, %v669
  %671 = vmatmul.bf16.gmra.mxu0 %v302
  %v672 = vpop.f32.mrf.mxu0
  %v673 = vadd.f32 %v604, %v672
  %v674 = vpop.f32.mrf.mxu0
  %v675 = vadd.f32 %v606, %v674
  %676 = vmatmul.bf16.gmra.mxu0 %v306
  %v677 = vpop.f32.mrf.mxu0
  %v678 = vadd.f32 %v609, %v677
  %v679 = vpop.f32.mrf.mxu0
  %v680 = vadd.f32 %v611, %v679
  %681 = vmatmul.bf16.gmra.mxu0 %v310
  %v682 = vpop.f32.mrf.mxu0
  %v683 = vadd.f32 %v614, %v682
  %v684 = vpop.f32.mrf.mxu0
  %v685 = vadd.f32 %v616, %v684
  %686 = vmatmul.bf16.gmra.mxu0 %v314
  %v687 = vpop.f32.mrf.mxu0
  %v688 = vadd.f32 %v619, %v687
  %v689 = vpop.f32.mrf.mxu0
  %v690 = vadd.f32 %v621, %v689
  %691 = vmatmul.bf16.gmra.mxu0 %v318
  %v692 = vpop.f32.mrf.mxu0
  %v693 = vadd.f32 %v624, %v692
  %v694 = vpop.f32.mrf.mxu0
  %v695 = vadd.f32 %v626, %v694
  %696 = vmatmul.bf16.gmra.mxu0 %v322
  %v697 = vpop.f32.mrf.mxu0
  %v698 = vadd.f32 %v629, %v697
  %v699 = vpop.f32.mrf.mxu0
  %v700 = vadd.f32 %v631, %v699
  %701 = vmatmul.bf16.gmra.mxu0 %v326
  %v702 = vpop.f32.mrf.mxu0
  %v703 = vadd.f32 %v634, %v702
  %v704 = vpop.f32.mrf.mxu0
  %v705 = vadd.f32 %v636, %v704
  %706 = vdwg.mxu0
  %707 = vmatpush.bf16.msra.mxu0 %v528
  %708 = vmatpush.bf16.msra.mxu0 %v527
  %709 = vmatpush.bf16.msra.mxu0 %v526
  %710 = vmatpush.bf16.msra.mxu0 %v525
  %711 = vmatpush.bf16.msra.mxu0 %v524
  %712 = vmatpush.bf16.msra.mxu0 %v523
  %713 = vmatpush.bf16.msra.mxu0 %v522
  %714 = vmatpush.bf16.msra.mxu0 %v521
  %715 = vmatmul.bf16.gmra.mxu0 %v283
  %v716 = vpop.f32.mrf.mxu0
  %v717 = vadd.f32 %v648, %v716
  %v718 = vpop.f32.mrf.mxu0
  %v719 = vadd.f32 %v650, %v718
  %720 = vmatmul.bf16.gmra.mxu0 %v287
  %v721 = vpop.f32.mrf.mxu0
  %v722 = vadd.f32 %v653, %v721
  %v723 = vpop.f32.mrf.mxu0
  %v724 = vadd.f32 %v655, %v723
  %725 = vmatmul.bf16.gmra.mxu0 %v291
  %v726 = vpop.f32.mrf.mxu0
  %v727 = vadd.f32 %v658, %v726
  %v728 = vpop.f32.mrf.mxu0
  %v729 = vadd.f32 %v660, %v728
  %730 = vmatmul.bf16.gmra.mxu0 %v295
  %v731 = vpop.f32.mrf.mxu0
  %v732 = vadd.f32 %v663, %v731
  %v733 = vpop.f32.mrf.mxu0
  %v734 = vadd.f32 %v665, %v733
  %735 = vmatmul.bf16.gmra.mxu0 %v299
  %v736 = vpop.f32.mrf.mxu0
  %v737 = vadd.f32 %v668, %v736
  %v738 = vpop.f32.mrf.mxu0
  %v739 = vadd.f32 %v670, %v738
  %740 = vmatmul.bf16.gmra.mxu0 %v303
  %v741 = vpop.f32.mrf.mxu0
  %v742 = vadd.f32 %v673, %v741
  %v743 = vpop.f32.mrf.mxu0
  %v744 = vadd.f32 %v675, %v743
  %745 = vmatmul.bf16.gmra.mxu0 %v307
  %v746 = vpop.f32.mrf.mxu0
  %v747 = vadd.f32 %v678, %v746
  %v748 = vpop.f32.mrf.mxu0
  %v749 = vadd.f32 %v680, %v748
  %750 = vmatmul.bf16.gmra.mxu0 %v311
  %v751 = vpop.f32.mrf.mxu0
  %v752 = vadd.f32 %v683, %v751
  %v753 = vpop.f32.mrf.mxu0
  %v754 = vadd.f32 %v685, %v753
  %755 = vmatmul.bf16.gmra.mxu0 %v315
  %v756 = vpop.f32.mrf.mxu0
  %v757 = vadd.f32 %v688, %v756
  %v758 = vpop.f32.mrf.mxu0
  %v759 = vadd.f32 %v690, %v758
  %760 = vmatmul.bf16.gmra.mxu0 %v319
  %v761 = vpop.f32.mrf.mxu0
  %v762 = vadd.f32 %v693, %v761
  %v763 = vpop.f32.mrf.mxu0
  %v764 = vadd.f32 %v695, %v763
  %765 = vmatmul.bf16.gmra.mxu0 %v323
  %v766 = vpop.f32.mrf.mxu0
  %v767 = vadd.f32 %v698, %v766
  %v768 = vpop.f32.mrf.mxu0
  %v769 = vadd.f32 %v700, %v768
  %770 = vmatmul.bf16.gmra.mxu0 %v327
  %v771 = vpop.f32.mrf.mxu0
  %v772 = vadd.f32 %v703, %v771
  %v773 = vpop.f32.mrf.mxu0
  %v774 = vadd.f32 %v705, %v773
  %775 = vdwg.mxu0
  %776 = vmatpush.bf16.msra.mxu0 %v536
  %777 = vmatpush.bf16.msra.mxu0 %v535
  %778 = vmatpush.bf16.msra.mxu0 %v534
  %779 = vmatpush.bf16.msra.mxu0 %v533
  %780 = vmatpush.bf16.msra.mxu0 %v532
  %781 = vmatpush.bf16.msra.mxu0 %v531
  %782 = vmatpush.bf16.msra.mxu0 %v530
  %783 = vmatpush.bf16.msra.mxu0 %v529
  %784 = vmatmul.bf16.gmra.mxu0 %v284
  %v785 = vpop.f32.mrf.mxu0
  %v786 = vadd.f32 %v717, %v785
  %v787 = vpop.f32.mrf.mxu0
  %v788 = vadd.f32 %v719, %v787
  %789 = vmatmul.bf16.gmra.mxu0 %v288
  %v790 = vpop.f32.mrf.mxu0
  %v791 = vadd.f32 %v722, %v790
  %v792 = vpop.f32.mrf.mxu0
  %v793 = vadd.f32 %v724, %v792
  %794 = vmatmul.bf16.gmra.mxu0 %v292
  %v795 = vpop.f32.mrf.mxu0
  %v796 = vadd.f32 %v727, %v795
  %v797 = vpop.f32.mrf.mxu0
  %v798 = vadd.f32 %v729, %v797
  %799 = vmatmul.bf16.gmra.mxu0 %v296
  %v800 = vpop.f32.mrf.mxu0
  %v801 = vadd.f32 %v732, %v800
  %v802 = vpop.f32.mrf.mxu0
  %v803 = vadd.f32 %v734, %v802
  %804 = vmatmul.bf16.gmra.mxu0 %v300
  %v805 = vpop.f32.mrf.mxu0
  %v806 = vadd.f32 %v737, %v805
  %v807 = vpop.f32.mrf.mxu0
  %v808 = vadd.f32 %v739, %v807
  %809 = vmatmul.bf16.gmra.mxu0 %v304
  %v810 = vpop.f32.mrf.mxu0
  %v811 = vadd.f32 %v742, %v810
  %v812 = vpop.f32.mrf.mxu0
  %v813 = vadd.f32 %v744, %v812
  %814 = vmatmul.bf16.gmra.mxu0 %v308
  %v815 = vpop.f32.mrf.mxu0
  %v816 = vadd.f32 %v747, %v815
  %v817 = vpop.f32.mrf.mxu0
  %v818 = vadd.f32 %v749, %v817
  %819 = vmatmul.bf16.gmra.mxu0 %v312
  %v820 = vpop.f32.mrf.mxu0
  %v821 = vadd.f32 %v752, %v820
  %v822 = vpop.f32.mrf.mxu0
  %v823 = vadd.f32 %v754, %v822
  %824 = vmatmul.bf16.gmra.mxu0 %v316
  %v825 = vpop.f32.mrf.mxu0
  %v826 = vadd.f32 %v757, %v825
  %v827 = vpop.f32.mrf.mxu0
  %v828 = vadd.f32 %v759, %v827
  %829 = vmatmul.bf16.gmra.mxu0 %v320
  %v830 = vpop.f32.mrf.mxu0
  %v831 = vadd.f32 %v762, %v830
  %v832 = vpop.f32.mrf.mxu0
  %v833 = vadd.f32 %v764, %v832
  %834 = vmatmul.bf16.gmra.mxu0 %v324
  %v835 = vpop.f32.mrf.mxu0
  %v836 = vadd.f32 %v767, %v835
  %v837 = vpop.f32.mrf.mxu0
  %v838 = vadd.f32 %v769, %v837
  %839 = vmatmul.bf16.gmra.mxu0 %v328
  %v840 = vpop.f32.mrf.mxu0
  %v841 = vadd.f32 %v772, %v840
  %v842 = vpop.f32.mrf.mxu0
  %v843 = vadd.f32 %v774, %v842
  %844 = vdwg.mxu0
  %v845 = vmax.f32 %v786, 0.0
  %v846 = vmax.f32 %v788, 0.0
  %v847 = vmax.f32 %v791, 0.0
  %v848 = vmax.f32 %v793, 0.0
  %v849 = vmax.f32 %v796, 0.0
  %v850 = vmax.f32 %v798, 0.0
  %v851 = vmax.f32 %v801, 0.0
  %v852 = vmax.f32 %v803, 0.0
  %v853 = vmax.f32 %v806, 0.0
  %v854 = vmax.f32 %v808, 0.0
  %v855 = vmax.f32 %v811, 0.0
  %v856 = vmax.f32 %v813, 0.0
  %v857 = vmax.f32 %v816, 0.0
  %v858 = vmax.f32 %v818, 0.0
  %v859 = vmax.f32 %v821, 0.0
  %v860 = vmax.f32 %v823, 0.0
  %v861 = vmax.f32 %v826, 0.0
  %v862 = vmax.f32 %v828, 0.0
  %v863 = vmax.f32 %v831, 0.0
  %v864 = vmax.f32 %v833, 0.0
  %v865 = vmax.f32 %v836, 0.0
  %v866 = vmax.f32 %v838, 0.0
  %v867 = vmax.f32 %v841, 0.0
  %v868 = vmax.f32 %v843, 0.0
  %v869 = vpack.c.bf16 %v845, %v845
  %v870 = vpack.c.bf16 %v846, %v846
  %v871 = vpack.c.bf16 %v847, %v847
  %v872 = vpack.c.bf16 %v848, %v848
  %v873 = vpack.c.bf16 %v849, %v849
  %v874 = vpack.c.bf16 %v850, %v850
  %v875 = vpack.c.bf16 %v851, %v851
  %v876 = vpack.c.bf16 %v852, %v852
  %v877 = vpack.c.bf16 %v853, %v853
  %v878 = vpack.c.bf16 %v854, %v854
  %v879 = vpack.c.bf16 %v855, %v855
  %v880 = vpack.c.bf16 %v856, %v856
  %v881 = vpack.c.bf16 %v857, %v857
  %v882 = vpack.c.bf16 %v858, %v858
  %v883 = vpack.c.bf16 %v859, %v859
  %v884 = vpack.c.bf16 %v860, %v860
  %v885 = vpack.c.bf16 %v861, %v861
  %v886 = vpack.c.bf16 %v862, %v862
  %v887 = vpack.c.bf16 %v863, %v863
  %v888 = vpack.c.bf16 %v864, %v864
  %v889 = vpack.c.bf16 %v865, %v865
  %v890 = vpack.c.bf16 %v866, %v866
  %v891 = vpack.c.bf16 %v867, %v867
  %v892 = vpack.c.bf16 %v868, %v868
  %vm893 = vcmask 519168
  %894 = vst.msk [vmem:[#allocation2] sm:$0xf] %vm893, %v869
  %895 = vst.msk [vmem:[#allocation2 + $0x4] sm:$0xf] %vm893, %v870
  %896 = vst.msk [vmem:[#allocation2 + $0x8] sm:$0xf] %vm893, %v871
  %897 = vst.msk [vmem:[#allocation2 + $0xc] sm:$0xf] %vm893, %v872
  %898 = vst.msk [vmem:[#allocation2 + $0x10] sm:$0xf] %vm893, %v873
  %899 = vst.msk [vmem:[#allocation2 + $0x14] sm:$0xf] %vm893, %v874
  %900 = vst.msk [vmem:[#allocation2 + $0x18] sm:$0xf] %vm893, %v875
  %901 = vst.msk [vmem:[#allocation2 + $0x1c] sm:$0xf] %vm893, %v876
  %902 = vst.msk [vmem:[#allocation2 + $0x20] sm:$0xf] %vm893, %v877
  %903 = vst.msk [vmem:[#allocation2 + $0x24] sm:$0xf] %vm893, %v878
  %904 = vst.msk [vmem:[#allocation2 + $0x28] sm:$0xf] %vm893, %v879
  %905 = vst.msk [vmem:[#allocation2 + $0x2c] sm:$0xf] %vm893, %v880
  %906 = vst.msk [vmem:[#allocation2 + $0x30] sm:$0xf] %vm893, %v881
  %907 = vst.msk [vmem:[#allocation2 + $0x34] sm:$0xf] %vm893, %v882
  %908 = vst.msk [vmem:[#allocation2 + $0x38] sm:$0xf] %vm893, %v883
  %909 = vst.msk [vmem:[#allocation2 + $0x3c] sm:$0xf] %vm893, %v884
  %910 = vst.msk [vmem:[#allocation2 + $0x40] sm:$0xf] %vm893, %v885
  %911 = vst.msk [vmem:[#allocation2 + $0x44] sm:$0xf] %vm893, %v886
  %912 = vst.msk [vmem:[#allocation2 + $0x48] sm:$0xf] %vm893, %v887
  %913 = vst.msk [vmem:[#allocation2 + $0x4c] sm:$0xf] %vm893, %v888
  %914 = vst.msk [vmem:[#allocation2 + $0x50] sm:$0xf] %vm893, %v889
  %915 = vst.msk [vmem:[#allocation2 + $0x54] sm:$0xf] %vm893, %v890
  %916 = vst.msk [vmem:[#allocation2 + $0x58] sm:$0xf] %vm893, %v891
  %917 = vst.msk [vmem:[#allocation2 + $0x5c] sm:$0xf] %vm893, %v892
  %v918 = vld [vmem:[#allocation2] sm:$0xf]
  %v919 = vld [vmem:[#allocation2 + $0x4] sm:$0xf]
  %v920 = vld [vmem:[#allocation2 + $0x8] sm:$0xf]
  %v921 = vld [vmem:[#allocation2 + $0xc] sm:$0xf]
  %v922 = vld [vmem:[#allocation2 + $0x10] sm:$0xf]
  %v923 = vld [vmem:[#allocation2 + $0x14] sm:$0xf]
  %v924 = vld [vmem:[#allocation2 + $0x18] sm:$0xf]
  %v925 = vld [vmem:[#allocation2 + $0x1c] sm:$0xf]
  %v926 = vld [vmem:[#allocation2 + $0x20] sm:$0xf]
  %v927 = vld [vmem:[#allocation2 + $0x24] sm:$0xf]
  %v928 = vld [vmem:[#allocation2 + $0x28] sm:$0xf]
  %v929 = vld [vmem:[#allocation2 + $0x2c] sm:$0xf]
  %v930 = vld [vmem:[#allocation2 + $0x30] sm:$0xf]
  %v931 = vld [vmem:[#allocation2 + $0x34] sm:$0xf]
  %v932 = vld [vmem:[#allocation2 + $0x38] sm:$0xf]
  %v933 = vld [vmem:[#allocation2 + $0x3c] sm:$0xf]
  %v934 = vld [vmem:[#allocation2 + $0x40] sm:$0xf]
  %v935 = vld [vmem:[#allocation2 + $0x44] sm:$0xf]
  %v936 = vld [vmem:[#allocation2 + $0x48] sm:$0xf]
  %v937 = vld [vmem:[#allocation2 + $0x4c] sm:$0xf]
  %v938 = vld [vmem:[#allocation2 + $0x50] sm:$0xf]
  %v939 = vld [vmem:[%s3] sm:$0xf]
  %v940 = vld [vmem:[%s3 + $0x4] sm:$0xf]
  %v941 = vld [vmem:[%s3 + $0x8] sm:$0xf]
  %v942 = vld [vmem:[%s3 + $0xc] sm:$0xf]
  %v943 = vld [vmem:[%s3 + $0x10] sm:$0xf]
  %v944 = vld [vmem:[%s3 + $0x14] sm:$0xf]
  %v945 = vld [vmem:[%s3 + $0x18] sm:$0xf]
  %v946 = vld [vmem:[%s3 + $0x1c] sm:$0xf]
  %v947 = vld [vmem:[#allocation2 + $0x54] sm:$0x1]
  %s948 = scalar_lea.vmem %s3, 32
  %v949 = vld [vmem:[%s948] sm:$0xf]
  %v950 = vld [vmem:[%s948 + $0x4] sm:$0xf]
  %v951 = vld [vmem:[%s948 + $0x8] sm:$0xf]
  %v952 = vld [vmem:[%s948 + $0xc] sm:$0xf]
  %v953 = vld [vmem:[%s948 + $0x10] sm:$0xf]
  %v954 = vld [vmem:[%s948 + $0x14] sm:$0xf]
  %v955 = vld [vmem:[%s948 + $0x18] sm:$0xf]
  %v956 = vld [vmem:[%s948 + $0x1c] sm:$0xf]
  %v979 = vunpack.c.l.b16 %v918
  %v980 = vunpack.c.l.b16 %v919
  %v981 = vunpack.c.l.b16 %v920
  %v982 = vunpack.c.l.b16 %v921
  %v983 = vunpack.c.l.b16 %v922
  %v984 = vunpack.c.l.b16 %v923
  %v985 = vunpack.c.l.b16 %v924
  %v986 = vunpack.c.l.b16 %v925
  %v987 = vunpack.c.l.b16 %v926
  %v988 = vunpack.c.l.b16 %v927
  %v989 = vunpack.c.l.b16 %v928
  %v990 = vunpack.c.l.b16 %v929
  %v991 = vunpack.c.l.b16 %v930
  %v992 = vunpack.c.l.b16 %v931
  %v993 = vunpack.c.l.b16 %v932
  %v994 = vunpack.c.l.b16 %v933
  %v995 = vunpack.c.l.b16 %v934
  %v996 = vunpack.c.l.b16 %v935
  %v997 = vunpack.c.l.b16 %v936
  %v998 = vunpack.c.l.b16 %v937
  %v999 = vunpack.c.l.b16 %v938
  %v1000 = vunpack.c.l.b16 %v947
  %v1001 = vpack.c.b16 %v980, %v979
  %v1002 = vpack.c.b16 %v982, %v981
  %v1003 = vpack.c.b16 %v984, %v983
  %v1004 = vpack.c.b16 %v986, %v985
  %v1005 = vpack.c.b16 %v988, %v987
  %v1006 = vpack.c.b16 %v990, %v989
  %v1007 = vpack.c.b16 %v992, %v991
  %v1008 = vpack.c.b16 %v994, %v993
  %v1009 = vpack.c.b16 %v996, %v995
  %v1010 = vpack.c.b16 %v998, %v997
  %v1011 = vpack.c.b16 %v1000, %v999
  %vm1012 = vsmask.f32 7424
  %v1014 = vshrl.u32 %v1001, 16
  %v1016 = vshll.u32 %v1001, 16
  %v1018 = vrot.slane %v1016, 1
  %v1019 = vor.u32 %v1014, %v1018
  %v1021 = vshll.u32 %v1002, 16
  %v1023 = vrot.slane %v1021, 1
  %v1024 = vsel %vm1012, %v1019, %v1023
  %v1025 = vshrl.u32 %v1002, 16
  %v1027 = vor.u32 %v1025, %v1023
  %v1029 = vshll.u32 %v1003, 16
  %v1031 = vrot.slane %v1029, 1
  %v1032 = vsel %vm1012, %v1027, %v1031
  %v1033 = vshrl.u32 %v1003, 16
  %v1035 = vor.u32 %v1033, %v1031
  %v1037 = vshll.u32 %v1004, 16
  %v1039 = vrot.slane %v1037, 1
  %v1040 = vsel %vm1012, %v1035, %v1039
  %v1041 = vshrl.u32 %v1004, 16
  %v1043 = vor.u32 %v1041, %v1039
  %v1045 = vshll.u32 %v1005, 16
  %v1047 = vrot.slane %v1045, 1
  %v1048 = vsel %vm1012, %v1043, %v1047
  %v1049 = vshrl.u32 %v1005, 16
  %v1051 = vor.u32 %v1049, %v1047
  %v1053 = vshll.u32 %v1006, 16
  %v1055 = vrot.slane %v1053, 1
  %v1056 = vsel %vm1012, %v1051, %v1055
  %v1057 = vshrl.u32 %v1006, 16
  %v1059 = vor.u32 %v1057, %v1055
  %v1061 = vshll.u32 %v1007, 16
  %v1063 = vrot.slane %v1061, 1
  %v1064 = vsel %vm1012, %v1059, %v1063
  %v1065 = vshrl.u32 %v1007, 16
  %v1067 = vor.u32 %v1065, %v1063
  %v1069 = vshll.u32 %v1008, 16
  %v1071 = vrot.slane %v1069, 1
  %v1072 = vsel %vm1012, %v1067, %v1071
  %v1073 = vshrl.u32 %v1008, 16
  %v1075 = vor.u32 %v1073, %v1071
  %v1077 = vshll.u32 %v1009, 16
  %v1079 = vrot.slane %v1077, 1
  %v1080 = vsel %vm1012, %v1075, %v1079
  %v1081 = vshrl.u32 %v1009, 16
  %v1083 = vor.u32 %v1081, %v1079
  %v1085 = vshll.u32 %v1010, 16
  %v1087 = vrot.slane %v1085, 1
  %v1088 = vsel %vm1012, %v1083, %v1087
  %v1089 = vshrl.u32 %v1010, 16
  %v1091 = vor.u32 %v1089, %v1087
  %v1093 = vshll.u32 %v1011, 16
  %v1095 = vrot.slane %v1093, 1
  %v1096 = vsel %vm1012, %v1091, %v1095
  %v1097 = vshrl.u32 %v1011, 16
  %v1099 = vor.u32 %v1097, %v1095
  %v1108 = vunpack.c.l.b16 %v949
  %v1109 = vunpack.c.l.b16 %v950
  %v1110 = vunpack.c.l.b16 %v951
  %v1111 = vunpack.c.l.b16 %v952
  %v1112 = vunpack.c.l.b16 %v953
  %v1113 = vunpack.c.l.b16 %v954
  %v1114 = vunpack.c.l.b16 %v955
  %v1115 = vunpack.c.l.b16 %v956
  %v1116 = vpack.c.b16 %v1109, %v1108
  %v1117 = vpack.c.b16 %v1111, %v1110
  %v1118 = vpack.c.b16 %v1113, %v1112
  %v1119 = vpack.c.b16 %v1115, %v1114
  %vm1124 = vcmask 523264
  %v1126 = vsel %vm1124, %v1024, 0
  %v1129 = vsel %vm1124, %v1032, 0
  %v1132 = vsel %vm1124, %v1040, 0
  %v1135 = vsel %vm1124, %v1048, 0
  %v1138 = vsel %vm1124, %v1056, 0
  %v1141 = vsel %vm1124, %v1064, 0
  %v1144 = vsel %vm1124, %v1072, 0
  %v1147 = vsel %vm1124, %v1080, 0
  %v1150 = vsel %vm1124, %v1088, 0
  %v1153 = vsel %vm1124, %v1096, 0
  %v1156 = vsel %vm1124, %v1099, 0
  %1158 = vmatpush.bf16.msra.mxu0 0
  %1159 = vmatpush.bf16.msra.mxu0 0
  %1160 = vmatpush.bf16.msra.mxu0 0
  %1161 = vmatpush.bf16.msra.mxu0 0
  %1162 = vmatpush.bf16.msra.mxu0 %v1119
  %1163 = vmatpush.bf16.msra.mxu0 %v1118
  %1164 = vmatpush.bf16.msra.mxu0 %v1117
  %1165 = vmatpush.bf16.msra.mxu0 %v1116
  %1166 = vmatmul.bf16.gmra.mxu0 %v1126
  %v1167 = vpop.f32.mrf.mxu0
  %v1168 = vadd.f32 0.0, %v1167
  %v1169 = vpop.f32.mrf.mxu0
  %v1170 = vadd.f32 0.0, %v1169
  %1171 = vmatmul.bf16.gmra.mxu0 %v1129
  %v1172 = vpop.f32.mrf.mxu0
  %v1173 = vadd.f32 0.0, %v1172
  %v1174 = vpop.f32.mrf.mxu0
  %v1175 = vadd.f32 0.0, %v1174
  %1176 = vmatmul.bf16.gmra.mxu0 %v1132
  %v1177 = vpop.f32.mrf.mxu0
  %v1178 = vadd.f32 0.0, %v1177
  %v1179 = vpop.f32.mrf.mxu0
  %v1180 = vadd.f32 0.0, %v1179
  %1181 = vmatmul.bf16.gmra.mxu0 %v1135
  %v1182 = vpop.f32.mrf.mxu0
  %v1183 = vadd.f32 0.0, %v1182
  %v1184 = vpop.f32.mrf.mxu0
  %v1185 = vadd.f32 0.0, %v1184
  %1186 = vmatmul.bf16.gmra.mxu0 %v1138
  %v1187 = vpop.f32.mrf.mxu0
  %v1188 = vadd.f32 0.0, %v1187
  %v1189 = vpop.f32.mrf.mxu0
  %v1190 = vadd.f32 0.0, %v1189
  %1191 = vmatmul.bf16.gmra.mxu0 %v1141
  %v1192 = vpop.f32.mrf.mxu0
  %v1193 = vadd.f32 0.0, %v1192
  %v1194 = vpop.f32.mrf.mxu0
  %v1195 = vadd.f32 0.0, %v1194
  %1196 = vmatmul.bf16.gmra.mxu0 %v1144
  %v1197 = vpop.f32.mrf.mxu0
  %v1198 = vadd.f32 0.0, %v1197
  %v1199 = vpop.f32.mrf.mxu0
  %v1200 = vadd.f32 0.0, %v1199
  %1201 = vmatmul.bf16.gmra.mxu0 %v1147
  %v1202 = vpop.f32.mrf.mxu0
  %v1203 = vadd.f32 0.0, %v1202
  %v1204 = vpop.f32.mrf.mxu0
  %v1205 = vadd.f32 0.0, %v1204
  %1206 = vmatmul.bf16.gmra.mxu0 %v1150
  %v1207 = vpop.f32.mrf.mxu0
  %v1208 = vadd.f32 0.0, %v1207
  %v1209 = vpop.f32.mrf.mxu0
  %v1210 = vadd.f32 0.0, %v1209
  %1211 = vmatmul.bf16.gmra.mxu0 %v1153
  %v1212 = vpop.f32.mrf.mxu0
  %v1213 = vadd.f32 0.0, %v1212
  %v1214 = vpop.f32.mrf.mxu0
  %v1215 = vadd.f32 0.0, %v1214
  %1216 = vmatmul.bf16.gmra.mxu0 %v1156
  %v1217 = vpop.f32.mrf.mxu0
  %v1218 = vadd.f32 0.0, %v1217
  %v1219 = vpop.f32.mrf.mxu0
  %1220 = vdwg.mxu0
  %v1221 = vpack.c.b16 %v999, %v999
  %v1230 = vunpack.c.l.b16 %v939
  %v1231 = vunpack.c.l.b16 %v940
  %v1232 = vunpack.c.l.b16 %v941
  %v1233 = vunpack.c.l.b16 %v942
  %v1234 = vunpack.c.l.b16 %v943
  %v1235 = vunpack.c.l.b16 %v944
  %v1236 = vunpack.c.l.b16 %v945
  %v1237 = vunpack.c.l.b16 %v946
  %v1238 = vpack.c.b16 %v1231, %v1230
  %v1239 = vpack.c.b16 %v1233, %v1232
  %v1240 = vpack.c.b16 %v1235, %v1234
  %v1241 = vpack.c.b16 %v1237, %v1236
  %v1246 = vsel %vm1124, %v1001, 0
  %v1248 = vsel %vm1124, %v1002, 0
  %v1250 = vsel %vm1124, %v1003, 0
  %v1252 = vsel %vm1124, %v1004, 0
  %v1254 = vsel %vm1124, %v1005, 0
  %v1256 = vsel %vm1124, %v1006, 0
  %v1258 = vsel %vm1124, %v1007, 0
  %v1260 = vsel %vm1124, %v1008, 0
  %v1262 = vsel %vm1124, %v1009, 0
  %v1264 = vsel %vm1124, %v1010, 0
  %v1267 = vsel %vm1124, %v1221, 0
  %1269 = vmatpush.bf16.msra.mxu0 0
  %1270 = vmatpush.bf16.msra.mxu0 0
  %1271 = vmatpush.bf16.msra.mxu0 0
  %1272 = vmatpush.bf16.msra.mxu0 0
  %1273 = vmatpush.bf16.msra.mxu0 %v1241
  %1274 = vmatpush.bf16.msra.mxu0 %v1240
  %1275 = vmatpush.bf16.msra.mxu0 %v1239
  %1276 = vmatpush.bf16.msra.mxu0 %v1238
  %1277 = vmatmul.bf16.gmra.mxu0 %v1246
  %v1278 = vpop.f32.mrf.mxu0
  %v1279 = vadd.f32 %v1168, %v1278
  %v1280 = vpop.f32.mrf.mxu0
  %v1281 = vadd.f32 %v1170, %v1280
  %1282 = vmatmul.bf16.gmra.mxu0 %v1248
  %v1283 = vpop.f32.mrf.mxu0
  %v1284 = vadd.f32 %v1173, %v1283
  %v1285 = vpop.f32.mrf.mxu0
  %v1286 = vadd.f32 %v1175, %v1285
  %1287 = vmatmul.bf16.gmra.mxu0 %v1250
  %v1288 = vpop.f32.mrf.mxu0
  %v1289 = vadd.f32 %v1178, %v1288
  %v1290 = vpop.f32.mrf.mxu0
  %v1291 = vadd.f32 %v1180, %v1290
  %1292 = vmatmul.bf16.gmra.mxu0 %v1252
  %v1293 = vpop.f32.mrf.mxu0
  %v1294 = vadd.f32 %v1183, %v1293
  %v1295 = vpop.f32.mrf.mxu0
  %v1296 = vadd.f32 %v1185, %v1295
  %1297 = vmatmul.bf16.gmra.mxu0 %v1254
  %v1298 = vpop.f32.mrf.mxu0
  %v1299 = vadd.f32 %v1188, %v1298
  %v1300 = vpop.f32.mrf.mxu0
  %v1301 = vadd.f32 %v1190, %v1300
  %1302 = vmatmul.bf16.gmra.mxu0 %v1256
  %v1303 = vpop.f32.mrf.mxu0
  %v1304 = vadd.f32 %v1193, %v1303
  %v1305 = vpop.f32.mrf.mxu0
  %v1306 = vadd.f32 %v1195, %v1305
  %1307 = vmatmul.bf16.gmra.mxu0 %v1258
  %v1308 = vpop.f32.mrf.mxu0
  %v1309 = vadd.f32 %v1198, %v1308
  %v1310 = vpop.f32.mrf.mxu0
  %v1311 = vadd.f32 %v1200, %v1310
  %1312 = vmatmul.bf16.gmra.mxu0 %v1260
  %v1313 = vpop.f32.mrf.mxu0
  %v1314 = vadd.f32 %v1203, %v1313
  %v1315 = vpop.f32.mrf.mxu0
  %v1316 = vadd.f32 %v1205, %v1315
  %1317 = vmatmul.bf16.gmra.mxu0 %v1262
  %v1318 = vpop.f32.mrf.mxu0
  %v1319 = vadd.f32 %v1208, %v1318
  %v1320 = vpop.f32.mrf.mxu0
  %v1321 = vadd.f32 %v1210, %v1320
  %1322 = vmatmul.bf16.gmra.mxu0 %v1264
  %v1323 = vpop.f32.mrf.mxu0
  %v1324 = vadd.f32 %v1213, %v1323
  %v1325 = vpop.f32.mrf.mxu0
  %v1326 = vadd.f32 %v1215, %v1325
  %1327 = vmatmul.bf16.gmra.mxu0 %v1267
  %v1328 = vpop.f32.mrf.mxu0
  %v1329 = vadd.f32 %v1218, %v1328
  %v1330 = vpop.f32.mrf.mxu0
  %1331 = vdwg.mxu0
  %v1332 = vld [vmem:[#allocation2] sm:$0xe]
  %s1333 = scalar_lea.vmem %s3, 64
  %v1334 = vld [vmem:[%s1333] sm:$0xf]
  %v1335 = vld [vmem:[%s1333 + $0x4] sm:$0xf]
  %v1336 = vld [vmem:[%s1333 + $0x8] sm:$0xf]
  %v1337 = vld [vmem:[%s1333 + $0xc] sm:$0xf]
  %v1338 = vld [vmem:[%s1333 + $0x10] sm:$0xf]
  %v1339 = vld [vmem:[%s1333 + $0x14] sm:$0xf]
  %v1340 = vld [vmem:[%s1333 + $0x18] sm:$0xf]
  %v1341 = vld [vmem:[%s1333 + $0x1c] sm:$0xf]
  %v1343 = vunpack.c.l.b16 %v1332
  %v1344 = vpack.c.b16 %v980, %v1343
  %vm1345 = vcmask 1046528
  %v1346 = vrot.slane %v1344, 1
  %v1347 = vrot.slane %v1002, 1
  %v1348 = vsel %vm1345, %v1346, %v1347
  %v1349 = vrot.slane %v1003, 1
  %v1350 = vsel %vm1345, %v1347, %v1349
  %v1351 = vrot.slane %v1004, 1
  %v1352 = vsel %vm1345, %v1349, %v1351
  %v1353 = vrot.slane %v1005, 1
  %v1354 = vsel %vm1345, %v1351, %v1353
  %v1355 = vrot.slane %v1006, 1
  %v1356 = vsel %vm1345, %v1353, %v1355
  %v1357 = vrot.slane %v1007, 1
  %v1358 = vsel %vm1345, %v1355, %v1357
  %v1359 = vrot.slane %v1008, 1
  %v1360 = vsel %vm1345, %v1357, %v1359
  %v1361 = vrot.slane %v1009, 1
  %v1362 = vsel %vm1345, %v1359, %v1361
  %v1363 = vrot.slane %v1010, 1
  %v1364 = vsel %vm1345, %v1361, %v1363
  %v1365 = vrot.slane %v1011, 1
  %v1366 = vsel %vm1345, %v1363, %v1365
  %v1375 = vunpack.c.l.b16 %v1334
  %v1376 = vunpack.c.l.b16 %v1335
  %v1377 = vunpack.c.l.b16 %v1336
  %v1378 = vunpack.c.l.b16 %v1337
  %v1379 = vunpack.c.l.b16 %v1338
  %v1380 = vunpack.c.l.b16 %v1339
  %v1381 = vunpack.c.l.b16 %v1340
  %v1382 = vunpack.c.l.b16 %v1341
  %v1383 = vpack.c.b16 %v1376, %v1375
  %v1384 = vpack.c.b16 %v1378, %v1377
  %v1385 = vpack.c.b16 %v1380, %v1379
  %v1386 = vpack.c.b16 %v1382, %v1381
  %v1392 = vsel %vm1124, %v1348, 0
  %v1395 = vsel %vm1124, %v1350, 0
  %v1398 = vsel %vm1124, %v1352, 0
  %v1401 = vsel %vm1124, %v1354, 0
  %v1404 = vsel %vm1124, %v1356, 0
  %v1407 = vsel %vm1124, %v1358, 0
  %v1410 = vsel %vm1124, %v1360, 0
  %v1413 = vsel %vm1124, %v1362, 0
  %v1416 = vsel %vm1124, %v1364, 0
  %v1419 = vsel %vm1124, %v1366, 0
  %v1422 = vsel %vm1124, %v1365, 0
  %1424 = vmatpush.bf16.msra.mxu0 0
  %1425 = vmatpush.bf16.msra.mxu0 0
  %1426 = vmatpush.bf16.msra.mxu0 0
  %1427 = vmatpush.bf16.msra.mxu0 0
  %1428 = vmatpush.bf16.msra.mxu0 %v1386
  %1429 = vmatpush.bf16.msra.mxu0 %v1385
  %1430 = vmatpush.bf16.msra.mxu0 %v1384
  %1431 = vmatpush.bf16.msra.mxu0 %v1383
  %1432 = vmatmul.bf16.gmra.mxu0 %v1392
  %v1433 = vpop.f32.mrf.mxu0
  %v1434 = vadd.f32 0.0, %v1433
  %v1435 = vpop.f32.mrf.mxu0
  %v1436 = vadd.f32 0.0, %v1435
  %1437 = vmatmul.bf16.gmra.mxu0 %v1395
  %v1438 = vpop.f32.mrf.mxu0
  %v1439 = vadd.f32 0.0, %v1438
  %v1440 = vpop.f32.mrf.mxu0
  %v1441 = vadd.f32 0.0, %v1440
  %1442 = vmatmul.bf16.gmra.mxu0 %v1398
  %v1443 = vpop.f32.mrf.mxu0
  %v1444 = vadd.f32 0.0, %v1443
  %v1445 = vpop.f32.mrf.mxu0
  %v1446 = vadd.f32 0.0, %v1445
  %1447 = vmatmul.bf16.gmra.mxu0 %v1401
  %v1448 = vpop.f32.mrf.mxu0
  %v1449 = vadd.f32 0.0, %v1448
  %v1450 = vpop.f32.mrf.mxu0
  %v1451 = vadd.f32 0.0, %v1450
  %1452 = vmatmul.bf16.gmra.mxu0 %v1404
  %v1453 = vpop.f32.mrf.mxu0
  %v1454 = vadd.f32 0.0, %v1453
  %v1455 = vpop.f32.mrf.mxu0
  %v1456 = vadd.f32 0.0, %v1455
  %1457 = vmatmul.bf16.gmra.mxu0 %v1407
  %v1458 = vpop.f32.mrf.mxu0
  %v1459 = vadd.f32 0.0, %v1458
  %v1460 = vpop.f32.mrf.mxu0
  %v1461 = vadd.f32 0.0, %v1460
  %1462 = vmatmul.bf16.gmra.mxu0 %v1410
  %v1463 = vpop.f32.mrf.mxu0
  %v1464 = vadd.f32 0.0, %v1463
  %v1465 = vpop.f32.mrf.mxu0
  %v1466 = vadd.f32 0.0, %v1465
  %1467 = vmatmul.bf16.gmra.mxu0 %v1413
  %v1468 = vpop.f32.mrf.mxu0
  %v1469 = vadd.f32 0.0, %v1468
  %v1470 = vpop.f32.mrf.mxu0
  %v1471 = vadd.f32 0.0, %v1470
  %1472 = vmatmul.bf16.gmra.mxu0 %v1416
  %v1473 = vpop.f32.mrf.mxu0
  %v1474 = vadd.f32 0.0, %v1473
  %v1475 = vpop.f32.mrf.mxu0
  %v1476 = vadd.f32 0.0, %v1475
  %1477 = vmatmul.bf16.gmra.mxu0 %v1419
  %v1478 = vpop.f32.mrf.mxu0
  %v1479 = vadd.f32 0.0, %v1478
  %v1480 = vpop.f32.mrf.mxu0
  %v1481 = vadd.f32 0.0, %v1480
  %1482 = vmatmul.bf16.gmra.mxu0 %v1422
  %v1483 = vpop.f32.mrf.mxu0
  %v1484 = vadd.f32 0.0, %v1483
  %v1485 = vpop.f32.mrf.mxu0
  %1486 = vdwg.mxu0
  %v1487 = vadd.f32 %v1279, %v1434
  %v1488 = vadd.f32 %v1281, %v1436
  %v1489 = vadd.f32 %v1284, %v1439
  %v1490 = vadd.f32 %v1286, %v1441
  %v1491 = vadd.f32 %v1289, %v1444
  %v1492 = vadd.f32 %v1291, %v1446
  %v1493 = vadd.f32 %v1294, %v1449
  %v1494 = vadd.f32 %v1296, %v1451
  %v1495 = vadd.f32 %v1299, %v1454
  %v1496 = vadd.f32 %v1301, %v1456
  %v1497 = vadd.f32 %v1304, %v1459
  %v1498 = vadd.f32 %v1306, %v1461
  %v1499 = vadd.f32 %v1309, %v1464
  %v1500 = vadd.f32 %v1311, %v1466
  %v1501 = vadd.f32 %v1314, %v1469
  %v1502 = vadd.f32 %v1316, %v1471
  %v1503 = vadd.f32 %v1319, %v1474
  %v1504 = vadd.f32 %v1321, %v1476
  %v1505 = vadd.f32 %v1324, %v1479
  %v1506 = vadd.f32 %v1326, %v1481
  %v1507 = vadd.f32 %v1329, %v1484
  %v1508 = vld [vmem:[#allocation2 + $0x4] sm:$0xf]
  %v1509 = vld [vmem:[#allocation2 + $0x8] sm:$0xf]
  %v1510 = vld [vmem:[#allocation2 + $0xc] sm:$0xf]
  %v1511 = vld [vmem:[#allocation2 + $0x10] sm:$0xf]
  %v1512 = vld [vmem:[#allocation2 + $0x14] sm:$0xf]
  %v1513 = vld [vmem:[#allocation2 + $0x18] sm:$0xf]
  %v1514 = vld [vmem:[#allocation2 + $0x1c] sm:$0xf]
  %v1515 = vld [vmem:[#allocation2 + $0x20] sm:$0xf]
  %v1516 = vld [vmem:[#allocation2 + $0x24] sm:$0xf]
  %v1517 = vld [vmem:[#allocation2 + $0x28] sm:$0xf]
  %v1518 = vld [vmem:[#allocation2 + $0x2c] sm:$0xf]
  %v1519 = vld [vmem:[#allocation2 + $0x30] sm:$0xf]
  %v1520 = vld [vmem:[#allocation2 + $0x34] sm:$0xf]
  %v1521 = vld [vmem:[#allocation2 + $0x38] sm:$0xf]
  %v1522 = vld [vmem:[#allocation2 + $0x3c] sm:$0xf]
  %v1523 = vld [vmem:[#allocation2 + $0x40] sm:$0xf]
  %v1524 = vld [vmem:[#allocation2 + $0x44] sm:$0xf]
  %v1525 = vld [vmem:[#allocation2 + $0x48] sm:$0xf]
  %v1526 = vld [vmem:[#allocation2 + $0x4c] sm:$0xf]
  %v1527 = vld [vmem:[#allocation2 + $0x50] sm:$0xf]
  %v1528 = vld [vmem:[#allocation2 + $0x54] sm:$0xf]
  %v1529 = vld [vmem:[#allocation2 + $0x58] sm:$0x1]
  %s1530 = scalar_lea.vmem %s3, 96
  %v1531 = vld [vmem:[%s1530] sm:$0xf]
  %v1532 = vld [vmem:[%s1530 + $0x4] sm:$0xf]
  %v1533 = vld [vmem:[%s1530 + $0x8] sm:$0xf]
  %v1534 = vld [vmem:[%s1530 + $0xc] sm:$0xf]
  %v1535 = vld [vmem:[%s1530 + $0x10] sm:$0xf]
  %v1536 = vld [vmem:[%s1530 + $0x14] sm:$0xf]
  %v1537 = vld [vmem:[%s1530 + $0x18] sm:$0xf]
  %v1538 = vld [vmem:[%s1530 + $0x1c] sm:$0xf]
  %v1561 = vunpack.c.l.b16 %v1508
  %v1562 = vunpack.c.l.b16 %v1509
  %v1563 = vunpack.c.l.b16 %v1510
  %v1564 = vunpack.c.l.b16 %v1511
  %v1565 = vunpack.c.l.b16 %v1512
  %v1566 = vunpack.c.l.b16 %v1513
  %v1567 = vunpack.c.l.b16 %v1514
  %v1568 = vunpack.c.l.b16 %v1515
  %v1569 = vunpack.c.l.b16 %v1516
  %v1570 = vunpack.c.l.b16 %v1517
  %v1571 = vunpack.c.l.b16 %v1518
  %v1572 = vunpack.c.l.b16 %v1519
  %v1573 = vunpack.c.l.b16 %v1520
  %v1574 = vunpack.c.l.b16 %v1521
  %v1575 = vunpack.c.l.b16 %v1522
  %v1576 = vunpack.c.l.b16 %v1523
  %v1577 = vunpack.c.l.b16 %v1524
  %v1578 = vunpack.c.l.b16 %v1525
  %v1579 = vunpack.c.l.b16 %v1526
  %v1580 = vunpack.c.l.b16 %v1527
  %v1581 = vunpack.c.l.b16 %v1528
  %v1582 = vunpack.c.l.b16 %v1529
  %v1583 = vpack.c.b16 %v1562, %v1561
  %v1584 = vpack.c.b16 %v1564, %v1563
  %v1585 = vpack.c.b16 %v1566, %v1565
  %v1586 = vpack.c.b16 %v1568, %v1567
  %v1587 = vpack.c.b16 %v1570, %v1569
  %v1588 = vpack.c.b16 %v1572, %v1571
  %v1589 = vpack.c.b16 %v1574, %v1573
  %v1590 = vpack.c.b16 %v1576, %v1575
  %v1591 = vpack.c.b16 %v1578, %v1577
  %v1592 = vpack.c.b16 %v1580, %v1579
  %v1593 = vpack.c.b16 %v1582, %v1581
  %v1595 = vshrl.u32 %v1583, 16
  %v1597 = vshll.u32 %v1583, 16
  %v1599 = vrot.slane %v1597, 1
  %v1600 = vor.u32 %v1595, %v1599
  %v1602 = vshll.u32 %v1584, 16
  %v1604 = vrot.slane %v1602, 1
  %v1605 = vsel %vm1012, %v1600, %v1604
  %v1606 = vshrl.u32 %v1584, 16
  %v1608 = vor.u32 %v1606, %v1604
  %v1610 = vshll.u32 %v1585, 16
  %v1612 = vrot.slane %v1610, 1
  %v1613 = vsel %vm1012, %v1608, %v1612
  %v1614 = vshrl.u32 %v1585, 16
  %v1616 = vor.u32 %v1614, %v1612
  %v1618 = vshll.u32 %v1586, 16
  %v1620 = vrot.slane %v1618, 1
  %v1621 = vsel %vm1012, %v1616, %v1620
  %v1622 = vshrl.u32 %v1586, 16
  %v1624 = vor.u32 %v1622, %v1620
  %v1626 = vshll.u32 %v1587, 16
  %v1628 = vrot.slane %v1626, 1
  %v1629 = vsel %vm1012, %v1624, %v1628
  %v1630 = vshrl.u32 %v1587, 16
  %v1632 = vor.u32 %v1630, %v1628
  %v1634 = vshll.u32 %v1588, 16
  %v1636 = vrot.slane %v1634, 1
  %v1637 = vsel %vm1012, %v1632, %v1636
  %v1638 = vshrl.u32 %v1588, 16
  %v1640 = vor.u32 %v1638, %v1636
  %v1642 = vshll.u32 %v1589, 16
  %v1644 = vrot.slane %v1642, 1
  %v1645 = vsel %vm1012, %v1640, %v1644
  %v1646 = vshrl.u32 %v1589, 16
  %v1648 = vor.u32 %v1646, %v1644
  %v1650 = vshll.u32 %v1590, 16
  %v1652 = vrot.slane %v1650, 1
  %v1653 = vsel %vm1012, %v1648, %v1652
  %v1654 = vshrl.u32 %v1590, 16
  %v1656 = vor.u32 %v1654, %v1652
  %v1658 = vshll.u32 %v1591, 16
  %v1660 = vrot.slane %v1658, 1
  %v1661 = vsel %vm1012, %v1656, %v1660
  %v1662 = vshrl.u32 %v1591, 16
  %v1664 = vor.u32 %v1662, %v1660
  %v1666 = vshll.u32 %v1592, 16
  %v1668 = vrot.slane %v1666, 1
  %v1669 = vsel %vm1012, %v1664, %v1668
  %v1670 = vshrl.u32 %v1592, 16
  %v1672 = vor.u32 %v1670, %v1668
  %v1674 = vshll.u32 %v1593, 16
  %v1676 = vrot.slane %v1674, 1
  %v1677 = vsel %vm1012, %v1672, %v1676
  %v1678 = vshrl.u32 %v1593, 16
  %v1680 = vor.u32 %v1678, %v1676
  %v1689 = vunpack.c.l.b16 %v1531
  %v1690 = vunpack.c.l.b16 %v1532
  %v1691 = vunpack.c.l.b16 %v1533
  %v1692 = vunpack.c.l.b16 %v1534
  %v1693 = vunpack.c.l.b16 %v1535
  %v1694 = vunpack.c.l.b16 %v1536
  %v1695 = vunpack.c.l.b16 %v1537
  %v1696 = vunpack.c.l.b16 %v1538
  %v1697 = vpack.c.b16 %v1690, %v1689
  %v1698 = vpack.c.b16 %v1692, %v1691
  %v1699 = vpack.c.b16 %v1694, %v1693
  %v1700 = vpack.c.b16 %v1696, %v1695
  %v1706 = vsel %vm1124, %v1605, 0
  %v1709 = vsel %vm1124, %v1613, 0
  %v1712 = vsel %vm1124, %v1621, 0
  %v1715 = vsel %vm1124, %v1629, 0
  %v1718 = vsel %vm1124, %v1637, 0
  %v1721 = vsel %vm1124, %v1645, 0
  %v1724 = vsel %vm1124, %v1653, 0
  %v1727 = vsel %vm1124, %v1661, 0
  %v1730 = vsel %vm1124, %v1669, 0
  %v1733 = vsel %vm1124, %v1677, 0
  %v1736 = vsel %vm1124, %v1680, 0
  %1738 = vmatpush.bf16.msra.mxu0 0
  %1739 = vmatpush.bf16.msra.mxu0 0
  %1740 = vmatpush.bf16.msra.mxu0 0
  %1741 = vmatpush.bf16.msra.mxu0 0
  %1742 = vmatpush.bf16.msra.mxu0 %v1700
  %1743 = vmatpush.bf16.msra.mxu0 %v1699
  %1744 = vmatpush.bf16.msra.mxu0 %v1698
  %1745 = vmatpush.bf16.msra.mxu0 %v1697
  %1746 = vmatmul.bf16.gmra.mxu0 %v1706
  %v1747 = vpop.f32.mrf.mxu0
  %v1748 = vadd.f32 0.0, %v1747
  %v1749 = vpop.f32.mrf.mxu0
  %v1750 = vadd.f32 0.0, %v1749
  %1751 = vmatmul.bf16.gmra.mxu0 %v1709
  %v1752 = vpop.f32.mrf.mxu0
  %v1753 = vadd.f32 0.0, %v1752
  %v1754 = vpop.f32.mrf.mxu0
  %v1755 = vadd.f32 0.0, %v1754
  %1756 = vmatmul.bf16.gmra.mxu0 %v1712
  %v1757 = vpop.f32.mrf.mxu0
  %v1758 = vadd.f32 0.0, %v1757
  %v1759 = vpop.f32.mrf.mxu0
  %v1760 = vadd.f32 0.0, %v1759
  %1761 = vmatmul.bf16.gmra.mxu0 %v1715
  %v1762 = vpop.f32.mrf.mxu0
  %v1763 = vadd.f32 0.0, %v1762
  %v1764 = vpop.f32.mrf.mxu0
  %v1765 = vadd.f32 0.0, %v1764
  %1766 = vmatmul.bf16.gmra.mxu0 %v1718
  %v1767 = vpop.f32.mrf.mxu0
  %v1768 = vadd.f32 0.0, %v1767
  %v1769 = vpop.f32.mrf.mxu0
  %v1770 = vadd.f32 0.0, %v1769
  %1771 = vmatmul.bf16.gmra.mxu0 %v1721
  %v1772 = vpop.f32.mrf.mxu0
  %v1773 = vadd.f32 0.0, %v1772
  %v1774 = vpop.f32.mrf.mxu0
  %v1775 = vadd.f32 0.0, %v1774
  %1776 = vmatmul.bf16.gmra.mxu0 %v1724
  %v1777 = vpop.f32.mrf.mxu0
  %v1778 = vadd.f32 0.0, %v1777
  %v1779 = vpop.f32.mrf.mxu0
  %v1780 = vadd.f32 0.0, %v1779
  %1781 = vmatmul.bf16.gmra.mxu0 %v1727
  %v1782 = vpop.f32.mrf.mxu0
  %v1783 = vadd.f32 0.0, %v1782
  %v1784 = vpop.f32.mrf.mxu0
  %v1785 = vadd.f32 0.0, %v1784
  %1786 = vmatmul.bf16.gmra.mxu0 %v1730
  %v1787 = vpop.f32.mrf.mxu0
  %v1788 = vadd.f32 0.0, %v1787
  %v1789 = vpop.f32.mrf.mxu0
  %v1790 = vadd.f32 0.0, %v1789
  %1791 = vmatmul.bf16.gmra.mxu0 %v1733
  %v1792 = vpop.f32.mrf.mxu0
  %v1793 = vadd.f32 0.0, %v1792
  %v1794 = vpop.f32.mrf.mxu0
  %v1795 = vadd.f32 0.0, %v1794
  %1796 = vmatmul.bf16.gmra.mxu0 %v1736
  %v1797 = vpop.f32.mrf.mxu0
  %v1798 = vadd.f32 0.0, %v1797
  %v1799 = vpop.f32.mrf.mxu0
  %1800 = vdwg.mxu0
  %v1801 = vadd.f32 %v1487, %v1748
  %v1802 = vadd.f32 %v1488, %v1750
  %v1803 = vadd.f32 %v1489, %v1753
  %v1804 = vadd.f32 %v1490, %v1755
  %v1805 = vadd.f32 %v1491, %v1758
  %v1806 = vadd.f32 %v1492, %v1760
  %v1807 = vadd.f32 %v1493, %v1763
  %v1808 = vadd.f32 %v1494, %v1765
  %v1809 = vadd.f32 %v1495, %v1768
  %v1810 = vadd.f32 %v1496, %v1770
  %v1811 = vadd.f32 %v1497, %v1773
  %v1812 = vadd.f32 %v1498, %v1775
  %v1813 = vadd.f32 %v1499, %v1778
  %v1814 = vadd.f32 %v1500, %v1780
  %v1815 = vadd.f32 %v1501, %v1783
  %v1816 = vadd.f32 %v1502, %v1785
  %v1817 = vadd.f32 %v1503, %v1788
  %v1818 = vadd.f32 %v1504, %v1790
  %v1819 = vadd.f32 %v1505, %v1793
  %v1820 = vadd.f32 %v1506, %v1795
  %v1821 = vadd.f32 %v1507, %v1798
  %v1822 = vld [vmem:[#allocation2 + $0x4] sm:$0xe]
  %s1823 = scalar_lea.vmem %s3, 128
  %v1824 = vld [vmem:[%s1823] sm:$0xf]
  %v1825 = vld [vmem:[%s1823 + $0x4] sm:$0xf]
  %v1826 = vld [vmem:[%s1823 + $0x8] sm:$0xf]
  %v1827 = vld [vmem:[%s1823 + $0xc] sm:$0xf]
  %v1828 = vld [vmem:[%s1823 + $0x10] sm:$0xf]
  %v1829 = vld [vmem:[%s1823 + $0x14] sm:$0xf]
  %v1830 = vld [vmem:[%s1823 + $0x18] sm:$0xf]
  %v1831 = vld [vmem:[%s1823 + $0x1c] sm:$0xf]
  %v1833 = vunpack.c.l.b16 %v1822
  %v1834 = vpack.c.b16 %v1562, %v1833
  %v1835 = vrot.slane %v1834, 1
  %v1836 = vrot.slane %v1584, 1
  %v1837 = vsel %vm1345, %v1835, %v1836
  %v1838 = vrot.slane %v1585, 1
  %v1839 = vsel %vm1345, %v1836, %v1838
  %v1840 = vrot.slane %v1586, 1
  %v1841 = vsel %vm1345, %v1838, %v1840
  %v1842 = vrot.slane %v1587, 1
  %v1843 = vsel %vm1345, %v1840, %v1842
  %v1844 = vrot.slane %v1588, 1
  %v1845 = vsel %vm1345, %v1842, %v1844
  %v1846 = vrot.slane %v1589, 1
  %v1847 = vsel %vm1345, %v1844, %v1846
  %v1848 = vrot.slane %v1590, 1
  %v1849 = vsel %vm1345, %v1846, %v1848
  %v1850 = vrot.slane %v1591, 1
  %v1851 = vsel %vm1345, %v1848, %v1850
  %v1852 = vrot.slane %v1592, 1
  %v1853 = vsel %vm1345, %v1850, %v1852
  %v1854 = vrot.slane %v1593, 1
  %v1855 = vsel %vm1345, %v1852, %v1854
  %v1864 = vunpack.c.l.b16 %v1824
  %v1865 = vunpack.c.l.b16 %v1825
  %v1866 = vunpack.c.l.b16 %v1826
  %v1867 = vunpack.c.l.b16 %v1827
  %v1868 = vunpack.c.l.b16 %v1828
  %v1869 = vunpack.c.l.b16 %v1829
  %v1870 = vunpack.c.l.b16 %v1830
  %v1871 = vunpack.c.l.b16 %v1831
  %v1872 = vpack.c.b16 %v1865, %v1864
  %v1873 = vpack.c.b16 %v1867, %v1866
  %v1874 = vpack.c.b16 %v1869, %v1868
  %v1875 = vpack.c.b16 %v1871, %v1870
  %v1881 = vsel %vm1124, %v1837, 0
  %v1884 = vsel %vm1124, %v1839, 0
  %v1887 = vsel %vm1124, %v1841, 0
  %v1890 = vsel %vm1124, %v1843, 0
  %v1893 = vsel %vm1124, %v1845, 0
  %v1896 = vsel %vm1124, %v1847, 0
  %v1899 = vsel %vm1124, %v1849, 0
  %v1902 = vsel %vm1124, %v1851, 0
  %v1905 = vsel %vm1124, %v1853, 0
  %v1908 = vsel %vm1124, %v1855, 0
  %v1911 = vsel %vm1124, %v1854, 0
  %1913 = vmatpush.bf16.msra.mxu0 0
  %1914 = vmatpush.bf16.msra.mxu0 0
  %1915 = vmatpush.bf16.msra.mxu0 0
  %1916 = vmatpush.bf16.msra.mxu0 0
  %1917 = vmatpush.bf16.msra.mxu0 %v1875
  %1918 = vmatpush.bf16.msra.mxu0 %v1874
  %1919 = vmatpush.bf16.msra.mxu0 %v1873
  %1920 = vmatpush.bf16.msra.mxu0 %v1872
  %1921 = vmatmul.bf16.gmra.mxu0 %v1881
  %v1922 = vpop.f32.mrf.mxu0
  %v1923 = vadd.f32 0.0, %v1922
  %v1924 = vpop.f32.mrf.mxu0
  %v1925 = vadd.f32 0.0, %v1924
  %1926 = vmatmul.bf16.gmra.mxu0 %v1884
  %v1927 = vpop.f32.mrf.mxu0
  %v1928 = vadd.f32 0.0, %v1927
  %v1929 = vpop.f32.mrf.mxu0
  %v1930 = vadd.f32 0.0, %v1929
  %1931 = vmatmul.bf16.gmra.mxu0 %v1887
  %v1932 = vpop.f32.mrf.mxu0
  %v1933 = vadd.f32 0.0, %v1932
  %v1934 = vpop.f32.mrf.mxu0
  %v1935 = vadd.f32 0.0, %v1934
  %1936 = vmatmul.bf16.gmra.mxu0 %v1890
  %v1937 = vpop.f32.mrf.mxu0
  %v1938 = vadd.f32 0.0, %v1937
  %v1939 = vpop.f32.mrf.mxu0
  %v1940 = vadd.f32 0.0, %v1939
  %1941 = vmatmul.bf16.gmra.mxu0 %v1893
  %v1942 = vpop.f32.mrf.mxu0
  %v1943 = vadd.f32 0.0, %v1942
  %v1944 = vpop.f32.mrf.mxu0
  %v1945 = vadd.f32 0.0, %v1944
  %1946 = vmatmul.bf16.gmra.mxu0 %v1896
  %v1947 = vpop.f32.mrf.mxu0
  %v1948 = vadd.f32 0.0, %v1947
  %v1949 = vpop.f32.mrf.mxu0
  %v1950 = vadd.f32 0.0, %v1949
  %1951 = vmatmul.bf16.gmra.mxu0 %v1899
  %v1952 = vpop.f32.mrf.mxu0
  %v1953 = vadd.f32 0.0, %v1952
  %v1954 = vpop.f32.mrf.mxu0
  %v1955 = vadd.f32 0.0, %v1954
  %1956 = vmatmul.bf16.gmra.mxu0 %v1902
  %v1957 = vpop.f32.mrf.mxu0
  %v1958 = vadd.f32 0.0, %v1957
  %v1959 = vpop.f32.mrf.mxu0
  %v1960 = vadd.f32 0.0, %v1959
  %1961 = vmatmul.bf16.gmra.mxu0 %v1905
  %v1962 = vpop.f32.mrf.mxu0
  %v1963 = vadd.f32 0.0, %v1962
  %v1964 = vpop.f32.mrf.mxu0
  %v1965 = vadd.f32 0.0, %v1964
  %1966 = vmatmul.bf16.gmra.mxu0 %v1908
  %v1967 = vpop.f32.mrf.mxu0
  %v1968 = vadd.f32 0.0, %v1967
  %v1969 = vpop.f32.mrf.mxu0
  %v1970 = vadd.f32 0.0, %v1969
  %1971 = vmatmul.bf16.gmra.mxu0 %v1911
  %v1972 = vpop.f32.mrf.mxu0
  %v1973 = vadd.f32 0.0, %v1972
  %v1974 = vpop.f32.mrf.mxu0
  %1975 = vdwg.mxu0
  %v1976 = vadd.f32 %v1801, %v1923
  %v1977 = vadd.f32 %v1802, %v1925
  %v1978 = vadd.f32 %v1803, %v1928
  %v1979 = vadd.f32 %v1804, %v1930
  %v1980 = vadd.f32 %v1805, %v1933
  %v1981 = vadd.f32 %v1806, %v1935
  %v1982 = vadd.f32 %v1807, %v1938
  %v1983 = vadd.f32 %v1808, %v1940
  %v1984 = vadd.f32 %v1809, %v1943
  %v1985 = vadd.f32 %v1810, %v1945
  %v1986 = vadd.f32 %v1811, %v1948
  %v1987 = vadd.f32 %v1812, %v1950
  %v1988 = vadd.f32 %v1813, %v1953
  %v1989 = vadd.f32 %v1814, %v1955
  %v1990 = vadd.f32 %v1815, %v1958
  %v1991 = vadd.f32 %v1816, %v1960
  %v1992 = vadd.f32 %v1817, %v1963
  %v1993 = vadd.f32 %v1818, %v1965
  %v1994 = vadd.f32 %v1819, %v1968
  %v1995 = vadd.f32 %v1820, %v1970
  %v1996 = vadd.f32 %v1821, %v1973
  %v1997 = vld [vmem:[#allocation2 + $0x58] sm:$0x3]
  %s1998 = scalar_lea.vmem %s3, 160
  %v1999 = vld [vmem:[%s1998] sm:$0xf]
  %v2000 = vld [vmem:[%s1998 + $0x4] sm:$0xf]
  %v2001 = vld [vmem:[%s1998 + $0x8] sm:$0xf]
  %v2002 = vld [vmem:[%s1998 + $0xc] sm:$0xf]
  %v2003 = vld [vmem:[%s1998 + $0x10] sm:$0xf]
  %v2004 = vld [vmem:[%s1998 + $0x14] sm:$0xf]
  %v2005 = vld [vmem:[%s1998 + $0x18] sm:$0xf]
  %v2006 = vld [vmem:[%s1998 + $0x1c] sm:$0xf]
  %v2008 = vunpack.c.l.b16 %v1997
  %v2009 = vpack.c.b16 %v2008, %v1581
  %vm2010 = vsmask.f32 6400
  %v2012 = vshrl.u32 %v1834, 16
  %v2014 = vrot.slane %v2012, 1
  %v2015 = vshll.u32 %v1834, 16
  %v2017 = vrot.slane %v2015, 2
  %v2018 = vor.u32 %v2014, %v2017
  %v2019 = vrot.slane %v1606, 1
  %v2020 = vrot.slane %v1602, 2
  %v2021 = vor.u32 %v2019, %v2020
  %v2022 = vsel %vm2010, %v2018, %v2021
  %v2023 = vrot.slane %v1614, 1
  %v2024 = vrot.slane %v1610, 2
  %v2025 = vor.u32 %v2023, %v2024
  %v2026 = vsel %vm2010, %v2021, %v2025
  %v2027 = vrot.slane %v1622, 1
  %v2028 = vrot.slane %v1618, 2
  %v2029 = vor.u32 %v2027, %v2028
  %v2030 = vsel %vm2010, %v2025, %v2029
  %v2031 = vrot.slane %v1630, 1
  %v2032 = vrot.slane %v1626, 2
  %v2033 = vor.u32 %v2031, %v2032
  %v2034 = vsel %vm2010, %v2029, %v2033
  %v2035 = vrot.slane %v1638, 1
  %v2036 = vrot.slane %v1634, 2
  %v2037 = vor.u32 %v2035, %v2036
  %v2038 = vsel %vm2010, %v2033, %v2037
  %v2039 = vrot.slane %v1646, 1
  %v2040 = vrot.slane %v1642, 2
  %v2041 = vor.u32 %v2039, %v2040
  %v2042 = vsel %vm2010, %v2037, %v2041
  %v2043 = vrot.slane %v1654, 1
  %v2044 = vrot.slane %v1650, 2
  %v2045 = vor.u32 %v2043, %v2044
  %v2046 = vsel %vm2010, %v2041, %v2045
  %v2047 = vrot.slane %v1662, 1
  %v2048 = vrot.slane %v1658, 2
  %v2049 = vor.u32 %v2047, %v2048
  %v2050 = vsel %vm2010, %v2045, %v2049
  %v2051 = vrot.slane %v1670, 1
  %v2052 = vrot.slane %v1666, 2
  %v2053 = vor.u32 %v2051, %v2052
  %v2054 = vsel %vm2010, %v2049, %v2053
  %v2056 = vshrl.u32 %v2009, 16
  %v2058 = vrot.slane %v2056, 1
  %v2059 = vshll.u32 %v2009, 16
  %v2061 = vrot.slane %v2059, 2
  %v2062 = vor.u32 %v2058, %v2061
  %v2063 = vsel %vm2010, %v2053, %v2062
  %v2072 = vunpack.c.l.b16 %v1999
  %v2073 = vunpack.c.l.b16 %v2000
  %v2074 = vunpack.c.l.b16 %v2001
  %v2075 = vunpack.c.l.b16 %v2002
  %v2076 = vunpack.c.l.b16 %v2003
  %v2077 = vunpack.c.l.b16 %v2004
  %v2078 = vunpack.c.l.b16 %v2005
  %v2079 = vunpack.c.l.b16 %v2006
  %v2080 = vpack.c.b16 %v2073, %v2072
  %v2081 = vpack.c.b16 %v2075, %v2074
  %v2082 = vpack.c.b16 %v2077, %v2076
  %v2083 = vpack.c.b16 %v2079, %v2078
  %v2089 = vsel %vm1124, %v2022, 0
  %v2092 = vsel %vm1124, %v2026, 0
  %v2095 = vsel %vm1124, %v2030, 0
  %v2098 = vsel %vm1124, %v2034, 0
  %v2101 = vsel %vm1124, %v2038, 0
  %v2104 = vsel %vm1124, %v2042, 0
  %v2107 = vsel %vm1124, %v2046, 0
  %v2110 = vsel %vm1124, %v2050, 0
  %v2113 = vsel %vm1124, %v2054, 0
  %v2116 = vsel %vm1124, %v2063, 0
  %v2119 = vsel %vm1124, %v2062, 0
  %2121 = vmatpush.bf16.msra.mxu0 0
  %2122 = vmatpush.bf16.msra.mxu0 0
  %2123 = vmatpush.bf16.msra.mxu0 0
  %2124 = vmatpush.bf16.msra.mxu0 0
  %2125 = vmatpush.bf16.msra.mxu0 %v2083
  %2126 = vmatpush.bf16.msra.mxu0 %v2082
  %2127 = vmatpush.bf16.msra.mxu0 %v2081
  %2128 = vmatpush.bf16.msra.mxu0 %v2080
  %2129 = vmatmul.bf16.gmra.mxu0 %v2089
  %v2130 = vpop.f32.mrf.mxu0
  %v2131 = vadd.f32 0.0, %v2130
  %v2132 = vpop.f32.mrf.mxu0
  %v2133 = vadd.f32 0.0, %v2132
  %2134 = vmatmul.bf16.gmra.mxu0 %v2092
  %v2135 = vpop.f32.mrf.mxu0
  %v2136 = vadd.f32 0.0, %v2135
  %v2137 = vpop.f32.mrf.mxu0
  %v2138 = vadd.f32 0.0, %v2137
  %2139 = vmatmul.bf16.gmra.mxu0 %v2095
  %v2140 = vpop.f32.mrf.mxu0
  %v2141 = vadd.f32 0.0, %v2140
  %v2142 = vpop.f32.mrf.mxu0
  %v2143 = vadd.f32 0.0, %v2142
  %2144 = vmatmul.bf16.gmra.mxu0 %v2098
  %v2145 = vpop.f32.mrf.mxu0
  %v2146 = vadd.f32 0.0, %v2145
  %v2147 = vpop.f32.mrf.mxu0
  %v2148 = vadd.f32 0.0, %v2147
  %2149 = vmatmul.bf16.gmra.mxu0 %v2101
  %v2150 = vpop.f32.mrf.mxu0
  %v2151 = vadd.f32 0.0, %v2150
  %v2152 = vpop.f32.mrf.mxu0
  %v2153 = vadd.f32 0.0, %v2152
  %2154 = vmatmul.bf16.gmra.mxu0 %v2104
  %v2155 = vpop.f32.mrf.mxu0
  %v2156 = vadd.f32 0.0, %v2155
  %v2157 = vpop.f32.mrf.mxu0
  %v2158 = vadd.f32 0.0, %v2157
  %2159 = vmatmul.bf16.gmra.mxu0 %v2107
  %v2160 = vpop.f32.mrf.mxu0
  %v2161 = vadd.f32 0.0, %v2160
  %v2162 = vpop.f32.mrf.mxu0
  %v2163 = vadd.f32 0.0, %v2162
  %2164 = vmatmul.bf16.gmra.mxu0 %v2110
  %v2165 = vpop.f32.mrf.mxu0
  %v2166 = vadd.f32 0.0, %v2165
  %v2167 = vpop.f32.mrf.mxu0
  %v2168 = vadd.f32 0.0, %v2167
  %2169 = vmatmul.bf16.gmra.mxu0 %v2113
  %v2170 = vpop.f32.mrf.mxu0
  %v2171 = vadd.f32 0.0, %v2170
  %v2172 = vpop.f32.mrf.mxu0
  %v2173 = vadd.f32 0.0, %v2172
  %2174 = vmatmul.bf16.gmra.mxu0 %v2116
  %v2175 = vpop.f32.mrf.mxu0
  %v2176 = vadd.f32 0.0, %v2175
  %v2177 = vpop.f32.mrf.mxu0
  %v2178 = vadd.f32 0.0, %v2177
  %2179 = vmatmul.bf16.gmra.mxu0 %v2119
  %v2180 = vpop.f32.mrf.mxu0
  %v2181 = vadd.f32 0.0, %v2180
  %v2182 = vpop.f32.mrf.mxu0
  %2183 = vdwg.mxu0
  %v2184 = vadd.f32 %v1976, %v2131
  %v2185 = vadd.f32 %v1977, %v2133
  %v2186 = vadd.f32 %v1978, %v2136
  %v2187 = vadd.f32 %v1979, %v2138
  %v2188 = vadd.f32 %v1980, %v2141
  %v2189 = vadd.f32 %v1981, %v2143
  %v2190 = vadd.f32 %v1982, %v2146
  %v2191 = vadd.f32 %v1983, %v2148
  %v2192 = vadd.f32 %v1984, %v2151
  %v2193 = vadd.f32 %v1985, %v2153
  %v2194 = vadd.f32 %v1986, %v2156
  %v2195 = vadd.f32 %v1987, %v2158
  %v2196 = vadd.f32 %v1988, %v2161
  %v2197 = vadd.f32 %v1989, %v2163
  %v2198 = vadd.f32 %v1990, %v2166
  %v2199 = vadd.f32 %v1991, %v2168
  %v2200 = vadd.f32 %v1992, %v2171
  %v2201 = vadd.f32 %v1993, %v2173
  %v2202 = vadd.f32 %v1994, %v2176
  %v2203 = vadd.f32 %v1995, %v2178
  %v2204 = vadd.f32 %v1996, %v2181
  %v2205 = vld [vmem:[#allocation2 + $0x8] sm:$0xe]
  %v2206 = vld [vmem:[#allocation2 + $0xc] sm:$0xf]
  %v2207 = vld [vmem:[#allocation2 + $0x10] sm:$0xf]
  %v2208 = vld [vmem:[#allocation2 + $0x14] sm:$0xf]
  %v2209 = vld [vmem:[#allocation2 + $0x18] sm:$0xf]
  %v2210 = vld [vmem:[#allocation2 + $0x1c] sm:$0xf]
  %v2211 = vld [vmem:[#allocation2 + $0x20] sm:$0xf]
  %v2212 = vld [vmem:[#allocation2 + $0x24] sm:$0xf]
  %v2213 = vld [vmem:[#allocation2 + $0x28] sm:$0xf]
  %v2214 = vld [vmem:[#allocation2 + $0x2c] sm:$0xf]
  %v2215 = vld [vmem:[#allocation2 + $0x30] sm:$0xf]
  %v2216 = vld [vmem:[#allocation2 + $0x34] sm:$0xf]
  %v2217 = vld [vmem:[#allocation2 + $0x38] sm:$0xf]
  %v2218 = vld [vmem:[#allocation2 + $0x3c] sm:$0xf]
  %v2219 = vld [vmem:[#allocation2 + $0x40] sm:$0xf]
  %v2220 = vld [vmem:[#allocation2 + $0x44] sm:$0xf]
  %v2221 = vld [vmem:[#allocation2 + $0x48] sm:$0xf]
  %v2222 = vld [vmem:[#allocation2 + $0x4c] sm:$0xf]
  %v2223 = vld [vmem:[#allocation2 + $0x50] sm:$0xf]
  %v2224 = vld [vmem:[#allocation2 + $0x54] sm:$0xf]
  %v2225 = vld [vmem:[#allocation2 + $0x58] sm:$0xf]
  %v2226 = vld [vmem:[#allocation2 + $0x5c] sm:$0x1]
  %s2227 = scalar_lea.vmem %s3, 192
  %v2228 = vld [vmem:[%s2227] sm:$0xf]
  %v2229 = vld [vmem:[%s2227 + $0x4] sm:$0xf]
  %v2230 = vld [vmem:[%s2227 + $0x8] sm:$0xf]
  %v2231 = vld [vmem:[%s2227 + $0xc] sm:$0xf]
  %v2232 = vld [vmem:[%s2227 + $0x10] sm:$0xf]
  %v2233 = vld [vmem:[%s2227 + $0x14] sm:$0xf]
  %v2234 = vld [vmem:[%s2227 + $0x18] sm:$0xf]
  %v2235 = vld [vmem:[%s2227 + $0x1c] sm:$0xf]
  %v2258 = vunpack.c.l.b16 %v2205
  %v2259 = vunpack.c.l.b16 %v2206
  %v2260 = vunpack.c.l.b16 %v2207
  %v2261 = vunpack.c.l.b16 %v2208
  %v2262 = vunpack.c.l.b16 %v2209
  %v2263 = vunpack.c.l.b16 %v2210
  %v2264 = vunpack.c.l.b16 %v2211
  %v2265 = vunpack.c.l.b16 %v2212
  %v2266 = vunpack.c.l.b16 %v2213
  %v2267 = vunpack.c.l.b16 %v2214
  %v2268 = vunpack.c.l.b16 %v2215
  %v2269 = vunpack.c.l.b16 %v2216
  %v2270 = vunpack.c.l.b16 %v2217
  %v2271 = vunpack.c.l.b16 %v2218
  %v2272 = vunpack.c.l.b16 %v2219
  %v2273 = vunpack.c.l.b16 %v2220
  %v2274 = vunpack.c.l.b16 %v2221
  %v2275 = vunpack.c.l.b16 %v2222
  %v2276 = vunpack.c.l.b16 %v2223
  %v2277 = vunpack.c.l.b16 %v2224
  %v2278 = vunpack.c.l.b16 %v2225
  %v2279 = vunpack.c.l.b16 %v2226
  %v2280 = vpack.c.b16 %v2259, %v2258
  %v2281 = vpack.c.b16 %v2261, %v2260
  %v2282 = vpack.c.b16 %v2263, %v2262
  %v2283 = vpack.c.b16 %v2265, %v2264
  %v2284 = vpack.c.b16 %v2267, %v2266
  %v2285 = vpack.c.b16 %v2269, %v2268
  %v2286 = vpack.c.b16 %v2271, %v2270
  %v2287 = vpack.c.b16 %v2273, %v2272
  %v2288 = vpack.c.b16 %v2275, %v2274
  %v2289 = vpack.c.b16 %v2277, %v2276
  %v2290 = vpack.c.b16 %v2279, %v2278
  %v2291 = vrot.slane %v2280, 1
  %v2292 = vrot.slane %v2281, 1
  %v2293 = vsel %vm1345, %v2291, %v2292
  %v2294 = vrot.slane %v2282, 1
  %v2295 = vsel %vm1345, %v2292, %v2294
  %v2296 = vrot.slane %v2283, 1
  %v2297 = vsel %vm1345, %v2294, %v2296
  %v2298 = vrot.slane %v2284, 1
  %v2299 = vsel %vm1345, %v2296, %v2298
  %v2300 = vrot.slane %v2285, 1
  %v2301 = vsel %vm1345, %v2298, %v2300
  %v2302 = vrot.slane %v2286, 1
  %v2303 = vsel %vm1345, %v2300, %v2302
  %v2304 = vrot.slane %v2287, 1
  %v2305 = vsel %vm1345, %v2302, %v2304
  %v2306 = vrot.slane %v2288, 1
  %v2307 = vsel %vm1345, %v2304, %v2306
  %v2308 = vrot.slane %v2289, 1
  %v2309 = vsel %vm1345, %v2306, %v2308
  %v2310 = vrot.slane %v2290, 1
  %v2311 = vsel %vm1345, %v2308, %v2310
  %v2320 = vunpack.c.l.b16 %v2228
  %v2321 = vunpack.c.l.b16 %v2229
  %v2322 = vunpack.c.l.b16 %v2230
  %v2323 = vunpack.c.l.b16 %v2231
  %v2324 = vunpack.c.l.b16 %v2232
  %v2325 = vunpack.c.l.b16 %v2233
  %v2326 = vunpack.c.l.b16 %v2234
  %v2327 = vunpack.c.l.b16 %v2235
  %v2328 = vpack.c.b16 %v2321, %v2320
  %v2329 = vpack.c.b16 %v2323, %v2322
  %v2330 = vpack.c.b16 %v2325, %v2324
  %v2331 = vpack.c.b16 %v2327, %v2326
  %v2337 = vsel %vm1124, %v2293, 0
  %v2340 = vsel %vm1124, %v2295, 0
  %v2343 = vsel %vm1124, %v2297, 0
  %v2346 = vsel %vm1124, %v2299, 0
  %v2349 = vsel %vm1124, %v2301, 0
  %v2352 = vsel %vm1124, %v2303, 0
  %v2355 = vsel %vm1124, %v2305, 0
  %v2358 = vsel %vm1124, %v2307, 0
  %v2361 = vsel %vm1124, %v2309, 0
  %v2364 = vsel %vm1124, %v2311, 0
  %v2367 = vsel %vm1124, %v2310, 0
  %2369 = vmatpush.bf16.msra.mxu0 0
  %2370 = vmatpush.bf16.msra.mxu0 0
  %2371 = vmatpush.bf16.msra.mxu0 0
  %2372 = vmatpush.bf16.msra.mxu0 0
  %2373 = vmatpush.bf16.msra.mxu0 %v2331
  %2374 = vmatpush.bf16.msra.mxu0 %v2330
  %2375 = vmatpush.bf16.msra.mxu0 %v2329
  %2376 = vmatpush.bf16.msra.mxu0 %v2328
  %2377 = vmatmul.bf16.gmra.mxu0 %v2337
  %v2378 = vpop.f32.mrf.mxu0
  %v2379 = vadd.f32 0.0, %v2378
  %v2380 = vpop.f32.mrf.mxu0
  %v2381 = vadd.f32 0.0, %v2380
  %2382 = vmatmul.bf16.gmra.mxu0 %v2340
  %v2383 = vpop.f32.mrf.mxu0
  %v2384 = vadd.f32 0.0, %v2383
  %v2385 = vpop.f32.mrf.mxu0
  %v2386 = vadd.f32 0.0, %v2385
  %2387 = vmatmul.bf16.gmra.mxu0 %v2343
  %v2388 = vpop.f32.mrf.mxu0
  %v2389 = vadd.f32 0.0, %v2388
  %v2390 = vpop.f32.mrf.mxu0
  %v2391 = vadd.f32 0.0, %v2390
  %2392 = vmatmul.bf16.gmra.mxu0 %v2346
  %v2393 = vpop.f32.mrf.mxu0
  %v2394 = vadd.f32 0.0, %v2393
  %v2395 = vpop.f32.mrf.mxu0
  %v2396 = vadd.f32 0.0, %v2395
  %2397 = vmatmul.bf16.gmra.mxu0 %v2349
  %v2398 = vpop.f32.mrf.mxu0
  %v2399 = vadd.f32 0.0, %v2398
  %v2400 = vpop.f32.mrf.mxu0
  %v2401 = vadd.f32 0.0, %v2400
  %2402 = vmatmul.bf16.gmra.mxu0 %v2352
  %v2403 = vpop.f32.mrf.mxu0
  %v2404 = vadd.f32 0.0, %v2403
  %v2405 = vpop.f32.mrf.mxu0
  %v2406 = vadd.f32 0.0, %v2405
  %2407 = vmatmul.bf16.gmra.mxu0 %v2355
  %v2408 = vpop.f32.mrf.mxu0
  %v2409 = vadd.f32 0.0, %v2408
  %v2410 = vpop.f32.mrf.mxu0
  %v2411 = vadd.f32 0.0, %v2410
  %2412 = vmatmul.bf16.gmra.mxu0 %v2358
  %v2413 = vpop.f32.mrf.mxu0
  %v2414 = vadd.f32 0.0, %v2413
  %v2415 = vpop.f32.mrf.mxu0
  %v2416 = vadd.f32 0.0, %v2415
  %2417 = vmatmul.bf16.gmra.mxu0 %v2361
  %v2418 = vpop.f32.mrf.mxu0
  %v2419 = vadd.f32 0.0, %v2418
  %v2420 = vpop.f32.mrf.mxu0
  %v2421 = vadd.f32 0.0, %v2420
  %2422 = vmatmul.bf16.gmra.mxu0 %v2364
  %v2423 = vpop.f32.mrf.mxu0
  %v2424 = vadd.f32 0.0, %v2423
  %v2425 = vpop.f32.mrf.mxu0
  %v2426 = vadd.f32 0.0, %v2425
  %2427 = vmatmul.bf16.gmra.mxu0 %v2367
  %v2428 = vpop.f32.mrf.mxu0
  %v2429 = vadd.f32 0.0, %v2428
  %v2430 = vpop.f32.mrf.mxu0
  %2431 = vdwg.mxu0
  %v2432 = vadd.f32 %v2184, %v2379
  %v2433 = vadd.f32 %v2185, %v2381
  %v2434 = vadd.f32 %v2186, %v2384
  %v2435 = vadd.f32 %v2187, %v2386
  %v2436 = vadd.f32 %v2188, %v2389
  %v2437 = vadd.f32 %v2189, %v2391
  %v2438 = vadd.f32 %v2190, %v2394
  %v2439 = vadd.f32 %v2191, %v2396
  %v2440 = vadd.f32 %v2192, %v2399
  %v2441 = vadd.f32 %v2193, %v2401
  %v2442 = vadd.f32 %v2194, %v2404
  %v2443 = vadd.f32 %v2195, %v2406
  %v2444 = vadd.f32 %v2196, %v2409
  %v2445 = vadd.f32 %v2197, %v2411
  %v2446 = vadd.f32 %v2198, %v2414
  %v2447 = vadd.f32 %v2199, %v2416
  %v2448 = vadd.f32 %v2200, %v2419
  %v2449 = vadd.f32 %v2201, %v2421
  %v2450 = vadd.f32 %v2202, %v2424
  %v2451 = vadd.f32 %v2203, %v2426
  %v2452 = vadd.f32 %v2204, %v2429
  %v2453 = vld [vmem:[#allocation2 + $0x5c] sm:$0x3]
  %s2454 = scalar_lea.vmem %s3, 224
  %v2455 = vld [vmem:[%s2454] sm:$0xf]
  %v2456 = vld [vmem:[%s2454 + $0x4] sm:$0xf]
  %v2457 = vld [vmem:[%s2454 + $0x8] sm:$0xf]
  %v2458 = vld [vmem:[%s2454 + $0xc] sm:$0xf]
  %v2459 = vld [vmem:[%s2454 + $0x10] sm:$0xf]
  %v2460 = vld [vmem:[%s2454 + $0x14] sm:$0xf]
  %v2461 = vld [vmem:[%s2454 + $0x18] sm:$0xf]
  %v2462 = vld [vmem:[%s2454 + $0x1c] sm:$0xf]
  %v2464 = vunpack.c.l.b16 %v2453
  %v2465 = vpack.c.b16 %v2464, %v2278
  %v2467 = vshrl.u32 %v2280, 16
  %v2469 = vrot.slane %v2467, 1
  %v2470 = vshll.u32 %v2280, 16
  %v2472 = vrot.slane %v2470, 2
  %v2473 = vor.u32 %v2469, %v2472
  %v2475 = vshrl.u32 %v2281, 16
  %v2477 = vrot.slane %v2475, 1
  %v2478 = vshll.u32 %v2281, 16
  %v2480 = vrot.slane %v2478, 2
  %v2481 = vor.u32 %v2477, %v2480
  %v2482 = vsel %vm2010, %v2473, %v2481
  %v2484 = vshrl.u32 %v2282, 16
  %v2486 = vrot.slane %v2484, 1
  %v2487 = vshll.u32 %v2282, 16
  %v2489 = vrot.slane %v2487, 2
  %v2490 = vor.u32 %v2486, %v2489
  %v2491 = vsel %vm2010, %v2481, %v2490
  %v2493 = vshrl.u32 %v2283, 16
  %v2495 = vrot.slane %v2493, 1
  %v2496 = vshll.u32 %v2283, 16
  %v2498 = vrot.slane %v2496, 2
  %v2499 = vor.u32 %v2495, %v2498
  %v2500 = vsel %vm2010, %v2490, %v2499
  %v2502 = vshrl.u32 %v2284, 16
  %v2504 = vrot.slane %v2502, 1
  %v2505 = vshll.u32 %v2284, 16
  %v2507 = vrot.slane %v2505, 2
  %v2508 = vor.u32 %v2504, %v2507
  %v2509 = vsel %vm2010, %v2499, %v2508
  %v2511 = vshrl.u32 %v2285, 16
  %v2513 = vrot.slane %v2511, 1
  %v2514 = vshll.u32 %v2285, 16
  %v2516 = vrot.slane %v2514, 2
  %v2517 = vor.u32 %v2513, %v2516
  %v2518 = vsel %vm2010, %v2508, %v2517
  %v2520 = vshrl.u32 %v2286, 16
  %v2522 = vrot.slane %v2520, 1
  %v2523 = vshll.u32 %v2286, 16
  %v2525 = vrot.slane %v2523, 2
  %v2526 = vor.u32 %v2522, %v2525
  %v2527 = vsel %vm2010, %v2517, %v2526
  %v2529 = vshrl.u32 %v2287, 16
  %v2531 = vrot.slane %v2529, 1
  %v2532 = vshll.u32 %v2287, 16
  %v2534 = vrot.slane %v2532, 2
  %v2535 = vor.u32 %v2531, %v2534
  %v2536 = vsel %vm2010, %v2526, %v2535
  %v2538 = vshrl.u32 %v2288, 16
  %v2540 = vrot.slane %v2538, 1
  %v2541 = vshll.u32 %v2288, 16
  %v2543 = vrot.slane %v2541, 2
  %v2544 = vor.u32 %v2540, %v2543
  %v2545 = vsel %vm2010, %v2535, %v2544
  %v2547 = vshrl.u32 %v2289, 16
  %v2549 = vrot.slane %v2547, 1
  %v2550 = vshll.u32 %v2289, 16
  %v2552 = vrot.slane %v2550, 2
  %v2553 = vor.u32 %v2549, %v2552
  %v2554 = vsel %vm2010, %v2544, %v2553
  %v2556 = vshrl.u32 %v2465, 16
  %v2558 = vrot.slane %v2556, 1
  %v2559 = vshll.u32 %v2465, 16
  %v2561 = vrot.slane %v2559, 2
  %v2562 = vor.u32 %v2558, %v2561
  %v2563 = vsel %vm2010, %v2553, %v2562
  %v2572 = vunpack.c.l.b16 %v2455
  %v2573 = vunpack.c.l.b16 %v2456
  %v2574 = vunpack.c.l.b16 %v2457
  %v2575 = vunpack.c.l.b16 %v2458
  %v2576 = vunpack.c.l.b16 %v2459
  %v2577 = vunpack.c.l.b16 %v2460
  %v2578 = vunpack.c.l.b16 %v2461
  %v2579 = vunpack.c.l.b16 %v2462
  %v2580 = vpack.c.b16 %v2573, %v2572
  %v2581 = vpack.c.b16 %v2575, %v2574
  %v2582 = vpack.c.b16 %v2577, %v2576
  %v2583 = vpack.c.b16 %v2579, %v2578
  %v2589 = vsel %vm1124, %v2482, 0
  %v2592 = vsel %vm1124, %v2491, 0
  %v2595 = vsel %vm1124, %v2500, 0
  %v2598 = vsel %vm1124, %v2509, 0
  %v2601 = vsel %vm1124, %v2518, 0
  %v2604 = vsel %vm1124, %v2527, 0
  %v2607 = vsel %vm1124, %v2536, 0
  %v2610 = vsel %vm1124, %v2545, 0
  %v2613 = vsel %vm1124, %v2554, 0
  %v2616 = vsel %vm1124, %v2563, 0
  %v2619 = vsel %vm1124, %v2562, 0
  %2621 = vmatpush.bf16.msra.mxu0 0
  %2622 = vmatpush.bf16.msra.mxu0 0
  %2623 = vmatpush.bf16.msra.mxu0 0
  %2624 = vmatpush.bf16.msra.mxu0 0
  %2625 = vmatpush.bf16.msra.mxu0 %v2583
  %2626 = vmatpush.bf16.msra.mxu0 %v2582
  %2627 = vmatpush.bf16.msra.mxu0 %v2581
  %2628 = vmatpush.bf16.msra.mxu0 %v2580
  %2629 = vmatmul.bf16.gmra.mxu0 %v2589
  %v2630 = vpop.f32.mrf.mxu0
  %v2631 = vadd.f32 0.0, %v2630
  %v2632 = vpop.f32.mrf.mxu0
  %v2633 = vadd.f32 0.0, %v2632
  %2634 = vmatmul.bf16.gmra.mxu0 %v2592
  %v2635 = vpop.f32.mrf.mxu0
  %v2636 = vadd.f32 0.0, %v2635
  %v2637 = vpop.f32.mrf.mxu0
  %v2638 = vadd.f32 0.0, %v2637
  %2639 = vmatmul.bf16.gmra.mxu0 %v2595
  %v2640 = vpop.f32.mrf.mxu0
  %v2641 = vadd.f32 0.0, %v2640
  %v2642 = vpop.f32.mrf.mxu0
  %v2643 = vadd.f32 0.0, %v2642
  %2644 = vmatmul.bf16.gmra.mxu0 %v2598
  %v2645 = vpop.f32.mrf.mxu0
  %v2646 = vadd.f32 0.0, %v2645
  %v2647 = vpop.f32.mrf.mxu0
  %v2648 = vadd.f32 0.0, %v2647
  %2649 = vmatmul.bf16.gmra.mxu0 %v2601
  %v2650 = vpop.f32.mrf.mxu0
  %v2651 = vadd.f32 0.0, %v2650
  %v2652 = vpop.f32.mrf.mxu0
  %v2653 = vadd.f32 0.0, %v2652
  %2654 = vmatmul.bf16.gmra.mxu0 %v2604
  %v2655 = vpop.f32.mrf.mxu0
  %v2656 = vadd.f32 0.0, %v2655
  %v2657 = vpop.f32.mrf.mxu0
  %v2658 = vadd.f32 0.0, %v2657
  %2659 = vmatmul.bf16.gmra.mxu0 %v2607
  %v2660 = vpop.f32.mrf.mxu0
  %v2661 = vadd.f32 0.0, %v2660
  %v2662 = vpop.f32.mrf.mxu0
  %v2663 = vadd.f32 0.0, %v2662
  %2664 = vmatmul.bf16.gmra.mxu0 %v2610
  %v2665 = vpop.f32.mrf.mxu0
  %v2666 = vadd.f32 0.0, %v2665
  %v2667 = vpop.f32.mrf.mxu0
  %v2668 = vadd.f32 0.0, %v2667
  %2669 = vmatmul.bf16.gmra.mxu0 %v2613
  %v2670 = vpop.f32.mrf.mxu0
  %v2671 = vadd.f32 0.0, %v2670
  %v2672 = vpop.f32.mrf.mxu0
  %v2673 = vadd.f32 0.0, %v2672
  %2674 = vmatmul.bf16.gmra.mxu0 %v2616
  %v2675 = vpop.f32.mrf.mxu0
  %v2676 = vadd.f32 0.0, %v2675
  %v2677 = vpop.f32.mrf.mxu0
  %v2678 = vadd.f32 0.0, %v2677
  %2679 = vmatmul.bf16.gmra.mxu0 %v2619
  %v2680 = vpop.f32.mrf.mxu0
  %v2681 = vadd.f32 0.0, %v2680
  %v2682 = vpop.f32.mrf.mxu0
  %2683 = vdwg.mxu0
  %v2684 = vadd.f32 %v2432, %v2631
  %v2685 = vadd.f32 %v2433, %v2633
  %v2686 = vadd.f32 %v2434, %v2636
  %v2687 = vadd.f32 %v2435, %v2638
  %v2688 = vadd.f32 %v2436, %v2641
  %v2689 = vadd.f32 %v2437, %v2643
  %v2690 = vadd.f32 %v2438, %v2646
  %v2691 = vadd.f32 %v2439, %v2648
  %v2692 = vadd.f32 %v2440, %v2651
  %v2693 = vadd.f32 %v2441, %v2653
  %v2694 = vadd.f32 %v2442, %v2656
  %v2695 = vadd.f32 %v2443, %v2658
  %v2696 = vadd.f32 %v2444, %v2661
  %v2697 = vadd.f32 %v2445, %v2663
  %v2698 = vadd.f32 %v2446, %v2666
  %v2699 = vadd.f32 %v2447, %v2668
  %v2700 = vadd.f32 %v2448, %v2671
  %v2701 = vadd.f32 %v2449, %v2673
  %v2702 = vadd.f32 %v2450, %v2676
  %v2703 = vadd.f32 %v2451, %v2678
  %v2704 = vadd.f32 %v2452, %v2681
  %v2705 = vld [vmem:[#allocation2 + $0x8] sm:$0xc]
  %s2706 = scalar_lea.vmem %s3, 256
  %v2707 = vld [vmem:[%s2706] sm:$0xf]
  %v2708 = vld [vmem:[%s2706 + $0x4] sm:$0xf]
  %v2709 = vld [vmem:[%s2706 + $0x8] sm:$0xf]
  %v2710 = vld [vmem:[%s2706 + $0xc] sm:$0xf]
  %v2711 = vld [vmem:[%s2706 + $0x10] sm:$0xf]
  %v2712 = vld [vmem:[%s2706 + $0x14] sm:$0xf]
  %v2713 = vld [vmem:[%s2706 + $0x18] sm:$0xf]
  %v2714 = vld [vmem:[%s2706 + $0x1c] sm:$0xf]
  %v2716 = vunpack.c.l.b16 %v2705
  %v2717 = vpack.c.b16 %v2259, %v2716
  %vm2718 = vcmask 1045504
  %v2719 = vrot.slane %v2717, 2
  %v2720 = vrot.slane %v2281, 2
  %v2721 = vsel %vm2718, %v2719, %v2720
  %v2722 = vrot.slane %v2282, 2
  %v2723 = vsel %vm2718, %v2720, %v2722
  %v2724 = vrot.slane %v2283, 2
  %v2725 = vsel %vm2718, %v2722, %v2724
  %v2726 = vrot.slane %v2284, 2
  %v2727 = vsel %vm2718, %v2724, %v2726
  %v2728 = vrot.slane %v2285, 2
  %v2729 = vsel %vm2718, %v2726, %v2728
  %v2730 = vrot.slane %v2286, 2
  %v2731 = vsel %vm2718, %v2728, %v2730
  %v2732 = vrot.slane %v2287, 2
  %v2733 = vsel %vm2718, %v2730, %v2732
  %v2734 = vrot.slane %v2288, 2
  %v2735 = vsel %vm2718, %v2732, %v2734
  %v2736 = vrot.slane %v2289, 2
  %v2737 = vsel %vm2718, %v2734, %v2736
  %v2738 = vrot.slane %v2465, 2
  %v2739 = vsel %vm2718, %v2736, %v2738
  %v2748 = vunpack.c.l.b16 %v2707
  %v2749 = vunpack.c.l.b16 %v2708
  %v2750 = vunpack.c.l.b16 %v2709
  %v2751 = vunpack.c.l.b16 %v2710
  %v2752 = vunpack.c.l.b16 %v2711
  %v2753 = vunpack.c.l.b16 %v2712
  %v2754 = vunpack.c.l.b16 %v2713
  %v2755 = vunpack.c.l.b16 %v2714
  %v2756 = vpack.c.b16 %v2749, %v2748
  %v2757 = vpack.c.b16 %v2751, %v2750
  %v2758 = vpack.c.b16 %v2753, %v2752
  %v2759 = vpack.c.b16 %v2755, %v2754
  %v2765 = vsel %vm1124, %v2721, 0
  %v2768 = vsel %vm1124, %v2723, 0
  %v2771 = vsel %vm1124, %v2725, 0
  %v2774 = vsel %vm1124, %v2727, 0
  %v2777 = vsel %vm1124, %v2729, 0
  %v2780 = vsel %vm1124, %v2731, 0
  %v2783 = vsel %vm1124, %v2733, 0
  %v2786 = vsel %vm1124, %v2735, 0
  %v2789 = vsel %vm1124, %v2737, 0
  %v2792 = vsel %vm1124, %v2739, 0
  %v2795 = vsel %vm1124, %v2738, 0
  %2797 = vmatpush.bf16.msra.mxu0 0
  %2798 = vmatpush.bf16.msra.mxu0 0
  %2799 = vmatpush.bf16.msra.mxu0 0
  %2800 = vmatpush.bf16.msra.mxu0 0
  %2801 = vmatpush.bf16.msra.mxu0 %v2759
  %2802 = vmatpush.bf16.msra.mxu0 %v2758
  %2803 = vmatpush.bf16.msra.mxu0 %v2757
  %2804 = vmatpush.bf16.msra.mxu0 %v2756
  %2805 = vmatmul.bf16.gmra.mxu0 %v2765
  %v2806 = vpop.f32.mrf.mxu0
  %v2807 = vadd.f32 0.0, %v2806
  %v2808 = vpop.f32.mrf.mxu0
  %v2809 = vadd.f32 0.0, %v2808
  %2810 = vmatmul.bf16.gmra.mxu0 %v2768
  %v2811 = vpop.f32.mrf.mxu0
  %v2812 = vadd.f32 0.0, %v2811
  %v2813 = vpop.f32.mrf.mxu0
  %v2814 = vadd.f32 0.0, %v2813
  %2815 = vmatmul.bf16.gmra.mxu0 %v2771
  %v2816 = vpop.f32.mrf.mxu0
  %v2817 = vadd.f32 0.0, %v2816
  %v2818 = vpop.f32.mrf.mxu0
  %v2819 = vadd.f32 0.0, %v2818
  %2820 = vmatmul.bf16.gmra.mxu0 %v2774
  %v2821 = vpop.f32.mrf.mxu0
  %v2822 = vadd.f32 0.0, %v2821
  %v2823 = vpop.f32.mrf.mxu0
  %v2824 = vadd.f32 0.0, %v2823
  %2825 = vmatmul.bf16.gmra.mxu0 %v2777
  %v2826 = vpop.f32.mrf.mxu0
  %v2827 = vadd.f32 0.0, %v2826
  %v2828 = vpop.f32.mrf.mxu0
  %v2829 = vadd.f32 0.0, %v2828
  %2830 = vmatmul.bf16.gmra.mxu0 %v2780
  %v2831 = vpop.f32.mrf.mxu0
  %v2832 = vadd.f32 0.0, %v2831
  %v2833 = vpop.f32.mrf.mxu0
  %v2834 = vadd.f32 0.0, %v2833
  %2835 = vmatmul.bf16.gmra.mxu0 %v2783
  %v2836 = vpop.f32.mrf.mxu0
  %v2837 = vadd.f32 0.0, %v2836
  %v2838 = vpop.f32.mrf.mxu0
  %v2839 = vadd.f32 0.0, %v2838
  %2840 = vmatmul.bf16.gmra.mxu0 %v2786
  %v2841 = vpop.f32.mrf.mxu0
  %v2842 = vadd.f32 0.0, %v2841
  %v2843 = vpop.f32.mrf.mxu0
  %v2844 = vadd.f32 0.0, %v2843
  %2845 = vmatmul.bf16.gmra.mxu0 %v2789
  %v2846 = vpop.f32.mrf.mxu0
  %v2847 = vadd.f32 0.0, %v2846
  %v2848 = vpop.f32.mrf.mxu0
  %v2849 = vadd.f32 0.0, %v2848
  %2850 = vmatmul.bf16.gmra.mxu0 %v2792
  %v2851 = vpop.f32.mrf.mxu0
  %v2852 = vadd.f32 0.0, %v2851
  %v2853 = vpop.f32.mrf.mxu0
  %v2854 = vadd.f32 0.0, %v2853
  %2855 = vmatmul.bf16.gmra.mxu0 %v2795
  %v2856 = vpop.f32.mrf.mxu0
  %v2857 = vadd.f32 0.0, %v2856
  %v2858 = vpop.f32.mrf.mxu0
  %2859 = vdwg.mxu0
  %v2860 = vadd.f32 %v2684, %v2807
  %v2861 = vadd.f32 %v2685, %v2809
  %v2862 = vadd.f32 %v2686, %v2812
  %v2863 = vadd.f32 %v2687, %v2814
  %v2864 = vadd.f32 %v2688, %v2817
  %v2865 = vadd.f32 %v2689, %v2819
  %v2866 = vadd.f32 %v2690, %v2822
  %v2867 = vadd.f32 %v2691, %v2824
  %v2868 = vadd.f32 %v2692, %v2827
  %v2869 = vadd.f32 %v2693, %v2829
  %v2870 = vadd.f32 %v2694, %v2832
  %v2871 = vadd.f32 %v2695, %v2834
  %v2872 = vadd.f32 %v2696, %v2837
  %v2873 = vadd.f32 %v2697, %v2839
  %v2874 = vadd.f32 %v2698, %v2842
  %v2875 = vadd.f32 %v2699, %v2844
  %v2876 = vadd.f32 %v2700, %v2847
  %v2877 = vadd.f32 %v2701, %v2849
  %v2878 = vadd.f32 %v2702, %v2852
  %v2879 = vadd.f32 %v2703, %v2854
  %v2880 = vadd.f32 %v2704, %v2857
  %v2881 = vld [vmem:[%s4] sm:$0x1]
  %v2883 = vperm.slane %v2881, 0
  %v2885 = vadd.f32 %v2860, %v2883
  %v2886 = vadd.f32 %v2861, %v2883
  %v2887 = vadd.f32 %v2862, %v2883
  %v2888 = vadd.f32 %v2863, %v2883
  %v2889 = vadd.f32 %v2864, %v2883
  %v2890 = vadd.f32 %v2865, %v2883
  %v2891 = vadd.f32 %v2866, %v2883
  %v2892 = vadd.f32 %v2867, %v2883
  %v2893 = vadd.f32 %v2868, %v2883
  %v2894 = vadd.f32 %v2869, %v2883
  %v2895 = vadd.f32 %v2870, %v2883
  %v2896 = vadd.f32 %v2871, %v2883
  %v2897 = vadd.f32 %v2872, %v2883
  %v2898 = vadd.f32 %v2873, %v2883
  %v2899 = vadd.f32 %v2874, %v2883
  %v2900 = vadd.f32 %v2875, %v2883
  %v2901 = vadd.f32 %v2876, %v2883
  %v2902 = vadd.f32 %v2877, %v2883
  %v2903 = vadd.f32 %v2878, %v2883
  %v2904 = vadd.f32 %v2879, %v2883
  %v2905 = vadd.f32 %v2880, %v2883
  %v2906 = vmax.f32 %v2885, 0.0
  %v2907 = vmax.f32 %v2886, 0.0
  %v2908 = vmax.f32 %v2887, 0.0
  %v2909 = vmax.f32 %v2888, 0.0
  %v2910 = vmax.f32 %v2889, 0.0
  %v2911 = vmax.f32 %v2890, 0.0
  %v2912 = vmax.f32 %v2891, 0.0
  %v2913 = vmax.f32 %v2892, 0.0
  %v2914 = vmax.f32 %v2893, 0.0
  %v2915 = vmax.f32 %v2894, 0.0
  %v2916 = vmax.f32 %v2895, 0.0
  %v2917 = vmax.f32 %v2896, 0.0
  %v2918 = vmax.f32 %v2897, 0.0
  %v2919 = vmax.f32 %v2898, 0.0
  %v2920 = vmax.f32 %v2899, 0.0
  %v2921 = vmax.f32 %v2900, 0.0
  %v2922 = vmax.f32 %v2901, 0.0
  %v2923 = vmax.f32 %v2902, 0.0
  %v2924 = vmax.f32 %v2903, 0.0
  %v2925 = vmax.f32 %v2904, 0.0
  %v2926 = vmax.f32 %v2905, 0.0
  %v2927 = vpack.c.bf16 %v2906, %v2906
  %v2928 = vpack.c.bf16 %v2907, %v2907
  %v2929 = vpack.c.bf16 %v2908, %v2908
  %v2930 = vpack.c.bf16 %v2909, %v2909
  %v2931 = vpack.c.bf16 %v2910, %v2910
  %v2932 = vpack.c.bf16 %v2911, %v2911
  %v2933 = vpack.c.bf16 %v2912, %v2912
  %v2934 = vpack.c.bf16 %v2913, %v2913
  %v2935 = vpack.c.bf16 %v2914, %v2914
  %v2936 = vpack.c.bf16 %v2915, %v2915
  %v2937 = vpack.c.bf16 %v2916, %v2916
  %v2938 = vpack.c.bf16 %v2917, %v2917
  %v2939 = vpack.c.bf16 %v2918, %v2918
  %v2940 = vpack.c.bf16 %v2919, %v2919
  %v2941 = vpack.c.bf16 %v2920, %v2920
  %v2942 = vpack.c.bf16 %v2921, %v2921
  %v2943 = vpack.c.bf16 %v2922, %v2922
  %v2944 = vpack.c.bf16 %v2923, %v2923
  %v2945 = vpack.c.bf16 %v2924, %v2924
  %v2946 = vpack.c.bf16 %v2925, %v2925
  %v2947 = vpack.c.bf16 %v2926, %v2926
  %2948 = vst.msk [vmem:[%s5] sm:$0xf] %vm893, %v2927
  %2949 = vst.msk [vmem:[%s5 + $0x4] sm:$0xf] %vm893, %v2928
  %2950 = vst.msk [vmem:[%s5 + $0x8] sm:$0xf] %vm893, %v2929
  %2951 = vst.msk [vmem:[%s5 + $0xc] sm:$0xf] %vm893, %v2930
  %2952 = vst.msk [vmem:[%s5 + $0x10] sm:$0xf] %vm893, %v2931
  %2953 = vst.msk [vmem:[%s5 + $0x14] sm:$0xf] %vm893, %v2932
  %2954 = vst.msk [vmem:[%s5 + $0x18] sm:$0xf] %vm893, %v2933
  %2955 = vst.msk [vmem:[%s5 + $0x1c] sm:$0xf] %vm893, %v2934
  %2956 = vst.msk [vmem:[%s5 + $0x20] sm:$0xf] %vm893, %v2935
  %2957 = vst.msk [vmem:[%s5 + $0x24] sm:$0xf] %vm893, %v2936
  %2958 = vst.msk [vmem:[%s5 + $0x28] sm:$0xf] %vm893, %v2937
  %2959 = vst.msk [vmem:[%s5 + $0x2c] sm:$0xf] %vm893, %v2938
  %2960 = vst.msk [vmem:[%s5 + $0x30] sm:$0xf] %vm893, %v2939
  %2961 = vst.msk [vmem:[%s5 + $0x34] sm:$0xf] %vm893, %v2940
  %2962 = vst.msk [vmem:[%s5 + $0x38] sm:$0xf] %vm893, %v2941
  %2963 = vst.msk [vmem:[%s5 + $0x3c] sm:$0xf] %vm893, %v2942
  %2964 = vst.msk [vmem:[%s5 + $0x40] sm:$0xf] %vm893, %v2943
  %2965 = vst.msk [vmem:[%s5 + $0x44] sm:$0xf] %vm893, %v2944
  %2966 = vst.msk [vmem:[%s5 + $0x48] sm:$0xf] %vm893, %v2945
  %2967 = vst.msk [vmem:[%s5 + $0x4c] sm:$0xf] %vm893, %v2946
  %2968 = vst.msk [vmem:[%s5 + $0x50] sm:$0xf] %vm893, %v2947
  // Predicated region
  $region22: #{forward.4} parent=0 // pred_check
    _
  $region23: #{forward.4} parent=0 // pred_check_branch
    %2970 = sbr.rel (0) target = $region25
  $region24: #{forward.4} parent=0 // pred_region
    _
  $region25: #{forward.4} parent=0 // pred_fallthru
    _
  // Predicated region
  $region26: #{forward.4} parent=0 // pred_check
    _
  $region27: #{forward.4} parent=0 // pred_check_branch
    %2972 = sbr.rel (0) target = $region29
  $region28: #{forward.4} parent=0 // pred_region
    _
  $region29: #{forward.4} parent=0 // pred_fallthru
    _

// kernel: forward.5
$region0: #{forward.5}
  #allocation0 [shape = 'u32[]', space=smem, size = 0x4, offset = 0x4, fixed_abs, tag = 'smem constant byte address 0x4 - core index']
  #allocation1 [shape = 'u32[72,128]{1,0:T(1,128)}', space=vmem, size = 0x9000, scoped, tag = 'internal scratch']
  #allocation2 [shape = 'f32[1,1]{1,0:T(1,128)S(1)}', space=vmem, size = 0x200, scoped, tag = 'scoped memory for forward.5']
  %s0 = inlined_call_operand.vmem [shape: bf16[2,3136], index: 0, kind: input, shape index: {}]
  %s1 = inlined_call_operand.vmem [shape: f32[2,384], index: 1, kind: input, shape index: {}]
  %s2 = inlined_call_operand.vmem [shape: f32[2,384], index: 2, kind: input, shape index: {}]
  %s3 = inlined_call_operand.vmem [shape: bf16[3136,512], index: 3, kind: input, shape index: {}]
  %s4 = inlined_call_operand.vmem [shape: f32[1,512], index: 4, kind: input, shape index: {}]
  %s5 = inlined_call_operand.vmem [shape: bf16[512,128], index: 5, kind: input, shape index: {}]
  %s6 = inlined_call_operand.vmem [shape: f32[1,128], index: 6, kind: input, shape index: {}]
  %s7 = inlined_call_operand.vmem [shape: bf16[128,6], index: 7, kind: input, shape index: {}]
  %s8 = inlined_call_operand.vmem [shape: f32[1,6], index: 8, kind: input, shape index: {}]
  %s9 = inlined_call_operand.vmem [shape: bf16[512,128], index: 9, kind: input, shape index: {}]
  %s10 = inlined_call_operand.vmem [shape: f32[1,128], index: 10, kind: input, shape index: {}]
  %s11 = inlined_call_operand.vmem [shape: bf16[512,1536], index: 11, kind: input, shape index: {}]
  %s12 = inlined_call_operand.vmem [shape: f32[1,1536], index: 12, kind: input, shape index: {}]
  %s13 = inlined_call_operand.vmem [shape: bf16[384,128], index: 13, kind: input, shape index: {}]
  %s14 = inlined_call_operand.vmem [shape: f32[1,128], index: 14, kind: input, shape index: {}]
  %s15 = inlined_call_operand.vmem [shape: bf16[128,1], index: 15, kind: input, shape index: {}]
  %s16 = inlined_call_operand.<no memory space> [shape: f32[1,1], index: 16, kind: input, shape index: {}]
  %s17 = inlined_call_operand.vmem [shape: f32[2,1], index: 17, kind: output, shape index: {0}]
  %s18 = inlined_call_operand.hbm [shape: f32[2,6], index: 18, kind: output, shape index: {1}]
  %s19 = inlined_call_operand.hbm [shape: f32[2,384], index: 19, kind: output, shape index: {2}]
  %s20 = inlined_call_operand.hbm [shape: f32[2,384], index: 20, kind: output, shape index: {3}]
  %21 = xla_tuple %s17, %s18, %s19, %s20
  %s22 = sld [smem:[#allocation0]]
  $region102: #{forward.5} parent=0
    _
  %s24 = ssub.s32 1, %s22
  %s25 = scalar_select 0, %s24, %s22
  %v26 = vstv %s16
  %27 = vst [vmem:[#allocation2] sm:$0x1] %v26
  $region1: #{forward.5} parent=0
    #allocation3 [shape = 'u8[1024]{0}', space=vmem, size = 0x400, scoped, tag = 'output window, operand 1, single buffered']
    #allocation4 [shape = 's32[1]{0}', space=sflag, size = 0x4, scoped, tag = 'scoped memory for forward.5']
    #allocation5 [shape = 'u8[3072]{0}', space=vmem, size = 0xc00, scoped, tag = 'output window, operand 2, single buffered']
    #allocation6 [shape = 's32[1]{0}', space=sflag, size = 0x4, scoped, tag = 'scoped memory for forward.5']
    #allocation7 [shape = 'u8[3072]{0}', space=vmem, size = 0xc00, scoped, tag = 'output window, operand 3, single buffered']
    %28 = vsyncpa [#allocation4], 0
    %29 = vsyncpa [#allocation6], 0
    // Predicated region
    $region2: #{forward.5} parent=1 // pred_check
      _
    $region3: #{forward.5} parent=1 // pred_check_branch
      %31 = sbr.rel (0) target = $region5
    $region4: #{forward.5} parent=1 // pred_region
      _
    $region5: #{forward.5} parent=1 // pred_fallthru
      _
    // Predicated region
    $region6: #{forward.5} parent=1 // pred_check
      _
    $region7: #{forward.5} parent=1 // pred_check_branch
      %33 = sbr.rel (0) target = $region9
    $region8: #{forward.5} parent=1 // pred_region
      _
    $region9: #{forward.5} parent=1 // pred_fallthru
      _
    // Predicated region
    $region10: #{forward.5} parent=1 // pred_check
      _
    $region11: #{forward.5} parent=1 // pred_check_branch
      %35 = sbr.rel (0) target = $region13
    $region12: #{forward.5} parent=1 // pred_region
      _
    $region13: #{forward.5} parent=1 // pred_fallthru
      _
    // Predicated region
    $region14: #{forward.5} parent=1 // pred_check
      _
    $region15: #{forward.5} parent=1 // pred_check_branch
      %37 = sbr.rel (0) target = $region17
    $region16: #{forward.5} parent=1 // pred_region
      _
    $region17: #{forward.5} parent=1 // pred_fallthru
      _
    // Predicated region
    $region18: #{forward.5} parent=1 // pred_check
      _
    $region19: #{forward.5} parent=1 // pred_check_branch
      %39 = sbr.rel (0) target = $region21
    $region20: #{forward.5} parent=1 // pred_region
      _
    $region21: #{forward.5} parent=1 // pred_fallthru
      _
    // Predicated region
    $region22: #{forward.5} parent=1 // pred_check
      _
    $region23: #{forward.5} parent=1 // pred_check_branch
      %41 = sbr.rel (0) target = $region25
    $region24: #{forward.5} parent=1 // pred_region
      _
    $region25: #{forward.5} parent=1 // pred_fallthru
      _
    // Predicated region
    $region26: #{forward.5} parent=1 // pred_check
      _
    $region27: #{forward.5} parent=1 // pred_check_branch
      %43 = sbr.rel (0) target = $region29
    $region28: #{forward.5} parent=1 // pred_region
      _
    $region29: #{forward.5} parent=1 // pred_fallthru
      _
    // Predicated region
    $region30: #{forward.5} parent=1 // pred_check
      _
    $region31: #{forward.5} parent=1 // pred_check_branch
      %45 = sbr.rel (0) target = $region33
    $region32: #{forward.5} parent=1 // pred_region
      _
    $region33: #{forward.5} parent=1 // pred_fallthru
      _
    // Predicated region
    $region34: #{forward.5} parent=1 // pred_check
      _
    $region35: #{forward.5} parent=1 // pred_check_branch
      %47 = sbr.rel (0) target = $region37
    $region36: #{forward.5} parent=1 // pred_region
      _
    $region37: #{forward.5} parent=1 // pred_fallthru
      _
    // Predicated region
    $region38: #{forward.5} parent=1 // pred_check
      _
    $region39: #{forward.5} parent=1 // pred_check_branch
      %49 = sbr.rel (0) target = $region41
    $region40: #{forward.5} parent=1 // pred_region
      _
    $region41: #{forward.5} parent=1 // pred_fallthru
      _
    // Predicated region
    $region42: #{forward.5} parent=1 // pred_check
      _
    $region43: #{forward.5} parent=1 // pred_check_branch
      %51 = sbr.rel (0) target = $region45
    $region44: #{forward.5} parent=1 // pred_region
      _
    $region45: #{forward.5} parent=1 // pred_fallthru
      _
    // Predicated region
    $region46: #{forward.5} parent=1 // pred_check
      _
    $region47: #{forward.5} parent=1 // pred_check_branch
      %53 = sbr.rel (0) target = $region49
    $region48: #{forward.5} parent=1 // pred_region
      _
    $region49: #{forward.5} parent=1 // pred_fallthru
      _
    // Predicated region
    $region50: #{forward.5} parent=1 // pred_check
      _
    $region51: #{forward.5} parent=1 // pred_check_branch
      %55 = sbr.rel (0) target = $region53
    $region52: #{forward.5} parent=1 // pred_region
      _
    $region53: #{forward.5} parent=1 // pred_fallthru
      _
    // Predicated region
    $region54: #{forward.5} parent=1 // pred_check
      _
    $region55: #{forward.5} parent=1 // pred_check_branch
      %57 = sbr.rel (0) target = $region57
    $region56: #{forward.5} parent=1 // pred_region
      _
    $region57: #{forward.5} parent=1 // pred_fallthru
      _
    // Predicated region
    $region58: #{forward.5} parent=1 // pred_check
      _
    $region59: #{forward.5} parent=1 // pred_check_branch
      %59 = sbr.rel (0) target = $region61
    $region60: #{forward.5} parent=1 // pred_region
      _
    $region61: #{forward.5} parent=1 // pred_fallthru
      _
    // Predicated region
    $region62: #{forward.5} parent=1 // pred_check
      _
    $region63: #{forward.5} parent=1 // pred_check_branch
      %61 = sbr.rel (0) target = $region65
    $region64: #{forward.5} parent=1 // pred_region
      _
    $region65: #{forward.5} parent=1 // pred_fallthru
      _
    // Predicated region
    $region66: #{forward.5} parent=1 // pred_check
      _
    $region67: #{forward.5} parent=1 // pred_check_branch
      %63 = sbr.rel (0) target = $region69
    $region68: #{forward.5} parent=1 // pred_region
      _
    $region69: #{forward.5} parent=1 // pred_fallthru
      _
    %v65 = vld [vmem:[%s0] sm:$0xff]
    %v66 = vld [vmem:[%s0 + $0x8] sm:$0xff]
    %v67 = vld [vmem:[%s0 + $0x10] sm:$0xff]
    %v68 = vld [vmem:[%s0 + $0x18] sm:$0x1]
    %v69 = vld [vmem:[%s3] sm:$0xff]
    %v70 = vld [vmem:[%s3 + $0x8] sm:$0xff]
    %v71 = vld [vmem:[%s3 + $0x10] sm:$0xff]
    %v72 = vld [vmem:[%s3 + $0x18] sm:$0xff]
    %v73 = vld [vmem:[%s3 + $0x20] sm:$0xff]
    %v74 = vld [vmem:[%s3 + $0x28] sm:$0xff]
    %v75 = vld [vmem:[%s3 + $0x30] sm:$0xff]
    %v76 = vld [vmem:[%s3 + $0x38] sm:$0xff]
    %v77 = vld [vmem:[%s3 + $0x40] sm:$0xff]
    %v78 = vld [vmem:[%s3 + $0x48] sm:$0xff]
    %v79 = vld [vmem:[%s3 + $0x50] sm:$0xff]
    %v80 = vld [vmem:[%s3 + $0x58] sm:$0xff]
    %v81 = vld [vmem:[%s3 + $0x60] sm:$0xff]
    %v82 = vld [vmem:[%s3 + $0x68] sm:$0xff]
    %v83 = vld [vmem:[%s3 + $0x70] sm:$0xff]
    %v84 = vld [vmem:[%s3 + $0x78] sm:$0xff]
    %v85 = vld [vmem:[%s3 + $0x80] sm:$0xff]
    %v86 = vld [vmem:[%s3 + $0x88] sm:$0xff]
    %v87 = vld [vmem:[%s3 + $0x90] sm:$0xff]
    %v88 = vld [vmem:[%s3 + $0x98] sm:$0xff]
    %v89 = vld [vmem:[%s3 + $0xa0] sm:$0xff]
    %v90 = vld [vmem:[%s3 + $0xa8] sm:$0xff]
    %v91 = vld [vmem:[%s3 + $0xb0] sm:$0xff]
    %v92 = vld [vmem:[%s3 + $0xb8] sm:$0xff]
    %v93 = vld [vmem:[%s3 + $0xc0] sm:$0xff]
    %v94 = vld [vmem:[%s3 + $0xc8] sm:$0xff]
    %v95 = vld [vmem:[%s3 + $0xd0] sm:$0xff]
    %v96 = vld [vmem:[%s3 + $0xd8] sm:$0xff]
    %v97 = vld [vmem:[%s3 + $0xe0] sm:$0xff]
    %v98 = vld [vmem:[%s3 + $0xe8] sm:$0xff]
    %v99 = vld [vmem:[%s3 + $0xf0] sm:$0xff]
    %v100 = vld [vmem:[%s3 + $0xf8] sm:$0xff]
    %v101 = vld [vmem:[%s3 + $0x100] sm:$0xff]
    %v102 = vld [vmem:[%s3 + $0x108] sm:$0xff]
    %v103 = vld [vmem:[%s3 + $0x110] sm:$0xff]
    %v104 = vld [vmem:[%s3 + $0x118] sm:$0xff]
    %v105 = vld [vmem:[%s3 + $0x120] sm:$0xff]
    %v106 = vld [vmem:[%s3 + $0x128] sm:$0xff]
    %v107 = vld [vmem:[%s3 + $0x130] sm:$0xff]
    %v108 = vld [vmem:[%s3 + $0x138] sm:$0xff]
    %v109 = vld [vmem:[%s3 + $0x140] sm:$0xff]
    %v110 = vld [vmem:[%s3 + $0x148] sm:$0xff]
    %v111 = vld [vmem:[%s3 + $0x150] sm:$0xff]
    %v112 = vld [vmem:[%s3 + $0x158] sm:$0xff]
    %v113 = vld [vmem:[%s3 + $0x160] sm:$0xff]
    %v114 = vld [vmem:[%s3 + $0x168] sm:$0xff]
    %v115 = vld [vmem:[%s3 + $0x170] sm:$0xff]
    %v116 = vld [vmem:[%s3 + $0x178] sm:$0xff]
    %v117 = vld [vmem:[%s3 + $0x180] sm:$0xff]
    %v118 = vld [vmem:[%s3 + $0x188] sm:$0xff]
    %v119 = vld [vmem:[%s3 + $0x190] sm:$0xff]
    %v120 = vld [vmem:[%s3 + $0x198] sm:$0xff]
    %v121 = vld [vmem:[%s3 + $0x1a0] sm:$0xff]
    %v122 = vld [vmem:[%s3 + $0x1a8] sm:$0xff]
    %v123 = vld [vmem:[%s3 + $0x1b0] sm:$0xff]
    %v124 = vld [vmem:[%s3 + $0x1b8] sm:$0xff]
    %v125 = vld [vmem:[%s3 + $0x1c0] sm:$0xff]
    %v126 = vld [vmem:[%s3 + $0x1c8] sm:$0xff]
    %v127 = vld [vmem:[%s3 + $0x1d0] sm:$0xff]
    %v128 = vld [vmem:[%s3 + $0x1d8] sm:$0xff]
    %v129 = vld [vmem:[%s3 + $0x1e0] sm:$0xff]
    %v130 = vld [vmem:[%s3 + $0x1e8] sm:$0xff]
    %v131 = vld [vmem:[%s3 + $0x1f0] sm:$0xff]
    %v132 = vld [vmem:[%s3 + $0x1f8] sm:$0xff]
    %v133 = vld [vmem:[%s3 + $0x200] sm:$0xff]
    %v134 = vld [vmem:[%s3 + $0x208] sm:$0xff]
    %v135 = vld [vmem:[%s3 + $0x210] sm:$0xff]
    %v136 = vld [vmem:[%s3 + $0x218] sm:$0xff]
    %v137 = vld [vmem:[%s3 + $0x220] sm:$0xff]
    %v138 = vld [vmem:[%s3 + $0x228] sm:$0xff]
    %v139 = vld [vmem:[%s3 + $0x230] sm:$0xff]
    %v140 = vld [vmem:[%s3 + $0x238] sm:$0xff]
    %v141 = vld [vmem:[%s3 + $0x240] sm:$0xff]
    %v142 = vld [vmem:[%s3 + $0x248] sm:$0xff]
    %v143 = vld [vmem:[%s3 + $0x250] sm:$0xff]
    %v144 = vld [vmem:[%s3 + $0x258] sm:$0xff]
    %v145 = vld [vmem:[%s3 + $0x260] sm:$0xff]
    %v146 = vld [vmem:[%s3 + $0x268] sm:$0xff]
    %v147 = vld [vmem:[%s3 + $0x270] sm:$0xff]
    %v148 = vld [vmem:[%s3 + $0x278] sm:$0xff]
    %v149 = vld [vmem:[%s3 + $0x280] sm:$0xff]
    %v150 = vld [vmem:[%s3 + $0x288] sm:$0xff]
    %v151 = vld [vmem:[%s3 + $0x290] sm:$0xff]
    %v152 = vld [vmem:[%s3 + $0x298] sm:$0xff]
    %v153 = vld [vmem:[%s3 + $0x2a0] sm:$0xff]
    %v154 = vld [vmem:[%s3 + $0x2a8] sm:$0xff]
    %v155 = vld [vmem:[%s3 + $0x2b0] sm:$0xff]
    %v156 = vld [vmem:[%s3 + $0x2b8] sm:$0xff]
    %v157 = vld [vmem:[%s3 + $0x2c0] sm:$0xff]
    %v158 = vld [vmem:[%s3 + $0x2c8] sm:$0xff]
    %v159 = vld [vmem:[%s3 + $0x2d0] sm:$0xff]
    %v160 = vld [vmem:[%s3 + $0x2d8] sm:$0xff]
    %v161 = vld [vmem:[%s3 + $0x2e0] sm:$0xff]
    %v162 = vld [vmem:[%s3 + $0x2e8] sm:$0xff]
    %v163 = vld [vmem:[%s3 + $0x2f0] sm:$0xff]
    %v164 = vld [vmem:[%s3 + $0x2f8] sm:$0xff]
    %v165 = vld [vmem:[%s3 + $0x300] sm:$0xff]
    %v166 = vld [vmem:[%s3 + $0x308] sm:$0xff]
    %v167 = vld [vmem:[%s3 + $0x310] sm:$0xff]
    %v168 = vld [vmem:[%s3 + $0x318] sm:$0xff]
    %v169 = vld [vmem:[%s3 + $0x320] sm:$0xff]
    %v170 = vld [vmem:[%s3 + $0x328] sm:$0xff]
    %v171 = vld [vmem:[%s3 + $0x330] sm:$0xff]
    %v172 = vld [vmem:[%s3 + $0x338] sm:$0xff]
    %v173 = vld [vmem:[%s3 + $0x340] sm:$0xff]
    %v174 = vld [vmem:[%s3 + $0x348] sm:$0xff]
    %v175 = vld [vmem:[%s3 + $0x350] sm:$0xff]
    %v176 = vld [vmem:[%s3 + $0x358] sm:$0xff]
    %v177 = vld [vmem:[%s3 + $0x360] sm:$0xff]
    %v178 = vld [vmem:[%s3 + $0x368] sm:$0xff]
    %v179 = vld [vmem:[%s3 + $0x370] sm:$0xff]
    %v180 = vld [vmem:[%s3 + $0x378] sm:$0xff]
    %v181 = vld [vmem:[%s3 + $0x380] sm:$0xff]
    %v182 = vld [vmem:[%s3 + $0x388] sm:$0xff]
    %v183 = vld [vmem:[%s3 + $0x390] sm:$0xff]
    %v184 = vld [vmem:[%s3 + $0x398] sm:$0xff]
    %v185 = vld [vmem:[%s3 + $0x3a0] sm:$0xff]
    %v186 = vld [vmem:[%s3 + $0x3a8] sm:$0xff]
    %v187 = vld [vmem:[%s3 + $0x3b0] sm:$0xff]
    %v188 = vld [vmem:[%s3 + $0x3b8] sm:$0xff]
    %v189 = vld [vmem:[%s3 + $0x3c0] sm:$0xff]
    %v190 = vld [vmem:[%s3 + $0x3c8] sm:$0xff]
    %v191 = vld [vmem:[%s3 + $0x3d0] sm:$0xff]
    %v192 = vld [vmem:[%s3 + $0x3d8] sm:$0xff]
    %v193 = vld [vmem:[%s3 + $0x3e0] sm:$0xff]
    %v194 = vld [vmem:[%s3 + $0x3e8] sm:$0xff]
    %v195 = vld [vmem:[%s3 + $0x3f0] sm:$0xff]
    %v196 = vld [vmem:[%s3 + $0x3f8] sm:$0xff]
    %v197 = vld [vmem:[%s3 + $0x400] sm:$0xff]
    %v198 = vld [vmem:[%s3 + $0x408] sm:$0xff]
    %v199 = vld [vmem:[%s3 + $0x410] sm:$0xff]
    %v200 = vld [vmem:[%s3 + $0x418] sm:$0xff]
    %v201 = vld [vmem:[%s3 + $0x420] sm:$0xff]
    %v202 = vld [vmem:[%s3 + $0x428] sm:$0xff]
    %v203 = vld [vmem:[%s3 + $0x430] sm:$0xff]
    %v204 = vld [vmem:[%s3 + $0x438] sm:$0xff]
    %v205 = vld [vmem:[%s3 + $0x440] sm:$0xff]
    %v206 = vld [vmem:[%s3 + $0x448] sm:$0xff]
    %v207 = vld [vmem:[%s3 + $0x450] sm:$0xff]
    %v208 = vld [vmem:[%s3 + $0x458] sm:$0xff]
    %v209 = vld [vmem:[%s3 + $0x460] sm:$0xff]
    %v210 = vld [vmem:[%s3 + $0x468] sm:$0xff]
    %v211 = vld [vmem:[%s3 + $0x470] sm:$0xff]
    %v212 = vld [vmem:[%s3 + $0x478] sm:$0xff]
    %v213 = vld [vmem:[%s3 + $0x480] sm:$0xff]
    %v214 = vld [vmem:[%s3 + $0x488] sm:$0xff]
    %v215 = vld [vmem:[%s3 + $0x490] sm:$0xff]
    %v216 = vld [vmem:[%s3 + $0x498] sm:$0xff]
    %v217 = vld [vmem:[%s3 + $0x4a0] sm:$0xff]
    %v218 = vld [vmem:[%s3 + $0x4a8] sm:$0xff]
    %v219 = vld [vmem:[%s3 + $0x4b0] sm:$0xff]
    %v220 = vld [vmem:[%s3 + $0x4b8] sm:$0xff]
    %v221 = vld [vmem:[%s3 + $0x4c0] sm:$0xff]
    %v222 = vld [vmem:[%s3 + $0x4c8] sm:$0xff]
    %v223 = vld [vmem:[%s3 + $0x4d0] sm:$0xff]
    %v224 = vld [vmem:[%s3 + $0x4d8] sm:$0xff]
    %v225 = vld [vmem:[%s3 + $0x4e0] sm:$0xff]
    %v226 = vld [vmem:[%s3 + $0x4e8] sm:$0xff]
    %v227 = vld [vmem:[%s3 + $0x4f0] sm:$0xff]
    %v228 = vld [vmem:[%s3 + $0x4f8] sm:$0xff]
    %v229 = vld [vmem:[%s3 + $0x500] sm:$0xff]
    %v230 = vld [vmem:[%s3 + $0x508] sm:$0xff]
    %v231 = vld [vmem:[%s3 + $0x510] sm:$0xff]
    %v232 = vld [vmem:[%s3 + $0x518] sm:$0xff]
    %v233 = vld [vmem:[%s3 + $0x520] sm:$0xff]
    %v234 = vld [vmem:[%s3 + $0x528] sm:$0xff]
    %v235 = vld [vmem:[%s3 + $0x530] sm:$0xff]
    %v236 = vld [vmem:[%s3 + $0x538] sm:$0xff]
    %v237 = vld [vmem:[%s3 + $0x540] sm:$0xff]
    %v238 = vld [vmem:[%s3 + $0x548] sm:$0xff]
    %v239 = vld [vmem:[%s3 + $0x550] sm:$0xff]
    %v240 = vld [vmem:[%s3 + $0x558] sm:$0xff]
    %v241 = vld [vmem:[%s3 + $0x560] sm:$0xff]
    %v242 = vld [vmem:[%s3 + $0x568] sm:$0xff]
    %v243 = vld [vmem:[%s3 + $0x570] sm:$0xff]
    %v244 = vld [vmem:[%s3 + $0x578] sm:$0xff]
    %v245 = vld [vmem:[%s3 + $0x580] sm:$0xff]
    %v246 = vld [vmem:[%s3 + $0x588] sm:$0xff]
    %v247 = vld [vmem:[%s3 + $0x590] sm:$0xff]
    %v248 = vld [vmem:[%s3 + $0x598] sm:$0xff]
    %v249 = vld [vmem:[%s3 + $0x5a0] sm:$0xff]
    %v250 = vld [vmem:[%s3 + $0x5a8] sm:$0xff]
    %v251 = vld [vmem:[%s3 + $0x5b0] sm:$0xff]
    %v252 = vld [vmem:[%s3 + $0x5b8] sm:$0xff]
    %v253 = vld [vmem:[%s3 + $0x5c0] sm:$0xff]
    %v254 = vld [vmem:[%s3 + $0x5c8] sm:$0xff]
    %v255 = vld [vmem:[%s3 + $0x5d0] sm:$0xff]
    %v256 = vld [vmem:[%s3 + $0x5d8] sm:$0xff]
    %v257 = vld [vmem:[%s3 + $0x5e0] sm:$0xff]
    %v258 = vld [vmem:[%s3 + $0x5e8] sm:$0xff]
    %v259 = vld [vmem:[%s3 + $0x5f0] sm:$0xff]
    %v260 = vld [vmem:[%s3 + $0x5f8] sm:$0xff]
    %v261 = vld [vmem:[%s3 + $0x600] sm:$0xff]
    %v262 = vld [vmem:[%s3 + $0x608] sm:$0xff]
    %v263 = vld [vmem:[%s3 + $0x610] sm:$0xff]
    %v264 = vld [vmem:[%s3 + $0x618] sm:$0xff]
    %v265 = vld [vmem:[%s3 + $0x620] sm:$0xff]
    %v266 = vld [vmem:[%s3 + $0x628] sm:$0xff]
    %v267 = vld [vmem:[%s3 + $0x630] sm:$0xff]
    %v268 = vld [vmem:[%s3 + $0x638] sm:$0xff]
    %v269 = vld [vmem:[%s3 + $0x640] sm:$0xff]
    %v270 = vld [vmem:[%s3 + $0x648] sm:$0xff]
    %v271 = vld [vmem:[%s3 + $0x650] sm:$0xff]
    %v272 = vld [vmem:[%s3 + $0x658] sm:$0xff]
    %v273 = vld [vmem:[%s3 + $0x660] sm:$0xff]
    %v274 = vld [vmem:[%s3 + $0x668] sm:$0xff]
    %v275 = vld [vmem:[%s3 + $0x670] sm:$0xff]
    %v276 = vld [vmem:[%s3 + $0x678] sm:$0xff]
    %v277 = vld [vmem:[%s3 + $0x680] sm:$0xff]
    %v278 = vld [vmem:[%s3 + $0x688] sm:$0xff]
    %v279 = vld [vmem:[%s3 + $0x690] sm:$0xff]
    %v280 = vld [vmem:[%s3 + $0x698] sm:$0xff]
    %v281 = vld [vmem:[%s3 + $0x6a0] sm:$0xff]
    %v282 = vld [vmem:[%s3 + $0x6a8] sm:$0xff]
    %v283 = vld [vmem:[%s3 + $0x6b0] sm:$0xff]
    %v284 = vld [vmem:[%s3 + $0x6b8] sm:$0xff]
    %v285 = vld [vmem:[%s3 + $0x6c0] sm:$0xff]
    %v286 = vld [vmem:[%s3 + $0x6c8] sm:$0xff]
    %v287 = vld [vmem:[%s3 + $0x6d0] sm:$0xff]
    %v288 = vld [vmem:[%s3 + $0x6d8] sm:$0xff]
    %v289 = vld [vmem:[%s3 + $0x6e0] sm:$0xff]
    %v290 = vld [vmem:[%s3 + $0x6e8] sm:$0xff]
    %v291 = vld [vmem:[%s3 + $0x6f0] sm:$0xff]
    %v292 = vld [vmem:[%s3 + $0x6f8] sm:$0xff]
    %v293 = vld [vmem:[%s3 + $0x700] sm:$0xff]
    %v294 = vld [vmem:[%s3 + $0x708] sm:$0xff]
    %v295 = vld [vmem:[%s3 + $0x710] sm:$0xff]
    %v296 = vld [vmem:[%s3 + $0x718] sm:$0xff]
    %v297 = vld [vmem:[%s3 + $0x720] sm:$0xff]
    %v298 = vld [vmem:[%s3 + $0x728] sm:$0xff]
    %v299 = vld [vmem:[%s3 + $0x730] sm:$0xff]
    %v300 = vld [vmem:[%s3 + $0x738] sm:$0xff]
    %v301 = vld [vmem:[%s3 + $0x740] sm:$0xff]
    %v302 = vld [vmem:[%s3 + $0x748] sm:$0xff]
    %v303 = vld [vmem:[%s3 + $0x750] sm:$0xff]
    %v304 = vld [vmem:[%s3 + $0x758] sm:$0xff]
    %v305 = vld [vmem:[%s3 + $0x760] sm:$0xff]
    %v306 = vld [vmem:[%s3 + $0x768] sm:$0xff]
    %v307 = vld [vmem:[%s3 + $0x770] sm:$0xff]
    %v308 = vld [vmem:[%s3 + $0x778] sm:$0xff]
    %v309 = vld [vmem:[%s3 + $0x780] sm:$0xff]
    %v310 = vld [vmem:[%s3 + $0x788] sm:$0xff]
    %v311 = vld [vmem:[%s3 + $0x790] sm:$0xff]
    %v312 = vld [vmem:[%s3 + $0x798] sm:$0xff]
    %v313 = vld [vmem:[%s3 + $0x7a0] sm:$0xff]
    %v314 = vld [vmem:[%s3 + $0x7a8] sm:$0xff]
    %v315 = vld [vmem:[%s3 + $0x7b0] sm:$0xff]
    %v316 = vld [vmem:[%s3 + $0x7b8] sm:$0xff]
    %v317 = vld [vmem:[%s3 + $0x7c0] sm:$0xff]
    %v318 = vld [vmem:[%s3 + $0x7c8] sm:$0xff]
    %v319 = vld [vmem:[%s3 + $0x7d0] sm:$0xff]
    %v320 = vld [vmem:[%s3 + $0x7d8] sm:$0xff]
    %v321 = vld [vmem:[%s3 + $0x7e0] sm:$0xff]
    %v322 = vld [vmem:[%s3 + $0x7e8] sm:$0xff]
    %v323 = vld [vmem:[%s3 + $0x7f0] sm:$0xff]
    %v324 = vld [vmem:[%s3 + $0x7f8] sm:$0xff]
    %v325 = vld [vmem:[%s3 + $0x800] sm:$0xff]
    %v326 = vld [vmem:[%s3 + $0x808] sm:$0xff]
    %v327 = vld [vmem:[%s3 + $0x810] sm:$0xff]
    %v328 = vld [vmem:[%s3 + $0x818] sm:$0xff]
    %v329 = vld [vmem:[%s3 + $0x820] sm:$0xff]
    %v330 = vld [vmem:[%s3 + $0x828] sm:$0xff]
    %v331 = vld [vmem:[%s3 + $0x830] sm:$0xff]
    %v332 = vld [vmem:[%s3 + $0x838] sm:$0xff]
    %v333 = vld [vmem:[%s3 + $0x840] sm:$0xff]
    %v334 = vld [vmem:[%s3 + $0x848] sm:$0xff]
    %v335 = vld [vmem:[%s3 + $0x850] sm:$0xff]
    %v336 = vld [vmem:[%s3 + $0x858] sm:$0xff]
    %v337 = vld [vmem:[%s3 + $0x860] sm:$0xff]
    %v338 = vld [vmem:[%s3 + $0x868] sm:$0xff]
    %v339 = vld [vmem:[%s3 + $0x870] sm:$0xff]
    %v340 = vld [vmem:[%s3 + $0x878] sm:$0xff]
    %v341 = vld [vmem:[%s3 + $0x880] sm:$0xff]
    %v342 = vld [vmem:[%s3 + $0x888] sm:$0xff]
    %v343 = vld [vmem:[%s3 + $0x890] sm:$0xff]
    %v344 = vld [vmem:[%s3 + $0x898] sm:$0xff]
    %v345 = vld [vmem:[%s3 + $0x8a0] sm:$0xff]
    %v346 = vld [vmem:[%s3 + $0x8a8] sm:$0xff]
    %v347 = vld [vmem:[%s3 + $0x8b0] sm:$0xff]
    %v348 = vld [vmem:[%s3 + $0x8b8] sm:$0xff]
    %v349 = vld [vmem:[%s3 + $0x8c0] sm:$0xff]
    %v350 = vld [vmem:[%s3 + $0x8c8] sm:$0xff]
    %v351 = vld [vmem:[%s3 + $0x8d0] sm:$0xff]
    %v352 = vld [vmem:[%s3 + $0x8d8] sm:$0xff]
    %v353 = vld [vmem:[%s3 + $0x8e0] sm:$0xff]
    %v354 = vld [vmem:[%s3 + $0x8e8] sm:$0xff]
    %v355 = vld [vmem:[%s3 + $0x8f0] sm:$0xff]
    %v356 = vld [vmem:[%s3 + $0x8f8] sm:$0xff]
    %v357 = vld [vmem:[%s3 + $0x900] sm:$0xff]
    %v358 = vld [vmem:[%s3 + $0x908] sm:$0xff]
    %v359 = vld [vmem:[%s3 + $0x910] sm:$0xff]
    %v360 = vld [vmem:[%s3 + $0x918] sm:$0xff]
    %v361 = vld [vmem:[%s3 + $0x920] sm:$0xff]
    %v362 = vld [vmem:[%s3 + $0x928] sm:$0xff]
    %v363 = vld [vmem:[%s3 + $0x930] sm:$0xff]
    %v364 = vld [vmem:[%s3 + $0x938] sm:$0xff]
    %v365 = vld [vmem:[%s3 + $0x940] sm:$0xff]
    %v366 = vld [vmem:[%s3 + $0x948] sm:$0xff]
    %v367 = vld [vmem:[%s3 + $0x950] sm:$0xff]
    %v368 = vld [vmem:[%s3 + $0x958] sm:$0xff]
    %v369 = vld [vmem:[%s3 + $0x960] sm:$0xff]
    %v370 = vld [vmem:[%s3 + $0x968] sm:$0xff]
    %v371 = vld [vmem:[%s3 + $0x970] sm:$0xff]
    %v372 = vld [vmem:[%s3 + $0x978] sm:$0xff]
    %v373 = vld [vmem:[%s3 + $0x980] sm:$0xff]
    %v374 = vld [vmem:[%s3 + $0x988] sm:$0xff]
    %v375 = vld [vmem:[%s3 + $0x990] sm:$0xff]
    %v376 = vld [vmem:[%s3 + $0x998] sm:$0xff]
    %v377 = vld [vmem:[%s3 + $0x9a0] sm:$0xff]
    %v378 = vld [vmem:[%s3 + $0x9a8] sm:$0xff]
    %v379 = vld [vmem:[%s3 + $0x9b0] sm:$0xff]
    %v380 = vld [vmem:[%s3 + $0x9b8] sm:$0xff]
    %v381 = vld [vmem:[%s3 + $0x9c0] sm:$0xff]
    %v382 = vld [vmem:[%s3 + $0x9c8] sm:$0xff]
    %v383 = vld [vmem:[%s3 + $0x9d0] sm:$0xff]
    %v384 = vld [vmem:[%s3 + $0x9d8] sm:$0xff]
    %v385 = vld [vmem:[%s3 + $0x9e0] sm:$0xff]
    %v386 = vld [vmem:[%s3 + $0x9e8] sm:$0xff]
    %v387 = vld [vmem:[%s3 + $0x9f0] sm:$0xff]
    %v388 = vld [vmem:[%s3 + $0x9f8] sm:$0xff]
    %v389 = vld [vmem:[%s3 + $0xa00] sm:$0xff]
    %v390 = vld [vmem:[%s3 + $0xa08] sm:$0xff]
    %v391 = vld [vmem:[%s3 + $0xa10] sm:$0xff]
    %v392 = vld [vmem:[%s3 + $0xa18] sm:$0xff]
    %v393 = vld [vmem:[%s3 + $0xa20] sm:$0xff]
    %v394 = vld [vmem:[%s3 + $0xa28] sm:$0xff]
    %v395 = vld [vmem:[%s3 + $0xa30] sm:$0xff]
    %v396 = vld [vmem:[%s3 + $0xa38] sm:$0xff]
    %v397 = vld [vmem:[%s3 + $0xa40] sm:$0xff]
    %v398 = vld [vmem:[%s3 + $0xa48] sm:$0xff]
    %v399 = vld [vmem:[%s3 + $0xa50] sm:$0xff]
    %v400 = vld [vmem:[%s3 + $0xa58] sm:$0xff]
    %v401 = vld [vmem:[%s3 + $0xa60] sm:$0xff]
    %v402 = vld [vmem:[%s3 + $0xa68] sm:$0xff]
    %v403 = vld [vmem:[%s3 + $0xa70] sm:$0xff]
    %v404 = vld [vmem:[%s3 + $0xa78] sm:$0xff]
    %v405 = vld [vmem:[%s3 + $0xa80] sm:$0xff]
    %v406 = vld [vmem:[%s3 + $0xa88] sm:$0xff]
    %v407 = vld [vmem:[%s3 + $0xa90] sm:$0xff]
    %v408 = vld [vmem:[%s3 + $0xa98] sm:$0xff]
    %v409 = vld [vmem:[%s3 + $0xaa0] sm:$0xff]
    %v410 = vld [vmem:[%s3 + $0xaa8] sm:$0xff]
    %v411 = vld [vmem:[%s3 + $0xab0] sm:$0xff]
    %v412 = vld [vmem:[%s3 + $0xab8] sm:$0xff]
    %v413 = vld [vmem:[%s3 + $0xac0] sm:$0xff]
    %v414 = vld [vmem:[%s3 + $0xac8] sm:$0xff]
    %v415 = vld [vmem:[%s3 + $0xad0] sm:$0xff]
    %v416 = vld [vmem:[%s3 + $0xad8] sm:$0xff]
    %v417 = vld [vmem:[%s3 + $0xae0] sm:$0xff]
    %v418 = vld [vmem:[%s3 + $0xae8] sm:$0xff]
    %v419 = vld [vmem:[%s3 + $0xaf0] sm:$0xff]
    %v420 = vld [vmem:[%s3 + $0xaf8] sm:$0xff]
    %v421 = vld [vmem:[%s3 + $0xb00] sm:$0xff]
    %v422 = vld [vmem:[%s3 + $0xb08] sm:$0xff]
    %v423 = vld [vmem:[%s3 + $0xb10] sm:$0xff]
    %v424 = vld [vmem:[%s3 + $0xb18] sm:$0xff]
    %v425 = vld [vmem:[%s3 + $0xb20] sm:$0xff]
    %v426 = vld [vmem:[%s3 + $0xb28] sm:$0xff]
    %v427 = vld [vmem:[%s3 + $0xb30] sm:$0xff]
    %v428 = vld [vmem:[%s3 + $0xb38] sm:$0xff]
    %v429 = vld [vmem:[%s3 + $0xb40] sm:$0xff]
    %v430 = vld [vmem:[%s3 + $0xb48] sm:$0xff]
    %v431 = vld [vmem:[%s3 + $0xb50] sm:$0xff]
    %v432 = vld [vmem:[%s3 + $0xb58] sm:$0xff]
    %v433 = vld [vmem:[%s3 + $0xb60] sm:$0xff]
    %v434 = vld [vmem:[%s3 + $0xb68] sm:$0xff]
    %v435 = vld [vmem:[%s3 + $0xb70] sm:$0xff]
    %v436 = vld [vmem:[%s3 + $0xb78] sm:$0xff]
    %v437 = vld [vmem:[%s3 + $0xb80] sm:$0xff]
    %v438 = vld [vmem:[%s3 + $0xb88] sm:$0xff]
    %v439 = vld [vmem:[%s3 + $0xb90] sm:$0xff]
    %v440 = vld [vmem:[%s3 + $0xb98] sm:$0xff]
    %v441 = vld [vmem:[%s3 + $0xba0] sm:$0xff]
    %v442 = vld [vmem:[%s3 + $0xba8] sm:$0xff]
    %v443 = vld [vmem:[%s3 + $0xbb0] sm:$0xff]
    %v444 = vld [vmem:[%s3 + $0xbb8] sm:$0xff]
    %v445 = vld [vmem:[%s3 + $0xbc0] sm:$0xff]
    %v446 = vld [vmem:[%s3 + $0xbc8] sm:$0xff]
    %v447 = vld [vmem:[%s3 + $0xbd0] sm:$0xff]
    %v448 = vld [vmem:[%s3 + $0xbd8] sm:$0xff]
    %v449 = vld [vmem:[%s3 + $0xbe0] sm:$0xff]
    %v450 = vld [vmem:[%s3 + $0xbe8] sm:$0xff]
    %v451 = vld [vmem:[%s3 + $0xbf0] sm:$0xff]
    %v452 = vld [vmem:[%s3 + $0xbf8] sm:$0xff]
    %v453 = vld [vmem:[%s3 + $0xc00] sm:$0xff]
    %v454 = vld [vmem:[%s3 + $0xc08] sm:$0xff]
    %v455 = vld [vmem:[%s3 + $0xc10] sm:$0xff]
    %v456 = vld [vmem:[%s3 + $0xc18] sm:$0xff]
    %v457 = vld [vmem:[%s3 + $0xc20] sm:$0xff]
    %v458 = vld [vmem:[%s3 + $0xc28] sm:$0xff]
    %v459 = vld [vmem:[%s3 + $0xc30] sm:$0xff]
    %v460 = vld [vmem:[%s3 + $0xc38] sm:$0xff]
    %v461 = vld [vmem:[%s3 + $0xc40] sm:$0xff]
    %v462 = vld [vmem:[%s3 + $0xc48] sm:$0xff]
    %v463 = vld [vmem:[%s3 + $0xc50] sm:$0xff]
    %v464 = vld [vmem:[%s3 + $0xc58] sm:$0xff]
    %v465 = vld [vmem:[%s3 + $0xc60] sm:$0xff]
    %v466 = vld [vmem:[%s3 + $0xc68] sm:$0xff]
    %v467 = vld [vmem:[%s3 + $0xc70] sm:$0xff]
    %v468 = vld [vmem:[%s3 + $0xc78] sm:$0xff]
    %v469 = vld [vmem:[%s3 + $0xc80] sm:$0xff]
    %v470 = vld [vmem:[%s3 + $0xc88] sm:$0xff]
    %v471 = vld [vmem:[%s3 + $0xc90] sm:$0xff]
    %v472 = vld [vmem:[%s3 + $0xc98] sm:$0xff]
    %v473 = vld [vmem:[%s3 + $0xca0] sm:$0xff]
    %v474 = vld [vmem:[%s3 + $0xca8] sm:$0xff]
    %v475 = vld [vmem:[%s3 + $0xcb0] sm:$0xff]
    %v476 = vld [vmem:[%s3 + $0xcb8] sm:$0xff]
    %v477 = vld [vmem:[%s3 + $0xcc0] sm:$0xff]
    %v478 = vld [vmem:[%s3 + $0xcc8] sm:$0xff]
    %v479 = vld [vmem:[%s3 + $0xcd0] sm:$0xff]
    %v480 = vld [vmem:[%s3 + $0xcd8] sm:$0xff]
    %v481 = vld [vmem:[%s3 + $0xce0] sm:$0xff]
    %v482 = vld [vmem:[%s3 + $0xce8] sm:$0xff]
    %v483 = vld [vmem:[%s3 + $0xcf0] sm:$0xff]
    %v484 = vld [vmem:[%s3 + $0xcf8] sm:$0xff]
    %v485 = vld [vmem:[%s3 + $0xd00] sm:$0xff]
    %v486 = vld [vmem:[%s3 + $0xd08] sm:$0xff]
    %v487 = vld [vmem:[%s3 + $0xd10] sm:$0xff]
    %v488 = vld [vmem:[%s3 + $0xd18] sm:$0xff]
    %v489 = vld [vmem:[%s3 + $0xd20] sm:$0xff]
    %v490 = vld [vmem:[%s3 + $0xd28] sm:$0xff]
    %v491 = vld [vmem:[%s3 + $0xd30] sm:$0xff]
    %v492 = vld [vmem:[%s3 + $0xd38] sm:$0xff]
    %v493 = vld [vmem:[%s3 + $0xd40] sm:$0xff]
    %v494 = vld [vmem:[%s3 + $0xd48] sm:$0xff]
    %v495 = vld [vmem:[%s3 + $0xd50] sm:$0xff]
    %v496 = vld [vmem:[%s3 + $0xd58] sm:$0xff]
    %v497 = vld [vmem:[%s3 + $0xd60] sm:$0xff]
    %v498 = vld [vmem:[%s3 + $0xd68] sm:$0xff]
    %v499 = vld [vmem:[%s3 + $0xd70] sm:$0xff]
    %v500 = vld [vmem:[%s3 + $0xd78] sm:$0xff]
    %v501 = vld [vmem:[%s3 + $0xd80] sm:$0xff]
    %v502 = vld [vmem:[%s3 + $0xd88] sm:$0xff]
    %v503 = vld [vmem:[%s3 + $0xd90] sm:$0xff]
    %v504 = vld [vmem:[%s3 + $0xd98] sm:$0xff]
    %v505 = vld [vmem:[%s3 + $0xda0] sm:$0xff]
    %v506 = vld [vmem:[%s3 + $0xda8] sm:$0xff]
    %v507 = vld [vmem:[%s3 + $0xdb0] sm:$0xff]
    %v508 = vld [vmem:[%s3 + $0xdb8] sm:$0xff]
    %v509 = vld [vmem:[%s3 + $0xdc0] sm:$0xff]
    %v510 = vld [vmem:[%s3 + $0xdc8] sm:$0xff]
    %v511 = vld [vmem:[%s3 + $0xdd0] sm:$0xff]
    %v512 = vld [vmem:[%s3 + $0xdd8] sm:$0xff]
    %v513 = vld [vmem:[%s3 + $0xde0] sm:$0xff]
    %v514 = vld [vmem:[%s3 + $0xde8] sm:$0xff]
    %v515 = vld [vmem:[%s3 + $0xdf0] sm:$0xff]
    %v516 = vld [vmem:[%s3 + $0xdf8] sm:$0xff]
    %v517 = vld [vmem:[%s3 + $0xe00] sm:$0xff]
    %v518 = vld [vmem:[%s3 + $0xe08] sm:$0xff]
    %v519 = vld [vmem:[%s3 + $0xe10] sm:$0xff]
    %v520 = vld [vmem:[%s3 + $0xe18] sm:$0xff]
    %v521 = vld [vmem:[%s3 + $0xe20] sm:$0xff]
    %v522 = vld [vmem:[%s3 + $0xe28] sm:$0xff]
    %v523 = vld [vmem:[%s3 + $0xe30] sm:$0xff]
    %v524 = vld [vmem:[%s3 + $0xe38] sm:$0xff]
    %v525 = vld [vmem:[%s3 + $0xe40] sm:$0xff]
    %v526 = vld [vmem:[%s3 + $0xe48] sm:$0xff]
    %v527 = vld [vmem:[%s3 + $0xe50] sm:$0xff]
    %v528 = vld [vmem:[%s3 + $0xe58] sm:$0xff]
    %v529 = vld [vmem:[%s3 + $0xe60] sm:$0xff]
    %v530 = vld [vmem:[%s3 + $0xe68] sm:$0xff]
    %v531 = vld [vmem:[%s3 + $0xe70] sm:$0xff]
    %v532 = vld [vmem:[%s3 + $0xe78] sm:$0xff]
    %v533 = vld [vmem:[%s3 + $0xe80] sm:$0xff]
    %v534 = vld [vmem:[%s3 + $0xe88] sm:$0xff]
    %v535 = vld [vmem:[%s3 + $0xe90] sm:$0xff]
    %v536 = vld [vmem:[%s3 + $0xe98] sm:$0xff]
    %v537 = vld [vmem:[%s3 + $0xea0] sm:$0xff]
    %v538 = vld [vmem:[%s3 + $0xea8] sm:$0xff]
    %v539 = vld [vmem:[%s3 + $0xeb0] sm:$0xff]
    %v540 = vld [vmem:[%s3 + $0xeb8] sm:$0xff]
    %v541 = vld [vmem:[%s3 + $0xec0] sm:$0xff]
    %v542 = vld [vmem:[%s3 + $0xec8] sm:$0xff]
    %v543 = vld [vmem:[%s3 + $0xed0] sm:$0xff]
    %v544 = vld [vmem:[%s3 + $0xed8] sm:$0xff]
    %v545 = vld [vmem:[%s3 + $0xee0] sm:$0xff]
    %v546 = vld [vmem:[%s3 + $0xee8] sm:$0xff]
    %v547 = vld [vmem:[%s3 + $0xef0] sm:$0xff]
    %v548 = vld [vmem:[%s3 + $0xef8] sm:$0xff]
    %v549 = vld [vmem:[%s3 + $0xf00] sm:$0xff]
    %v550 = vld [vmem:[%s3 + $0xf08] sm:$0xff]
    %v551 = vld [vmem:[%s3 + $0xf10] sm:$0xff]
    %v552 = vld [vmem:[%s3 + $0xf18] sm:$0xff]
    %v553 = vld [vmem:[%s3 + $0xf20] sm:$0xff]
    %v554 = vld [vmem:[%s3 + $0xf28] sm:$0xff]
    %v555 = vld [vmem:[%s3 + $0xf30] sm:$0xff]
    %v556 = vld [vmem:[%s3 + $0xf38] sm:$0xff]
    %v557 = vld [vmem:[%s3 + $0xf40] sm:$0xff]
    %v558 = vld [vmem:[%s3 + $0xf48] sm:$0xff]
    %v559 = vld [vmem:[%s3 + $0xf50] sm:$0xff]
    %v560 = vld [vmem:[%s3 + $0xf58] sm:$0xff]
    %v561 = vld [vmem:[%s3 + $0xf60] sm:$0xff]
    %v562 = vld [vmem:[%s3 + $0xf68] sm:$0xff]
    %v563 = vld [vmem:[%s3 + $0xf70] sm:$0xff]
    %v564 = vld [vmem:[%s3 + $0xf78] sm:$0xff]
    %v565 = vld [vmem:[%s3 + $0xf80] sm:$0xff]
    %v566 = vld [vmem:[%s3 + $0xf88] sm:$0xff]
    %v567 = vld [vmem:[%s3 + $0xf90] sm:$0xff]
    %v568 = vld [vmem:[%s3 + $0xf98] sm:$0xff]
    %v569 = vld [vmem:[%s3 + $0xfa0] sm:$0xff]
    %v570 = vld [vmem:[%s3 + $0xfa8] sm:$0xff]
    %v571 = vld [vmem:[%s3 + $0xfb0] sm:$0xff]
    %v572 = vld [vmem:[%s3 + $0xfb8] sm:$0xff]
    %v573 = vld [vmem:[%s3 + $0xfc0] sm:$0xff]
    %v574 = vld [vmem:[%s3 + $0xfc8] sm:$0xff]
    %v575 = vld [vmem:[%s3 + $0xfd0] sm:$0xff]
    %v576 = vld [vmem:[%s3 + $0xfd8] sm:$0xff]
    %v577 = vld [vmem:[%s3 + $0xfe0] sm:$0xff]
    %v578 = vld [vmem:[%s3 + $0xfe8] sm:$0xff]
    %v579 = vld [vmem:[%s3 + $0xff0] sm:$0xff]
    %v580 = vld [vmem:[%s3 + $0xff8] sm:$0xff]
    %v581 = vld [vmem:[%s3 + $0x1000] sm:$0xff]
    %v582 = vld [vmem:[%s3 + $0x1008] sm:$0xff]
    %v583 = vld [vmem:[%s3 + $0x1010] sm:$0xff]
    %v584 = vld [vmem:[%s3 + $0x1018] sm:$0xff]
    %v585 = vld [vmem:[%s3 + $0x1020] sm:$0xff]
    %v586 = vld [vmem:[%s3 + $0x1028] sm:$0xff]
    %v587 = vld [vmem:[%s3 + $0x1030] sm:$0xff]
    %v588 = vld [vmem:[%s3 + $0x1038] sm:$0xff]
    %v589 = vld [vmem:[%s3 + $0x1040] sm:$0xff]
    %v590 = vld [vmem:[%s3 + $0x1048] sm:$0xff]
    %v591 = vld [vmem:[%s3 + $0x1050] sm:$0xff]
    %v592 = vld [vmem:[%s3 + $0x1058] sm:$0xff]
    %v593 = vld [vmem:[%s3 + $0x1060] sm:$0xff]
    %v594 = vld [vmem:[%s3 + $0x1068] sm:$0xff]
    %v595 = vld [vmem:[%s3 + $0x1070] sm:$0xff]
    %v596 = vld [vmem:[%s3 + $0x1078] sm:$0xff]
    %v597 = vld [vmem:[%s3 + $0x1080] sm:$0xff]
    %v598 = vld [vmem:[%s3 + $0x1088] sm:$0xff]
    %v599 = vld [vmem:[%s3 + $0x1090] sm:$0xff]
    %v600 = vld [vmem:[%s3 + $0x1098] sm:$0xff]
    %v601 = vld [vmem:[%s3 + $0x10a0] sm:$0xff]
    %v602 = vld [vmem:[%s3 + $0x10a8] sm:$0xff]
    %v603 = vld [vmem:[%s3 + $0x10b0] sm:$0xff]
    %v604 = vld [vmem:[%s3 + $0x10b8] sm:$0xff]
    %v605 = vld [vmem:[%s3 + $0x10c0] sm:$0xff]
    %v606 = vld [vmem:[%s3 + $0x10c8] sm:$0xff]
    %v607 = vld [vmem:[%s3 + $0x10d0] sm:$0xff]
    %v608 = vld [vmem:[%s3 + $0x10d8] sm:$0xff]
    %v609 = vld [vmem:[%s3 + $0x10e0] sm:$0xff]
    %v610 = vld [vmem:[%s3 + $0x10e8] sm:$0xff]
    %v611 = vld [vmem:[%s3 + $0x10f0] sm:$0xff]
    %v612 = vld [vmem:[%s3 + $0x10f8] sm:$0xff]
    %v613 = vld [vmem:[%s3 + $0x1100] sm:$0xff]
    %v614 = vld [vmem:[%s3 + $0x1108] sm:$0xff]
    %v615 = vld [vmem:[%s3 + $0x1110] sm:$0xff]
    %v616 = vld [vmem:[%s3 + $0x1118] sm:$0xff]
    %v617 = vld [vmem:[%s3 + $0x1120] sm:$0xff]
    %v618 = vld [vmem:[%s3 + $0x1128] sm:$0xff]
    %v619 = vld [vmem:[%s3 + $0x1130] sm:$0xff]
    %v620 = vld [vmem:[%s3 + $0x1138] sm:$0xff]
    %v621 = vld [vmem:[%s3 + $0x1140] sm:$0xff]
    %v622 = vld [vmem:[%s3 + $0x1148] sm:$0xff]
    %v623 = vld [vmem:[%s3 + $0x1150] sm:$0xff]
    %v624 = vld [vmem:[%s3 + $0x1158] sm:$0xff]
    %v625 = vld [vmem:[%s3 + $0x1160] sm:$0xff]
    %v626 = vld [vmem:[%s3 + $0x1168] sm:$0xff]
    %v627 = vld [vmem:[%s3 + $0x1170] sm:$0xff]
    %v628 = vld [vmem:[%s3 + $0x1178] sm:$0xff]
    %v629 = vld [vmem:[%s3 + $0x1180] sm:$0xff]
    %v630 = vld [vmem:[%s3 + $0x1188] sm:$0xff]
    %v631 = vld [vmem:[%s3 + $0x1190] sm:$0xff]
    %v632 = vld [vmem:[%s3 + $0x1198] sm:$0xff]
    %v633 = vld [vmem:[%s3 + $0x11a0] sm:$0xff]
    %v634 = vld [vmem:[%s3 + $0x11a8] sm:$0xff]
    %v635 = vld [vmem:[%s3 + $0x11b0] sm:$0xff]
    %v636 = vld [vmem:[%s3 + $0x11b8] sm:$0xff]
    %v637 = vld [vmem:[%s3 + $0x11c0] sm:$0xff]
    %v638 = vld [vmem:[%s3 + $0x11c8] sm:$0xff]
    %v639 = vld [vmem:[%s3 + $0x11d0] sm:$0xff]
    %v640 = vld [vmem:[%s3 + $0x11d8] sm:$0xff]
    %v641 = vld [vmem:[%s3 + $0x11e0] sm:$0xff]
    %v642 = vld [vmem:[%s3 + $0x11e8] sm:$0xff]
    %v643 = vld [vmem:[%s3 + $0x11f0] sm:$0xff]
    %v644 = vld [vmem:[%s3 + $0x11f8] sm:$0xff]
    %v645 = vld [vmem:[%s3 + $0x1200] sm:$0xff]
    %v646 = vld [vmem:[%s3 + $0x1208] sm:$0xff]
    %v647 = vld [vmem:[%s3 + $0x1210] sm:$0xff]
    %v648 = vld [vmem:[%s3 + $0x1218] sm:$0xff]
    %v649 = vld [vmem:[%s3 + $0x1220] sm:$0xff]
    %v650 = vld [vmem:[%s3 + $0x1228] sm:$0xff]
    %v651 = vld [vmem:[%s3 + $0x1230] sm:$0xff]
    %v652 = vld [vmem:[%s3 + $0x1238] sm:$0xff]
    %v653 = vld [vmem:[%s3 + $0x1240] sm:$0xff]
    %v654 = vld [vmem:[%s3 + $0x1248] sm:$0xff]
    %v655 = vld [vmem:[%s3 + $0x1250] sm:$0xff]
    %v656 = vld [vmem:[%s3 + $0x1258] sm:$0xff]
    %v657 = vld [vmem:[%s3 + $0x1260] sm:$0xff]
    %v658 = vld [vmem:[%s3 + $0x1268] sm:$0xff]
    %v659 = vld [vmem:[%s3 + $0x1270] sm:$0xff]
    %v660 = vld [vmem:[%s3 + $0x1278] sm:$0xff]
    %v661 = vld [vmem:[%s3 + $0x1280] sm:$0xff]
    %v662 = vld [vmem:[%s3 + $0x1288] sm:$0xff]
    %v663 = vld [vmem:[%s3 + $0x1290] sm:$0xff]
    %v664 = vld [vmem:[%s3 + $0x1298] sm:$0xff]
    %v665 = vld [vmem:[%s3 + $0x12a0] sm:$0xff]
    %v666 = vld [vmem:[%s3 + $0x12a8] sm:$0xff]
    %v667 = vld [vmem:[%s3 + $0x12b0] sm:$0xff]
    %v668 = vld [vmem:[%s3 + $0x12b8] sm:$0xff]
    %v669 = vld [vmem:[%s3 + $0x12c0] sm:$0xff]
    %v670 = vld [vmem:[%s3 + $0x12c8] sm:$0xff]
    %v671 = vld [vmem:[%s3 + $0x12d0] sm:$0xff]
    %v672 = vld [vmem:[%s3 + $0x12d8] sm:$0xff]
    %v673 = vld [vmem:[%s3 + $0x12e0] sm:$0xff]
    %v674 = vld [vmem:[%s3 + $0x12e8] sm:$0xff]
    %v675 = vld [vmem:[%s3 + $0x12f0] sm:$0xff]
    %v676 = vld [vmem:[%s3 + $0x12f8] sm:$0xff]
    %v677 = vld [vmem:[%s3 + $0x1300] sm:$0xff]
    %v678 = vld [vmem:[%s3 + $0x1308] sm:$0xff]
    %v679 = vld [vmem:[%s3 + $0x1310] sm:$0xff]
    %v680 = vld [vmem:[%s3 + $0x1318] sm:$0xff]
    %v681 = vld [vmem:[%s3 + $0x1320] sm:$0xff]
    %v682 = vld [vmem:[%s3 + $0x1328] sm:$0xff]
    %v683 = vld [vmem:[%s3 + $0x1330] sm:$0xff]
    %v684 = vld [vmem:[%s3 + $0x1338] sm:$0xff]
    %v685 = vld [vmem:[%s3 + $0x1340] sm:$0xff]
    %v686 = vld [vmem:[%s3 + $0x1348] sm:$0xff]
    %v687 = vld [vmem:[%s3 + $0x1350] sm:$0xff]
    %v688 = vld [vmem:[%s3 + $0x1358] sm:$0xff]
    %v689 = vld [vmem:[%s3 + $0x1360] sm:$0xff]
    %v690 = vld [vmem:[%s3 + $0x1368] sm:$0xff]
    %v691 = vld [vmem:[%s3 + $0x1370] sm:$0xff]
    %v692 = vld [vmem:[%s3 + $0x1378] sm:$0xff]
    %v693 = vld [vmem:[%s3 + $0x1380] sm:$0xff]
    %v694 = vld [vmem:[%s3 + $0x1388] sm:$0xff]
    %v695 = vld [vmem:[%s3 + $0x1390] sm:$0xff]
    %v696 = vld [vmem:[%s3 + $0x1398] sm:$0xff]
    %v697 = vld [vmem:[%s3 + $0x13a0] sm:$0xff]
    %v698 = vld [vmem:[%s3 + $0x13a8] sm:$0xff]
    %v699 = vld [vmem:[%s3 + $0x13b0] sm:$0xff]
    %v700 = vld [vmem:[%s3 + $0x13b8] sm:$0xff]
    %v701 = vld [vmem:[%s3 + $0x13c0] sm:$0xff]
    %v702 = vld [vmem:[%s3 + $0x13c8] sm:$0xff]
    %v703 = vld [vmem:[%s3 + $0x13d0] sm:$0xff]
    %v704 = vld [vmem:[%s3 + $0x13d8] sm:$0xff]
    %v705 = vld [vmem:[%s3 + $0x13e0] sm:$0xff]
    %v706 = vld [vmem:[%s3 + $0x13e8] sm:$0xff]
    %v707 = vld [vmem:[%s3 + $0x13f0] sm:$0xff]
    %v708 = vld [vmem:[%s3 + $0x13f8] sm:$0xff]
    %v709 = vld [vmem:[%s3 + $0x1400] sm:$0xff]
    %v710 = vld [vmem:[%s3 + $0x1408] sm:$0xff]
    %v711 = vld [vmem:[%s3 + $0x1410] sm:$0xff]
    %v712 = vld [vmem:[%s3 + $0x1418] sm:$0xff]
    %v713 = vld [vmem:[%s3 + $0x1420] sm:$0xff]
    %v714 = vld [vmem:[%s3 + $0x1428] sm:$0xff]
    %v715 = vld [vmem:[%s3 + $0x1430] sm:$0xff]
    %v716 = vld [vmem:[%s3 + $0x1438] sm:$0xff]
    %v717 = vld [vmem:[%s3 + $0x1440] sm:$0xff]
    %v718 = vld [vmem:[%s3 + $0x1448] sm:$0xff]
    %v719 = vld [vmem:[%s3 + $0x1450] sm:$0xff]
    %v720 = vld [vmem:[%s3 + $0x1458] sm:$0xff]
    %v721 = vld [vmem:[%s3 + $0x1460] sm:$0xff]
    %v722 = vld [vmem:[%s3 + $0x1468] sm:$0xff]
    %v723 = vld [vmem:[%s3 + $0x1470] sm:$0xff]
    %v724 = vld [vmem:[%s3 + $0x1478] sm:$0xff]
    %v725 = vld [vmem:[%s3 + $0x1480] sm:$0xff]
    %v726 = vld [vmem:[%s3 + $0x1488] sm:$0xff]
    %v727 = vld [vmem:[%s3 + $0x1490] sm:$0xff]
    %v728 = vld [vmem:[%s3 + $0x1498] sm:$0xff]
    %v729 = vld [vmem:[%s3 + $0x14a0] sm:$0xff]
    %v730 = vld [vmem:[%s3 + $0x14a8] sm:$0xff]
    %v731 = vld [vmem:[%s3 + $0x14b0] sm:$0xff]
    %v732 = vld [vmem:[%s3 + $0x14b8] sm:$0xff]
    %v733 = vld [vmem:[%s3 + $0x14c0] sm:$0xff]
    %v734 = vld [vmem:[%s3 + $0x14c8] sm:$0xff]
    %v735 = vld [vmem:[%s3 + $0x14d0] sm:$0xff]
    %v736 = vld [vmem:[%s3 + $0x14d8] sm:$0xff]
    %v737 = vld [vmem:[%s3 + $0x14e0] sm:$0xff]
    %v738 = vld [vmem:[%s3 + $0x14e8] sm:$0xff]
    %v739 = vld [vmem:[%s3 + $0x14f0] sm:$0xff]
    %v740 = vld [vmem:[%s3 + $0x14f8] sm:$0xff]
    %v741 = vld [vmem:[%s3 + $0x1500] sm:$0xff]
    %v742 = vld [vmem:[%s3 + $0x1508] sm:$0xff]
    %v743 = vld [vmem:[%s3 + $0x1510] sm:$0xff]
    %v744 = vld [vmem:[%s3 + $0x1518] sm:$0xff]
    %v745 = vld [vmem:[%s3 + $0x1520] sm:$0xff]
    %v746 = vld [vmem:[%s3 + $0x1528] sm:$0xff]
    %v747 = vld [vmem:[%s3 + $0x1530] sm:$0xff]
    %v748 = vld [vmem:[%s3 + $0x1538] sm:$0xff]
    %v749 = vld [vmem:[%s3 + $0x1540] sm:$0xff]
    %v750 = vld [vmem:[%s3 + $0x1548] sm:$0xff]
    %v751 = vld [vmem:[%s3 + $0x1550] sm:$0xff]
    %v752 = vld [vmem:[%s3 + $0x1558] sm:$0xff]
    %v753 = vld [vmem:[%s3 + $0x1560] sm:$0xff]
    %v754 = vld [vmem:[%s3 + $0x1568] sm:$0xff]
    %v755 = vld [vmem:[%s3 + $0x1570] sm:$0xff]
    %v756 = vld [vmem:[%s3 + $0x1578] sm:$0xff]
    %v757 = vld [vmem:[%s3 + $0x1580] sm:$0xff]
    %v758 = vld [vmem:[%s3 + $0x1588] sm:$0xff]
    %v759 = vld [vmem:[%s3 + $0x1590] sm:$0xff]
    %v760 = vld [vmem:[%s3 + $0x1598] sm:$0xff]
    %v761 = vld [vmem:[%s3 + $0x15a0] sm:$0xff]
    %v762 = vld [vmem:[%s3 + $0x15a8] sm:$0xff]
    %v763 = vld [vmem:[%s3 + $0x15b0] sm:$0xff]
    %v764 = vld [vmem:[%s3 + $0x15b8] sm:$0xff]
    %v765 = vld [vmem:[%s3 + $0x15c0] sm:$0xff]
    %v766 = vld [vmem:[%s3 + $0x15c8] sm:$0xff]
    %v767 = vld [vmem:[%s3 + $0x15d0] sm:$0xff]
    %v768 = vld [vmem:[%s3 + $0x15d8] sm:$0xff]
    %v769 = vld [vmem:[%s3 + $0x15e0] sm:$0xff]
    %v770 = vld [vmem:[%s3 + $0x15e8] sm:$0xff]
    %v771 = vld [vmem:[%s3 + $0x15f0] sm:$0xff]
    %v772 = vld [vmem:[%s3 + $0x15f8] sm:$0xff]
    %v773 = vld [vmem:[%s3 + $0x1600] sm:$0xff]
    %v774 = vld [vmem:[%s3 + $0x1608] sm:$0xff]
    %v775 = vld [vmem:[%s3 + $0x1610] sm:$0xff]
    %v776 = vld [vmem:[%s3 + $0x1618] sm:$0xff]
    %v777 = vld [vmem:[%s3 + $0x1620] sm:$0xff]
    %v778 = vld [vmem:[%s3 + $0x1628] sm:$0xff]
    %v779 = vld [vmem:[%s3 + $0x1630] sm:$0xff]
    %v780 = vld [vmem:[%s3 + $0x1638] sm:$0xff]
    %v781 = vld [vmem:[%s3 + $0x1640] sm:$0xff]
    %v782 = vld [vmem:[%s3 + $0x1648] sm:$0xff]
    %v783 = vld [vmem:[%s3 + $0x1650] sm:$0xff]
    %v784 = vld [vmem:[%s3 + $0x1658] sm:$0xff]
    %v785 = vld [vmem:[%s3 + $0x1660] sm:$0xff]
    %v786 = vld [vmem:[%s3 + $0x1668] sm:$0xff]
    %v787 = vld [vmem:[%s3 + $0x1670] sm:$0xff]
    %v788 = vld [vmem:[%s3 + $0x1678] sm:$0xff]
    %v789 = vld [vmem:[%s3 + $0x1680] sm:$0xff]
    %v790 = vld [vmem:[%s3 + $0x1688] sm:$0xff]
    %v791 = vld [vmem:[%s3 + $0x1690] sm:$0xff]
    %v792 = vld [vmem:[%s3 + $0x1698] sm:$0xff]
    %v793 = vld [vmem:[%s3 + $0x16a0] sm:$0xff]
    %v794 = vld [vmem:[%s3 + $0x16a8] sm:$0xff]
    %v795 = vld [vmem:[%s3 + $0x16b0] sm:$0xff]
    %v796 = vld [vmem:[%s3 + $0x16b8] sm:$0xff]
    %v797 = vld [vmem:[%s3 + $0x16c0] sm:$0xff]
    %v798 = vld [vmem:[%s3 + $0x16c8] sm:$0xff]
    %v799 = vld [vmem:[%s3 + $0x16d0] sm:$0xff]
    %v800 = vld [vmem:[%s3 + $0x16d8] sm:$0xff]
    %v801 = vld [vmem:[%s3 + $0x16e0] sm:$0xff]
    %v802 = vld [vmem:[%s3 + $0x16e8] sm:$0xff]
    %v803 = vld [vmem:[%s3 + $0x16f0] sm:$0xff]
    %v804 = vld [vmem:[%s3 + $0x16f8] sm:$0xff]
    %v805 = vld [vmem:[%s3 + $0x1700] sm:$0xff]
    %v806 = vld [vmem:[%s3 + $0x1708] sm:$0xff]
    %v807 = vld [vmem:[%s3 + $0x1710] sm:$0xff]
    %v808 = vld [vmem:[%s3 + $0x1718] sm:$0xff]
    %v809 = vld [vmem:[%s3 + $0x1720] sm:$0xff]
    %v810 = vld [vmem:[%s3 + $0x1728] sm:$0xff]
    %v811 = vld [vmem:[%s3 + $0x1730] sm:$0xff]
    %v812 = vld [vmem:[%s3 + $0x1738] sm:$0xff]
    %v813 = vld [vmem:[%s3 + $0x1740] sm:$0xff]
    %v814 = vld [vmem:[%s3 + $0x1748] sm:$0xff]
    %v815 = vld [vmem:[%s3 + $0x1750] sm:$0xff]
    %v816 = vld [vmem:[%s3 + $0x1758] sm:$0xff]
    %v817 = vld [vmem:[%s3 + $0x1760] sm:$0xff]
    %v818 = vld [vmem:[%s3 + $0x1768] sm:$0xff]
    %v819 = vld [vmem:[%s3 + $0x1770] sm:$0xff]
    %v820 = vld [vmem:[%s3 + $0x1778] sm:$0xff]
    %v821 = vld [vmem:[%s3 + $0x1780] sm:$0xff]
    %v822 = vld [vmem:[%s3 + $0x1788] sm:$0xff]
    %v823 = vld [vmem:[%s3 + $0x1790] sm:$0xff]
    %v824 = vld [vmem:[%s3 + $0x1798] sm:$0xff]
    %v825 = vld [vmem:[%s3 + $0x17a0] sm:$0xff]
    %v826 = vld [vmem:[%s3 + $0x17a8] sm:$0xff]
    %v827 = vld [vmem:[%s3 + $0x17b0] sm:$0xff]
    %v828 = vld [vmem:[%s3 + $0x17b8] sm:$0xff]
    %v829 = vld [vmem:[%s3 + $0x17c0] sm:$0xff]
    %v830 = vld [vmem:[%s3 + $0x17c8] sm:$0xff]
    %v831 = vld [vmem:[%s3 + $0x17d0] sm:$0xff]
    %v832 = vld [vmem:[%s3 + $0x17d8] sm:$0xff]
    %v833 = vld [vmem:[%s3 + $0x17e0] sm:$0xff]
    %v834 = vld [vmem:[%s3 + $0x17e8] sm:$0xff]
    %v835 = vld [vmem:[%s3 + $0x17f0] sm:$0xff]
    %v836 = vld [vmem:[%s3 + $0x17f8] sm:$0xff]
    %v837 = vld [vmem:[%s3 + $0x1800] sm:$0xff]
    %v838 = vld [vmem:[%s3 + $0x1808] sm:$0xff]
    %v839 = vld [vmem:[%s3 + $0x1810] sm:$0xff]
    %v840 = vld [vmem:[%s3 + $0x1818] sm:$0xff]
    %v841 = vld [vmem:[%s3 + $0x1820] sm:$0xff]
    %v842 = vld [vmem:[%s3 + $0x1828] sm:$0xff]
    %v843 = vld [vmem:[%s3 + $0x1830] sm:$0xff]
    %v844 = vld [vmem:[%s3 + $0x1838] sm:$0xff]
    %v845 = vld [vmem:[%s3 + $0x1840] sm:$0xff]
    %v846 = vld [vmem:[%s3 + $0x1848] sm:$0xff]
    %v847 = vld [vmem:[%s3 + $0x1850] sm:$0xff]
    %v848 = vld [vmem:[%s3 + $0x1858] sm:$0xff]
    %v849 = vld [vmem:[%s3 + $0x1860] sm:$0xff]
    %v850 = vld [vmem:[%s3 + $0x1868] sm:$0xff]
    %v851 = vld [vmem:[%s3 + $0x1870] sm:$0xff]
    %v852 = vld [vmem:[%s3 + $0x1878] sm:$0xff]
    %v853 = vld [vmem:[%s4] sm:$0xf]
    %v855 = vperm.slane %v853, 0
    %v856 = vperm.slane %v853, 1
    %v857 = vperm.slane %v853, 2
    %v858 = vperm.slane %v853, 3
    %864 = vst [vmem:[#allocation1] ss:$9 sm:$0xff] %v65
    %v865 = vld [vmem:[#allocation1] sm:$0xff]
    %v866 = vld [vmem:[#allocation1 + $0x9] sm:$0xff]
    %v867 = vld [vmem:[#allocation1 + $0x12] sm:$0xff]
    %v868 = vld [vmem:[#allocation1 + $0x1b] sm:$0xff]
    %v869 = vld [vmem:[#allocation1 + $0x24] sm:$0xff]
    %v870 = vld [vmem:[#allocation1 + $0x2d] sm:$0xff]
    %v871 = vld [vmem:[#allocation1 + $0x36] sm:$0xff]
    %v872 = vld [vmem:[#allocation1 + $0x3f] sm:$0xff]
    %874 = vst [vmem:[#allocation1] ss:$9 sm:$0xff] %v66
    %v875 = vld [vmem:[#allocation1] sm:$0xff]
    %v876 = vld [vmem:[#allocation1 + $0x9] sm:$0xff]
    %v877 = vld [vmem:[#allocation1 + $0x12] sm:$0xff]
    %v878 = vld [vmem:[#allocation1 + $0x1b] sm:$0xff]
    %v879 = vld [vmem:[#allocation1 + $0x24] sm:$0xff]
    %v880 = vld [vmem:[#allocation1 + $0x2d] sm:$0xff]
    %v881 = vld [vmem:[#allocation1 + $0x36] sm:$0xff]
    %v882 = vld [vmem:[#allocation1 + $0x3f] sm:$0xff]
    %884 = vst [vmem:[#allocation1] ss:$9 sm:$0xff] %v67
    %v885 = vld [vmem:[#allocation1] sm:$0xff]
    %v886 = vld [vmem:[#allocation1 + $0x9] sm:$0xff]
    %v887 = vld [vmem:[#allocation1 + $0x12] sm:$0xff]
    %v888 = vld [vmem:[#allocation1 + $0x1b] sm:$0xff]
    %v889 = vld [vmem:[#allocation1 + $0x24] sm:$0xff]
    %v890 = vld [vmem:[#allocation1 + $0x2d] sm:$0xff]
    %v891 = vld [vmem:[#allocation1 + $0x36] sm:$0xff]
    %v892 = vld [vmem:[#allocation1 + $0x3f] sm:$0xff]
    %894 = vst [vmem:[#allocation1] ss:$9 sm:$0xff] %v68
    %v895 = vld [vmem:[#allocation1] sm:$0xff]
    %v1704 = vunpack.c.l.b16 %v69
    %v1705 = vunpack.c.h.b16 %v69
    %v1706 = vunpack.c.l.b16 %v70
    %v1707 = vunpack.c.h.b16 %v70
    %v1708 = vunpack.c.l.b16 %v71
    %v1709 = vunpack.c.h.b16 %v71
    %v1710 = vunpack.c.l.b16 %v72
    %v1711 = vunpack.c.h.b16 %v72
    %v1712 = vunpack.c.l.b16 %v73
    %v1713 = vunpack.c.h.b16 %v73
    %v1714 = vunpack.c.l.b16 %v74
    %v1715 = vunpack.c.h.b16 %v74
    %v1716 = vunpack.c.l.b16 %v75
    %v1717 = vunpack.c.h.b16 %v75
    %v1718 = vunpack.c.l.b16 %v76
    %v1719 = vunpack.c.h.b16 %v76
    %v1720 = vunpack.c.l.b16 %v77
    %v1721 = vunpack.c.h.b16 %v77
    %v1722 = vunpack.c.l.b16 %v78
    %v1723 = vunpack.c.h.b16 %v78
    %v1724 = vunpack.c.l.b16 %v79
    %v1725 = vunpack.c.h.b16 %v79
    %v1726 = vunpack.c.l.b16 %v80
    %v1727 = vunpack.c.h.b16 %v80
    %v1728 = vunpack.c.l.b16 %v81
    %v1729 = vunpack.c.h.b16 %v81
    %v1730 = vunpack.c.l.b16 %v82
    %v1731 = vunpack.c.h.b16 %v82
    %v1732 = vunpack.c.l.b16 %v83
    %v1733 = vunpack.c.h.b16 %v83
    %v1734 = vunpack.c.l.b16 %v84
    %v1735 = vunpack.c.h.b16 %v84
    %v1736 = vunpack.c.l.b16 %v85
    %v1737 = vunpack.c.h.b16 %v85
    %v1738 = vunpack.c.l.b16 %v86
    %v1739 = vunpack.c.h.b16 %v86
    %v1740 = vunpack.c.l.b16 %v87
    %v1741 = vunpack.c.h.b16 %v87
    %v1742 = vunpack.c.l.b16 %v88
    %v1743 = vunpack.c.h.b16 %v88
    %v1744 = vunpack.c.l.b16 %v89
    %v1745 = vunpack.c.h.b16 %v89
    %v1746 = vunpack.c.l.b16 %v90
    %v1747 = vunpack.c.h.b16 %v90
    %v1748 = vunpack.c.l.b16 %v91
    %v1749 = vunpack.c.h.b16 %v91
    %v1750 = vunpack.c.l.b16 %v92
    %v1751 = vunpack.c.h.b16 %v92
    %v1752 = vunpack.c.l.b16 %v93
    %v1753 = vunpack.c.h.b16 %v93
    %v1754 = vunpack.c.l.b16 %v94
    %v1755 = vunpack.c.h.b16 %v94
    %v1756 = vunpack.c.l.b16 %v95
    %v1757 = vunpack.c.h.b16 %v95
    %v1758 = vunpack.c.l.b16 %v96
    %v1759 = vunpack.c.h.b16 %v96
    %v1760 = vunpack.c.l.b16 %v97
    %v1761 = vunpack.c.h.b16 %v97
    %v1762 = vunpack.c.l.b16 %v98
    %v1763 = vunpack.c.h.b16 %v98
    %v1764 = vunpack.c.l.b16 %v99
    %v1765 = vunpack.c.h.b16 %v99
    %v1766 = vunpack.c.l.b16 %v100
    %v1767 = vunpack.c.h.b16 %v100
    %v1768 = vunpack.c.l.b16 %v101
    %v1769 = vunpack.c.h.b16 %v101
    %v1770 = vunpack.c.l.b16 %v102
    %v1771 = vunpack.c.h.b16 %v102
    %v1772 = vunpack.c.l.b16 %v103
    %v1773 = vunpack.c.h.b16 %v103
    %v1774 = vunpack.c.l.b16 %v104
    %v1775 = vunpack.c.h.b16 %v104
    %v1776 = vunpack.c.l.b16 %v105
    %v1777 = vunpack.c.h.b16 %v105
    %v1778 = vunpack.c.l.b16 %v106
    %v1779 = vunpack.c.h.b16 %v106
    %v1780 = vunpack.c.l.b16 %v107
    %v1781 = vunpack.c.h.b16 %v107
    %v1782 = vunpack.c.l.b16 %v108
    %v1783 = vunpack.c.h.b16 %v108
    %v1784 = vunpack.c.l.b16 %v109
    %v1785 = vunpack.c.h.b16 %v109
    %v1786 = vunpack.c.l.b16 %v110
    %v1787 = vunpack.c.h.b16 %v110
    %v1788 = vunpack.c.l.b16 %v111
    %v1789 = vunpack.c.h.b16 %v111
    %v1790 = vunpack.c.l.b16 %v112
    %v1791 = vunpack.c.h.b16 %v112
    %v1792 = vunpack.c.l.b16 %v113
    %v1793 = vunpack.c.h.b16 %v113
    %v1794 = vunpack.c.l.b16 %v114
    %v1795 = vunpack.c.h.b16 %v114
    %v1796 = vunpack.c.l.b16 %v115
    %v1797 = vunpack.c.h.b16 %v115
    %v1798 = vunpack.c.l.b16 %v116
    %v1799 = vunpack.c.h.b16 %v116
    %v1800 = vunpack.c.l.b16 %v117
    %v1801 = vunpack.c.h.b16 %v117
    %v1802 = vunpack.c.l.b16 %v118
    %v1803 = vunpack.c.h.b16 %v118
    %v1804 = vunpack.c.l.b16 %v119
    %v1805 = vunpack.c.h.b16 %v119
    %v1806 = vunpack.c.l.b16 %v120
    %v1807 = vunpack.c.h.b16 %v120
    %v1808 = vunpack.c.l.b16 %v121
    %v1809 = vunpack.c.h.b16 %v121
    %v1810 = vunpack.c.l.b16 %v122
    %v1811 = vunpack.c.h.b16 %v122
    %v1812 = vunpack.c.l.b16 %v123
    %v1813 = vunpack.c.h.b16 %v123
    %v1814 = vunpack.c.l.b16 %v124
    %v1815 = vunpack.c.h.b16 %v124
    %v1816 = vunpack.c.l.b16 %v125
    %v1817 = vunpack.c.h.b16 %v125
    %v1818 = vunpack.c.l.b16 %v126
    %v1819 = vunpack.c.h.b16 %v126
    %v1820 = vunpack.c.l.b16 %v127
    %v1821 = vunpack.c.h.b16 %v127
    %v1822 = vunpack.c.l.b16 %v128
    %v1823 = vunpack.c.h.b16 %v128
    %v1824 = vunpack.c.l.b16 %v129
    %v1825 = vunpack.c.h.b16 %v129
    %v1826 = vunpack.c.l.b16 %v130
    %v1827 = vunpack.c.h.b16 %v130
    %v1828 = vunpack.c.l.b16 %v131
    %v1829 = vunpack.c.h.b16 %v131
    %v1830 = vunpack.c.l.b16 %v132
    %v1831 = vunpack.c.h.b16 %v132
    %v1832 = vunpack.c.l.b16 %v133
    %v1833 = vunpack.c.h.b16 %v133
    %v1834 = vunpack.c.l.b16 %v134
    %v1835 = vunpack.c.h.b16 %v134
    %v1836 = vunpack.c.l.b16 %v135
    %v1837 = vunpack.c.h.b16 %v135
    %v1838 = vunpack.c.l.b16 %v136
    %v1839 = vunpack.c.h.b16 %v136
    %v1840 = vunpack.c.l.b16 %v137
    %v1841 = vunpack.c.h.b16 %v137
    %v1842 = vunpack.c.l.b16 %v138
    %v1843 = vunpack.c.h.b16 %v138
    %v1844 = vunpack.c.l.b16 %v139
    %v1845 = vunpack.c.h.b16 %v139
    %v1846 = vunpack.c.l.b16 %v140
    %v1847 = vunpack.c.h.b16 %v140
    %v1848 = vunpack.c.l.b16 %v141
    %v1849 = vunpack.c.h.b16 %v141
    %v1850 = vunpack.c.l.b16 %v142
    %v1851 = vunpack.c.h.b16 %v142
    %v1852 = vunpack.c.l.b16 %v143
    %v1853 = vunpack.c.h.b16 %v143
    %v1854 = vunpack.c.l.b16 %v144
    %v1855 = vunpack.c.h.b16 %v144
    %v1856 = vunpack.c.l.b16 %v145
    %v1857 = vunpack.c.h.b16 %v145
    %v1858 = vunpack.c.l.b16 %v146
    %v1859 = vunpack.c.h.b16 %v146
    %v1860 = vunpack.c.l.b16 %v147
    %v1861 = vunpack.c.h.b16 %v147
    %v1862 = vunpack.c.l.b16 %v148
    %v1863 = vunpack.c.h.b16 %v148
    %v1864 = vunpack.c.l.b16 %v149
    %v1865 = vunpack.c.h.b16 %v149
    %v1866 = vunpack.c.l.b16 %v150
    %v1867 = vunpack.c.h.b16 %v150
    %v1868 = vunpack.c.l.b16 %v151
    %v1869 = vunpack.c.h.b16 %v151
    %v1870 = vunpack.c.l.b16 %v152
    %v1871 = vunpack.c.h.b16 %v152
    %v1872 = vunpack.c.l.b16 %v153
    %v1873 = vunpack.c.h.b16 %v153
    %v1874 = vunpack.c.l.b16 %v154
    %v1875 = vunpack.c.h.b16 %v154
    %v1876 = vunpack.c.l.b16 %v155
    %v1877 = vunpack.c.h.b16 %v155
    %v1878 = vunpack.c.l.b16 %v156
    %v1879 = vunpack.c.h.b16 %v156
    %v1880 = vunpack.c.l.b16 %v157
    %v1881 = vunpack.c.h.b16 %v157
    %v1882 = vunpack.c.l.b16 %v158
    %v1883 = vunpack.c.h.b16 %v158
    %v1884 = vunpack.c.l.b16 %v159
    %v1885 = vunpack.c.h.b16 %v159
    %v1886 = vunpack.c.l.b16 %v160
    %v1887 = vunpack.c.h.b16 %v160
    %v1888 = vunpack.c.l.b16 %v161
    %v1889 = vunpack.c.h.b16 %v161
    %v1890 = vunpack.c.l.b16 %v162
    %v1891 = vunpack.c.h.b16 %v162
    %v1892 = vunpack.c.l.b16 %v163
    %v1893 = vunpack.c.h.b16 %v163
    %v1894 = vunpack.c.l.b16 %v164
    %v1895 = vunpack.c.h.b16 %v164
    %v1896 = vunpack.c.l.b16 %v165
    %v1897 = vunpack.c.h.b16 %v165
    %v1898 = vunpack.c.l.b16 %v166
    %v1899 = vunpack.c.h.b16 %v166
    %v1900 = vunpack.c.l.b16 %v167
    %v1901 = vunpack.c.h.b16 %v167
    %v1902 = vunpack.c.l.b16 %v168
    %v1903 = vunpack.c.h.b16 %v168
    %v1904 = vunpack.c.l.b16 %v169
    %v1905 = vunpack.c.h.b16 %v169
    %v1906 = vunpack.c.l.b16 %v170
    %v1907 = vunpack.c.h.b16 %v170
    %v1908 = vunpack.c.l.b16 %v171
    %v1909 = vunpack.c.h.b16 %v171
    %v1910 = vunpack.c.l.b16 %v172
    %v1911 = vunpack.c.h.b16 %v172
    %v1912 = vunpack.c.l.b16 %v173
    %v1913 = vunpack.c.h.b16 %v173
    %v1914 = vunpack.c.l.b16 %v174
    %v1915 = vunpack.c.h.b16 %v174
    %v1916 = vunpack.c.l.b16 %v175
    %v1917 = vunpack.c.h.b16 %v175
    %v1918 = vunpack.c.l.b16 %v176
    %v1919 = vunpack.c.h.b16 %v176
    %v1920 = vunpack.c.l.b16 %v177
    %v1921 = vunpack.c.h.b16 %v177
    %v1922 = vunpack.c.l.b16 %v178
    %v1923 = vunpack.c.h.b16 %v178
    %v1924 = vunpack.c.l.b16 %v179
    %v1925 = vunpack.c.h.b16 %v179
    %v1926 = vunpack.c.l.b16 %v180
    %v1927 = vunpack.c.h.b16 %v180
    %v1928 = vunpack.c.l.b16 %v181
    %v1929 = vunpack.c.h.b16 %v181
    %v1930 = vunpack.c.l.b16 %v182
    %v1931 = vunpack.c.h.b16 %v182
    %v1932 = vunpack.c.l.b16 %v183
    %v1933 = vunpack.c.h.b16 %v183
    %v1934 = vunpack.c.l.b16 %v184
    %v1935 = vunpack.c.h.b16 %v184
    %v1936 = vunpack.c.l.b16 %v185
    %v1937 = vunpack.c.h.b16 %v185
    %v1938 = vunpack.c.l.b16 %v186
    %v1939 = vunpack.c.h.b16 %v186
    %v1940 = vunpack.c.l.b16 %v187
    %v1941 = vunpack.c.h.b16 %v187
    %v1942 = vunpack.c.l.b16 %v188
    %v1943 = vunpack.c.h.b16 %v188
    %v1944 = vunpack.c.l.b16 %v189
    %v1945 = vunpack.c.h.b16 %v189
    %v1946 = vunpack.c.l.b16 %v190
    %v1947 = vunpack.c.h.b16 %v190
    %v1948 = vunpack.c.l.b16 %v191
    %v1949 = vunpack.c.h.b16 %v191
    %v1950 = vunpack.c.l.b16 %v192
    %v1951 = vunpack.c.h.b16 %v192
    %v1952 = vunpack.c.l.b16 %v193
    %v1953 = vunpack.c.h.b16 %v193
    %v1954 = vunpack.c.l.b16 %v194
    %v1955 = vunpack.c.h.b16 %v194
    %v1956 = vunpack.c.l.b16 %v195
    %v1957 = vunpack.c.h.b16 %v195
    %v1958 = vunpack.c.l.b16 %v196
    %v1959 = vunpack.c.h.b16 %v196
    %v1960 = vunpack.c.l.b16 %v197
    %v1961 = vunpack.c.h.b16 %v197
    %v1962 = vunpack.c.l.b16 %v198
    %v1963 = vunpack.c.h.b16 %v198
    %v1964 = vunpack.c.l.b16 %v199
    %v1965 = vunpack.c.h.b16 %v199
    %v1966 = vunpack.c.l.b16 %v200
    %v1967 = vunpack.c.h.b16 %v200
    %v1968 = vunpack.c.l.b16 %v201
    %v1969 = vunpack.c.h.b16 %v201
    %v1970 = vunpack.c.l.b16 %v202
    %v1971 = vunpack.c.h.b16 %v202
    %v1972 = vunpack.c.l.b16 %v203
    %v1973 = vunpack.c.h.b16 %v203
    %v1974 = vunpack.c.l.b16 %v204
    %v1975 = vunpack.c.h.b16 %v204
    %v1976 = vunpack.c.l.b16 %v205
    %v1977 = vunpack.c.h.b16 %v205
    %v1978 = vunpack.c.l.b16 %v206
    %v1979 = vunpack.c.h.b16 %v206
    %v1980 = vunpack.c.l.b16 %v207
    %v1981 = vunpack.c.h.b16 %v207
    %v1982 = vunpack.c.l.b16 %v208
    %v1983 = vunpack.c.h.b16 %v208
    %v1984 = vunpack.c.l.b16 %v209
    %v1985 = vunpack.c.h.b16 %v209
    %v1986 = vunpack.c.l.b16 %v210
    %v1987 = vunpack.c.h.b16 %v210
    %v1988 = vunpack.c.l.b16 %v211
    %v1989 = vunpack.c.h.b16 %v211
    %v1990 = vunpack.c.l.b16 %v212
    %v1991 = vunpack.c.h.b16 %v212
    %v1992 = vunpack.c.l.b16 %v213
    %v1993 = vunpack.c.h.b16 %v213
    %v1994 = vunpack.c.l.b16 %v214
    %v1995 = vunpack.c.h.b16 %v214
    %v1996 = vunpack.c.l.b16 %v215
    %v1997 = vunpack.c.h.b16 %v215
    %v1998 = vunpack.c.l.b16 %v216
    %v1999 = vunpack.c.h.b16 %v216
    %v2000 = vunpack.c.l.b16 %v217
    %v2001 = vunpack.c.h.b16 %v217
    %v2002 = vunpack.c.l.b16 %v218
    %v2003 = vunpack.c.h.b16 %v218
    %v2004 = vunpack.c.l.b16 %v219
    %v2005 = vunpack.c.h.b16 %v219
    %v2006 = vunpack.c.l.b16 %v220
    %v2007 = vunpack.c.h.b16 %v220
    %v2008 = vunpack.c.l.b16 %v221
    %v2009 = vunpack.c.h.b16 %v221
    %v2010 = vunpack.c.l.b16 %v222
    %v2011 = vunpack.c.h.b16 %v222
    %v2012 = vunpack.c.l.b16 %v223
    %v2013 = vunpack.c.h.b16 %v223
    %v2014 = vunpack.c.l.b16 %v224
    %v2015 = vunpack.c.h.b16 %v224
    %v2016 = vunpack.c.l.b16 %v225
    %v2017 = vunpack.c.h.b16 %v225
    %v2018 = vunpack.c.l.b16 %v226
    %v2019 = vunpack.c.h.b16 %v226
    %v2020 = vunpack.c.l.b16 %v227
    %v2021 = vunpack.c.h.b16 %v227
    %v2022 = vunpack.c.l.b16 %v228
    %v2023 = vunpack.c.h.b16 %v228
    %v2024 = vunpack.c.l.b16 %v229
    %v2025 = vunpack.c.h.b16 %v229
    %v2026 = vunpack.c.l.b16 %v230
    %v2027 = vunpack.c.h.b16 %v230
    %v2028 = vunpack.c.l.b16 %v231
    %v2029 = vunpack.c.h.b16 %v231
    %v2030 = vunpack.c.l.b16 %v232
    %v2031 = vunpack.c.h.b16 %v232
    %v2032 = vunpack.c.l.b16 %v233
    %v2033 = vunpack.c.h.b16 %v233
    %v2034 = vunpack.c.l.b16 %v234
    %v2035 = vunpack.c.h.b16 %v234
    %v2036 = vunpack.c.l.b16 %v235
    %v2037 = vunpack.c.h.b16 %v235
    %v2038 = vunpack.c.l.b16 %v236
    %v2039 = vunpack.c.h.b16 %v236
    %v2040 = vunpack.c.l.b16 %v237
    %v2041 = vunpack.c.h.b16 %v237
    %v2042 = vunpack.c.l.b16 %v238
    %v2043 = vunpack.c.h.b16 %v238
    %v2044 = vunpack.c.l.b16 %v239
    %v2045 = vunpack.c.h.b16 %v239
    %v2046 = vunpack.c.l.b16 %v240
    %v2047 = vunpack.c.h.b16 %v240
    %v2048 = vunpack.c.l.b16 %v241
    %v2049 = vunpack.c.h.b16 %v241
    %v2050 = vunpack.c.l.b16 %v242
    %v2051 = vunpack.c.h.b16 %v242
    %v2052 = vunpack.c.l.b16 %v243
    %v2053 = vunpack.c.h.b16 %v243
    %v2054 = vunpack.c.l.b16 %v244
    %v2055 = vunpack.c.h.b16 %v244
    %v2056 = vunpack.c.l.b16 %v245
    %v2057 = vunpack.c.h.b16 %v245
    %v2058 = vunpack.c.l.b16 %v246
    %v2059 = vunpack.c.h.b16 %v246
    %v2060 = vunpack.c.l.b16 %v247
    %v2061 = vunpack.c.h.b16 %v247
    %v2062 = vunpack.c.l.b16 %v248
    %v2063 = vunpack.c.h.b16 %v248
    %v2064 = vunpack.c.l.b16 %v249
    %v2065 = vunpack.c.h.b16 %v249
    %v2066 = vunpack.c.l.b16 %v250
    %v2067 = vunpack.c.h.b16 %v250
    %v2068 = vunpack.c.l.b16 %v251
    %v2069 = vunpack.c.h.b16 %v251
    %v2070 = vunpack.c.l.b16 %v252
    %v2071 = vunpack.c.h.b16 %v252
    %v2072 = vunpack.c.l.b16 %v253
    %v2073 = vunpack.c.h.b16 %v253
    %v2074 = vunpack.c.l.b16 %v254
    %v2075 = vunpack.c.h.b16 %v254
    %v2076 = vunpack.c.l.b16 %v255
    %v2077 = vunpack.c.h.b16 %v255
    %v2078 = vunpack.c.l.b16 %v256
    %v2079 = vunpack.c.h.b16 %v256
    %v2080 = vunpack.c.l.b16 %v257
    %v2081 = vunpack.c.h.b16 %v257
    %v2082 = vunpack.c.l.b16 %v258
    %v2083 = vunpack.c.h.b16 %v258
    %v2084 = vunpack.c.l.b16 %v259
    %v2085 = vunpack.c.h.b16 %v259
    %v2086 = vunpack.c.l.b16 %v260
    %v2087 = vunpack.c.h.b16 %v260
    %v2088 = vunpack.c.l.b16 %v261
    %v2089 = vunpack.c.h.b16 %v261
    %v2090 = vunpack.c.l.b16 %v262
    %v2091 = vunpack.c.h.b16 %v262
    %v2092 = vunpack.c.l.b16 %v263
    %v2093 = vunpack.c.h.b16 %v263
    %v2094 = vunpack.c.l.b16 %v264
    %v2095 = vunpack.c.h.b16 %v264
    %v2096 = vunpack.c.l.b16 %v265
    %v2097 = vunpack.c.h.b16 %v265
    %v2098 = vunpack.c.l.b16 %v266
    %v2099 = vunpack.c.h.b16 %v266
    %v2100 = vunpack.c.l.b16 %v267
    %v2101 = vunpack.c.h.b16 %v267
    %v2102 = vunpack.c.l.b16 %v268
    %v2103 = vunpack.c.h.b16 %v268
    %v2104 = vunpack.c.l.b16 %v269
    %v2105 = vunpack.c.h.b16 %v269
    %v2106 = vunpack.c.l.b16 %v270
    %v2107 = vunpack.c.h.b16 %v270
    %v2108 = vunpack.c.l.b16 %v271
    %v2109 = vunpack.c.h.b16 %v271
    %v2110 = vunpack.c.l.b16 %v272
    %v2111 = vunpack.c.h.b16 %v272
    %v2112 = vunpack.c.l.b16 %v273
    %v2113 = vunpack.c.h.b16 %v273
    %v2114 = vunpack.c.l.b16 %v274
    %v2115 = vunpack.c.h.b16 %v274
    %v2116 = vunpack.c.l.b16 %v275
    %v2117 = vunpack.c.h.b16 %v275
    %v2118 = vunpack.c.l.b16 %v276
    %v2119 = vunpack.c.h.b16 %v276
    %v2120 = vunpack.c.l.b16 %v277
    %v2121 = vunpack.c.h.b16 %v277
    %v2122 = vunpack.c.l.b16 %v278
    %v2123 = vunpack.c.h.b16 %v278
    %v2124 = vunpack.c.l.b16 %v279
    %v2125 = vunpack.c.h.b16 %v279
    %v2126 = vunpack.c.l.b16 %v280
    %v2127 = vunpack.c.h.b16 %v280
    %v2128 = vunpack.c.l.b16 %v281
    %v2129 = vunpack.c.h.b16 %v281
    %v2130 = vunpack.c.l.b16 %v282
    %v2131 = vunpack.c.h.b16 %v282
    %v2132 = vunpack.c.l.b16 %v283
    %v2133 = vunpack.c.h.b16 %v283
    %v2134 = vunpack.c.l.b16 %v284
    %v2135 = vunpack.c.h.b16 %v284
    %v2136 = vunpack.c.l.b16 %v285
    %v2137 = vunpack.c.h.b16 %v285
    %v2138 = vunpack.c.l.b16 %v286
    %v2139 = vunpack.c.h.b16 %v286
    %v2140 = vunpack.c.l.b16 %v287
    %v2141 = vunpack.c.h.b16 %v287
    %v2142 = vunpack.c.l.b16 %v288
    %v2143 = vunpack.c.h.b16 %v288
    %v2144 = vunpack.c.l.b16 %v289
    %v2145 = vunpack.c.h.b16 %v289
    %v2146 = vunpack.c.l.b16 %v290
    %v2147 = vunpack.c.h.b16 %v290
    %v2148 = vunpack.c.l.b16 %v291
    %v2149 = vunpack.c.h.b16 %v291
    %v2150 = vunpack.c.l.b16 %v292
    %v2151 = vunpack.c.h.b16 %v292
    %v2152 = vunpack.c.l.b16 %v293
    %v2153 = vunpack.c.h.b16 %v293
    %v2154 = vunpack.c.l.b16 %v294
    %v2155 = vunpack.c.h.b16 %v294
    %v2156 = vunpack.c.l.b16 %v295
    %v2157 = vunpack.c.h.b16 %v295
    %v2158 = vunpack.c.l.b16 %v296
    %v2159 = vunpack.c.h.b16 %v296
    %v2160 = vunpack.c.l.b16 %v297
    %v2161 = vunpack.c.h.b16 %v297
    %v2162 = vunpack.c.l.b16 %v298
    %v2163 = vunpack.c.h.b16 %v298
    %v2164 = vunpack.c.l.b16 %v299
    %v2165 = vunpack.c.h.b16 %v299
    %v2166 = vunpack.c.l.b16 %v300
    %v2167 = vunpack.c.h.b16 %v300
    %v2168 = vunpack.c.l.b16 %v301
    %v2169 = vunpack.c.h.b16 %v301
    %v2170 = vunpack.c.l.b16 %v302
    %v2171 = vunpack.c.h.b16 %v302
    %v2172 = vunpack.c.l.b16 %v303
    %v2173 = vunpack.c.h.b16 %v303
    %v2174 = vunpack.c.l.b16 %v304
    %v2175 = vunpack.c.h.b16 %v304
    %v2176 = vunpack.c.l.b16 %v305
    %v2177 = vunpack.c.h.b16 %v305
    %v2178 = vunpack.c.l.b16 %v306
    %v2179 = vunpack.c.h.b16 %v306
    %v2180 = vunpack.c.l.b16 %v307
    %v2181 = vunpack.c.h.b16 %v307
    %v2182 = vunpack.c.l.b16 %v308
    %v2183 = vunpack.c.h.b16 %v308
    %v2184 = vunpack.c.l.b16 %v309
    %v2185 = vunpack.c.h.b16 %v309
    %v2186 = vunpack.c.l.b16 %v310
    %v2187 = vunpack.c.h.b16 %v310
    %v2188 = vunpack.c.l.b16 %v311
    %v2189 = vunpack.c.h.b16 %v311
    %v2190 = vunpack.c.l.b16 %v312
    %v2191 = vunpack.c.h.b16 %v312
    %v2192 = vunpack.c.l.b16 %v313
    %v2193 = vunpack.c.h.b16 %v313
    %v2194 = vunpack.c.l.b16 %v314
    %v2195 = vunpack.c.h.b16 %v314
    %v2196 = vunpack.c.l.b16 %v315
    %v2197 = vunpack.c.h.b16 %v315
    %v2198 = vunpack.c.l.b16 %v316
    %v2199 = vunpack.c.h.b16 %v316
    %v2200 = vunpack.c.l.b16 %v317
    %v2201 = vunpack.c.h.b16 %v317
    %v2202 = vunpack.c.l.b16 %v318
    %v2203 = vunpack.c.h.b16 %v318
    %v2204 = vunpack.c.l.b16 %v319
    %v2205 = vunpack.c.h.b16 %v319
    %v2206 = vunpack.c.l.b16 %v320
    %v2207 = vunpack.c.h.b16 %v320
    %v2208 = vunpack.c.l.b16 %v321
    %v2209 = vunpack.c.h.b16 %v321
    %v2210 = vunpack.c.l.b16 %v322
    %v2211 = vunpack.c.h.b16 %v322
    %v2212 = vunpack.c.l.b16 %v323
    %v2213 = vunpack.c.h.b16 %v323
    %v2214 = vunpack.c.l.b16 %v324
    %v2215 = vunpack.c.h.b16 %v324
    %v2216 = vunpack.c.l.b16 %v325
    %v2217 = vunpack.c.h.b16 %v325
    %v2218 = vunpack.c.l.b16 %v326
    %v2219 = vunpack.c.h.b16 %v326
    %v2220 = vunpack.c.l.b16 %v327
    %v2221 = vunpack.c.h.b16 %v327
    %v2222 = vunpack.c.l.b16 %v328
    %v2223 = vunpack.c.h.b16 %v328
    %v2224 = vunpack.c.l.b16 %v329
    %v2225 = vunpack.c.h.b16 %v329
    %v2226 = vunpack.c.l.b16 %v330
    %v2227 = vunpack.c.h.b16 %v330
    %v2228 = vunpack.c.l.b16 %v331
    %v2229 = vunpack.c.h.b16 %v331
    %v2230 = vunpack.c.l.b16 %v332
    %v2231 = vunpack.c.h.b16 %v332
    %v2232 = vunpack.c.l.b16 %v333
    %v2233 = vunpack.c.h.b16 %v333
    %v2234 = vunpack.c.l.b16 %v334
    %v2235 = vunpack.c.h.b16 %v334
    %v2236 = vunpack.c.l.b16 %v335
    %v2237 = vunpack.c.h.b16 %v335
    %v2238 = vunpack.c.l.b16 %v336
    %v2239 = vunpack.c.h.b16 %v336
    %v2240 = vunpack.c.l.b16 %v337
    %v2241 = vunpack.c.h.b16 %v337
    %v2242 = vunpack.c.l.b16 %v338
    %v2243 = vunpack.c.h.b16 %v338
    %v2244 = vunpack.c.l.b16 %v339
    %v2245 = vunpack.c.h.b16 %v339
    %v2246 = vunpack.c.l.b16 %v340
    %v2247 = vunpack.c.h.b16 %v340
    %v2248 = vunpack.c.l.b16 %v341
    %v2249 = vunpack.c.h.b16 %v341
    %v2250 = vunpack.c.l.b16 %v342
    %v2251 = vunpack.c.h.b16 %v342
    %v2252 = vunpack.c.l.b16 %v343
    %v2253 = vunpack.c.h.b16 %v343
    %v2254 = vunpack.c.l.b16 %v344
    %v2255 = vunpack.c.h.b16 %v344
    %v2256 = vunpack.c.l.b16 %v345
    %v2257 = vunpack.c.h.b16 %v345
    %v2258 = vunpack.c.l.b16 %v346
    %v2259 = vunpack.c.h.b16 %v346
    %v2260 = vunpack.c.l.b16 %v347
    %v2261 = vunpack.c.h.b16 %v347
    %v2262 = vunpack.c.l.b16 %v348
    %v2263 = vunpack.c.h.b16 %v348
    %v2264 = vunpack.c.l.b16 %v349
    %v2265 = vunpack.c.h.b16 %v349
    %v2266 = vunpack.c.l.b16 %v350
    %v2267 = vunpack.c.h.b16 %v350
    %v2268 = vunpack.c.l.b16 %v351
    %v2269 = vunpack.c.h.b16 %v351
    %v2270 = vunpack.c.l.b16 %v352
    %v2271 = vunpack.c.h.b16 %v352
    %v2272 = vunpack.c.l.b16 %v353
    %v2273 = vunpack.c.h.b16 %v353
    %v2274 = vunpack.c.l.b16 %v354
    %v2275 = vunpack.c.h.b16 %v354
    %v2276 = vunpack.c.l.b16 %v355
    %v2277 = vunpack.c.h.b16 %v355
    %v2278 = vunpack.c.l.b16 %v356
    %v2279 = vunpack.c.h.b16 %v356
    %v2280 = vunpack.c.l.b16 %v357
    %v2281 = vunpack.c.h.b16 %v357
    %v2282 = vunpack.c.l.b16 %v358
    %v2283 = vunpack.c.h.b16 %v358
    %v2284 = vunpack.c.l.b16 %v359
    %v2285 = vunpack.c.h.b16 %v359
    %v2286 = vunpack.c.l.b16 %v360
    %v2287 = vunpack.c.h.b16 %v360
    %v2288 = vunpack.c.l.b16 %v361
    %v2289 = vunpack.c.h.b16 %v361
    %v2290 = vunpack.c.l.b16 %v362
    %v2291 = vunpack.c.h.b16 %v362
    %v2292 = vunpack.c.l.b16 %v363
    %v2293 = vunpack.c.h.b16 %v363
    %v2294 = vunpack.c.l.b16 %v364
    %v2295 = vunpack.c.h.b16 %v364
    %v2296 = vunpack.c.l.b16 %v365
    %v2297 = vunpack.c.h.b16 %v365
    %v2298 = vunpack.c.l.b16 %v366
    %v2299 = vunpack.c.h.b16 %v366
    %v2300 = vunpack.c.l.b16 %v367
    %v2301 = vunpack.c.h.b16 %v367
    %v2302 = vunpack.c.l.b16 %v368
    %v2303 = vunpack.c.h.b16 %v368
    %v2304 = vunpack.c.l.b16 %v369
    %v2305 = vunpack.c.h.b16 %v369
    %v2306 = vunpack.c.l.b16 %v370
    %v2307 = vunpack.c.h.b16 %v370
    %v2308 = vunpack.c.l.b16 %v371
    %v2309 = vunpack.c.h.b16 %v371
    %v2310 = vunpack.c.l.b16 %v372
    %v2311 = vunpack.c.h.b16 %v372
    %v2312 = vunpack.c.l.b16 %v373
    %v2313 = vunpack.c.h.b16 %v373
    %v2314 = vunpack.c.l.b16 %v374
    %v2315 = vunpack.c.h.b16 %v374
    %v2316 = vunpack.c.l.b16 %v375
    %v2317 = vunpack.c.h.b16 %v375
    %v2318 = vunpack.c.l.b16 %v376
    %v2319 = vunpack.c.h.b16 %v376
    %v2320 = vunpack.c.l.b16 %v377
    %v2321 = vunpack.c.h.b16 %v377
    %v2322 = vunpack.c.l.b16 %v378
    %v2323 = vunpack.c.h.b16 %v378
    %v2324 = vunpack.c.l.b16 %v379
    %v2325 = vunpack.c.h.b16 %v379
    %v2326 = vunpack.c.l.b16 %v380
    %v2327 = vunpack.c.h.b16 %v380
    %v2328 = vunpack.c.l.b16 %v381
    %v2329 = vunpack.c.h.b16 %v381
    %v2330 = vunpack.c.l.b16 %v382
    %v2331 = vunpack.c.h.b16 %v382
    %v2332 = vunpack.c.l.b16 %v383
    %v2333 = vunpack.c.h.b16 %v383
    %v2334 = vunpack.c.l.b16 %v384
    %v2335 = vunpack.c.h.b16 %v384
    %v2336 = vunpack.c.l.b16 %v385
    %v2337 = vunpack.c.h.b16 %v385
    %v2338 = vunpack.c.l.b16 %v386
    %v2339 = vunpack.c.h.b16 %v386
    %v2340 = vunpack.c.l.b16 %v387
    %v2341 = vunpack.c.h.b16 %v387
    %v2342 = vunpack.c.l.b16 %v388
    %v2343 = vunpack.c.h.b16 %v388
    %v2344 = vunpack.c.l.b16 %v389
    %v2345 = vunpack.c.h.b16 %v389
    %v2346 = vunpack.c.l.b16 %v390
    %v2347 = vunpack.c.h.b16 %v390
    %v2348 = vunpack.c.l.b16 %v391
    %v2349 = vunpack.c.h.b16 %v391
    %v2350 = vunpack.c.l.b16 %v392
    %v2351 = vunpack.c.h.b16 %v392
    %v2352 = vunpack.c.l.b16 %v393
    %v2353 = vunpack.c.h.b16 %v393
    %v2354 = vunpack.c.l.b16 %v394
    %v2355 = vunpack.c.h.b16 %v394
    %v2356 = vunpack.c.l.b16 %v395
    %v2357 = vunpack.c.h.b16 %v395
    %v2358 = vunpack.c.l.b16 %v396
    %v2359 = vunpack.c.h.b16 %v396
    %v2360 = vunpack.c.l.b16 %v397
    %v2361 = vunpack.c.h.b16 %v397
    %v2362 = vunpack.c.l.b16 %v398
    %v2363 = vunpack.c.h.b16 %v398
    %v2364 = vunpack.c.l.b16 %v399
    %v2365 = vunpack.c.h.b16 %v399
    %v2366 = vunpack.c.l.b16 %v400
    %v2367 = vunpack.c.h.b16 %v400
    %v2368 = vunpack.c.l.b16 %v401
    %v2369 = vunpack.c.h.b16 %v401
    %v2370 = vunpack.c.l.b16 %v402
    %v2371 = vunpack.c.h.b16 %v402
    %v2372 = vunpack.c.l.b16 %v403
    %v2373 = vunpack.c.h.b16 %v403
    %v2374 = vunpack.c.l.b16 %v404
    %v2375 = vunpack.c.h.b16 %v404
    %v2376 = vunpack.c.l.b16 %v405
    %v2377 = vunpack.c.h.b16 %v405
    %v2378 = vunpack.c.l.b16 %v406
    %v2379 = vunpack.c.h.b16 %v406
    %v2380 = vunpack.c.l.b16 %v407
    %v2381 = vunpack.c.h.b16 %v407
    %v2382 = vunpack.c.l.b16 %v408
    %v2383 = vunpack.c.h.b16 %v408
    %v2384 = vunpack.c.l.b16 %v409
    %v2385 = vunpack.c.h.b16 %v409
    %v2386 = vunpack.c.l.b16 %v410
    %v2387 = vunpack.c.h.b16 %v410
    %v2388 = vunpack.c.l.b16 %v411
    %v2389 = vunpack.c.h.b16 %v411
    %v2390 = vunpack.c.l.b16 %v412
    %v2391 = vunpack.c.h.b16 %v412
    %v2392 = vunpack.c.l.b16 %v413
    %v2393 = vunpack.c.h.b16 %v413
    %v2394 = vunpack.c.l.b16 %v414
    %v2395 = vunpack.c.h.b16 %v414
    %v2396 = vunpack.c.l.b16 %v415
    %v2397 = vunpack.c.h.b16 %v415
    %v2398 = vunpack.c.l.b16 %v416
    %v2399 = vunpack.c.h.b16 %v416
    %v2400 = vunpack.c.l.b16 %v417
    %v2401 = vunpack.c.h.b16 %v417
    %v2402 = vunpack.c.l.b16 %v418
    %v2403 = vunpack.c.h.b16 %v418
    %v2404 = vunpack.c.l.b16 %v419
    %v2405 = vunpack.c.h.b16 %v419
    %v2406 = vunpack.c.l.b16 %v420
    %v2407 = vunpack.c.h.b16 %v420
    %v2408 = vunpack.c.l.b16 %v421
    %v2409 = vunpack.c.h.b16 %v421
    %v2410 = vunpack.c.l.b16 %v422
    %v2411 = vunpack.c.h.b16 %v422
    %v2412 = vunpack.c.l.b16 %v423
    %v2413 = vunpack.c.h.b16 %v423
    %v2414 = vunpack.c.l.b16 %v424
    %v2415 = vunpack.c.h.b16 %v424
    %v2416 = vunpack.c.l.b16 %v425
    %v2417 = vunpack.c.h.b16 %v425
    %v2418 = vunpack.c.l.b16 %v426
    %v2419 = vunpack.c.h.b16 %v426
    %v2420 = vunpack.c.l.b16 %v427
    %v2421 = vunpack.c.h.b16 %v427
    %v2422 = vunpack.c.l.b16 %v428
    %v2423 = vunpack.c.h.b16 %v428
    %v2424 = vunpack.c.l.b16 %v429
    %v2425 = vunpack.c.h.b16 %v429
    %v2426 = vunpack.c.l.b16 %v430
    %v2427 = vunpack.c.h.b16 %v430
    %v2428 = vunpack.c.l.b16 %v431
    %v2429 = vunpack.c.h.b16 %v431
    %v2430 = vunpack.c.l.b16 %v432
    %v2431 = vunpack.c.h.b16 %v432
    %v2432 = vunpack.c.l.b16 %v433
    %v2433 = vunpack.c.h.b16 %v433
    %v2434 = vunpack.c.l.b16 %v434
    %v2435 = vunpack.c.h.b16 %v434
    %v2436 = vunpack.c.l.b16 %v435
    %v2437 = vunpack.c.h.b16 %v435
    %v2438 = vunpack.c.l.b16 %v436
    %v2439 = vunpack.c.h.b16 %v436
    %v2440 = vunpack.c.l.b16 %v437
    %v2441 = vunpack.c.h.b16 %v437
    %v2442 = vunpack.c.l.b16 %v438
    %v2443 = vunpack.c.h.b16 %v438
    %v2444 = vunpack.c.l.b16 %v439
    %v2445 = vunpack.c.h.b16 %v439
    %v2446 = vunpack.c.l.b16 %v440
    %v2447 = vunpack.c.h.b16 %v440
    %v2448 = vunpack.c.l.b16 %v441
    %v2449 = vunpack.c.h.b16 %v441
    %v2450 = vunpack.c.l.b16 %v442
    %v2451 = vunpack.c.h.b16 %v442
    %v2452 = vunpack.c.l.b16 %v443
    %v2453 = vunpack.c.h.b16 %v443
    %v2454 = vunpack.c.l.b16 %v444
    %v2455 = vunpack.c.h.b16 %v444
    %v2456 = vunpack.c.l.b16 %v445
    %v2457 = vunpack.c.h.b16 %v445
    %v2458 = vunpack.c.l.b16 %v446
    %v2459 = vunpack.c.h.b16 %v446
    %v2460 = vunpack.c.l.b16 %v447
    %v2461 = vunpack.c.h.b16 %v447
    %v2462 = vunpack.c.l.b16 %v448
    %v2463 = vunpack.c.h.b16 %v448
    %v2464 = vunpack.c.l.b16 %v449
    %v2465 = vunpack.c.h.b16 %v449
    %v2466 = vunpack.c.l.b16 %v450
    %v2467 = vunpack.c.h.b16 %v450
    %v2468 = vunpack.c.l.b16 %v451
    %v2469 = vunpack.c.h.b16 %v451
    %v2470 = vunpack.c.l.b16 %v452
    %v2471 = vunpack.c.h.b16 %v452
    %v2472 = vunpack.c.l.b16 %v453
    %v2473 = vunpack.c.h.b16 %v453
    %v2474 = vunpack.c.l.b16 %v454
    %v2475 = vunpack.c.h.b16 %v454
    %v2476 = vunpack.c.l.b16 %v455
    %v2477 = vunpack.c.h.b16 %v455
    %v2478 = vunpack.c.l.b16 %v456
    %v2479 = vunpack.c.h.b16 %v456
    %v2480 = vunpack.c.l.b16 %v457
    %v2481 = vunpack.c.h.b16 %v457
    %v2482 = vunpack.c.l.b16 %v458
    %v2483 = vunpack.c.h.b16 %v458
    %v2484 = vunpack.c.l.b16 %v459
    %v2485 = vunpack.c.h.b16 %v459
    %v2486 = vunpack.c.l.b16 %v460
    %v2487 = vunpack.c.h.b16 %v460
    %v2488 = vunpack.c.l.b16 %v461
    %v2489 = vunpack.c.h.b16 %v461
    %v2490 = vunpack.c.l.b16 %v462
    %v2491 = vunpack.c.h.b16 %v462
    %v2492 = vunpack.c.l.b16 %v463
    %v2493 = vunpack.c.h.b16 %v463
    %v2494 = vunpack.c.l.b16 %v464
    %v2495 = vunpack.c.h.b16 %v464
    %v2496 = vunpack.c.l.b16 %v465
    %v2497 = vunpack.c.h.b16 %v465
    %v2498 = vunpack.c.l.b16 %v466
    %v2499 = vunpack.c.h.b16 %v466
    %v2500 = vunpack.c.l.b16 %v467
    %v2501 = vunpack.c.h.b16 %v467
    %v2502 = vunpack.c.l.b16 %v468
    %v2503 = vunpack.c.h.b16 %v468
    %v2504 = vunpack.c.l.b16 %v469
    %v2505 = vunpack.c.h.b16 %v469
    %v2506 = vunpack.c.l.b16 %v470
    %v2507 = vunpack.c.h.b16 %v470
    %v2508 = vunpack.c.l.b16 %v471
    %v2509 = vunpack.c.h.b16 %v471
    %v2510 = vunpack.c.l.b16 %v472
    %v2511 = vunpack.c.h.b16 %v472
    %v2512 = vunpack.c.l.b16 %v473
    %v2513 = vunpack.c.h.b16 %v473
    %v2514 = vunpack.c.l.b16 %v474
    %v2515 = vunpack.c.h.b16 %v474
    %v2516 = vunpack.c.l.b16 %v475
    %v2517 = vunpack.c.h.b16 %v475
    %v2518 = vunpack.c.l.b16 %v476
    %v2519 = vunpack.c.h.b16 %v476
    %v2520 = vunpack.c.l.b16 %v477
    %v2521 = vunpack.c.h.b16 %v477
    %v2522 = vunpack.c.l.b16 %v478
    %v2523 = vunpack.c.h.b16 %v478
    %v2524 = vunpack.c.l.b16 %v479
    %v2525 = vunpack.c.h.b16 %v479
    %v2526 = vunpack.c.l.b16 %v480
    %v2527 = vunpack.c.h.b16 %v480
    %v2528 = vunpack.c.l.b16 %v481
    %v2529 = vunpack.c.h.b16 %v481
    %v2530 = vunpack.c.l.b16 %v482
    %v2531 = vunpack.c.h.b16 %v482
    %v2532 = vunpack.c.l.b16 %v483
    %v2533 = vunpack.c.h.b16 %v483
    %v2534 = vunpack.c.l.b16 %v484
    %v2535 = vunpack.c.h.b16 %v484
    %v2536 = vunpack.c.l.b16 %v485
    %v2537 = vunpack.c.h.b16 %v485
    %v2538 = vunpack.c.l.b16 %v486
    %v2539 = vunpack.c.h.b16 %v486
    %v2540 = vunpack.c.l.b16 %v487
    %v2541 = vunpack.c.h.b16 %v487
    %v2542 = vunpack.c.l.b16 %v488
    %v2543 = vunpack.c.h.b16 %v488
    %v2544 = vunpack.c.l.b16 %v489
    %v2545 = vunpack.c.h.b16 %v489
    %v2546 = vunpack.c.l.b16 %v490
    %v2547 = vunpack.c.h.b16 %v490
    %v2548 = vunpack.c.l.b16 %v491
    %v2549 = vunpack.c.h.b16 %v491
    %v2550 = vunpack.c.l.b16 %v492
    %v2551 = vunpack.c.h.b16 %v492
    %v2552 = vunpack.c.l.b16 %v493
    %v2553 = vunpack.c.h.b16 %v493
    %v2554 = vunpack.c.l.b16 %v494
    %v2555 = vunpack.c.h.b16 %v494
    %v2556 = vunpack.c.l.b16 %v495
    %v2557 = vunpack.c.h.b16 %v495
    %v2558 = vunpack.c.l.b16 %v496
    %v2559 = vunpack.c.h.b16 %v496
    %v2560 = vunpack.c.l.b16 %v497
    %v2561 = vunpack.c.h.b16 %v497
    %v2562 = vunpack.c.l.b16 %v498
    %v2563 = vunpack.c.h.b16 %v498
    %v2564 = vunpack.c.l.b16 %v499
    %v2565 = vunpack.c.h.b16 %v499
    %v2566 = vunpack.c.l.b16 %v500
    %v2567 = vunpack.c.h.b16 %v500
    %v2568 = vunpack.c.l.b16 %v501
    %v2569 = vunpack.c.h.b16 %v501
    %v2570 = vunpack.c.l.b16 %v502
    %v2571 = vunpack.c.h.b16 %v502
    %v2572 = vunpack.c.l.b16 %v503
    %v2573 = vunpack.c.h.b16 %v503
    %v2574 = vunpack.c.l.b16 %v504
    %v2575 = vunpack.c.h.b16 %v504
    %v2576 = vunpack.c.l.b16 %v505
    %v2577 = vunpack.c.h.b16 %v505
    %v2578 = vunpack.c.l.b16 %v506
    %v2579 = vunpack.c.h.b16 %v506
    %v2580 = vunpack.c.l.b16 %v507
    %v2581 = vunpack.c.h.b16 %v507
    %v2582 = vunpack.c.l.b16 %v508
    %v2583 = vunpack.c.h.b16 %v508
    %v2584 = vunpack.c.l.b16 %v509
    %v2585 = vunpack.c.h.b16 %v509
    %v2586 = vunpack.c.l.b16 %v510
    %v2587 = vunpack.c.h.b16 %v510
    %v2588 = vunpack.c.l.b16 %v511
    %v2589 = vunpack.c.h.b16 %v511
    %v2590 = vunpack.c.l.b16 %v512
    %v2591 = vunpack.c.h.b16 %v512
    %v2592 = vunpack.c.l.b16 %v513
    %v2593 = vunpack.c.h.b16 %v513
    %v2594 = vunpack.c.l.b16 %v514
    %v2595 = vunpack.c.h.b16 %v514
    %v2596 = vunpack.c.l.b16 %v515
    %v2597 = vunpack.c.h.b16 %v515
    %v2598 = vunpack.c.l.b16 %v516
    %v2599 = vunpack.c.h.b16 %v516
    %v2600 = vunpack.c.l.b16 %v517
    %v2601 = vunpack.c.h.b16 %v517
    %v2602 = vunpack.c.l.b16 %v518
    %v2603 = vunpack.c.h.b16 %v518
    %v2604 = vunpack.c.l.b16 %v519
    %v2605 = vunpack.c.h.b16 %v519
    %v2606 = vunpack.c.l.b16 %v520
    %v2607 = vunpack.c.h.b16 %v520
    %v2608 = vunpack.c.l.b16 %v521
    %v2609 = vunpack.c.h.b16 %v521
    %v2610 = vunpack.c.l.b16 %v522
    %v2611 = vunpack.c.h.b16 %v522
    %v2612 = vunpack.c.l.b16 %v523
    %v2613 = vunpack.c.h.b16 %v523
    %v2614 = vunpack.c.l.b16 %v524
    %v2615 = vunpack.c.h.b16 %v524
    %v2616 = vunpack.c.l.b16 %v525
    %v2617 = vunpack.c.h.b16 %v525
    %v2618 = vunpack.c.l.b16 %v526
    %v2619 = vunpack.c.h.b16 %v526
    %v2620 = vunpack.c.l.b16 %v527
    %v2621 = vunpack.c.h.b16 %v527
    %v2622 = vunpack.c.l.b16 %v528
    %v2623 = vunpack.c.h.b16 %v528
    %v2624 = vunpack.c.l.b16 %v529
    %v2625 = vunpack.c.h.b16 %v529
    %v2626 = vunpack.c.l.b16 %v530
    %v2627 = vunpack.c.h.b16 %v530
    %v2628 = vunpack.c.l.b16 %v531
    %v2629 = vunpack.c.h.b16 %v531
    %v2630 = vunpack.c.l.b16 %v532
    %v2631 = vunpack.c.h.b16 %v532
    %v2632 = vunpack.c.l.b16 %v533
    %v2633 = vunpack.c.h.b16 %v533
    %v2634 = vunpack.c.l.b16 %v534
    %v2635 = vunpack.c.h.b16 %v534
    %v2636 = vunpack.c.l.b16 %v535
    %v2637 = vunpack.c.h.b16 %v535
    %v2638 = vunpack.c.l.b16 %v536
    %v2639 = vunpack.c.h.b16 %v536
    %v2640 = vunpack.c.l.b16 %v537
    %v2641 = vunpack.c.h.b16 %v537
    %v2642 = vunpack.c.l.b16 %v538
    %v2643 = vunpack.c.h.b16 %v538
    %v2644 = vunpack.c.l.b16 %v539
    %v2645 = vunpack.c.h.b16 %v539
    %v2646 = vunpack.c.l.b16 %v540
    %v2647 = vunpack.c.h.b16 %v540
    %v2648 = vunpack.c.l.b16 %v541
    %v2649 = vunpack.c.h.b16 %v541
    %v2650 = vunpack.c.l.b16 %v542
    %v2651 = vunpack.c.h.b16 %v542
    %v2652 = vunpack.c.l.b16 %v543
    %v2653 = vunpack.c.h.b16 %v543
    %v2654 = vunpack.c.l.b16 %v544
    %v2655 = vunpack.c.h.b16 %v544
    %v2656 = vunpack.c.l.b16 %v545
    %v2657 = vunpack.c.h.b16 %v545
    %v2658 = vunpack.c.l.b16 %v546
    %v2659 = vunpack.c.h.b16 %v546
    %v2660 = vunpack.c.l.b16 %v547
    %v2661 = vunpack.c.h.b16 %v547
    %v2662 = vunpack.c.l.b16 %v548
    %v2663 = vunpack.c.h.b16 %v548
    %v2664 = vunpack.c.l.b16 %v549
    %v2665 = vunpack.c.h.b16 %v549
    %v2666 = vunpack.c.l.b16 %v550
    %v2667 = vunpack.c.h.b16 %v550
    %v2668 = vunpack.c.l.b16 %v551
    %v2669 = vunpack.c.h.b16 %v551
    %v2670 = vunpack.c.l.b16 %v552
    %v2671 = vunpack.c.h.b16 %v552
    %v2672 = vunpack.c.l.b16 %v553
    %v2673 = vunpack.c.h.b16 %v553
    %v2674 = vunpack.c.l.b16 %v554
    %v2675 = vunpack.c.h.b16 %v554
    %v2676 = vunpack.c.l.b16 %v555
    %v2677 = vunpack.c.h.b16 %v555
    %v2678 = vunpack.c.l.b16 %v556
    %v2679 = vunpack.c.h.b16 %v556
    %v2680 = vunpack.c.l.b16 %v557
    %v2681 = vunpack.c.h.b16 %v557
    %v2682 = vunpack.c.l.b16 %v558
    %v2683 = vunpack.c.h.b16 %v558
    %v2684 = vunpack.c.l.b16 %v559
    %v2685 = vunpack.c.h.b16 %v559
    %v2686 = vunpack.c.l.b16 %v560
    %v2687 = vunpack.c.h.b16 %v560
    %v2688 = vunpack.c.l.b16 %v561
    %v2689 = vunpack.c.h.b16 %v561
    %v2690 = vunpack.c.l.b16 %v562
    %v2691 = vunpack.c.h.b16 %v562
    %v2692 = vunpack.c.l.b16 %v563
    %v2693 = vunpack.c.h.b16 %v563
    %v2694 = vunpack.c.l.b16 %v564
    %v2695 = vunpack.c.h.b16 %v564
    %v2696 = vunpack.c.l.b16 %v565
    %v2697 = vunpack.c.h.b16 %v565
    %v2698 = vunpack.c.l.b16 %v566
    %v2699 = vunpack.c.h.b16 %v566
    %v2700 = vunpack.c.l.b16 %v567
    %v2701 = vunpack.c.h.b16 %v567
    %v2702 = vunpack.c.l.b16 %v568
    %v2703 = vunpack.c.h.b16 %v568
    %v2704 = vunpack.c.l.b16 %v569
    %v2705 = vunpack.c.h.b16 %v569
    %v2706 = vunpack.c.l.b16 %v570
    %v2707 = vunpack.c.h.b16 %v570
    %v2708 = vunpack.c.l.b16 %v571
    %v2709 = vunpack.c.h.b16 %v571
    %v2710 = vunpack.c.l.b16 %v572
    %v2711 = vunpack.c.h.b16 %v572
    %v2712 = vunpack.c.l.b16 %v573
    %v2713 = vunpack.c.h.b16 %v573
    %v2714 = vunpack.c.l.b16 %v574
    %v2715 = vunpack.c.h.b16 %v574
    %v2716 = vunpack.c.l.b16 %v575
    %v2717 = vunpack.c.h.b16 %v575
    %v2718 = vunpack.c.l.b16 %v576
    %v2719 = vunpack.c.h.b16 %v576
    %v2720 = vunpack.c.l.b16 %v577
    %v2721 = vunpack.c.h.b16 %v577
    %v2722 = vunpack.c.l.b16 %v578
    %v2723 = vunpack.c.h.b16 %v578
    %v2724 = vunpack.c.l.b16 %v579
    %v2725 = vunpack.c.h.b16 %v579
    %v2726 = vunpack.c.l.b16 %v580
    %v2727 = vunpack.c.h.b16 %v580
    %v2728 = vunpack.c.l.b16 %v581
    %v2729 = vunpack.c.h.b16 %v581
    %v2730 = vunpack.c.l.b16 %v582
    %v2731 = vunpack.c.h.b16 %v582
    %v2732 = vunpack.c.l.b16 %v583
    %v2733 = vunpack.c.h.b16 %v583
    %v2734 = vunpack.c.l.b16 %v584
    %v2735 = vunpack.c.h.b16 %v584
    %v2736 = vunpack.c.l.b16 %v585
    %v2737 = vunpack.c.h.b16 %v585
    %v2738 = vunpack.c.l.b16 %v586
    %v2739 = vunpack.c.h.b16 %v586
    %v2740 = vunpack.c.l.b16 %v587
    %v2741 = vunpack.c.h.b16 %v587
    %v2742 = vunpack.c.l.b16 %v588
    %v2743 = vunpack.c.h.b16 %v588
    %v2744 = vunpack.c.l.b16 %v589
    %v2745 = vunpack.c.h.b16 %v589
    %v2746 = vunpack.c.l.b16 %v590
    %v2747 = vunpack.c.h.b16 %v590
    %v2748 = vunpack.c.l.b16 %v591
    %v2749 = vunpack.c.h.b16 %v591
    %v2750 = vunpack.c.l.b16 %v592
    %v2751 = vunpack.c.h.b16 %v592
    %v2752 = vunpack.c.l.b16 %v593
    %v2753 = vunpack.c.h.b16 %v593
    %v2754 = vunpack.c.l.b16 %v594
    %v2755 = vunpack.c.h.b16 %v594
    %v2756 = vunpack.c.l.b16 %v595
    %v2757 = vunpack.c.h.b16 %v595
    %v2758 = vunpack.c.l.b16 %v596
    %v2759 = vunpack.c.h.b16 %v596
    %v2760 = vunpack.c.l.b16 %v597
    %v2761 = vunpack.c.h.b16 %v597
    %v2762 = vunpack.c.l.b16 %v598
    %v2763 = vunpack.c.h.b16 %v598
    %v2764 = vunpack.c.l.b16 %v599
    %v2765 = vunpack.c.h.b16 %v599
    %v2766 = vunpack.c.l.b16 %v600
    %v2767 = vunpack.c.h.b16 %v600
    %v2768 = vunpack.c.l.b16 %v601
    %v2769 = vunpack.c.h.b16 %v601
    %v2770 = vunpack.c.l.b16 %v602
    %v2771 = vunpack.c.h.b16 %v602
    %v2772 = vunpack.c.l.b16 %v603
    %v2773 = vunpack.c.h.b16 %v603
    %v2774 = vunpack.c.l.b16 %v604
    %v2775 = vunpack.c.h.b16 %v604
    %v2776 = vunpack.c.l.b16 %v605
    %v2777 = vunpack.c.h.b16 %v605
    %v2778 = vunpack.c.l.b16 %v606
    %v2779 = vunpack.c.h.b16 %v606
    %v2780 = vunpack.c.l.b16 %v607
    %v2781 = vunpack.c.h.b16 %v607
    %v2782 = vunpack.c.l.b16 %v608
    %v2783 = vunpack.c.h.b16 %v608
    %v2784 = vunpack.c.l.b16 %v609
    %v2785 = vunpack.c.h.b16 %v609
    %v2786 = vunpack.c.l.b16 %v610
    %v2787 = vunpack.c.h.b16 %v610
    %v2788 = vunpack.c.l.b16 %v611
    %v2789 = vunpack.c.h.b16 %v611
    %v2790 = vunpack.c.l.b16 %v612
    %v2791 = vunpack.c.h.b16 %v612
    %v2792 = vunpack.c.l.b16 %v613
    %v2793 = vunpack.c.h.b16 %v613
    %v2794 = vunpack.c.l.b16 %v614
    %v2795 = vunpack.c.h.b16 %v614
    %v2796 = vunpack.c.l.b16 %v615
    %v2797 = vunpack.c.h.b16 %v615
    %v2798 = vunpack.c.l.b16 %v616
    %v2799 = vunpack.c.h.b16 %v616
    %v2800 = vunpack.c.l.b16 %v617
    %v2801 = vunpack.c.h.b16 %v617
    %v2802 = vunpack.c.l.b16 %v618
    %v2803 = vunpack.c.h.b16 %v618
    %v2804 = vunpack.c.l.b16 %v619
    %v2805 = vunpack.c.h.b16 %v619
    %v2806 = vunpack.c.l.b16 %v620
    %v2807 = vunpack.c.h.b16 %v620
    %v2808 = vunpack.c.l.b16 %v621
    %v2809 = vunpack.c.h.b16 %v621
    %v2810 = vunpack.c.l.b16 %v622
    %v2811 = vunpack.c.h.b16 %v622
    %v2812 = vunpack.c.l.b16 %v623
    %v2813 = vunpack.c.h.b16 %v623
    %v2814 = vunpack.c.l.b16 %v624
    %v2815 = vunpack.c.h.b16 %v624
    %v2816 = vunpack.c.l.b16 %v625
    %v2817 = vunpack.c.h.b16 %v625
    %v2818 = vunpack.c.l.b16 %v626
    %v2819 = vunpack.c.h.b16 %v626
    %v2820 = vunpack.c.l.b16 %v627
    %v2821 = vunpack.c.h.b16 %v627
    %v2822 = vunpack.c.l.b16 %v628
    %v2823 = vunpack.c.h.b16 %v628
    %v2824 = vunpack.c.l.b16 %v629
    %v2825 = vunpack.c.h.b16 %v629
    %v2826 = vunpack.c.l.b16 %v630
    %v2827 = vunpack.c.h.b16 %v630
    %v2828 = vunpack.c.l.b16 %v631
    %v2829 = vunpack.c.h.b16 %v631
    %v2830 = vunpack.c.l.b16 %v632
    %v2831 = vunpack.c.h.b16 %v632
    %v2832 = vunpack.c.l.b16 %v633
    %v2833 = vunpack.c.h.b16 %v633
    %v2834 = vunpack.c.l.b16 %v634
    %v2835 = vunpack.c.h.b16 %v634
    %v2836 = vunpack.c.l.b16 %v635
    %v2837 = vunpack.c.h.b16 %v635
    %v2838 = vunpack.c.l.b16 %v636
    %v2839 = vunpack.c.h.b16 %v636
    %v2840 = vunpack.c.l.b16 %v637
    %v2841 = vunpack.c.h.b16 %v637
    %v2842 = vunpack.c.l.b16 %v638
    %v2843 = vunpack.c.h.b16 %v638
    %v2844 = vunpack.c.l.b16 %v639
    %v2845 = vunpack.c.h.b16 %v639
    %v2846 = vunpack.c.l.b16 %v640
    %v2847 = vunpack.c.h.b16 %v640
    %v2848 = vunpack.c.l.b16 %v641
    %v2849 = vunpack.c.h.b16 %v641
    %v2850 = vunpack.c.l.b16 %v642
    %v2851 = vunpack.c.h.b16 %v642
    %v2852 = vunpack.c.l.b16 %v643
    %v2853 = vunpack.c.h.b16 %v643
    %v2854 = vunpack.c.l.b16 %v644
    %v2855 = vunpack.c.h.b16 %v644
    %v2856 = vunpack.c.l.b16 %v645
    %v2857 = vunpack.c.h.b16 %v645
    %v2858 = vunpack.c.l.b16 %v646
    %v2859 = vunpack.c.h.b16 %v646
    %v2860 = vunpack.c.l.b16 %v647
    %v2861 = vunpack.c.h.b16 %v647
    %v2862 = vunpack.c.l.b16 %v648
    %v2863 = vunpack.c.h.b16 %v648
    %v2864 = vunpack.c.l.b16 %v649
    %v2865 = vunpack.c.h.b16 %v649
    %v2866 = vunpack.c.l.b16 %v650
    %v2867 = vunpack.c.h.b16 %v650
    %v2868 = vunpack.c.l.b16 %v651
    %v2869 = vunpack.c.h.b16 %v651
    %v2870 = vunpack.c.l.b16 %v652
    %v2871 = vunpack.c.h.b16 %v652
    %v2872 = vunpack.c.l.b16 %v653
    %v2873 = vunpack.c.h.b16 %v653
    %v2874 = vunpack.c.l.b16 %v654
    %v2875 = vunpack.c.h.b16 %v654
    %v2876 = vunpack.c.l.b16 %v655
    %v2877 = vunpack.c.h.b16 %v655
    %v2878 = vunpack.c.l.b16 %v656
    %v2879 = vunpack.c.h.b16 %v656
    %v2880 = vunpack.c.l.b16 %v657
    %v2881 = vunpack.c.h.b16 %v657
    %v2882 = vunpack.c.l.b16 %v658
    %v2883 = vunpack.c.h.b16 %v658
    %v2884 = vunpack.c.l.b16 %v659
    %v2885 = vunpack.c.h.b16 %v659
    %v2886 = vunpack.c.l.b16 %v660
    %v2887 = vunpack.c.h.b16 %v660
    %v2888 = vunpack.c.l.b16 %v661
    %v2889 = vunpack.c.h.b16 %v661
    %v2890 = vunpack.c.l.b16 %v662
    %v2891 = vunpack.c.h.b16 %v662
    %v2892 = vunpack.c.l.b16 %v663
    %v2893 = vunpack.c.h.b16 %v663
    %v2894 = vunpack.c.l.b16 %v664
    %v2895 = vunpack.c.h.b16 %v664
    %v2896 = vunpack.c.l.b16 %v665
    %v2897 = vunpack.c.h.b16 %v665
    %v2898 = vunpack.c.l.b16 %v666
    %v2899 = vunpack.c.h.b16 %v666
    %v2900 = vunpack.c.l.b16 %v667
    %v2901 = vunpack.c.h.b16 %v667
    %v2902 = vunpack.c.l.b16 %v668
    %v2903 = vunpack.c.h.b16 %v668
    %v2904 = vunpack.c.l.b16 %v669
    %v2905 = vunpack.c.h.b16 %v669
    %v2906 = vunpack.c.l.b16 %v670
    %v2907 = vunpack.c.h.b16 %v670
    %v2908 = vunpack.c.l.b16 %v671
    %v2909 = vunpack.c.h.b16 %v671
    %v2910 = vunpack.c.l.b16 %v672
    %v2911 = vunpack.c.h.b16 %v672
    %v2912 = vunpack.c.l.b16 %v673
    %v2913 = vunpack.c.h.b16 %v673
    %v2914 = vunpack.c.l.b16 %v674
    %v2915 = vunpack.c.h.b16 %v674
    %v2916 = vunpack.c.l.b16 %v675
    %v2917 = vunpack.c.h.b16 %v675
    %v2918 = vunpack.c.l.b16 %v676
    %v2919 = vunpack.c.h.b16 %v676
    %v2920 = vunpack.c.l.b16 %v677
    %v2921 = vunpack.c.h.b16 %v677
    %v2922 = vunpack.c.l.b16 %v678
    %v2923 = vunpack.c.h.b16 %v678
    %v2924 = vunpack.c.l.b16 %v679
    %v2925 = vunpack.c.h.b16 %v679
    %v2926 = vunpack.c.l.b16 %v680
    %v2927 = vunpack.c.h.b16 %v680
    %v2928 = vunpack.c.l.b16 %v681
    %v2929 = vunpack.c.h.b16 %v681
    %v2930 = vunpack.c.l.b16 %v682
    %v2931 = vunpack.c.h.b16 %v682
    %v2932 = vunpack.c.l.b16 %v683
    %v2933 = vunpack.c.h.b16 %v683
    %v2934 = vunpack.c.l.b16 %v684
    %v2935 = vunpack.c.h.b16 %v684
    %v2936 = vunpack.c.l.b16 %v685
    %v2937 = vunpack.c.h.b16 %v685
    %v2938 = vunpack.c.l.b16 %v686
    %v2939 = vunpack.c.h.b16 %v686
    %v2940 = vunpack.c.l.b16 %v687
    %v2941 = vunpack.c.h.b16 %v687
    %v2942 = vunpack.c.l.b16 %v688
    %v2943 = vunpack.c.h.b16 %v688
    %v2944 = vunpack.c.l.b16 %v689
    %v2945 = vunpack.c.h.b16 %v689
    %v2946 = vunpack.c.l.b16 %v690
    %v2947 = vunpack.c.h.b16 %v690
    %v2948 = vunpack.c.l.b16 %v691
    %v2949 = vunpack.c.h.b16 %v691
    %v2950 = vunpack.c.l.b16 %v692
    %v2951 = vunpack.c.h.b16 %v692
    %v2952 = vunpack.c.l.b16 %v693
    %v2953 = vunpack.c.h.b16 %v693
    %v2954 = vunpack.c.l.b16 %v694
    %v2955 = vunpack.c.h.b16 %v694
    %v2956 = vunpack.c.l.b16 %v695
    %v2957 = vunpack.c.h.b16 %v695
    %v2958 = vunpack.c.l.b16 %v696
    %v2959 = vunpack.c.h.b16 %v696
    %v2960 = vunpack.c.l.b16 %v697
    %v2961 = vunpack.c.h.b16 %v697
    %v2962 = vunpack.c.l.b16 %v698
    %v2963 = vunpack.c.h.b16 %v698
    %v2964 = vunpack.c.l.b16 %v699
    %v2965 = vunpack.c.h.b16 %v699
    %v2966 = vunpack.c.l.b16 %v700
    %v2967 = vunpack.c.h.b16 %v700
    %v2968 = vunpack.c.l.b16 %v701
    %v2969 = vunpack.c.h.b16 %v701
    %v2970 = vunpack.c.l.b16 %v702
    %v2971 = vunpack.c.h.b16 %v702
    %v2972 = vunpack.c.l.b16 %v703
    %v2973 = vunpack.c.h.b16 %v703
    %v2974 = vunpack.c.l.b16 %v704
    %v2975 = vunpack.c.h.b16 %v704
    %v2976 = vunpack.c.l.b16 %v705
    %v2977 = vunpack.c.h.b16 %v705
    %v2978 = vunpack.c.l.b16 %v706
    %v2979 = vunpack.c.h.b16 %v706
    %v2980 = vunpack.c.l.b16 %v707
    %v2981 = vunpack.c.h.b16 %v707
    %v2982 = vunpack.c.l.b16 %v708
    %v2983 = vunpack.c.h.b16 %v708
    %v2984 = vunpack.c.l.b16 %v709
    %v2985 = vunpack.c.h.b16 %v709
    %v2986 = vunpack.c.l.b16 %v710
    %v2987 = vunpack.c.h.b16 %v710
    %v2988 = vunpack.c.l.b16 %v711
    %v2989 = vunpack.c.h.b16 %v711
    %v2990 = vunpack.c.l.b16 %v712
    %v2991 = vunpack.c.h.b16 %v712
    %v2992 = vunpack.c.l.b16 %v713
    %v2993 = vunpack.c.h.b16 %v713
    %v2994 = vunpack.c.l.b16 %v714
    %v2995 = vunpack.c.h.b16 %v714
    %v2996 = vunpack.c.l.b16 %v715
    %v2997 = vunpack.c.h.b16 %v715
    %v2998 = vunpack.c.l.b16 %v716
    %v2999 = vunpack.c.h.b16 %v716
    %v3000 = vunpack.c.l.b16 %v717
    %v3001 = vunpack.c.h.b16 %v717
    %v3002 = vunpack.c.l.b16 %v718
    %v3003 = vunpack.c.h.b16 %v718
    %v3004 = vunpack.c.l.b16 %v719
    %v3005 = vunpack.c.h.b16 %v719
    %v3006 = vunpack.c.l.b16 %v720
    %v3007 = vunpack.c.h.b16 %v720
    %v3008 = vunpack.c.l.b16 %v721
    %v3009 = vunpack.c.h.b16 %v721
    %v3010 = vunpack.c.l.b16 %v722
    %v3011 = vunpack.c.h.b16 %v722
    %v3012 = vunpack.c.l.b16 %v723
    %v3013 = vunpack.c.h.b16 %v723
    %v3014 = vunpack.c.l.b16 %v724
    %v3015 = vunpack.c.h.b16 %v724
    %v3016 = vunpack.c.l.b16 %v725
    %v3017 = vunpack.c.h.b16 %v725
    %v3018 = vunpack.c.l.b16 %v726
    %v3019 = vunpack.c.h.b16 %v726
    %v3020 = vunpack.c.l.b16 %v727
    %v3021 = vunpack.c.h.b16 %v727
    %v3022 = vunpack.c.l.b16 %v728
    %v3023 = vunpack.c.h.b16 %v728
    %v3024 = vunpack.c.l.b16 %v729
    %v3025 = vunpack.c.h.b16 %v729
    %v3026 = vunpack.c.l.b16 %v730
    %v3027 = vunpack.c.h.b16 %v730
    %v3028 = vunpack.c.l.b16 %v731
    %v3029 = vunpack.c.h.b16 %v731
    %v3030 = vunpack.c.l.b16 %v732
    %v3031 = vunpack.c.h.b16 %v732
    %v3032 = vunpack.c.l.b16 %v733
    %v3033 = vunpack.c.h.b16 %v733
    %v3034 = vunpack.c.l.b16 %v734
    %v3035 = vunpack.c.h.b16 %v734
    %v3036 = vunpack.c.l.b16 %v735
    %v3037 = vunpack.c.h.b16 %v735
    %v3038 = vunpack.c.l.b16 %v736
    %v3039 = vunpack.c.h.b16 %v736
    %v3040 = vunpack.c.l.b16 %v737
    %v3041 = vunpack.c.h.b16 %v737
    %v3042 = vunpack.c.l.b16 %v738
    %v3043 = vunpack.c.h.b16 %v738
    %v3044 = vunpack.c.l.b16 %v739
    %v3045 = vunpack.c.h.b16 %v739
    %v3046 = vunpack.c.l.b16 %v740
    %v3047 = vunpack.c.h.b16 %v740
    %v3048 = vunpack.c.l.b16 %v741
    %v3049 = vunpack.c.h.b16 %v741
    %v3050 = vunpack.c.l.b16 %v742
    %v3051 = vunpack.c.h.b16 %v742
    %v3052 = vunpack.c.l.b16 %v743
    %v3053 = vunpack.c.h.b16 %v743
    %v3054 = vunpack.c.l.b16 %v744
    %v3055 = vunpack.c.h.b16 %v744
    %v3056 = vunpack.c.l.b16 %v745
    %v3057 = vunpack.c.h.b16 %v745
    %v3058 = vunpack.c.l.b16 %v746
    %v3059 = vunpack.c.h.b16 %v746
    %v3060 = vunpack.c.l.b16 %v747
    %v3061 = vunpack.c.h.b16 %v747
    %v3062 = vunpack.c.l.b16 %v748
    %v3063 = vunpack.c.h.b16 %v748
    %v3064 = vunpack.c.l.b16 %v749
    %v3065 = vunpack.c.h.b16 %v749
    %v3066 = vunpack.c.l.b16 %v750
    %v3067 = vunpack.c.h.b16 %v750
    %v3068 = vunpack.c.l.b16 %v751
    %v3069 = vunpack.c.h.b16 %v751
    %v3070 = vunpack.c.l.b16 %v752
    %v3071 = vunpack.c.h.b16 %v752
    %v3072 = vunpack.c.l.b16 %v753
    %v3073 = vunpack.c.h.b16 %v753
    %v3074 = vunpack.c.l.b16 %v754
    %v3075 = vunpack.c.h.b16 %v754
    %v3076 = vunpack.c.l.b16 %v755
    %v3077 = vunpack.c.h.b16 %v755
    %v3078 = vunpack.c.l.b16 %v756
    %v3079 = vunpack.c.h.b16 %v756
    %v3080 = vunpack.c.l.b16 %v757
    %v3081 = vunpack.c.h.b16 %v757
    %v3082 = vunpack.c.l.b16 %v758
    %v3083 = vunpack.c.h.b16 %v758
    %v3084 = vunpack.c.l.b16 %v759
    %v3085 = vunpack.c.h.b16 %v759
    %v3086 = vunpack.c.l.b16 %v760
    %v3087 = vunpack.c.h.b16 %v760
    %v3088 = vunpack.c.l.b16 %v761
    %v3089 = vunpack.c.h.b16 %v761
    %v3090 = vunpack.c.l.b16 %v762
    %v3091 = vunpack.c.h.b16 %v762
    %v3092 = vunpack.c.l.b16 %v763
    %v3093 = vunpack.c.h.b16 %v763
    %v3094 = vunpack.c.l.b16 %v764
    %v3095 = vunpack.c.h.b16 %v764
    %v3096 = vunpack.c.l.b16 %v765
    %v3097 = vunpack.c.h.b16 %v765
    %v3098 = vunpack.c.l.b16 %v766
    %v3099 = vunpack.c.h.b16 %v766
    %v3100 = vunpack.c.l.b16 %v767
    %v3101 = vunpack.c.h.b16 %v767
    %v3102 = vunpack.c.l.b16 %v768
    %v3103 = vunpack.c.h.b16 %v768
    %v3104 = vunpack.c.l.b16 %v769
    %v3105 = vunpack.c.h.b16 %v769
    %v3106 = vunpack.c.l.b16 %v770
    %v3107 = vunpack.c.h.b16 %v770
    %v3108 = vunpack.c.l.b16 %v771
    %v3109 = vunpack.c.h.b16 %v771
    %v3110 = vunpack.c.l.b16 %v772
    %v3111 = vunpack.c.h.b16 %v772
    %v3112 = vunpack.c.l.b16 %v773
    %v3113 = vunpack.c.h.b16 %v773
    %v3114 = vunpack.c.l.b16 %v774
    %v3115 = vunpack.c.h.b16 %v774
    %v3116 = vunpack.c.l.b16 %v775
    %v3117 = vunpack.c.h.b16 %v775
    %v3118 = vunpack.c.l.b16 %v776
    %v3119 = vunpack.c.h.b16 %v776
    %v3120 = vunpack.c.l.b16 %v777
    %v3121 = vunpack.c.h.b16 %v777
    %v3122 = vunpack.c.l.b16 %v778
    %v3123 = vunpack.c.h.b16 %v778
    %v3124 = vunpack.c.l.b16 %v779
    %v3125 = vunpack.c.h.b16 %v779
    %v3126 = vunpack.c.l.b16 %v780
    %v3127 = vunpack.c.h.b16 %v780
    %v3128 = vunpack.c.l.b16 %v781
    %v3129 = vunpack.c.h.b16 %v781
    %v3130 = vunpack.c.l.b16 %v782
    %v3131 = vunpack.c.h.b16 %v782
    %v3132 = vunpack.c.l.b16 %v783
    %v3133 = vunpack.c.h.b16 %v783
    %v3134 = vunpack.c.l.b16 %v784
    %v3135 = vunpack.c.h.b16 %v784
    %v3136 = vunpack.c.l.b16 %v785
    %v3137 = vunpack.c.h.b16 %v785
    %v3138 = vunpack.c.l.b16 %v786
    %v3139 = vunpack.c.h.b16 %v786
    %v3140 = vunpack.c.l.b16 %v787
    %v3141 = vunpack.c.h.b16 %v787
    %v3142 = vunpack.c.l.b16 %v788
    %v3143 = vunpack.c.h.b16 %v788
    %v3144 = vunpack.c.l.b16 %v789
    %v3145 = vunpack.c.h.b16 %v789
    %v3146 = vunpack.c.l.b16 %v790
    %v3147 = vunpack.c.h.b16 %v790
    %v3148 = vunpack.c.l.b16 %v791
    %v3149 = vunpack.c.h.b16 %v791
    %v3150 = vunpack.c.l.b16 %v792
    %v3151 = vunpack.c.h.b16 %v792
    %v3152 = vunpack.c.l.b16 %v793
    %v3153 = vunpack.c.h.b16 %v793
    %v3154 = vunpack.c.l.b16 %v794
    %v3155 = vunpack.c.h.b16 %v794
    %v3156 = vunpack.c.l.b16 %v795
    %v3157 = vunpack.c.h.b16 %v795
    %v3158 = vunpack.c.l.b16 %v796
    %v3159 = vunpack.c.h.b16 %v796
    %v3160 = vunpack.c.l.b16 %v797
    %v3161 = vunpack.c.h.b16 %v797
    %v3162 = vunpack.c.l.b16 %v798
    %v3163 = vunpack.c.h.b16 %v798
    %v3164 = vunpack.c.l.b16 %v799
    %v3165 = vunpack.c.h.b16 %v799
    %v3166 = vunpack.c.l.b16 %v800
    %v3167 = vunpack.c.h.b16 %v800
    %v3168 = vunpack.c.l.b16 %v801
    %v3169 = vunpack.c.h.b16 %v801
    %v3170 = vunpack.c.l.b16 %v802
    %v3171 = vunpack.c.h.b16 %v802
    %v3172 = vunpack.c.l.b16 %v803
    %v3173 = vunpack.c.h.b16 %v803
    %v3174 = vunpack.c.l.b16 %v804
    %v3175 = vunpack.c.h.b16 %v804
    %v3176 = vunpack.c.l.b16 %v805
    %v3177 = vunpack.c.h.b16 %v805
    %v3178 = vunpack.c.l.b16 %v806
    %v3179 = vunpack.c.h.b16 %v806
    %v3180 = vunpack.c.l.b16 %v807
    %v3181 = vunpack.c.h.b16 %v807
    %v3182 = vunpack.c.l.b16 %v808
    %v3183 = vunpack.c.h.b16 %v808
    %v3184 = vunpack.c.l.b16 %v809
    %v3185 = vunpack.c.h.b16 %v809
    %v3186 = vunpack.c.l.b16 %v810
    %v3187 = vunpack.c.h.b16 %v810
    %v3188 = vunpack.c.l.b16 %v811
    %v3189 = vunpack.c.h.b16 %v811
    %v3190 = vunpack.c.l.b16 %v812
    %v3191 = vunpack.c.h.b16 %v812
    %v3192 = vunpack.c.l.b16 %v813
    %v3193 = vunpack.c.h.b16 %v813
    %v3194 = vunpack.c.l.b16 %v814
    %v3195 = vunpack.c.h.b16 %v814
    %v3196 = vunpack.c.l.b16 %v815
    %v3197 = vunpack.c.h.b16 %v815
    %v3198 = vunpack.c.l.b16 %v816
    %v3199 = vunpack.c.h.b16 %v816
    %v3200 = vunpack.c.l.b16 %v817
    %v3201 = vunpack.c.h.b16 %v817
    %v3202 = vunpack.c.l.b16 %v818
    %v3203 = vunpack.c.h.b16 %v818
    %v3204 = vunpack.c.l.b16 %v819
    %v3205 = vunpack.c.h.b16 %v819
    %v3206 = vunpack.c.l.b16 %v820
    %v3207 = vunpack.c.h.b16 %v820
    %v3208 = vunpack.c.l.b16 %v821
    %v3209 = vunpack.c.h.b16 %v821
    %v3210 = vunpack.c.l.b16 %v822
    %v3211 = vunpack.c.h.b16 %v822
    %v3212 = vunpack.c.l.b16 %v823
    %v3213 = vunpack.c.h.b16 %v823
    %v3214 = vunpack.c.l.b16 %v824
    %v3215 = vunpack.c.h.b16 %v824
    %v3216 = vunpack.c.l.b16 %v825
    %v3217 = vunpack.c.h.b16 %v825
    %v3218 = vunpack.c.l.b16 %v826
    %v3219 = vunpack.c.h.b16 %v826
    %v3220 = vunpack.c.l.b16 %v827
    %v3221 = vunpack.c.h.b16 %v827
    %v3222 = vunpack.c.l.b16 %v828
    %v3223 = vunpack.c.h.b16 %v828
    %v3224 = vunpack.c.l.b16 %v829
    %v3225 = vunpack.c.h.b16 %v829
    %v3226 = vunpack.c.l.b16 %v830
    %v3227 = vunpack.c.h.b16 %v830
    %v3228 = vunpack.c.l.b16 %v831
    %v3229 = vunpack.c.h.b16 %v831
    %v3230 = vunpack.c.l.b16 %v832
    %v3231 = vunpack.c.h.b16 %v832
    %v3232 = vunpack.c.l.b16 %v833
    %v3233 = vunpack.c.h.b16 %v833
    %v3234 = vunpack.c.l.b16 %v834
    %v3235 = vunpack.c.h.b16 %v834
    %v3236 = vunpack.c.l.b16 %v835
    %v3237 = vunpack.c.h.b16 %v835
    %v3238 = vunpack.c.l.b16 %v836
    %v3239 = vunpack.c.h.b16 %v836
    %v3240 = vunpack.c.l.b16 %v837
    %v3241 = vunpack.c.h.b16 %v837
    %v3242 = vunpack.c.l.b16 %v838
    %v3243 = vunpack.c.h.b16 %v838
    %v3244 = vunpack.c.l.b16 %v839
    %v3245 = vunpack.c.h.b16 %v839
    %v3246 = vunpack.c.l.b16 %v840
    %v3247 = vunpack.c.h.b16 %v840
    %v3248 = vunpack.c.l.b16 %v841
    %v3249 = vunpack.c.h.b16 %v841
    %v3250 = vunpack.c.l.b16 %v842
    %v3251 = vunpack.c.h.b16 %v842
    %v3252 = vunpack.c.l.b16 %v843
    %v3253 = vunpack.c.h.b16 %v843
    %v3254 = vunpack.c.l.b16 %v844
    %v3255 = vunpack.c.h.b16 %v844
    %v3256 = vunpack.c.l.b16 %v845
    %v3257 = vunpack.c.h.b16 %v845
    %v3258 = vunpack.c.l.b16 %v846
    %v3259 = vunpack.c.h.b16 %v846
    %v3260 = vunpack.c.l.b16 %v847
    %v3261 = vunpack.c.h.b16 %v847
    %v3262 = vunpack.c.l.b16 %v848
    %v3263 = vunpack.c.h.b16 %v848
    %v3264 = vunpack.c.l.b16 %v849
    %v3265 = vunpack.c.h.b16 %v849
    %v3266 = vunpack.c.l.b16 %v850
    %v3267 = vunpack.c.h.b16 %v850
    %v3268 = vunpack.c.l.b16 %v851
    %v3269 = vunpack.c.h.b16 %v851
    %v3270 = vunpack.c.l.b16 %v852
    %v3271 = vunpack.c.h.b16 %v852
    %v3272 = vpack.c.b16 %v1708, %v1704
    %v3273 = vpack.c.b16 %v1709, %v1705
    %v3274 = vpack.c.b16 %v1710, %v1706
    %v3275 = vpack.c.b16 %v1711, %v1707
    %v3276 = vpack.c.b16 %v1716, %v1712
    %v3277 = vpack.c.b16 %v1717, %v1713
    %v3278 = vpack.c.b16 %v1718, %v1714
    %v3279 = vpack.c.b16 %v1719, %v1715
    %v3280 = vpack.c.b16 %v1724, %v1720
    %v3281 = vpack.c.b16 %v1725, %v1721
    %v3282 = vpack.c.b16 %v1726, %v1722
    %v3283 = vpack.c.b16 %v1727, %v1723
    %v3284 = vpack.c.b16 %v1732, %v1728
    %v3285 = vpack.c.b16 %v1733, %v1729
    %v3286 = vpack.c.b16 %v1734, %v1730
    %v3287 = vpack.c.b16 %v1735, %v1731
    %v3288 = vpack.c.b16 %v1740, %v1736
    %v3289 = vpack.c.b16 %v1741, %v1737
    %v3290 = vpack.c.b16 %v1742, %v1738
    %v3291 = vpack.c.b16 %v1743, %v1739
    %v3292 = vpack.c.b16 %v1748, %v1744
    %v3293 = vpack.c.b16 %v1749, %v1745
    %v3294 = vpack.c.b16 %v1750, %v1746
    %v3295 = vpack.c.b16 %v1751, %v1747
    %v3296 = vpack.c.b16 %v1756, %v1752
    %v3297 = vpack.c.b16 %v1757, %v1753
    %v3298 = vpack.c.b16 %v1758, %v1754
    %v3299 = vpack.c.b16 %v1759, %v1755
    %v3300 = vpack.c.b16 %v1764, %v1760
    %v3301 = vpack.c.b16 %v1765, %v1761
    %v3302 = vpack.c.b16 %v1766, %v1762
    %v3303 = vpack.c.b16 %v1767, %v1763
    %v3304 = vpack.c.b16 %v1772, %v1768
    %v3305 = vpack.c.b16 %v1773, %v1769
    %v3306 = vpack.c.b16 %v1774, %v1770
    %v3307 = vpack.c.b16 %v1775, %v1771
    %v3308 = vpack.c.b16 %v1780, %v1776
    %v3309 = vpack.c.b16 %v1781, %v1777
    %v3310 = vpack.c.b16 %v1782, %v1778
    %v3311 = vpack.c.b16 %v1783, %v1779
    %v3312 = vpack.c.b16 %v1788, %v1784
    %v3313 = vpack.c.b16 %v1789, %v1785
    %v3314 = vpack.c.b16 %v1790, %v1786
    %v3315 = vpack.c.b16 %v1791, %v1787
    %v3316 = vpack.c.b16 %v1796, %v1792
    %v3317 = vpack.c.b16 %v1797, %v1793
    %v3318 = vpack.c.b16 %v1798, %v1794
    %v3319 = vpack.c.b16 %v1799, %v1795
    %v3320 = vpack.c.b16 %v1804, %v1800
    %v3321 = vpack.c.b16 %v1805, %v1801
    %v3322 = vpack.c.b16 %v1806, %v1802
    %v3323 = vpack.c.b16 %v1807, %v1803
    %v3324 = vpack.c.b16 %v1812, %v1808
    %v3325 = vpack.c.b16 %v1813, %v1809
    %v3326 = vpack.c.b16 %v1814, %v1810
    %v3327 = vpack.c.b16 %v1815, %v1811
    %v3328 = vpack.c.b16 %v1820, %v1816
    %v3329 = vpack.c.b16 %v1821, %v1817
    %v3330 = vpack.c.b16 %v1822, %v1818
    %v3331 = vpack.c.b16 %v1823, %v1819
    %v3332 = vpack.c.b16 %v1828, %v1824
    %v3333 = vpack.c.b16 %v1829, %v1825
    %v3334 = vpack.c.b16 %v1830, %v1826
    %v3335 = vpack.c.b16 %v1831, %v1827
    %v3336 = vpack.c.b16 %v1836, %v1832
    %v3337 = vpack.c.b16 %v1837, %v1833
    %v3338 = vpack.c.b16 %v1838, %v1834
    %v3339 = vpack.c.b16 %v1839, %v1835
    %v3340 = vpack.c.b16 %v1844, %v1840
    %v3341 = vpack.c.b16 %v1845, %v1841
    %v3342 = vpack.c.b16 %v1846, %v1842
    %v3343 = vpack.c.b16 %v1847, %v1843
    %v3344 = vpack.c.b16 %v1852, %v1848
    %v3345 = vpack.c.b16 %v1853, %v1849
    %v3346 = vpack.c.b16 %v1854, %v1850
    %v3347 = vpack.c.b16 %v1855, %v1851
    %v3348 = vpack.c.b16 %v1860, %v1856
    %v3349 = vpack.c.b16 %v1861, %v1857
    %v3350 = vpack.c.b16 %v1862, %v1858
    %v3351 = vpack.c.b16 %v1863, %v1859
    %v3352 = vpack.c.b16 %v1868, %v1864
    %v3353 = vpack.c.b16 %v1869, %v1865
    %v3354 = vpack.c.b16 %v1870, %v1866
    %v3355 = vpack.c.b16 %v1871, %v1867
    %v3356 = vpack.c.b16 %v1876, %v1872
    %v3357 = vpack.c.b16 %v1877, %v1873
    %v3358 = vpack.c.b16 %v1878, %v1874
    %v3359 = vpack.c.b16 %v1879, %v1875
    %v3360 = vpack.c.b16 %v1884, %v1880
    %v3361 = vpack.c.b16 %v1885, %v1881
    %v3362 = vpack.c.b16 %v1886, %v1882
    %v3363 = vpack.c.b16 %v1887, %v1883
    %v3364 = vpack.c.b16 %v1892, %v1888
    %v3365 = vpack.c.b16 %v1893, %v1889
    %v3366 = vpack.c.b16 %v1894, %v1890
    %v3367 = vpack.c.b16 %v1895, %v1891
    %v3368 = vpack.c.b16 %v1900, %v1896
    %v3369 = vpack.c.b16 %v1901, %v1897
    %v3370 = vpack.c.b16 %v1902, %v1898
    %v3371 = vpack.c.b16 %v1903, %v1899
    %v3372 = vpack.c.b16 %v1908, %v1904
    %v3373 = vpack.c.b16 %v1909, %v1905
    %v3374 = vpack.c.b16 %v1910, %v1906
    %v3375 = vpack.c.b16 %v1911, %v1907
    %v3376 = vpack.c.b16 %v1916, %v1912
    %v3377 = vpack.c.b16 %v1917, %v1913
    %v3378 = vpack.c.b16 %v1918, %v1914
    %v3379 = vpack.c.b16 %v1919, %v1915
    %v3380 = vpack.c.b16 %v1924, %v1920
    %v3381 = vpack.c.b16 %v1925, %v1921
    %v3382 = vpack.c.b16 %v1926, %v1922
    %v3383 = vpack.c.b16 %v1927, %v1923
    %v3384 = vpack.c.b16 %v1932, %v1928
    %v3385 = vpack.c.b16 %v1933, %v1929
    %v3386 = vpack.c.b16 %v1934, %v1930
    %v3387 = vpack.c.b16 %v1935, %v1931
    %v3388 = vpack.c.b16 %v1940, %v1936
    %v3389 = vpack.c.b16 %v1941, %v1937
    %v3390 = vpack.c.b16 %v1942, %v1938
    %v3391 = vpack.c.b16 %v1943, %v1939
    %v3392 = vpack.c.b16 %v1948, %v1944
    %v3393 = vpack.c.b16 %v1949, %v1945
    %v3394 = vpack.c.b16 %v1950, %v1946
    %v3395 = vpack.c.b16 %v1951, %v1947
    %v3396 = vpack.c.b16 %v1956, %v1952
    %v3397 = vpack.c.b16 %v1957, %v1953
    %v3398 = vpack.c.b16 %v1958, %v1954
    %v3399 = vpack.c.b16 %v1959, %v1955
    %v3400 = vpack.c.b16 %v1964, %v1960
    %v3401 = vpack.c.b16 %v1965, %v1961
    %v3402 = vpack.c.b16 %v1966, %v1962
    %v3403 = vpack.c.b16 %v1967, %v1963
    %v3404 = vpack.c.b16 %v1972, %v1968
    %v3405 = vpack.c.b16 %v1973, %v1969
    %v3406 = vpack.c.b16 %v1974, %v1970
    %v3407 = vpack.c.b16 %v1975, %v1971
    %v3408 = vpack.c.b16 %v1980, %v1976
    %v3409 = vpack.c.b16 %v1981, %v1977
    %v3410 = vpack.c.b16 %v1982, %v1978
    %v3411 = vpack.c.b16 %v1983, %v1979
    %v3412 = vpack.c.b16 %v1988, %v1984
    %v3413 = vpack.c.b16 %v1989, %v1985
    %v3414 = vpack.c.b16 %v1990, %v1986
    %v3415 = vpack.c.b16 %v1991, %v1987
    %v3416 = vpack.c.b16 %v1996, %v1992
    %v3417 = vpack.c.b16 %v1997, %v1993
    %v3418 = vpack.c.b16 %v1998, %v1994
    %v3419 = vpack.c.b16 %v1999, %v1995
    %v3420 = vpack.c.b16 %v2004, %v2000
    %v3421 = vpack.c.b16 %v2005, %v2001
    %v3422 = vpack.c.b16 %v2006, %v2002
    %v3423 = vpack.c.b16 %v2007, %v2003
    %v3424 = vpack.c.b16 %v2012, %v2008
    %v3425 = vpack.c.b16 %v2013, %v2009
    %v3426 = vpack.c.b16 %v2014, %v2010
    %v3427 = vpack.c.b16 %v2015, %v2011
    %v3428 = vpack.c.b16 %v2020, %v2016
    %v3429 = vpack.c.b16 %v2021, %v2017
    %v3430 = vpack.c.b16 %v2022, %v2018
    %v3431 = vpack.c.b16 %v2023, %v2019
    %v3432 = vpack.c.b16 %v2028, %v2024
    %v3433 = vpack.c.b16 %v2029, %v2025
    %v3434 = vpack.c.b16 %v2030, %v2026
    %v3435 = vpack.c.b16 %v2031, %v2027
    %v3436 = vpack.c.b16 %v2036, %v2032
    %v3437 = vpack.c.b16 %v2037, %v2033
    %v3438 = vpack.c.b16 %v2038, %v2034
    %v3439 = vpack.c.b16 %v2039, %v2035
    %v3440 = vpack.c.b16 %v2044, %v2040
    %v3441 = vpack.c.b16 %v2045, %v2041
    %v3442 = vpack.c.b16 %v2046, %v2042
    %v3443 = vpack.c.b16 %v2047, %v2043
    %v3444 = vpack.c.b16 %v2052, %v2048
    %v3445 = vpack.c.b16 %v2053, %v2049
    %v3446 = vpack.c.b16 %v2054, %v2050
    %v3447 = vpack.c.b16 %v2055, %v2051
    %v3448 = vpack.c.b16 %v2060, %v2056
    %v3449 = vpack.c.b16 %v2061, %v2057
    %v3450 = vpack.c.b16 %v2062, %v2058
    %v3451 = vpack.c.b16 %v2063, %v2059
    %v3452 = vpack.c.b16 %v2068, %v2064
    %v3453 = vpack.c.b16 %v2069, %v2065
    %v3454 = vpack.c.b16 %v2070, %v2066
    %v3455 = vpack.c.b16 %v2071, %v2067
    %v3456 = vpack.c.b16 %v2076, %v2072
    %v3457 = vpack.c.b16 %v2077, %v2073
    %v3458 = vpack.c.b16 %v2078, %v2074
    %v3459 = vpack.c.b16 %v2079, %v2075
    %v3460 = vpack.c.b16 %v2084, %v2080
    %v3461 = vpack.c.b16 %v2085, %v2081
    %v3462 = vpack.c.b16 %v2086, %v2082
    %v3463 = vpack.c.b16 %v2087, %v2083
    %v3464 = vpack.c.b16 %v2092, %v2088
    %v3465 = vpack.c.b16 %v2093, %v2089
    %v3466 = vpack.c.b16 %v2094, %v2090
    %v3467 = vpack.c.b16 %v2095, %v2091
    %v3468 = vpack.c.b16 %v2100, %v2096
    %v3469 = vpack.c.b16 %v2101, %v2097
    %v3470 = vpack.c.b16 %v2102, %v2098
    %v3471 = vpack.c.b16 %v2103, %v2099
    %v3472 = vpack.c.b16 %v2108, %v2104
    %v3473 = vpack.c.b16 %v2109, %v2105
    %v3474 = vpack.c.b16 %v2110, %v2106
    %v3475 = vpack.c.b16 %v2111, %v2107
    %v3476 = vpack.c.b16 %v2116, %v2112
    %v3477 = vpack.c.b16 %v2117, %v2113
    %v3478 = vpack.c.b16 %v2118, %v2114
    %v3479 = vpack.c.b16 %v2119, %v2115
    %v3480 = vpack.c.b16 %v2124, %v2120
    %v3481 = vpack.c.b16 %v2125, %v2121
    %v3482 = vpack.c.b16 %v2126, %v2122
    %v3483 = vpack.c.b16 %v2127, %v2123
    %v3484 = vpack.c.b16 %v2132, %v2128
    %v3485 = vpack.c.b16 %v2133, %v2129
    %v3486 = vpack.c.b16 %v2134, %v2130
    %v3487 = vpack.c.b16 %v2135, %v2131
    %v3488 = vpack.c.b16 %v2140, %v2136
    %v3489 = vpack.c.b16 %v2141, %v2137
    %v3490 = vpack.c.b16 %v2142, %v2138
    %v3491 = vpack.c.b16 %v2143, %v2139
    %v3492 = vpack.c.b16 %v2148, %v2144
    %v3493 = vpack.c.b16 %v2149, %v2145
    %v3494 = vpack.c.b16 %v2150, %v2146
    %v3495 = vpack.c.b16 %v2151, %v2147
    %v3496 = vpack.c.b16 %v2156, %v2152
    %v3497 = vpack.c.b16 %v2157, %v2153
    %v3498 = vpack.c.b16 %v2158, %v2154
    %v3499 = vpack.c.b16 %v2159, %v2155
    %v3500 = vpack.c.b16 %v2164, %v2160
    %v3501 = vpack.c.b16 %v2165, %v2161
    %v3502 = vpack.c.b16 %v2166, %v2162
    %v3503 = vpack.c.b16 %v2167, %v2163
    %v3504 = vpack.c.b16 %v2172, %v2168
    %v3505 = vpack.c.b16 %v2173, %v2169
    %v3506 = vpack.c.b16 %v2174, %v2170
    %v3507 = vpack.c.b16 %v2175, %v2171
    %v3508 = vpack.c.b16 %v2180, %v2176
    %v3509 = vpack.c.b16 %v2181, %v2177
    %v3510 = vpack.c.b16 %v2182, %v2178
    %v3511 = vpack.c.b16 %v2183, %v2179
    %v3512 = vpack.c.b16 %v2188, %v2184
    %v3513 = vpack.c.b16 %v2189, %v2185
    %v3514 = vpack.c.b16 %v2190, %v2186
    %v3515 = vpack.c.b16 %v2191, %v2187
    %v3516 = vpack.c.b16 %v2196, %v2192
    %v3517 = vpack.c.b16 %v2197, %v2193
    %v3518 = vpack.c.b16 %v2198, %v2194
    %v3519 = vpack.c.b16 %v2199, %v2195
    %v3520 = vpack.c.b16 %v2204, %v2200
    %v3521 = vpack.c.b16 %v2205, %v2201
    %v3522 = vpack.c.b16 %v2206, %v2202
    %v3523 = vpack.c.b16 %v2207, %v2203
    %v3524 = vpack.c.b16 %v2212, %v2208
    %v3525 = vpack.c.b16 %v2213, %v2209
    %v3526 = vpack.c.b16 %v2214, %v2210
    %v3527 = vpack.c.b16 %v2215, %v2211
    %v3528 = vpack.c.b16 %v2220, %v2216
    %v3529 = vpack.c.b16 %v2221, %v2217
    %v3530 = vpack.c.b16 %v2222, %v2218
    %v3531 = vpack.c.b16 %v2223, %v2219
    %v3532 = vpack.c.b16 %v2228, %v2224
    %v3533 = vpack.c.b16 %v2229, %v2225
    %v3534 = vpack.c.b16 %v2230, %v2226
    %v3535 = vpack.c.b16 %v2231, %v2227
    %v3536 = vpack.c.b16 %v2236, %v2232
    %v3537 = vpack.c.b16 %v2237, %v2233
    %v3538 = vpack.c.b16 %v2238, %v2234
    %v3539 = vpack.c.b16 %v2239, %v2235
    %v3540 = vpack.c.b16 %v2244, %v2240
    %v3541 = vpack.c.b16 %v2245, %v2241
    %v3542 = vpack.c.b16 %v2246, %v2242
    %v3543 = vpack.c.b16 %v2247, %v2243
    %v3544 = vpack.c.b16 %v2252, %v2248
    %v3545 = vpack.c.b16 %v2253, %v2249
    %v3546 = vpack.c.b16 %v2254, %v2250
    %v3547 = vpack.c.b16 %v2255, %v2251
    %v3548 = vpack.c.b16 %v2260, %v2256
    %v3549 = vpack.c.b16 %v2261, %v2257
    %v3550 = vpack.c.b16 %v2262, %v2258
    %v3551 = vpack.c.b16 %v2263, %v2259
    %v3552 = vpack.c.b16 %v2268, %v2264
    %v3553 = vpack.c.b16 %v2269, %v2265
    %v3554 = vpack.c.b16 %v2270, %v2266
    %v3555 = vpack.c.b16 %v2271, %v2267
    %v3556 = vpack.c.b16 %v2276, %v2272
    %v3557 = vpack.c.b16 %v2277, %v2273
    %v3558 = vpack.c.b16 %v2278, %v2274
    %v3559 = vpack.c.b16 %v2279, %v2275
    %v3560 = vpack.c.b16 %v2284, %v2280
    %v3561 = vpack.c.b16 %v2285, %v2281
    %v3562 = vpack.c.b16 %v2286, %v2282
    %v3563 = vpack.c.b16 %v2287, %v2283
    %v3564 = vpack.c.b16 %v2292, %v2288
    %v3565 = vpack.c.b16 %v2293, %v2289
    %v3566 = vpack.c.b16 %v2294, %v2290
    %v3567 = vpack.c.b16 %v2295, %v2291
    %v3568 = vpack.c.b16 %v2300, %v2296
    %v3569 = vpack.c.b16 %v2301, %v2297
    %v3570 = vpack.c.b16 %v2302, %v2298
    %v3571 = vpack.c.b16 %v2303, %v2299
    %v3572 = vpack.c.b16 %v2308, %v2304
    %v3573 = vpack.c.b16 %v2309, %v2305
    %v3574 = vpack.c.b16 %v2310, %v2306
    %v3575 = vpack.c.b16 %v2311, %v2307
    %v3576 = vpack.c.b16 %v2316, %v2312
    %v3577 = vpack.c.b16 %v2317, %v2313
    %v3578 = vpack.c.b16 %v2318, %v2314
    %v3579 = vpack.c.b16 %v2319, %v2315
    %v3580 = vpack.c.b16 %v2324, %v2320
    %v3581 = vpack.c.b16 %v2325, %v2321
    %v3582 = vpack.c.b16 %v2326, %v2322
    %v3583 = vpack.c.b16 %v2327, %v2323
    %v3584 = vpack.c.b16 %v2332, %v2328
    %v3585 = vpack.c.b16 %v2333, %v2329
    %v3586 = vpack.c.b16 %v2334, %v2330
    %v3587 = vpack.c.b16 %v2335, %v2331
    %v3588 = vpack.c.b16 %v2340, %v2336
    %v3589 = vpack.c.b16 %v2341, %v2337
    %v3590 = vpack.c.b16 %v2342, %v2338
    %v3591 = vpack.c.b16 %v2343, %v2339
    %v3592 = vpack.c.b16 %v2348, %v2344
    %v3593 = vpack.c.b16 %v2349, %v2345
    %v3594 = vpack.c.b16 %v2350, %v2346
    %v3595 = vpack.c.b16 %v2351, %v2347
    %v3596 = vpack.c.b16 %v2356, %v2352
    %v3597 = vpack.c.b16 %v2357, %v2353
    %v3598 = vpack.c.b16 %v2358, %v2354
    %v3599 = vpack.c.b16 %v2359, %v2355
    %v3600 = vpack.c.b16 %v2364, %v2360
    %v3601 = vpack.c.b16 %v2365, %v2361
    %v3602 = vpack.c.b16 %v2366, %v2362
    %v3603 = vpack.c.b16 %v2367, %v2363
    %v3604 = vpack.c.b16 %v2372, %v2368
    %v3605 = vpack.c.b16 %v2373, %v2369
    %v3606 = vpack.c.b16 %v2374, %v2370
    %v3607 = vpack.c.b16 %v2375, %v2371
    %v3608 = vpack.c.b16 %v2380, %v2376
    %v3609 = vpack.c.b16 %v2381, %v2377
    %v3610 = vpack.c.b16 %v2382, %v2378
    %v3611 = vpack.c.b16 %v2383, %v2379
    %v3612 = vpack.c.b16 %v2388, %v2384
    %v3613 = vpack.c.b16 %v2389, %v2385
    %v3614 = vpack.c.b16 %v2390, %v2386
    %v3615 = vpack.c.b16 %v2391, %v2387
    %v3616 = vpack.c.b16 %v2396, %v2392
    %v3617 = vpack.c.b16 %v2397, %v2393
    %v3618 = vpack.c.b16 %v2398, %v2394
    %v3619 = vpack.c.b16 %v2399, %v2395
    %v3620 = vpack.c.b16 %v2404, %v2400
    %v3621 = vpack.c.b16 %v2405, %v2401
    %v3622 = vpack.c.b16 %v2406, %v2402
    %v3623 = vpack.c.b16 %v2407, %v2403
    %v3624 = vpack.c.b16 %v2412, %v2408
    %v3625 = vpack.c.b16 %v2413, %v2409
    %v3626 = vpack.c.b16 %v2414, %v2410
    %v3627 = vpack.c.b16 %v2415, %v2411
    %v3628 = vpack.c.b16 %v2420, %v2416
    %v3629 = vpack.c.b16 %v2421, %v2417
    %v3630 = vpack.c.b16 %v2422, %v2418
    %v3631 = vpack.c.b16 %v2423, %v2419
    %v3632 = vpack.c.b16 %v2428, %v2424
    %v3633 = vpack.c.b16 %v2429, %v2425
    %v3634 = vpack.c.b16 %v2430, %v2426
    %v3635 = vpack.c.b16 %v2431, %v2427
    %v3636 = vpack.c.b16 %v2436, %v2432
    %v3637 = vpack.c.b16 %v2437, %v2433
    %v3638 = vpack.c.b16 %v2438, %v2434
    %v3639 = vpack.c.b16 %v2439, %v2435
    %v3640 = vpack.c.b16 %v2444, %v2440
    %v3641 = vpack.c.b16 %v2445, %v2441
    %v3642 = vpack.c.b16 %v2446, %v2442
    %v3643 = vpack.c.b16 %v2447, %v2443
    %v3644 = vpack.c.b16 %v2452, %v2448
    %v3645 = vpack.c.b16 %v2453, %v2449
    %v3646 = vpack.c.b16 %v2454, %v2450
    %v3647 = vpack.c.b16 %v2455, %v2451
    %v3648 = vpack.c.b16 %v2460, %v2456
    %v3649 = vpack.c.b16 %v2461, %v2457
    %v3650 = vpack.c.b16 %v2462, %v2458
    %v3651 = vpack.c.b16 %v2463, %v2459
    %v3652 = vpack.c.b16 %v2468, %v2464
    %v3653 = vpack.c.b16 %v2469, %v2465
    %v3654 = vpack.c.b16 %v2470, %v2466
    %v3655 = vpack.c.b16 %v2471, %v2467
    %v3656 = vpack.c.b16 %v2476, %v2472
    %v3657 = vpack.c.b16 %v2477, %v2473
    %v3658 = vpack.c.b16 %v2478, %v2474
    %v3659 = vpack.c.b16 %v2479, %v2475
    %v3660 = vpack.c.b16 %v2484, %v2480
    %v3661 = vpack.c.b16 %v2485, %v2481
    %v3662 = vpack.c.b16 %v2486, %v2482
    %v3663 = vpack.c.b16 %v2487, %v2483
    %v3664 = vpack.c.b16 %v2492, %v2488
    %v3665 = vpack.c.b16 %v2493, %v2489
    %v3666 = vpack.c.b16 %v2494, %v2490
    %v3667 = vpack.c.b16 %v2495, %v2491
    %v3668 = vpack.c.b16 %v2500, %v2496
    %v3669 = vpack.c.b16 %v2501, %v2497
    %v3670 = vpack.c.b16 %v2502, %v2498
    %v3671 = vpack.c.b16 %v2503, %v2499
    %v3672 = vpack.c.b16 %v2508, %v2504
    %v3673 = vpack.c.b16 %v2509, %v2505
    %v3674 = vpack.c.b16 %v2510, %v2506
    %v3675 = vpack.c.b16 %v2511, %v2507
    %v3676 = vpack.c.b16 %v2516, %v2512
    %v3677 = vpack.c.b16 %v2517, %v2513
    %v3678 = vpack.c.b16 %v2518, %v2514
    %v3679 = vpack.c.b16 %v2519, %v2515
    %v3680 = vpack.c.b16 %v2524, %v2520
    %v3681 = vpack.c.b16 %v2525, %v2521
    %v3682 = vpack.c.b16 %v2526, %v2522
    %v3683 = vpack.c.b16 %v2527, %v2523
    %v3684 = vpack.c.b16 %v2532, %v2528
    %v3685 = vpack.c.b16 %v2533, %v2529
    %v3686 = vpack.c.b16 %v2534, %v2530
    %v3687 = vpack.c.b16 %v2535, %v2531
    %v3688 = vpack.c.b16 %v2540, %v2536
    %v3689 = vpack.c.b16 %v2541, %v2537
    %v3690 = vpack.c.b16 %v2542, %v2538
    %v3691 = vpack.c.b16 %v2543, %v2539
    %v3692 = vpack.c.b16 %v2548, %v2544
    %v3693 = vpack.c.b16 %v2549, %v2545
    %v3694 = vpack.c.b16 %v2550, %v2546
    %v3695 = vpack.c.b16 %v2551, %v2547
    %v3696 = vpack.c.b16 %v2556, %v2552
    %v3697 = vpack.c.b16 %v2557, %v2553
    %v3698 = vpack.c.b16 %v2558, %v2554
    %v3699 = vpack.c.b16 %v2559, %v2555
    %v3700 = vpack.c.b16 %v2564, %v2560
    %v3701 = vpack.c.b16 %v2565, %v2561
    %v3702 = vpack.c.b16 %v2566, %v2562
    %v3703 = vpack.c.b16 %v2567, %v2563
    %v3704 = vpack.c.b16 %v2572, %v2568
    %v3705 = vpack.c.b16 %v2573, %v2569
    %v3706 = vpack.c.b16 %v2574, %v2570
    %v3707 = vpack.c.b16 %v2575, %v2571
    %v3708 = vpack.c.b16 %v2580, %v2576
    %v3709 = vpack.c.b16 %v2581, %v2577
    %v3710 = vpack.c.b16 %v2582, %v2578
    %v3711 = vpack.c.b16 %v2583, %v2579
    %v3712 = vpack.c.b16 %v2588, %v2584
    %v3713 = vpack.c.b16 %v2589, %v2585
    %v3714 = vpack.c.b16 %v2590, %v2586
    %v3715 = vpack.c.b16 %v2591, %v2587
    %v3716 = vpack.c.b16 %v2596, %v2592
    %v3717 = vpack.c.b16 %v2597, %v2593
    %v3718 = vpack.c.b16 %v2598, %v2594
    %v3719 = vpack.c.b16 %v2599, %v2595
    %v3720 = vpack.c.b16 %v2604, %v2600
    %v3721 = vpack.c.b16 %v2605, %v2601
    %v3722 = vpack.c.b16 %v2606, %v2602
    %v3723 = vpack.c.b16 %v2607, %v2603
    %v3724 = vpack.c.b16 %v2612, %v2608
    %v3725 = vpack.c.b16 %v2613, %v2609
    %v3726 = vpack.c.b16 %v2614, %v2610
    %v3727 = vpack.c.b16 %v2615, %v2611
    %v3728 = vpack.c.b16 %v2620, %v2616
    %v3729 = vpack.c.b16 %v2621, %v2617
    %v3730 = vpack.c.b16 %v2622, %v2618
    %v3731 = vpack.c.b16 %v2623, %v2619
    %v3732 = vpack.c.b16 %v2628, %v2624
    %v3733 = vpack.c.b16 %v2629, %v2625
    %v3734 = vpack.c.b16 %v2630, %v2626
    %v3735 = vpack.c.b16 %v2631, %v2627
    %v3736 = vpack.c.b16 %v2636, %v2632
    %v3737 = vpack.c.b16 %v2637, %v2633
    %v3738 = vpack.c.b16 %v2638, %v2634
    %v3739 = vpack.c.b16 %v2639, %v2635
    %v3740 = vpack.c.b16 %v2644, %v2640
    %v3741 = vpack.c.b16 %v2645, %v2641
    %v3742 = vpack.c.b16 %v2646, %v2642
    %v3743 = vpack.c.b16 %v2647, %v2643
    %v3744 = vpack.c.b16 %v2652, %v2648
    %v3745 = vpack.c.b16 %v2653, %v2649
    %v3746 = vpack.c.b16 %v2654, %v2650
    %v3747 = vpack.c.b16 %v2655, %v2651
    %v3748 = vpack.c.b16 %v2660, %v2656
    %v3749 = vpack.c.b16 %v2661, %v2657
    %v3750 = vpack.c.b16 %v2662, %v2658
    %v3751 = vpack.c.b16 %v2663, %v2659
    %v3752 = vpack.c.b16 %v2668, %v2664
    %v3753 = vpack.c.b16 %v2669, %v2665
    %v3754 = vpack.c.b16 %v2670, %v2666
    %v3755 = vpack.c.b16 %v2671, %v2667
    %v3756 = vpack.c.b16 %v2676, %v2672
    %v3757 = vpack.c.b16 %v2677, %v2673
    %v3758 = vpack.c.b16 %v2678, %v2674
    %v3759 = vpack.c.b16 %v2679, %v2675
    %v3760 = vpack.c.b16 %v2684, %v2680
    %v3761 = vpack.c.b16 %v2685, %v2681
    %v3762 = vpack.c.b16 %v2686, %v2682
    %v3763 = vpack.c.b16 %v2687, %v2683
    %v3764 = vpack.c.b16 %v2692, %v2688
    %v3765 = vpack.c.b16 %v2693, %v2689
    %v3766 = vpack.c.b16 %v2694, %v2690
    %v3767 = vpack.c.b16 %v2695, %v2691
    %v3768 = vpack.c.b16 %v2700, %v2696
    %v3769 = vpack.c.b16 %v2701, %v2697
    %v3770 = vpack.c.b16 %v2702, %v2698
    %v3771 = vpack.c.b16 %v2703, %v2699
    %v3772 = vpack.c.b16 %v2708, %v2704
    %v3773 = vpack.c.b16 %v2709, %v2705
    %v3774 = vpack.c.b16 %v2710, %v2706
    %v3775 = vpack.c.b16 %v2711, %v2707
    %v3776 = vpack.c.b16 %v2716, %v2712
    %v3777 = vpack.c.b16 %v2717, %v2713
    %v3778 = vpack.c.b16 %v2718, %v2714
    %v3779 = vpack.c.b16 %v2719, %v2715
    %v3780 = vpack.c.b16 %v2724, %v2720
    %v3781 = vpack.c.b16 %v2725, %v2721
    %v3782 = vpack.c.b16 %v2726, %v2722
    %v3783 = vpack.c.b16 %v2727, %v2723
    %v3784 = vpack.c.b16 %v2732, %v2728
    %v3785 = vpack.c.b16 %v2733, %v2729
    %v3786 = vpack.c.b16 %v2734, %v2730
    %v3787 = vpack.c.b16 %v2735, %v2731
    %v3788 = vpack.c.b16 %v2740, %v2736
    %v3789 = vpack.c.b16 %v2741, %v2737
    %v3790 = vpack.c.b16 %v2742, %v2738
    %v3791 = vpack.c.b16 %v2743, %v2739
    %v3792 = vpack.c.b16 %v2748, %v2744
    %v3793 = vpack.c.b16 %v2749, %v2745
    %v3794 = vpack.c.b16 %v2750, %v2746
    %v3795 = vpack.c.b16 %v2751, %v2747
    %v3796 = vpack.c.b16 %v2756, %v2752
    %v3797 = vpack.c.b16 %v2757, %v2753
    %v3798 = vpack.c.b16 %v2758, %v2754
    %v3799 = vpack.c.b16 %v2759, %v2755
    %v3800 = vpack.c.b16 %v2764, %v2760
    %v3801 = vpack.c.b16 %v2765, %v2761
    %v3802 = vpack.c.b16 %v2766, %v2762
    %v3803 = vpack.c.b16 %v2767, %v2763
    %v3804 = vpack.c.b16 %v2772, %v2768
    %v3805 = vpack.c.b16 %v2773, %v2769
    %v3806 = vpack.c.b16 %v2774, %v2770
    %v3807 = vpack.c.b16 %v2775, %v2771
    %v3808 = vpack.c.b16 %v2780, %v2776
    %v3809 = vpack.c.b16 %v2781, %v2777
    %v3810 = vpack.c.b16 %v2782, %v2778
    %v3811 = vpack.c.b16 %v2783, %v2779
    %v3812 = vpack.c.b16 %v2788, %v2784
    %v3813 = vpack.c.b16 %v2789, %v2785
    %v3814 = vpack.c.b16 %v2790, %v2786
    %v3815 = vpack.c.b16 %v2791, %v2787
    %v3816 = vpack.c.b16 %v2796, %v2792
    %v3817 = vpack.c.b16 %v2797, %v2793
    %v3818 = vpack.c.b16 %v2798, %v2794
    %v3819 = vpack.c.b16 %v2799, %v2795
    %v3820 = vpack.c.b16 %v2804, %v2800
    %v3821 = vpack.c.b16 %v2805, %v2801
    %v3822 = vpack.c.b16 %v2806, %v2802
    %v3823 = vpack.c.b16 %v2807, %v2803
    %v3824 = vpack.c.b16 %v2812, %v2808
    %v3825 = vpack.c.b16 %v2813, %v2809
    %v3826 = vpack.c.b16 %v2814, %v2810
    %v3827 = vpack.c.b16 %v2815, %v2811
    %v3828 = vpack.c.b16 %v2820, %v2816
    %v3829 = vpack.c.b16 %v2821, %v2817
    %v3830 = vpack.c.b16 %v2822, %v2818
    %v3831 = vpack.c.b16 %v2823, %v2819
    %v3832 = vpack.c.b16 %v2828, %v2824
    %v3833 = vpack.c.b16 %v2829, %v2825
    %v3834 = vpack.c.b16 %v2830, %v2826
    %v3835 = vpack.c.b16 %v2831, %v2827
    %v3836 = vpack.c.b16 %v2836, %v2832
    %v3837 = vpack.c.b16 %v2837, %v2833
    %v3838 = vpack.c.b16 %v2838, %v2834
    %v3839 = vpack.c.b16 %v2839, %v2835
    %v3840 = vpack.c.b16 %v2844, %v2840
    %v3841 = vpack.c.b16 %v2845, %v2841
    %v3842 = vpack.c.b16 %v2846, %v2842
    %v3843 = vpack.c.b16 %v2847, %v2843
    %v3844 = vpack.c.b16 %v2852, %v2848
    %v3845 = vpack.c.b16 %v2853, %v2849
    %v3846 = vpack.c.b16 %v2854, %v2850
    %v3847 = vpack.c.b16 %v2855, %v2851
    %v3848 = vpack.c.b16 %v2860, %v2856
    %v3849 = vpack.c.b16 %v2861, %v2857
    %v3850 = vpack.c.b16 %v2862, %v2858
    %v3851 = vpack.c.b16 %v2863, %v2859
    %v3852 = vpack.c.b16 %v2868, %v2864
    %v3853 = vpack.c.b16 %v2869, %v2865
    %v3854 = vpack.c.b16 %v2870, %v2866
    %v3855 = vpack.c.b16 %v2871, %v2867
    %v3856 = vpack.c.b16 %v2876, %v2872
    %v3857 = vpack.c.b16 %v2877, %v2873
    %v3858 = vpack.c.b16 %v2878, %v2874
    %v3859 = vpack.c.b16 %v2879, %v2875
    %v3860 = vpack.c.b16 %v2884, %v2880
    %v3861 = vpack.c.b16 %v2885, %v2881
    %v3862 = vpack.c.b16 %v2886, %v2882
    %v3863 = vpack.c.b16 %v2887, %v2883
    %v3864 = vpack.c.b16 %v2892, %v2888
    %v3865 = vpack.c.b16 %v2893, %v2889
    %v3866 = vpack.c.b16 %v2894, %v2890
    %v3867 = vpack.c.b16 %v2895, %v2891
    %v3868 = vpack.c.b16 %v2900, %v2896
    %v3869 = vpack.c.b16 %v2901, %v2897
    %v3870 = vpack.c.b16 %v2902, %v2898
    %v3871 = vpack.c.b16 %v2903, %v2899
    %v3872 = vpack.c.b16 %v2908, %v2904
    %v3873 = vpack.c.b16 %v2909, %v2905
    %v3874 = vpack.c.b16 %v2910, %v2906
    %v3875 = vpack.c.b16 %v2911, %v2907
    %v3876 = vpack.c.b16 %v2916, %v2912
    %v3877 = vpack.c.b16 %v2917, %v2913
    %v3878 = vpack.c.b16 %v2918, %v2914
    %v3879 = vpack.c.b16 %v2919, %v2915
    %v3880 = vpack.c.b16 %v2924, %v2920
    %v3881 = vpack.c.b16 %v2925, %v2921
    %v3882 = vpack.c.b16 %v2926, %v2922
    %v3883 = vpack.c.b16 %v2927, %v2923
    %v3884 = vpack.c.b16 %v2932, %v2928
    %v3885 = vpack.c.b16 %v2933, %v2929
    %v3886 = vpack.c.b16 %v2934, %v2930
    %v3887 = vpack.c.b16 %v2935, %v2931
    %v3888 = vpack.c.b16 %v2940, %v2936
    %v3889 = vpack.c.b16 %v2941, %v2937
    %v3890 = vpack.c.b16 %v2942, %v2938
    %v3891 = vpack.c.b16 %v2943, %v2939
    %v3892 = vpack.c.b16 %v2948, %v2944
    %v3893 = vpack.c.b16 %v2949, %v2945
    %v3894 = vpack.c.b16 %v2950, %v2946
    %v3895 = vpack.c.b16 %v2951, %v2947
    %v3896 = vpack.c.b16 %v2956, %v2952
    %v3897 = vpack.c.b16 %v2957, %v2953
    %v3898 = vpack.c.b16 %v2958, %v2954
    %v3899 = vpack.c.b16 %v2959, %v2955
    %v3900 = vpack.c.b16 %v2964, %v2960
    %v3901 = vpack.c.b16 %v2965, %v2961
    %v3902 = vpack.c.b16 %v2966, %v2962
    %v3903 = vpack.c.b16 %v2967, %v2963
    %v3904 = vpack.c.b16 %v2972, %v2968
    %v3905 = vpack.c.b16 %v2973, %v2969
    %v3906 = vpack.c.b16 %v2974, %v2970
    %v3907 = vpack.c.b16 %v2975, %v2971
    %v3908 = vpack.c.b16 %v2980, %v2976
    %v3909 = vpack.c.b16 %v2981, %v2977
    %v3910 = vpack.c.b16 %v2982, %v2978
    %v3911 = vpack.c.b16 %v2983, %v2979
    %v3912 = vpack.c.b16 %v2988, %v2984
    %v3913 = vpack.c.b16 %v2989, %v2985
    %v3914 = vpack.c.b16 %v2990, %v2986
    %v3915 = vpack.c.b16 %v2991, %v2987
    %v3916 = vpack.c.b16 %v2996, %v2992
    %v3917 = vpack.c.b16 %v2997, %v2993
    %v3918 = vpack.c.b16 %v2998, %v2994
    %v3919 = vpack.c.b16 %v2999, %v2995
    %v3920 = vpack.c.b16 %v3004, %v3000
    %v3921 = vpack.c.b16 %v3005, %v3001
    %v3922 = vpack.c.b16 %v3006, %v3002
    %v3923 = vpack.c.b16 %v3007, %v3003
    %v3924 = vpack.c.b16 %v3012, %v3008
    %v3925 = vpack.c.b16 %v3013, %v3009
    %v3926 = vpack.c.b16 %v3014, %v3010
    %v3927 = vpack.c.b16 %v3015, %v3011
    %v3928 = vpack.c.b16 %v3020, %v3016
    %v3929 = vpack.c.b16 %v3021, %v3017
    %v3930 = vpack.c.b16 %v3022, %v3018
    %v3931 = vpack.c.b16 %v3023, %v3019
    %v3932 = vpack.c.b16 %v3028, %v3024
    %v3933 = vpack.c.b16 %v3029, %v3025
    %v3934 = vpack.c.b16 %v3030, %v3026
    %v3935 = vpack.c.b16 %v3031, %v3027
    %v3936 = vpack.c.b16 %v3036, %v3032
    %v3937 = vpack.c.b16 %v3037, %v3033
    %v3938 = vpack.c.b16 %v3038, %v3034
    %v3939 = vpack.c.b16 %v3039, %v3035
    %v3940 = vpack.c.b16 %v3044, %v3040
    %v3941 = vpack.c.b16 %v3045, %v3041
    %v3942 = vpack.c.b16 %v3046, %v3042
    %v3943 = vpack.c.b16 %v3047, %v3043
    %v3944 = vpack.c.b16 %v3052, %v3048
    %v3945 = vpack.c.b16 %v3053, %v3049
    %v3946 = vpack.c.b16 %v3054, %v3050
    %v3947 = vpack.c.b16 %v3055, %v3051
    %v3948 = vpack.c.b16 %v3060, %v3056
    %v3949 = vpack.c.b16 %v3061, %v3057
    %v3950 = vpack.c.b16 %v3062, %v3058
    %v3951 = vpack.c.b16 %v3063, %v3059
    %v3952 = vpack.c.b16 %v3068, %v3064
    %v3953 = vpack.c.b16 %v3069, %v3065
    %v3954 = vpack.c.b16 %v3070, %v3066
    %v3955 = vpack.c.b16 %v3071, %v3067
    %v3956 = vpack.c.b16 %v3076, %v3072
    %v3957 = vpack.c.b16 %v3077, %v3073
    %v3958 = vpack.c.b16 %v3078, %v3074
    %v3959 = vpack.c.b16 %v3079, %v3075
    %v3960 = vpack.c.b16 %v3084, %v3080
    %v3961 = vpack.c.b16 %v3085, %v3081
    %v3962 = vpack.c.b16 %v3086, %v3082
    %v3963 = vpack.c.b16 %v3087, %v3083
    %v3964 = vpack.c.b16 %v3092, %v3088
    %v3965 = vpack.c.b16 %v3093, %v3089
    %v3966 = vpack.c.b16 %v3094, %v3090
    %v3967 = vpack.c.b16 %v3095, %v3091
    %v3968 = vpack.c.b16 %v3100, %v3096
    %v3969 = vpack.c.b16 %v3101, %v3097
    %v3970 = vpack.c.b16 %v3102, %v3098
    %v3971 = vpack.c.b16 %v3103, %v3099
    %v3972 = vpack.c.b16 %v3108, %v3104
    %v3973 = vpack.c.b16 %v3109, %v3105
    %v3974 = vpack.c.b16 %v3110, %v3106
    %v3975 = vpack.c.b16 %v3111, %v3107
    %v3976 = vpack.c.b16 %v3116, %v3112
    %v3977 = vpack.c.b16 %v3117, %v3113
    %v3978 = vpack.c.b16 %v3118, %v3114
    %v3979 = vpack.c.b16 %v3119, %v3115
    %v3980 = vpack.c.b16 %v3124, %v3120
    %v3981 = vpack.c.b16 %v3125, %v3121
    %v3982 = vpack.c.b16 %v3126, %v3122
    %v3983 = vpack.c.b16 %v3127, %v3123
    %v3984 = vpack.c.b16 %v3132, %v3128
    %v3985 = vpack.c.b16 %v3133, %v3129
    %v3986 = vpack.c.b16 %v3134, %v3130
    %v3987 = vpack.c.b16 %v3135, %v3131
    %v3988 = vpack.c.b16 %v3140, %v3136
    %v3989 = vpack.c.b16 %v3141, %v3137
    %v3990 = vpack.c.b16 %v3142, %v3138
    %v3991 = vpack.c.b16 %v3143, %v3139
    %v3992 = vpack.c.b16 %v3148, %v3144
    %v3993 = vpack.c.b16 %v3149, %v3145
    %v3994 = vpack.c.b16 %v3150, %v3146
    %v3995 = vpack.c.b16 %v3151, %v3147
    %v3996 = vpack.c.b16 %v3156, %v3152
    %v3997 = vpack.c.b16 %v3157, %v3153
    %v3998 = vpack.c.b16 %v3158, %v3154
    %v3999 = vpack.c.b16 %v3159, %v3155
    %v4000 = vpack.c.b16 %v3164, %v3160
    %v4001 = vpack.c.b16 %v3165, %v3161
    %v4002 = vpack.c.b16 %v3166, %v3162
    %v4003 = vpack.c.b16 %v3167, %v3163
    %v4004 = vpack.c.b16 %v3172, %v3168
    %v4005 = vpack.c.b16 %v3173, %v3169
    %v4006 = vpack.c.b16 %v3174, %v3170
    %v4007 = vpack.c.b16 %v3175, %v3171
    %v4008 = vpack.c.b16 %v3180, %v3176
    %v4009 = vpack.c.b16 %v3181, %v3177
    %v4010 = vpack.c.b16 %v3182, %v3178
    %v4011 = vpack.c.b16 %v3183, %v3179
    %v4012 = vpack.c.b16 %v3188, %v3184
    %v4013 = vpack.c.b16 %v3189, %v3185
    %v4014 = vpack.c.b16 %v3190, %v3186
    %v4015 = vpack.c.b16 %v3191, %v3187
    %v4016 = vpack.c.b16 %v3196, %v3192
    %v4017 = vpack.c.b16 %v3197, %v3193
    %v4018 = vpack.c.b16 %v3198, %v3194
    %v4019 = vpack.c.b16 %v3199, %v3195
    %v4020 = vpack.c.b16 %v3204, %v3200
    %v4021 = vpack.c.b16 %v3205, %v3201
    %v4022 = vpack.c.b16 %v3206, %v3202
    %v4023 = vpack.c.b16 %v3207, %v3203
    %v4024 = vpack.c.b16 %v3212, %v3208
    %v4025 = vpack.c.b16 %v3213, %v3209
    %v4026 = vpack.c.b16 %v3214, %v3210
    %v4027 = vpack.c.b16 %v3215, %v3211
    %v4028 = vpack.c.b16 %v3220, %v3216
    %v4029 = vpack.c.b16 %v3221, %v3217
    %v4030 = vpack.c.b16 %v3222, %v3218
    %v4031 = vpack.c.b16 %v3223, %v3219
    %v4032 = vpack.c.b16 %v3228, %v3224
    %v4033 = vpack.c.b16 %v3229, %v3225
    %v4034 = vpack.c.b16 %v3230, %v3226
    %v4035 = vpack.c.b16 %v3231, %v3227
    %v4036 = vpack.c.b16 %v3236, %v3232
    %v4037 = vpack.c.b16 %v3237, %v3233
    %v4038 = vpack.c.b16 %v3238, %v3234
    %v4039 = vpack.c.b16 %v3239, %v3235
    %v4040 = vpack.c.b16 %v3244, %v3240
    %v4041 = vpack.c.b16 %v3245, %v3241
    %v4042 = vpack.c.b16 %v3246, %v3242
    %v4043 = vpack.c.b16 %v3247, %v3243
    %v4044 = vpack.c.b16 %v3252, %v3248
    %v4045 = vpack.c.b16 %v3253, %v3249
    %v4046 = vpack.c.b16 %v3254, %v3250
    %v4047 = vpack.c.b16 %v3255, %v3251
    %v4048 = vpack.c.b16 %v3260, %v3256
    %v4049 = vpack.c.b16 %v3261, %v3257
    %v4050 = vpack.c.b16 %v3262, %v3258
    %v4051 = vpack.c.b16 %v3263, %v3259
    %v4052 = vpack.c.b16 %v3268, %v3264
    %v4053 = vpack.c.b16 %v3269, %v3265
    %v4054 = vpack.c.b16 %v3270, %v3266
    %v4055 = vpack.c.b16 %v3271, %v3267
    %vm4840 = vcmask 523264
    %v4841 = vsel %vm4840, %v895, 0
    %4843 = vmatpush.bf16.msra.mxu0 %v3300
    %4844 = vmatpush.bf16.msra.mxu0 %v3296
    %4845 = vmatpush.bf16.msra.mxu0 %v3292
    %4846 = vmatpush.bf16.msra.mxu0 %v3288
    %4847 = vmatpush.bf16.msra.mxu0 %v3284
    %4848 = vmatpush.bf16.msra.mxu0 %v3280
    %4849 = vmatpush.bf16.msra.mxu0 %v3276
    %4850 = vmatpush.bf16.msra.mxu0 %v3272
    %4851 = vmatmul.bf16.gmra.mxu0 %v865
    %v4852 = vpop.f32.mrf.mxu0
    %v4853 = vadd.f32 %v855, %v4852
    %v4854 = vpop.f32.mrf.mxu0
    %4855 = vdwg.mxu0
    %4856 = vmatpush.bf16.msra.mxu0 %v3332
    %4857 = vmatpush.bf16.msra.mxu0 %v3328
    %4858 = vmatpush.bf16.msra.mxu0 %v3324
    %4859 = vmatpush.bf16.msra.mxu0 %v3320
    %4860 = vmatpush.bf16.msra.mxu0 %v3316
    %4861 = vmatpush.bf16.msra.mxu0 %v3312
    %4862 = vmatpush.bf16.msra.mxu0 %v3308
    %4863 = vmatpush.bf16.msra.mxu0 %v3304
    %4864 = vmatmul.bf16.gmra.mxu0 %v866
    %v4865 = vpop.f32.mrf.mxu0
    %v4866 = vadd.f32 %v4853, %v4865
    %v4867 = vpop.f32.mrf.mxu0
    %4868 = vdwg.mxu0
    %4869 = vmatpush.bf16.msra.mxu0 %v3364
    %4870 = vmatpush.bf16.msra.mxu0 %v3360
    %4871 = vmatpush.bf16.msra.mxu0 %v3356
    %4872 = vmatpush.bf16.msra.mxu0 %v3352
    %4873 = vmatpush.bf16.msra.mxu0 %v3348
    %4874 = vmatpush.bf16.msra.mxu0 %v3344
    %4875 = vmatpush.bf16.msra.mxu0 %v3340
    %4876 = vmatpush.bf16.msra.mxu0 %v3336
    %4877 = vmatmul.bf16.gmra.mxu0 %v867
    %v4878 = vpop.f32.mrf.mxu0
    %v4879 = vadd.f32 %v4866, %v4878
    %v4880 = vpop.f32.mrf.mxu0
    %4881 = vdwg.mxu0
    %4882 = vmatpush.bf16.msra.mxu0 %v3396
    %4883 = vmatpush.bf16.msra.mxu0 %v3392
    %4884 = vmatpush.bf16.msra.mxu0 %v3388
    %4885 = vmatpush.bf16.msra.mxu0 %v3384
    %4886 = vmatpush.bf16.msra.mxu0 %v3380
    %4887 = vmatpush.bf16.msra.mxu0 %v3376
    %4888 = vmatpush.bf16.msra.mxu0 %v3372
    %4889 = vmatpush.bf16.msra.mxu0 %v3368
    %4890 = vmatmul.bf16.gmra.mxu0 %v868
    %v4891 = vpop.f32.mrf.mxu0
    %v4892 = vadd.f32 %v4879, %v4891
    %v4893 = vpop.f32.mrf.mxu0
    %4894 = vdwg.mxu0
    %4895 = vmatpush.bf16.msra.mxu0 %v3428
    %4896 = vmatpush.bf16.msra.mxu0 %v3424
    %4897 = vmatpush.bf16.msra.mxu0 %v3420
    %4898 = vmatpush.bf16.msra.mxu0 %v3416
    %4899 = vmatpush.bf16.msra.mxu0 %v3412
    %4900 = vmatpush.bf16.msra.mxu0 %v3408
    %4901 = vmatpush.bf16.msra.mxu0 %v3404
    %4902 = vmatpush.bf16.msra.mxu0 %v3400
    %4903 = vmatmul.bf16.gmra.mxu0 %v869
    %v4904 = vpop.f32.mrf.mxu0
    %v4905 = vadd.f32 %v4892, %v4904
    %v4906 = vpop.f32.mrf.mxu0
    %4907 = vdwg.mxu0
    %4908 = vmatpush.bf16.msra.mxu0 %v3460
    %4909 = vmatpush.bf16.msra.mxu0 %v3456
    %4910 = vmatpush.bf16.msra.mxu0 %v3452
    %4911 = vmatpush.bf16.msra.mxu0 %v3448
    %4912 = vmatpush.bf16.msra.mxu0 %v3444
    %4913 = vmatpush.bf16.msra.mxu0 %v3440
    %4914 = vmatpush.bf16.msra.mxu0 %v3436
    %4915 = vmatpush.bf16.msra.mxu0 %v3432
    %4916 = vmatmul.bf16.gmra.mxu0 %v870
    %v4917 = vpop.f32.mrf.mxu0
    %v4918 = vadd.f32 %v4905, %v4917
    %v4919 = vpop.f32.mrf.mxu0
    %4920 = vdwg.mxu0
    %4921 = vmatpush.bf16.msra.mxu0 %v3492
    %4922 = vmatpush.bf16.msra.mxu0 %v3488
    %4923 = vmatpush.bf16.msra.mxu0 %v3484
    %4924 = vmatpush.bf16.msra.mxu0 %v3480
    %4925 = vmatpush.bf16.msra.mxu0 %v3476
    %4926 = vmatpush.bf16.msra.mxu0 %v3472
    %4927 = vmatpush.bf16.msra.mxu0 %v3468
    %4928 = vmatpush.bf16.msra.mxu0 %v3464
    %4929 = vmatmul.bf16.gmra.mxu0 %v871
    %v4930 = vpop.f32.mrf.mxu0
    %v4931 = vadd.f32 %v4918, %v4930
    %v4932 = vpop.f32.mrf.mxu0
    %4933 = vdwg.mxu0
    %4934 = vmatpush.bf16.msra.mxu0 %v3524
    %4935 = vmatpush.bf16.msra.mxu0 %v3520
    %4936 = vmatpush.bf16.msra.mxu0 %v3516
    %4937 = vmatpush.bf16.msra.mxu0 %v3512
    %4938 = vmatpush.bf16.msra.mxu0 %v3508
    %4939 = vmatpush.bf16.msra.mxu0 %v3504
    %4940 = vmatpush.bf16.msra.mxu0 %v3500
    %4941 = vmatpush.bf16.msra.mxu0 %v3496
    %4942 = vmatmul.bf16.gmra.mxu0 %v872
    %v4943 = vpop.f32.mrf.mxu0
    %v4944 = vadd.f32 %v4931, %v4943
    %v4945 = vpop.f32.mrf.mxu0
    %4946 = vdwg.mxu0
    %4947 = vmatpush.bf16.msra.mxu0 %v3556
    %4948 = vmatpush.bf16.msra.mxu0 %v3552
    %4949 = vmatpush.bf16.msra.mxu0 %v3548
    %4950 = vmatpush.bf16.msra.mxu0 %v3544
    %4951 = vmatpush.bf16.msra.mxu0 %v3540
    %4952 = vmatpush.bf16.msra.mxu0 %v3536
    %4953 = vmatpush.bf16.msra.mxu0 %v3532
    %4954 = vmatpush.bf16.msra.mxu0 %v3528
    %4955 = vmatmul.bf16.gmra.mxu0 %v875
    %v4956 = vpop.f32.mrf.mxu0
    %v4957 = vadd.f32 %v4944, %v4956
    %v4958 = vpop.f32.mrf.mxu0
    %4959 = vdwg.mxu0
    %4960 = vmatpush.bf16.msra.mxu0 %v3588
    %4961 = vmatpush.bf16.msra.mxu0 %v3584
    %4962 = vmatpush.bf16.msra.mxu0 %v3580
    %4963 = vmatpush.bf16.msra.mxu0 %v3576
    %4964 = vmatpush.bf16.msra.mxu0 %v3572
    %4965 = vmatpush.bf16.msra.mxu0 %v3568
    %4966 = vmatpush.bf16.msra.mxu0 %v3564
    %4967 = vmatpush.bf16.msra.mxu0 %v3560
    %4968 = vmatmul.bf16.gmra.mxu0 %v876
    %v4969 = vpop.f32.mrf.mxu0
    %v4970 = vadd.f32 %v4957, %v4969
    %v4971 = vpop.f32.mrf.mxu0
    %4972 = vdwg.mxu0
    %4973 = vmatpush.bf16.msra.mxu0 %v3620
    %4974 = vmatpush.bf16.msra.mxu0 %v3616
    %4975 = vmatpush.bf16.msra.mxu0 %v3612
    %4976 = vmatpush.bf16.msra.mxu0 %v3608
    %4977 = vmatpush.bf16.msra.mxu0 %v3604
    %4978 = vmatpush.bf16.msra.mxu0 %v3600
    %4979 = vmatpush.bf16.msra.mxu0 %v3596
    %4980 = vmatpush.bf16.msra.mxu0 %v3592
    %4981 = vmatmul.bf16.gmra.mxu0 %v877
    %v4982 = vpop.f32.mrf.mxu0
    %v4983 = vadd.f32 %v4970, %v4982
    %v4984 = vpop.f32.mrf.mxu0
    %4985 = vdwg.mxu0
    %4986 = vmatpush.bf16.msra.mxu0 %v3652
    %4987 = vmatpush.bf16.msra.mxu0 %v3648
    %4988 = vmatpush.bf16.msra.mxu0 %v3644
    %4989 = vmatpush.bf16.msra.mxu0 %v3640
    %4990 = vmatpush.bf16.msra.mxu0 %v3636
    %4991 = vmatpush.bf16.msra.mxu0 %v3632
    %4992 = vmatpush.bf16.msra.mxu0 %v3628
    %4993 = vmatpush.bf16.msra.mxu0 %v3624
    %4994 = vmatmul.bf16.gmra.mxu0 %v878
    %v4995 = vpop.f32.mrf.mxu0
    %v4996 = vadd.f32 %v4983, %v4995
    %v4997 = vpop.f32.mrf.mxu0
    %4998 = vdwg.mxu0
    %4999 = vmatpush.bf16.msra.mxu0 %v3684
    %5000 = vmatpush.bf16.msra.mxu0 %v3680
    %5001 = vmatpush.bf16.msra.mxu0 %v3676
    %5002 = vmatpush.bf16.msra.mxu0 %v3672
    %5003 = vmatpush.bf16.msra.mxu0 %v3668
    %5004 = vmatpush.bf16.msra.mxu0 %v3664
    %5005 = vmatpush.bf16.msra.mxu0 %v3660
    %5006 = vmatpush.bf16.msra.mxu0 %v3656
    %5007 = vmatmul.bf16.gmra.mxu0 %v879
    %v5008 = vpop.f32.mrf.mxu0
    %v5009 = vadd.f32 %v4996, %v5008
    %v5010 = vpop.f32.mrf.mxu0
    %5011 = vdwg.mxu0
    %5012 = vmatpush.bf16.msra.mxu0 %v3716
    %5013 = vmatpush.bf16.msra.mxu0 %v3712
    %5014 = vmatpush.bf16.msra.mxu0 %v3708
    %5015 = vmatpush.bf16.msra.mxu0 %v3704
    %5016 = vmatpush.bf16.msra.mxu0 %v3700
    %5017 = vmatpush.bf16.msra.mxu0 %v3696
    %5018 = vmatpush.bf16.msra.mxu0 %v3692
    %5019 = vmatpush.bf16.msra.mxu0 %v3688
    %5020 = vmatmul.bf16.gmra.mxu0 %v880
    %v5021 = vpop.f32.mrf.mxu0
    %v5022 = vadd.f32 %v5009, %v5021
    %v5023 = vpop.f32.mrf.mxu0
    %5024 = vdwg.mxu0
    %5025 = vmatpush.bf16.msra.mxu0 %v3748
    %5026 = vmatpush.bf16.msra.mxu0 %v3744
    %5027 = vmatpush.bf16.msra.mxu0 %v3740
    %5028 = vmatpush.bf16.msra.mxu0 %v3736
    %5029 = vmatpush.bf16.msra.mxu0 %v3732
    %5030 = vmatpush.bf16.msra.mxu0 %v3728
    %5031 = vmatpush.bf16.msra.mxu0 %v3724
    %5032 = vmatpush.bf16.msra.mxu0 %v3720
    %5033 = vmatmul.bf16.gmra.mxu0 %v881
    %v5034 = vpop.f32.mrf.mxu0
    %v5035 = vadd.f32 %v5022, %v5034
    %v5036 = vpop.f32.mrf.mxu0
    %5037 = vdwg.mxu0
    %5038 = vmatpush.bf16.msra.mxu0 %v3780
    %5039 = vmatpush.bf16.msra.mxu0 %v3776
    %5040 = vmatpush.bf16.msra.mxu0 %v3772
    %5041 = vmatpush.bf16.msra.mxu0 %v3768
    %5042 = vmatpush.bf16.msra.mxu0 %v3764
    %5043 = vmatpush.bf16.msra.mxu0 %v3760
    %5044 = vmatpush.bf16.msra.mxu0 %v3756
    %5045 = vmatpush.bf16.msra.mxu0 %v3752
    %5046 = vmatmul.bf16.gmra.mxu0 %v882
    %v5047 = vpop.f32.mrf.mxu0
    %v5048 = vadd.f32 %v5035, %v5047
    %v5049 = vpop.f32.mrf.mxu0
    %5050 = vdwg.mxu0
    %5051 = vmatpush.bf16.msra.mxu0 %v3812
    %5052 = vmatpush.bf16.msra.mxu0 %v3808
    %5053 = vmatpush.bf16.msra.mxu0 %v3804
    %5054 = vmatpush.bf16.msra.mxu0 %v3800
    %5055 = vmatpush.bf16.msra.mxu0 %v3796
    %5056 = vmatpush.bf16.msra.mxu0 %v3792
    %5057 = vmatpush.bf16.msra.mxu0 %v3788
    %5058 = vmatpush.bf16.msra.mxu0 %v3784
    %5059 = vmatmul.bf16.gmra.mxu0 %v885
    %v5060 = vpop.f32.mrf.mxu0
    %v5061 = vadd.f32 %v5048, %v5060
    %v5062 = vpop.f32.mrf.mxu0
    %5063 = vdwg.mxu0
    %5064 = vmatpush.bf16.msra.mxu0 %v3844
    %5065 = vmatpush.bf16.msra.mxu0 %v3840
    %5066 = vmatpush.bf16.msra.mxu0 %v3836
    %5067 = vmatpush.bf16.msra.mxu0 %v3832
    %5068 = vmatpush.bf16.msra.mxu0 %v3828
    %5069 = vmatpush.bf16.msra.mxu0 %v3824
    %5070 = vmatpush.bf16.msra.mxu0 %v3820
    %5071 = vmatpush.bf16.msra.mxu0 %v3816
    %5072 = vmatmul.bf16.gmra.mxu0 %v886
    %v5073 = vpop.f32.mrf.mxu0
    %v5074 = vadd.f32 %v5061, %v5073
    %v5075 = vpop.f32.mrf.mxu0
    %5076 = vdwg.mxu0
    %5077 = vmatpush.bf16.msra.mxu0 %v3876
    %5078 = vmatpush.bf16.msra.mxu0 %v3872
    %5079 = vmatpush.bf16.msra.mxu0 %v3868
    %5080 = vmatpush.bf16.msra.mxu0 %v3864
    %5081 = vmatpush.bf16.msra.mxu0 %v3860
    %5082 = vmatpush.bf16.msra.mxu0 %v3856
    %5083 = vmatpush.bf16.msra.mxu0 %v3852
    %5084 = vmatpush.bf16.msra.mxu0 %v3848
    %5085 = vmatmul.bf16.gmra.mxu0 %v887
    %v5086 = vpop.f32.mrf.mxu0
    %v5087 = vadd.f32 %v5074, %v5086
    %v5088 = vpop.f32.mrf.mxu0
    %5089 = vdwg.mxu0
    %5090 = vmatpush.bf16.msra.mxu0 %v3908
    %5091 = vmatpush.bf16.msra.mxu0 %v3904
    %5092 = vmatpush.bf16.msra.mxu0 %v3900
    %5093 = vmatpush.bf16.msra.mxu0 %v3896
    %5094 = vmatpush.bf16.msra.mxu0 %v3892
    %5095 = vmatpush.bf16.msra.mxu0 %v3888
    %5096 = vmatpush.bf16.msra.mxu0 %v3884
    %5097 = vmatpush.bf16.msra.mxu0 %v3880
    %5098 = vmatmul.bf16.gmra.mxu0 %v888
    %v5099 = vpop.f32.mrf.mxu0
    %v5100 = vadd.f32 %v5087, %v5099
    %v5101 = vpop.f32.mrf.mxu0
    %5102 = vdwg.mxu0
    %5103 = vmatpush.bf16.msra.mxu0 %v3940
    %5104 = vmatpush.bf16.msra.mxu0 %v3936
    %5105 = vmatpush.bf16.msra.mxu0 %v3932
    %5106 = vmatpush.bf16.msra.mxu0 %v3928
    %5107 = vmatpush.bf16.msra.mxu0 %v3924
    %5108 = vmatpush.bf16.msra.mxu0 %v3920
    %5109 = vmatpush.bf16.msra.mxu0 %v3916
    %5110 = vmatpush.bf16.msra.mxu0 %v3912
    %5111 = vmatmul.bf16.gmra.mxu0 %v889
    %v5112 = vpop.f32.mrf.mxu0
    %v5113 = vadd.f32 %v5100, %v5112
    %v5114 = vpop.f32.mrf.mxu0
    %5115 = vdwg.mxu0
    %5116 = vmatpush.bf16.msra.mxu0 %v3972
    %5117 = vmatpush.bf16.msra.mxu0 %v3968
    %5118 = vmatpush.bf16.msra.mxu0 %v3964
    %5119 = vmatpush.bf16.msra.mxu0 %v3960
    %5120 = vmatpush.bf16.msra.mxu0 %v3956
    %5121 = vmatpush.bf16.msra.mxu0 %v3952
    %5122 = vmatpush.bf16.msra.mxu0 %v3948
    %5123 = vmatpush.bf16.msra.mxu0 %v3944
    %5124 = vmatmul.bf16.gmra.mxu0 %v890
    %v5125 = vpop.f32.mrf.mxu0
    %v5126 = vadd.f32 %v5113, %v5125
    %v5127 = vpop.f32.mrf.mxu0
    %5128 = vdwg.mxu0
    %5129 = vmatpush.bf16.msra.mxu0 %v4004
    %5130 = vmatpush.bf16.msra.mxu0 %v4000
    %5131 = vmatpush.bf16.msra.mxu0 %v3996
    %5132 = vmatpush.bf16.msra.mxu0 %v3992
    %5133 = vmatpush.bf16.msra.mxu0 %v3988
    %5134 = vmatpush.bf16.msra.mxu0 %v3984
    %5135 = vmatpush.bf16.msra.mxu0 %v3980
    %5136 = vmatpush.bf16.msra.mxu0 %v3976
    %5137 = vmatmul.bf16.gmra.mxu0 %v891
    %v5138 = vpop.f32.mrf.mxu0
    %v5139 = vadd.f32 %v5126, %v5138
    %v5140 = vpop.f32.mrf.mxu0
    %5141 = vdwg.mxu0
    %5142 = vmatpush.bf16.msra.mxu0 %v4036
    %5143 = vmatpush.bf16.msra.mxu0 %v4032
    %5144 = vmatpush.bf16.msra.mxu0 %v4028
    %5145 = vmatpush.bf16.msra.mxu0 %v4024
    %5146 = vmatpush.bf16.msra.mxu0 %v4020
    %5147 = vmatpush.bf16.msra.mxu0 %v4016
    %5148 = vmatpush.bf16.msra.mxu0 %v4012
    %5149 = vmatpush.bf16.msra.mxu0 %v4008
    %5150 = vmatmul.bf16.gmra.mxu0 %v892
    %v5151 = vpop.f32.mrf.mxu0
    %v5152 = vadd.f32 %v5139, %v5151
    %v5153 = vpop.f32.mrf.mxu0
    %5154 = vdwg.mxu0
    %5155 = vmatpush.bf16.msra.mxu0 0
    %5156 = vmatpush.bf16.msra.mxu0 0
    %5157 = vmatpush.bf16.msra.mxu0 0
    %5158 = vmatpush.bf16.msra.mxu0 0
    %5159 = vmatpush.bf16.msra.mxu0 %v4052
    %5160 = vmatpush.bf16.msra.mxu0 %v4048
    %5161 = vmatpush.bf16.msra.mxu0 %v4044
    %5162 = vmatpush.bf16.msra.mxu0 %v4040
    %5163 = vmatmul.bf16.gmra.mxu0 %v4841
    %v5164 = vpop.f32.mrf.mxu0
    %v5165 = vadd.f32 %v5152, %v5164
    %v5166 = vpop.f32.mrf.mxu0
    %5167 = vdwg.mxu0
    %5168 = vmatpush.bf16.msra.mxu0 %v3301
    %5169 = vmatpush.bf16.msra.mxu0 %v3297
    %5170 = vmatpush.bf16.msra.mxu0 %v3293
    %5171 = vmatpush.bf16.msra.mxu0 %v3289
    %5172 = vmatpush.bf16.msra.mxu0 %v3285
    %5173 = vmatpush.bf16.msra.mxu0 %v3281
    %5174 = vmatpush.bf16.msra.mxu0 %v3277
    %5175 = vmatpush.bf16.msra.mxu0 %v3273
    %5176 = vmatmul.bf16.gmra.mxu0 %v865
    %v5177 = vpop.f32.mrf.mxu0
    %v5178 = vadd.f32 %v856, %v5177
    %v5179 = vpop.f32.mrf.mxu0
    %5180 = vdwg.mxu0
    %5181 = vmatpush.bf16.msra.mxu0 %v3333
    %5182 = vmatpush.bf16.msra.mxu0 %v3329
    %5183 = vmatpush.bf16.msra.mxu0 %v3325
    %5184 = vmatpush.bf16.msra.mxu0 %v3321
    %5185 = vmatpush.bf16.msra.mxu0 %v3317
    %5186 = vmatpush.bf16.msra.mxu0 %v3313
    %5187 = vmatpush.bf16.msra.mxu0 %v3309
    %5188 = vmatpush.bf16.msra.mxu0 %v3305
    %5189 = vmatmul.bf16.gmra.mxu0 %v866
    %v5190 = vpop.f32.mrf.mxu0
    %v5191 = vadd.f32 %v5178, %v5190
    %v5192 = vpop.f32.mrf.mxu0
    %5193 = vdwg.mxu0
    %5194 = vmatpush.bf16.msra.mxu0 %v3365
    %5195 = vmatpush.bf16.msra.mxu0 %v3361
    %5196 = vmatpush.bf16.msra.mxu0 %v3357
    %5197 = vmatpush.bf16.msra.mxu0 %v3353
    %5198 = vmatpush.bf16.msra.mxu0 %v3349
    %5199 = vmatpush.bf16.msra.mxu0 %v3345
    %5200 = vmatpush.bf16.msra.mxu0 %v3341
    %5201 = vmatpush.bf16.msra.mxu0 %v3337
    %5202 = vmatmul.bf16.gmra.mxu0 %v867
    %v5203 = vpop.f32.mrf.mxu0
    %v5204 = vadd.f32 %v5191, %v5203
    %v5205 = vpop.f32.mrf.mxu0
    %5206 = vdwg.mxu0
    %5207 = vmatpush.bf16.msra.mxu0 %v3397
    %5208 = vmatpush.bf16.msra.mxu0 %v3393
    %5209 = vmatpush.bf16.msra.mxu0 %v3389
    %5210 = vmatpush.bf16.msra.mxu0 %v3385
    %5211 = vmatpush.bf16.msra.mxu0 %v3381
    %5212 = vmatpush.bf16.msra.mxu0 %v3377
    %5213 = vmatpush.bf16.msra.mxu0 %v3373
    %5214 = vmatpush.bf16.msra.mxu0 %v3369
    %5215 = vmatmul.bf16.gmra.mxu0 %v868
    %v5216 = vpop.f32.mrf.mxu0
    %v5217 = vadd.f32 %v5204, %v5216
    %v5218 = vpop.f32.mrf.mxu0
    %5219 = vdwg.mxu0
    %5220 = vmatpush.bf16.msra.mxu0 %v3429
    %5221 = vmatpush.bf16.msra.mxu0 %v3425
    %5222 = vmatpush.bf16.msra.mxu0 %v3421
    %5223 = vmatpush.bf16.msra.mxu0 %v3417
    %5224 = vmatpush.bf16.msra.mxu0 %v3413
    %5225 = vmatpush.bf16.msra.mxu0 %v3409
    %5226 = vmatpush.bf16.msra.mxu0 %v3405
    %5227 = vmatpush.bf16.msra.mxu0 %v3401
    %5228 = vmatmul.bf16.gmra.mxu0 %v869
    %v5229 = vpop.f32.mrf.mxu0
    %v5230 = vadd.f32 %v5217, %v5229
    %v5231 = vpop.f32.mrf.mxu0
    %5232 = vdwg.mxu0
    %5233 = vmatpush.bf16.msra.mxu0 %v3461
    %5234 = vmatpush.bf16.msra.mxu0 %v3457
    %5235 = vmatpush.bf16.msra.mxu0 %v3453
    %5236 = vmatpush.bf16.msra.mxu0 %v3449
    %5237 = vmatpush.bf16.msra.mxu0 %v3445
    %5238 = vmatpush.bf16.msra.mxu0 %v3441
    %5239 = vmatpush.bf16.msra.mxu0 %v3437
    %5240 = vmatpush.bf16.msra.mxu0 %v3433
    %5241 = vmatmul.bf16.gmra.mxu0 %v870
    %v5242 = vpop.f32.mrf.mxu0
    %v5243 = vadd.f32 %v5230, %v5242
    %v5244 = vpop.f32.mrf.mxu0
    %5245 = vdwg.mxu0
    %5246 = vmatpush.bf16.msra.mxu0 %v3493
    %5247 = vmatpush.bf16.msra.mxu0 %v3489
    %5248 = vmatpush.bf16.msra.mxu0 %v3485
    %5249 = vmatpush.bf16.msra.mxu0 %v3481
    %5250 = vmatpush.bf16.msra.mxu0 %v3477
    %5251 = vmatpush.bf16.msra.mxu0 %v3473
    %5252 = vmatpush.bf16.msra.mxu0 %v3469
    %5253 = vmatpush.bf16.msra.mxu0 %v3465
    %5254 = vmatmul.bf16.gmra.mxu0 %v871
    %v5255 = vpop.f32.mrf.mxu0
    %v5256 = vadd.f32 %v5243, %v5255
    %v5257 = vpop.f32.mrf.mxu0
    %5258 = vdwg.mxu0
    %5259 = vmatpush.bf16.msra.mxu0 %v3525
    %5260 = vmatpush.bf16.msra.mxu0 %v3521
    %5261 = vmatpush.bf16.msra.mxu0 %v3517
    %5262 = vmatpush.bf16.msra.mxu0 %v3513
    %5263 = vmatpush.bf16.msra.mxu0 %v3509
    %5264 = vmatpush.bf16.msra.mxu0 %v3505
    %5265 = vmatpush.bf16.msra.mxu0 %v3501
    %5266 = vmatpush.bf16.msra.mxu0 %v3497
    %5267 = vmatmul.bf16.gmra.mxu0 %v872
    %v5268 = vpop.f32.mrf.mxu0
    %v5269 = vadd.f32 %v5256, %v5268
    %v5270 = vpop.f32.mrf.mxu0
    %5271 = vdwg.mxu0
    %5272 = vmatpush.bf16.msra.mxu0 %v3557
    %5273 = vmatpush.bf16.msra.mxu0 %v3553
    %5274 = vmatpush.bf16.msra.mxu0 %v3549
    %5275 = vmatpush.bf16.msra.mxu0 %v3545
    %5276 = vmatpush.bf16.msra.mxu0 %v3541
    %5277 = vmatpush.bf16.msra.mxu0 %v3537
    %5278 = vmatpush.bf16.msra.mxu0 %v3533
    %5279 = vmatpush.bf16.msra.mxu0 %v3529
    %5280 = vmatmul.bf16.gmra.mxu0 %v875
    %v5281 = vpop.f32.mrf.mxu0
    %v5282 = vadd.f32 %v5269, %v5281
    %v5283 = vpop.f32.mrf.mxu0
    %5284 = vdwg.mxu0
    %5285 = vmatpush.bf16.msra.mxu0 %v3589
    %5286 = vmatpush.bf16.msra.mxu0 %v3585
    %5287 = vmatpush.bf16.msra.mxu0 %v3581
    %5288 = vmatpush.bf16.msra.mxu0 %v3577
    %5289 = vmatpush.bf16.msra.mxu0 %v3573
    %5290 = vmatpush.bf16.msra.mxu0 %v3569
    %5291 = vmatpush.bf16.msra.mxu0 %v3565
    %5292 = vmatpush.bf16.msra.mxu0 %v3561
    %5293 = vmatmul.bf16.gmra.mxu0 %v876
    %v5294 = vpop.f32.mrf.mxu0
    %v5295 = vadd.f32 %v5282, %v5294
    %v5296 = vpop.f32.mrf.mxu0
    %5297 = vdwg.mxu0
    %5298 = vmatpush.bf16.msra.mxu0 %v3621
    %5299 = vmatpush.bf16.msra.mxu0 %v3617
    %5300 = vmatpush.bf16.msra.mxu0 %v3613
    %5301 = vmatpush.bf16.msra.mxu0 %v3609
    %5302 = vmatpush.bf16.msra.mxu0 %v3605
    %5303 = vmatpush.bf16.msra.mxu0 %v3601
    %5304 = vmatpush.bf16.msra.mxu0 %v3597
    %5305 = vmatpush.bf16.msra.mxu0 %v3593
    %5306 = vmatmul.bf16.gmra.mxu0 %v877
    %v5307 = vpop.f32.mrf.mxu0
    %v5308 = vadd.f32 %v5295, %v5307
    %v5309 = vpop.f32.mrf.mxu0
    %5310 = vdwg.mxu0
    %5311 = vmatpush.bf16.msra.mxu0 %v3653
    %5312 = vmatpush.bf16.msra.mxu0 %v3649
    %5313 = vmatpush.bf16.msra.mxu0 %v3645
    %5314 = vmatpush.bf16.msra.mxu0 %v3641
    %5315 = vmatpush.bf16.msra.mxu0 %v3637
    %5316 = vmatpush.bf16.msra.mxu0 %v3633
    %5317 = vmatpush.bf16.msra.mxu0 %v3629
    %5318 = vmatpush.bf16.msra.mxu0 %v3625
    %5319 = vmatmul.bf16.gmra.mxu0 %v878
    %v5320 = vpop.f32.mrf.mxu0
    %v5321 = vadd.f32 %v5308, %v5320
    %v5322 = vpop.f32.mrf.mxu0
    %5323 = vdwg.mxu0
    %5324 = vmatpush.bf16.msra.mxu0 %v3685
    %5325 = vmatpush.bf16.msra.mxu0 %v3681
    %5326 = vmatpush.bf16.msra.mxu0 %v3677
    %5327 = vmatpush.bf16.msra.mxu0 %v3673
    %5328 = vmatpush.bf16.msra.mxu0 %v3669
    %5329 = vmatpush.bf16.msra.mxu0 %v3665
    %5330 = vmatpush.bf16.msra.mxu0 %v3661
    %5331 = vmatpush.bf16.msra.mxu0 %v3657
    %5332 = vmatmul.bf16.gmra.mxu0 %v879
    %v5333 = vpop.f32.mrf.mxu0
    %v5334 = vadd.f32 %v5321, %v5333
    %v5335 = vpop.f32.mrf.mxu0
    %5336 = vdwg.mxu0
    %5337 = vmatpush.bf16.msra.mxu0 %v3717
    %5338 = vmatpush.bf16.msra.mxu0 %v3713
    %5339 = vmatpush.bf16.msra.mxu0 %v3709
    %5340 = vmatpush.bf16.msra.mxu0 %v3705
    %5341 = vmatpush.bf16.msra.mxu0 %v3701
    %5342 = vmatpush.bf16.msra.mxu0 %v3697
    %5343 = vmatpush.bf16.msra.mxu0 %v3693
    %5344 = vmatpush.bf16.msra.mxu0 %v3689
    %5345 = vmatmul.bf16.gmra.mxu0 %v880
    %v5346 = vpop.f32.mrf.mxu0
    %v5347 = vadd.f32 %v5334, %v5346
    %v5348 = vpop.f32.mrf.mxu0
    %5349 = vdwg.mxu0
    %5350 = vmatpush.bf16.msra.mxu0 %v3749
    %5351 = vmatpush.bf16.msra.mxu0 %v3745
    %5352 = vmatpush.bf16.msra.mxu0 %v3741
    %5353 = vmatpush.bf16.msra.mxu0 %v3737
    %5354 = vmatpush.bf16.msra.mxu0 %v3733
    %5355 = vmatpush.bf16.msra.mxu0 %v3729
    %5356 = vmatpush.bf16.msra.mxu0 %v3725
    %5357 = vmatpush.bf16.msra.mxu0 %v3721
    %5358 = vmatmul.bf16.gmra.mxu0 %v881
    %v5359 = vpop.f32.mrf.mxu0
    %v5360 = vadd.f32 %v5347, %v5359
    %v5361 = vpop.f32.mrf.mxu0
    %5362 = vdwg.mxu0
    %5363 = vmatpush.bf16.msra.mxu0 %v3781
    %5364 = vmatpush.bf16.msra.mxu0 %v3777
    %5365 = vmatpush.bf16.msra.mxu0 %v3773
    %5366 = vmatpush.bf16.msra.mxu0 %v3769
    %5367 = vmatpush.bf16.msra.mxu0 %v3765
    %5368 = vmatpush.bf16.msra.mxu0 %v3761
    %5369 = vmatpush.bf16.msra.mxu0 %v3757
    %5370 = vmatpush.bf16.msra.mxu0 %v3753
    %5371 = vmatmul.bf16.gmra.mxu0 %v882
    %v5372 = vpop.f32.mrf.mxu0
    %v5373 = vadd.f32 %v5360, %v5372
    %v5374 = vpop.f32.mrf.mxu0
    %5375 = vdwg.mxu0
    %5376 = vmatpush.bf16.msra.mxu0 %v3813
    %5377 = vmatpush.bf16.msra.mxu0 %v3809
    %5378 = vmatpush.bf16.msra.mxu0 %v3805
    %5379 = vmatpush.bf16.msra.mxu0 %v3801
    %5380 = vmatpush.bf16.msra.mxu0 %v3797
    %5381 = vmatpush.bf16.msra.mxu0 %v3793
    %5382 = vmatpush.bf16.msra.mxu0 %v3789
    %5383 = vmatpush.bf16.msra.mxu0 %v3785
    %5384 = vmatmul.bf16.gmra.mxu0 %v885
    %v5385 = vpop.f32.mrf.mxu0
    %v5386 = vadd.f32 %v5373, %v5385
    %v5387 = vpop.f32.mrf.mxu0
    %5388 = vdwg.mxu0
    %5389 = vmatpush.bf16.msra.mxu0 %v3845
    %5390 = vmatpush.bf16.msra.mxu0 %v3841
    %5391 = vmatpush.bf16.msra.mxu0 %v3837
    %5392 = vmatpush.bf16.msra.mxu0 %v3833
    %5393 = vmatpush.bf16.msra.mxu0 %v3829
    %5394 = vmatpush.bf16.msra.mxu0 %v3825
    %5395 = vmatpush.bf16.msra.mxu0 %v3821
    %5396 = vmatpush.bf16.msra.mxu0 %v3817
    %5397 = vmatmul.bf16.gmra.mxu0 %v886
    %v5398 = vpop.f32.mrf.mxu0
    %v5399 = vadd.f32 %v5386, %v5398
    %v5400 = vpop.f32.mrf.mxu0
    %5401 = vdwg.mxu0
    %5402 = vmatpush.bf16.msra.mxu0 %v3877
    %5403 = vmatpush.bf16.msra.mxu0 %v3873
    %5404 = vmatpush.bf16.msra.mxu0 %v3869
    %5405 = vmatpush.bf16.msra.mxu0 %v3865
    %5406 = vmatpush.bf16.msra.mxu0 %v3861
    %5407 = vmatpush.bf16.msra.mxu0 %v3857
    %5408 = vmatpush.bf16.msra.mxu0 %v3853
    %5409 = vmatpush.bf16.msra.mxu0 %v3849
    %5410 = vmatmul.bf16.gmra.mxu0 %v887
    %v5411 = vpop.f32.mrf.mxu0
    %v5412 = vadd.f32 %v5399, %v5411
    %v5413 = vpop.f32.mrf.mxu0
    %5414 = vdwg.mxu0
    %5415 = vmatpush.bf16.msra.mxu0 %v3909
    %5416 = vmatpush.bf16.msra.mxu0 %v3905
    %5417 = vmatpush.bf16.msra.mxu0 %v3901
    %5418 = vmatpush.bf16.msra.mxu0 %v3897
    %5419 = vmatpush.bf16.msra.mxu0 %v3893
    %5420 = vmatpush.bf16.msra.mxu0 %v3889
    %5421 = vmatpush.bf16.msra.mxu0 %v3885
    %5422 = vmatpush.bf16.msra.mxu0 %v3881
    %5423 = vmatmul.bf16.gmra.mxu0 %v888
    %v5424 = vpop.f32.mrf.mxu0
    %v5425 = vadd.f32 %v5412, %v5424
    %v5426 = vpop.f32.mrf.mxu0
    %5427 = vdwg.mxu0
    %5428 = vmatpush.bf16.msra.mxu0 %v3941
    %5429 = vmatpush.bf16.msra.mxu0 %v3937
    %5430 = vmatpush.bf16.msra.mxu0 %v3933
    %5431 = vmatpush.bf16.msra.mxu0 %v3929
    %5432 = vmatpush.bf16.msra.mxu0 %v3925
    %5433 = vmatpush.bf16.msra.mxu0 %v3921
    %5434 = vmatpush.bf16.msra.mxu0 %v3917
    %5435 = vmatpush.bf16.msra.mxu0 %v3913
    %5436 = vmatmul.bf16.gmra.mxu0 %v889
    %v5437 = vpop.f32.mrf.mxu0
    %v5438 = vadd.f32 %v5425, %v5437
    %v5439 = vpop.f32.mrf.mxu0
    %5440 = vdwg.mxu0
    %5441 = vmatpush.bf16.msra.mxu0 %v3973
    %5442 = vmatpush.bf16.msra.mxu0 %v3969
    %5443 = vmatpush.bf16.msra.mxu0 %v3965
    %5444 = vmatpush.bf16.msra.mxu0 %v3961
    %5445 = vmatpush.bf16.msra.mxu0 %v3957
    %5446 = vmatpush.bf16.msra.mxu0 %v3953
    %5447 = vmatpush.bf16.msra.mxu0 %v3949
    %5448 = vmatpush.bf16.msra.mxu0 %v3945
    %5449 = vmatmul.bf16.gmra.mxu0 %v890
    %v5450 = vpop.f32.mrf.mxu0
    %v5451 = vadd.f32 %v5438, %v5450
    %v5452 = vpop.f32.mrf.mxu0
    %5453 = vdwg.mxu0
    %5454 = vmatpush.bf16.msra.mxu0 %v4005
    %5455 = vmatpush.bf16.msra.mxu0 %v4001
    %5456 = vmatpush.bf16.msra.mxu0 %v3997
    %5457 = vmatpush.bf16.msra.mxu0 %v3993
    %5458 = vmatpush.bf16.msra.mxu0 %v3989
    %5459 = vmatpush.bf16.msra.mxu0 %v3985
    %5460 = vmatpush.bf16.msra.mxu0 %v3981
    %5461 = vmatpush.bf16.msra.mxu0 %v3977
    %5462 = vmatmul.bf16.gmra.mxu0 %v891
    %v5463 = vpop.f32.mrf.mxu0
    %v5464 = vadd.f32 %v5451, %v5463
    %v5465 = vpop.f32.mrf.mxu0
    %5466 = vdwg.mxu0
    %5467 = vmatpush.bf16.msra.mxu0 %v4037
    %5468 = vmatpush.bf16.msra.mxu0 %v4033
    %5469 = vmatpush.bf16.msra.mxu0 %v4029
    %5470 = vmatpush.bf16.msra.mxu0 %v4025
    %5471 = vmatpush.bf16.msra.mxu0 %v4021
    %5472 = vmatpush.bf16.msra.mxu0 %v4017
    %5473 = vmatpush.bf16.msra.mxu0 %v4013
    %5474 = vmatpush.bf16.msra.mxu0 %v4009
    %5475 = vmatmul.bf16.gmra.mxu0 %v892
    %v5476 = vpop.f32.mrf.mxu0
    %v5477 = vadd.f32 %v5464, %v5476
    %v5478 = vpop.f32.mrf.mxu0
    %5479 = vdwg.mxu0
    %5480 = vmatpush.bf16.msra.mxu0 0
    %5481 = vmatpush.bf16.msra.mxu0 0
    %5482 = vmatpush.bf16.msra.mxu0 0
    %5483 = vmatpush.bf16.msra.mxu0 0
    %5484 = vmatpush.bf16.msra.mxu0 %v4053
    %5485 = vmatpush.bf16.msra.mxu0 %v4049
    %5486 = vmatpush.bf16.msra.mxu0 %v4045
    %5487 = vmatpush.bf16.msra.mxu0 %v4041
    %5488 = vmatmul.bf16.gmra.mxu0 %v4841
    %v5489 = vpop.f32.mrf.mxu0
    %v5490 = vadd.f32 %v5477, %v5489
    %v5491 = vpop.f32.mrf.mxu0
    %5492 = vdwg.mxu0
    %5493 = vmatpush.bf16.msra.mxu0 %v3302
    %5494 = vmatpush.bf16.msra.mxu0 %v3298
    %5495 = vmatpush.bf16.msra.mxu0 %v3294
    %5496 = vmatpush.bf16.msra.mxu0 %v3290
    %5497 = vmatpush.bf16.msra.mxu0 %v3286
    %5498 = vmatpush.bf16.msra.mxu0 %v3282
    %5499 = vmatpush.bf16.msra.mxu0 %v3278
    %5500 = vmatpush.bf16.msra.mxu0 %v3274
    %5501 = vmatmul.bf16.gmra.mxu0 %v865
    %v5502 = vpop.f32.mrf.mxu0
    %v5503 = vadd.f32 %v857, %v5502
    %v5504 = vpop.f32.mrf.mxu0
    %5505 = vdwg.mxu0
    %5506 = vmatpush.bf16.msra.mxu0 %v3334
    %5507 = vmatpush.bf16.msra.mxu0 %v3330
    %5508 = vmatpush.bf16.msra.mxu0 %v3326
    %5509 = vmatpush.bf16.msra.mxu0 %v3322
    %5510 = vmatpush.bf16.msra.mxu0 %v3318
    %5511 = vmatpush.bf16.msra.mxu0 %v3314
    %5512 = vmatpush.bf16.msra.mxu0 %v3310
    %5513 = vmatpush.bf16.msra.mxu0 %v3306
    %5514 = vmatmul.bf16.gmra.mxu0 %v866
    %v5515 = vpop.f32.mrf.mxu0
    %v5516 = vadd.f32 %v5503, %v5515
    %v5517 = vpop.f32.mrf.mxu0
    %5518 = vdwg.mxu0
    %5519 = vmatpush.bf16.msra.mxu0 %v3366
    %5520 = vmatpush.bf16.msra.mxu0 %v3362
    %5521 = vmatpush.bf16.msra.mxu0 %v3358
    %5522 = vmatpush.bf16.msra.mxu0 %v3354
    %5523 = vmatpush.bf16.msra.mxu0 %v3350
    %5524 = vmatpush.bf16.msra.mxu0 %v3346
    %5525 = vmatpush.bf16.msra.mxu0 %v3342
    %5526 = vmatpush.bf16.msra.mxu0 %v3338
    %5527 = vmatmul.bf16.gmra.mxu0 %v867
    %v5528 = vpop.f32.mrf.mxu0
    %v5529 = vadd.f32 %v5516, %v5528
    %v5530 = vpop.f32.mrf.mxu0
    %5531 = vdwg.mxu0
    %5532 = vmatpush.bf16.msra.mxu0 %v3398
    %5533 = vmatpush.bf16.msra.mxu0 %v3394
    %5534 = vmatpush.bf16.msra.mxu0 %v3390
    %5535 = vmatpush.bf16.msra.mxu0 %v3386
    %5536 = vmatpush.bf16.msra.mxu0 %v3382
    %5537 = vmatpush.bf16.msra.mxu0 %v3378
    %5538 = vmatpush.bf16.msra.mxu0 %v3374
    %5539 = vmatpush.bf16.msra.mxu0 %v3370
    %5540 = vmatmul.bf16.gmra.mxu0 %v868
    %v5541 = vpop.f32.mrf.mxu0
    %v5542 = vadd.f32 %v5529, %v5541
    %v5543 = vpop.f32.mrf.mxu0
    %5544 = vdwg.mxu0
    %5545 = vmatpush.bf16.msra.mxu0 %v3430
    %5546 = vmatpush.bf16.msra.mxu0 %v3426
    %5547 = vmatpush.bf16.msra.mxu0 %v3422
    %5548 = vmatpush.bf16.msra.mxu0 %v3418
    %5549 = vmatpush.bf16.msra.mxu0 %v3414
    %5550 = vmatpush.bf16.msra.mxu0 %v3410
    %5551 = vmatpush.bf16.msra.mxu0 %v3406
    %5552 = vmatpush.bf16.msra.mxu0 %v3402
    %5553 = vmatmul.bf16.gmra.mxu0 %v869
    %v5554 = vpop.f32.mrf.mxu0
    %v5555 = vadd.f32 %v5542, %v5554
    %v5556 = vpop.f32.mrf.mxu0
    %5557 = vdwg.mxu0
    %5558 = vmatpush.bf16.msra.mxu0 %v3462
    %5559 = vmatpush.bf16.msra.mxu0 %v3458
    %5560 = vmatpush.bf16.msra.mxu0 %v3454
    %5561 = vmatpush.bf16.msra.mxu0 %v3450
    %5562 = vmatpush.bf16.msra.mxu0 %v3446
    %5563 = vmatpush.bf16.msra.mxu0 %v3442
    %5564 = vmatpush.bf16.msra.mxu0 %v3438
    %5565 = vmatpush.bf16.msra.mxu0 %v3434
    %5566 = vmatmul.bf16.gmra.mxu0 %v870
    %v5567 = vpop.f32.mrf.mxu0
    %v5568 = vadd.f32 %v5555, %v5567
    %v5569 = vpop.f32.mrf.mxu0
    %5570 = vdwg.mxu0
    %5571 = vmatpush.bf16.msra.mxu0 %v3494
    %5572 = vmatpush.bf16.msra.mxu0 %v3490
    %5573 = vmatpush.bf16.msra.mxu0 %v3486
    %5574 = vmatpush.bf16.msra.mxu0 %v3482
    %5575 = vmatpush.bf16.msra.mxu0 %v3478
    %5576 = vmatpush.bf16.msra.mxu0 %v3474
    %5577 = vmatpush.bf16.msra.mxu0 %v3470
    %5578 = vmatpush.bf16.msra.mxu0 %v3466
    %5579 = vmatmul.bf16.gmra.mxu0 %v871
    %v5580 = vpop.f32.mrf.mxu0
    %v5581 = vadd.f32 %v5568, %v5580
    %v5582 = vpop.f32.mrf.mxu0
    %5583 = vdwg.mxu0
    %5584 = vmatpush.bf16.msra.mxu0 %v3526
    %5585 = vmatpush.bf16.msra.mxu0 %v3522
    %5586 = vmatpush.bf16.msra.mxu0 %v3518
    %5587 = vmatpush.bf16.msra.mxu0 %v3514
    %5588 = vmatpush.bf16.msra.mxu0 %v3510
    %5589 = vmatpush.bf16.msra.mxu0 %v3506
    %5590 = vmatpush.bf16.msra.mxu0 %v3502
    %5591 = vmatpush.bf16.msra.mxu0 %v3498
    %5592 = vmatmul.bf16.gmra.mxu0 %v872
    %v5593 = vpop.f32.mrf.mxu0
    %v5594 = vadd.f32 %v5581, %v5593
    %v5595 = vpop.f32.mrf.mxu0
    %5596 = vdwg.mxu0
    %5597 = vmatpush.bf16.msra.mxu0 %v3558
    %5598 = vmatpush.bf16.msra.mxu0 %v3554
    %5599 = vmatpush.bf16.msra.mxu0 %v3550
    %5600 = vmatpush.bf16.msra.mxu0 %v3546
    %5601 = vmatpush.bf16.msra.mxu0 %v3542
    %5602 = vmatpush.bf16.msra.mxu0 %v3538
    %5603 = vmatpush.bf16.msra.mxu0 %v3534
    %5604 = vmatpush.bf16.msra.mxu0 %v3530
    %5605 = vmatmul.bf16.gmra.mxu0 %v875
    %v5606 = vpop.f32.mrf.mxu0
    %v5607 = vadd.f32 %v5594, %v5606
    %v5608 = vpop.f32.mrf.mxu0
    %5609 = vdwg.mxu0
    %5610 = vmatpush.bf16.msra.mxu0 %v3590
    %5611 = vmatpush.bf16.msra.mxu0 %v3586
    %5612 = vmatpush.bf16.msra.mxu0 %v3582
    %5613 = vmatpush.bf16.msra.mxu0 %v3578
    %5614 = vmatpush.bf16.msra.mxu0 %v3574
    %5615 = vmatpush.bf16.msra.mxu0 %v3570
    %5616 = vmatpush.bf16.msra.mxu0 %v3566
    %5617 = vmatpush.bf16.msra.mxu0 %v3562
    %5618 = vmatmul.bf16.gmra.mxu0 %v876
    %v5619 = vpop.f32.mrf.mxu0
    %v5620 = vadd.f32 %v5607, %v5619
    %v5621 = vpop.f32.mrf.mxu0
    %5622 = vdwg.mxu0
    %5623 = vmatpush.bf16.msra.mxu0 %v3622
    %5624 = vmatpush.bf16.msra.mxu0 %v3618
    %5625 = vmatpush.bf16.msra.mxu0 %v3614
    %5626 = vmatpush.bf16.msra.mxu0 %v3610
    %5627 = vmatpush.bf16.msra.mxu0 %v3606
    %5628 = vmatpush.bf16.msra.mxu0 %v3602
    %5629 = vmatpush.bf16.msra.mxu0 %v3598
    %5630 = vmatpush.bf16.msra.mxu0 %v3594
    %5631 = vmatmul.bf16.gmra.mxu0 %v877
    %v5632 = vpop.f32.mrf.mxu0
    %v5633 = vadd.f32 %v5620, %v5632
    %v5634 = vpop.f32.mrf.mxu0
    %5635 = vdwg.mxu0
    %5636 = vmatpush.bf16.msra.mxu0 %v3654
    %5637 = vmatpush.bf16.msra.mxu0 %v3650
    %5638 = vmatpush.bf16.msra.mxu0 %v3646
    %5639 = vmatpush.bf16.msra.mxu0 %v3642
    %5640 = vmatpush.bf16.msra.mxu0 %v3638
    %5641 = vmatpush.bf16.msra.mxu0 %v3634
    %5642 = vmatpush.bf16.msra.mxu0 %v3630
    %5643 = vmatpush.bf16.msra.mxu0 %v3626
    %5644 = vmatmul.bf16.gmra.mxu0 %v878
    %v5645 = vpop.f32.mrf.mxu0
    %v5646 = vadd.f32 %v5633, %v5645
    %v5647 = vpop.f32.mrf.mxu0
    %5648 = vdwg.mxu0
    %5649 = vmatpush.bf16.msra.mxu0 %v3686
    %5650 = vmatpush.bf16.msra.mxu0 %v3682
    %5651 = vmatpush.bf16.msra.mxu0 %v3678
    %5652 = vmatpush.bf16.msra.mxu0 %v3674
    %5653 = vmatpush.bf16.msra.mxu0 %v3670
    %5654 = vmatpush.bf16.msra.mxu0 %v3666
    %5655 = vmatpush.bf16.msra.mxu0 %v3662
    %5656 = vmatpush.bf16.msra.mxu0 %v3658
    %5657 = vmatmul.bf16.gmra.mxu0 %v879
    %v5658 = vpop.f32.mrf.mxu0
    %v5659 = vadd.f32 %v5646, %v5658
    %v5660 = vpop.f32.mrf.mxu0
    %5661 = vdwg.mxu0
    %5662 = vmatpush.bf16.msra.mxu0 %v3718
    %5663 = vmatpush.bf16.msra.mxu0 %v3714
    %5664 = vmatpush.bf16.msra.mxu0 %v3710
    %5665 = vmatpush.bf16.msra.mxu0 %v3706
    %5666 = vmatpush.bf16.msra.mxu0 %v3702
    %5667 = vmatpush.bf16.msra.mxu0 %v3698
    %5668 = vmatpush.bf16.msra.mxu0 %v3694
    %5669 = vmatpush.bf16.msra.mxu0 %v3690
    %5670 = vmatmul.bf16.gmra.mxu0 %v880
    %v5671 = vpop.f32.mrf.mxu0
    %v5672 = vadd.f32 %v5659, %v5671
    %v5673 = vpop.f32.mrf.mxu0
    %5674 = vdwg.mxu0
    %5675 = vmatpush.bf16.msra.mxu0 %v3750
    %5676 = vmatpush.bf16.msra.mxu0 %v3746
    %5677 = vmatpush.bf16.msra.mxu0 %v3742
    %5678 = vmatpush.bf16.msra.mxu0 %v3738
    %5679 = vmatpush.bf16.msra.mxu0 %v3734
    %5680 = vmatpush.bf16.msra.mxu0 %v3730
    %5681 = vmatpush.bf16.msra.mxu0 %v3726
    %5682 = vmatpush.bf16.msra.mxu0 %v3722
    %5683 = vmatmul.bf16.gmra.mxu0 %v881
    %v5684 = vpop.f32.mrf.mxu0
    %v5685 = vadd.f32 %v5672, %v5684
    %v5686 = vpop.f32.mrf.mxu0
    %5687 = vdwg.mxu0
    %5688 = vmatpush.bf16.msra.mxu0 %v3782
    %5689 = vmatpush.bf16.msra.mxu0 %v3778
    %5690 = vmatpush.bf16.msra.mxu0 %v3774
    %5691 = vmatpush.bf16.msra.mxu0 %v3770
    %5692 = vmatpush.bf16.msra.mxu0 %v3766
    %5693 = vmatpush.bf16.msra.mxu0 %v3762
    %5694 = vmatpush.bf16.msra.mxu0 %v3758
    %5695 = vmatpush.bf16.msra.mxu0 %v3754
    %5696 = vmatmul.bf16.gmra.mxu0 %v882
    %v5697 = vpop.f32.mrf.mxu0
    %v5698 = vadd.f32 %v5685, %v5697
    %v5699 = vpop.f32.mrf.mxu0
    %5700 = vdwg.mxu0
    %5701 = vmatpush.bf16.msra.mxu0 %v3814
    %5702 = vmatpush.bf16.msra.mxu0 %v3810
    %5703 = vmatpush.bf16.msra.mxu0 %v3806
    %5704 = vmatpush.bf16.msra.mxu0 %v3802
    %5705 = vmatpush.bf16.msra.mxu0 %v3798
    %5706 = vmatpush.bf16.msra.mxu0 %v3794
    %5707 = vmatpush.bf16.msra.mxu0 %v3790
    %5708 = vmatpush.bf16.msra.mxu0 %v3786
    %5709 = vmatmul.bf16.gmra.mxu0 %v885
    %v5710 = vpop.f32.mrf.mxu0
    %v5711 = vadd.f32 %v5698, %v5710
    %v5712 = vpop.f32.mrf.mxu0
    %5713 = vdwg.mxu0
    %5714 = vmatpush.bf16.msra.mxu0 %v3846
    %5715 = vmatpush.bf16.msra.mxu0 %v3842
    %5716 = vmatpush.bf16.msra.mxu0 %v3838
    %5717 = vmatpush.bf16.msra.mxu0 %v3834
    %5718 = vmatpush.bf16.msra.mxu0 %v3830
    %5719 = vmatpush.bf16.msra.mxu0 %v3826
    %5720 = vmatpush.bf16.msra.mxu0 %v3822
    %5721 = vmatpush.bf16.msra.mxu0 %v3818
    %5722 = vmatmul.bf16.gmra.mxu0 %v886
    %v5723 = vpop.f32.mrf.mxu0
    %v5724 = vadd.f32 %v5711, %v5723
    %v5725 = vpop.f32.mrf.mxu0
    %5726 = vdwg.mxu0
    %5727 = vmatpush.bf16.msra.mxu0 %v3878
    %5728 = vmatpush.bf16.msra.mxu0 %v3874
    %5729 = vmatpush.bf16.msra.mxu0 %v3870
    %5730 = vmatpush.bf16.msra.mxu0 %v3866
    %5731 = vmatpush.bf16.msra.mxu0 %v3862
    %5732 = vmatpush.bf16.msra.mxu0 %v3858
    %5733 = vmatpush.bf16.msra.mxu0 %v3854
    %5734 = vmatpush.bf16.msra.mxu0 %v3850
    %5735 = vmatmul.bf16.gmra.mxu0 %v887
    %v5736 = vpop.f32.mrf.mxu0
    %v5737 = vadd.f32 %v5724, %v5736
    %v5738 = vpop.f32.mrf.mxu0
    %5739 = vdwg.mxu0
    %5740 = vmatpush.bf16.msra.mxu0 %v3910
    %5741 = vmatpush.bf16.msra.mxu0 %v3906
    %5742 = vmatpush.bf16.msra.mxu0 %v3902
    %5743 = vmatpush.bf16.msra.mxu0 %v3898
    %5744 = vmatpush.bf16.msra.mxu0 %v3894
    %5745 = vmatpush.bf16.msra.mxu0 %v3890
    %5746 = vmatpush.bf16.msra.mxu0 %v3886
    %5747 = vmatpush.bf16.msra.mxu0 %v3882
    %5748 = vmatmul.bf16.gmra.mxu0 %v888
    %v5749 = vpop.f32.mrf.mxu0
    %v5750 = vadd.f32 %v5737, %v5749
    %v5751 = vpop.f32.mrf.mxu0
    %5752 = vdwg.mxu0
    %5753 = vmatpush.bf16.msra.mxu0 %v3942
    %5754 = vmatpush.bf16.msra.mxu0 %v3938
    %5755 = vmatpush.bf16.msra.mxu0 %v3934
    %5756 = vmatpush.bf16.msra.mxu0 %v3930
    %5757 = vmatpush.bf16.msra.mxu0 %v3926
    %5758 = vmatpush.bf16.msra.mxu0 %v3922
    %5759 = vmatpush.bf16.msra.mxu0 %v3918
    %5760 = vmatpush.bf16.msra.mxu0 %v3914
    %5761 = vmatmul.bf16.gmra.mxu0 %v889
    %v5762 = vpop.f32.mrf.mxu0
    %v5763 = vadd.f32 %v5750, %v5762
    %v5764 = vpop.f32.mrf.mxu0
    %5765 = vdwg.mxu0
    %5766 = vmatpush.bf16.msra.mxu0 %v3974
    %5767 = vmatpush.bf16.msra.mxu0 %v3970
    %5768 = vmatpush.bf16.msra.mxu0 %v3966
    %5769 = vmatpush.bf16.msra.mxu0 %v3962
    %5770 = vmatpush.bf16.msra.mxu0 %v3958
    %5771 = vmatpush.bf16.msra.mxu0 %v3954
    %5772 = vmatpush.bf16.msra.mxu0 %v3950
    %5773 = vmatpush.bf16.msra.mxu0 %v3946
    %5774 = vmatmul.bf16.gmra.mxu0 %v890
    %v5775 = vpop.f32.mrf.mxu0
    %v5776 = vadd.f32 %v5763, %v5775
    %v5777 = vpop.f32.mrf.mxu0
    %5778 = vdwg.mxu0
    %5779 = vmatpush.bf16.msra.mxu0 %v4006
    %5780 = vmatpush.bf16.msra.mxu0 %v4002
    %5781 = vmatpush.bf16.msra.mxu0 %v3998
    %5782 = vmatpush.bf16.msra.mxu0 %v3994
    %5783 = vmatpush.bf16.msra.mxu0 %v3990
    %5784 = vmatpush.bf16.msra.mxu0 %v3986
    %5785 = vmatpush.bf16.msra.mxu0 %v3982
    %5786 = vmatpush.bf16.msra.mxu0 %v3978
    %5787 = vmatmul.bf16.gmra.mxu0 %v891
    %v5788 = vpop.f32.mrf.mxu0
    %v5789 = vadd.f32 %v5776, %v5788
    %v5790 = vpop.f32.mrf.mxu0
    %5791 = vdwg.mxu0
    %5792 = vmatpush.bf16.msra.mxu0 %v4038
    %5793 = vmatpush.bf16.msra.mxu0 %v4034
    %5794 = vmatpush.bf16.msra.mxu0 %v4030
    %5795 = vmatpush.bf16.msra.mxu0 %v4026
    %5796 = vmatpush.bf16.msra.mxu0 %v4022
    %5797 = vmatpush.bf16.msra.mxu0 %v4018
    %5798 = vmatpush.bf16.msra.mxu0 %v4014
    %5799 = vmatpush.bf16.msra.mxu0 %v4010
    %5800 = vmatmul.bf16.gmra.mxu0 %v892
    %v5801 = vpop.f32.mrf.mxu0
    %v5802 = vadd.f32 %v5789, %v5801
    %v5803 = vpop.f32.mrf.mxu0
    %5804 = vdwg.mxu0
    %5805 = vmatpush.bf16.msra.mxu0 0
    %5806 = vmatpush.bf16.msra.mxu0 0
    %5807 = vmatpush.bf16.msra.mxu0 0
    %5808 = vmatpush.bf16.msra.mxu0 0
    %5809 = vmatpush.bf16.msra.mxu0 %v4054
    %5810 = vmatpush.bf16.msra.mxu0 %v4050
    %5811 = vmatpush.bf16.msra.mxu0 %v4046
    %5812 = vmatpush.bf16.msra.mxu0 %v4042
    %5813 = vmatmul.bf16.gmra.mxu0 %v4841
    %v5814 = vpop.f32.mrf.mxu0
    %v5815 = vadd.f32 %v5802, %v5814
    %v5816 = vpop.f32.mrf.mxu0
    %5817 = vdwg.mxu0
    %5818 = vmatpush.bf16.msra.mxu0 %v3303
    %5819 = vmatpush.bf16.msra.mxu0 %v3299
    %5820 = vmatpush.bf16.msra.mxu0 %v3295
    %5821 = vmatpush.bf16.msra.mxu0 %v3291
    %5822 = vmatpush.bf16.msra.mxu0 %v3287
    %5823 = vmatpush.bf16.msra.mxu0 %v3283
    %5824 = vmatpush.bf16.msra.mxu0 %v3279
    %5825 = vmatpush.bf16.msra.mxu0 %v3275
    %5826 = vmatmul.bf16.gmra.mxu0 %v865
    %v5827 = vpop.f32.mrf.mxu0
    %v5828 = vadd.f32 %v858, %v5827
    %v5829 = vpop.f32.mrf.mxu0
    %5830 = vdwg.mxu0
    %5831 = vmatpush.bf16.msra.mxu0 %v3335
    %5832 = vmatpush.bf16.msra.mxu0 %v3331
    %5833 = vmatpush.bf16.msra.mxu0 %v3327
    %5834 = vmatpush.bf16.msra.mxu0 %v3323
    %5835 = vmatpush.bf16.msra.mxu0 %v3319
    %5836 = vmatpush.bf16.msra.mxu0 %v3315
    %5837 = vmatpush.bf16.msra.mxu0 %v3311
    %5838 = vmatpush.bf16.msra.mxu0 %v3307
    %5839 = vmatmul.bf16.gmra.mxu0 %v866
    %v5840 = vpop.f32.mrf.mxu0
    %v5841 = vadd.f32 %v5828, %v5840
    %v5842 = vpop.f32.mrf.mxu0
    %5843 = vdwg.mxu0
    %5844 = vmatpush.bf16.msra.mxu0 %v3367
    %5845 = vmatpush.bf16.msra.mxu0 %v3363
    %5846 = vmatpush.bf16.msra.mxu0 %v3359
    %5847 = vmatpush.bf16.msra.mxu0 %v3355
    %5848 = vmatpush.bf16.msra.mxu0 %v3351
    %5849 = vmatpush.bf16.msra.mxu0 %v3347
    %5850 = vmatpush.bf16.msra.mxu0 %v3343
    %5851 = vmatpush.bf16.msra.mxu0 %v3339
    %5852 = vmatmul.bf16.gmra.mxu0 %v867
    %v5853 = vpop.f32.mrf.mxu0
    %v5854 = vadd.f32 %v5841, %v5853
    %v5855 = vpop.f32.mrf.mxu0
    %5856 = vdwg.mxu0
    %5857 = vmatpush.bf16.msra.mxu0 %v3399
    %5858 = vmatpush.bf16.msra.mxu0 %v3395
    %5859 = vmatpush.bf16.msra.mxu0 %v3391
    %5860 = vmatpush.bf16.msra.mxu0 %v3387
    %5861 = vmatpush.bf16.msra.mxu0 %v3383
    %5862 = vmatpush.bf16.msra.mxu0 %v3379
    %5863 = vmatpush.bf16.msra.mxu0 %v3375
    %5864 = vmatpush.bf16.msra.mxu0 %v3371
    %5865 = vmatmul.bf16.gmra.mxu0 %v868
    %v5866 = vpop.f32.mrf.mxu0
    %v5867 = vadd.f32 %v5854, %v5866
    %v5868 = vpop.f32.mrf.mxu0
    %5869 = vdwg.mxu0
    %5870 = vmatpush.bf16.msra.mxu0 %v3431
    %5871 = vmatpush.bf16.msra.mxu0 %v3427
    %5872 = vmatpush.bf16.msra.mxu0 %v3423
    %5873 = vmatpush.bf16.msra.mxu0 %v3419
    %5874 = vmatpush.bf16.msra.mxu0 %v3415
    %5875 = vmatpush.bf16.msra.mxu0 %v3411
    %5876 = vmatpush.bf16.msra.mxu0 %v3407
    %5877 = vmatpush.bf16.msra.mxu0 %v3403
    %5878 = vmatmul.bf16.gmra.mxu0 %v869
    %v5879 = vpop.f32.mrf.mxu0
    %v5880 = vadd.f32 %v5867, %v5879
    %v5881 = vpop.f32.mrf.mxu0
    %5882 = vdwg.mxu0
    %5883 = vmatpush.bf16.msra.mxu0 %v3463
    %5884 = vmatpush.bf16.msra.mxu0 %v3459
    %5885 = vmatpush.bf16.msra.mxu0 %v3455
    %5886 = vmatpush.bf16.msra.mxu0 %v3451
    %5887 = vmatpush.bf16.msra.mxu0 %v3447
    %5888 = vmatpush.bf16.msra.mxu0 %v3443
    %5889 = vmatpush.bf16.msra.mxu0 %v3439
    %5890 = vmatpush.bf16.msra.mxu0 %v3435
    %5891 = vmatmul.bf16.gmra.mxu0 %v870
    %v5892 = vpop.f32.mrf.mxu0
    %v5893 = vadd.f32 %v5880, %v5892
    %v5894 = vpop.f32.mrf.mxu0
    %5895 = vdwg.mxu0
    %5896 = vmatpush.bf16.msra.mxu0 %v3495
    %5897 = vmatpush.bf16.msra.mxu0 %v3491
    %5898 = vmatpush.bf16.msra.mxu0 %v3487
    %5899 = vmatpush.bf16.msra.mxu0 %v3483
    %5900 = vmatpush.bf16.msra.mxu0 %v3479
    %5901 = vmatpush.bf16.msra.mxu0 %v3475
    %5902 = vmatpush.bf16.msra.mxu0 %v3471
    %5903 = vmatpush.bf16.msra.mxu0 %v3467
    %5904 = vmatmul.bf16.gmra.mxu0 %v871
    %v5905 = vpop.f32.mrf.mxu0
    %v5906 = vadd.f32 %v5893, %v5905
    %v5907 = vpop.f32.mrf.mxu0
    %5908 = vdwg.mxu0
    %5909 = vmatpush.bf16.msra.mxu0 %v3527
    %5910 = vmatpush.bf16.msra.mxu0 %v3523
    %5911 = vmatpush.bf16.msra.mxu0 %v3519
    %5912 = vmatpush.bf16.msra.mxu0 %v3515
    %5913 = vmatpush.bf16.msra.mxu0 %v3511
    %5914 = vmatpush.bf16.msra.mxu0 %v3507
    %5915 = vmatpush.bf16.msra.mxu0 %v3503
    %5916 = vmatpush.bf16.msra.mxu0 %v3499
    %5917 = vmatmul.bf16.gmra.mxu0 %v872
    %v5918 = vpop.f32.mrf.mxu0
    %v5919 = vadd.f32 %v5906, %v5918
    %v5920 = vpop.f32.mrf.mxu0
    %5921 = vdwg.mxu0
    %5922 = vmatpush.bf16.msra.mxu0 %v3559
    %5923 = vmatpush.bf16.msra.mxu0 %v3555
    %5924 = vmatpush.bf16.msra.mxu0 %v3551
    %5925 = vmatpush.bf16.msra.mxu0 %v3547
    %5926 = vmatpush.bf16.msra.mxu0 %v3543
    %5927 = vmatpush.bf16.msra.mxu0 %v3539
    %5928 = vmatpush.bf16.msra.mxu0 %v3535
    %5929 = vmatpush.bf16.msra.mxu0 %v3531
    %5930 = vmatmul.bf16.gmra.mxu0 %v875
    %v5931 = vpop.f32.mrf.mxu0
    %v5932 = vadd.f32 %v5919, %v5931
    %v5933 = vpop.f32.mrf.mxu0
    %5934 = vdwg.mxu0
    %5935 = vmatpush.bf16.msra.mxu0 %v3591
    %5936 = vmatpush.bf16.msra.mxu0 %v3587
    %5937 = vmatpush.bf16.msra.mxu0 %v3583
    %5938 = vmatpush.bf16.msra.mxu0 %v3579
    %5939 = vmatpush.bf16.msra.mxu0 %v3575
    %5940 = vmatpush.bf16.msra.mxu0 %v3571
    %5941 = vmatpush.bf16.msra.mxu0 %v3567
    %5942 = vmatpush.bf16.msra.mxu0 %v3563
    %5943 = vmatmul.bf16.gmra.mxu0 %v876
    %v5944 = vpop.f32.mrf.mxu0
    %v5945 = vadd.f32 %v5932, %v5944
    %v5946 = vpop.f32.mrf.mxu0
    %5947 = vdwg.mxu0
    %5948 = vmatpush.bf16.msra.mxu0 %v3623
    %5949 = vmatpush.bf16.msra.mxu0 %v3619
    %5950 = vmatpush.bf16.msra.mxu0 %v3615
    %5951 = vmatpush.bf16.msra.mxu0 %v3611
    %5952 = vmatpush.bf16.msra.mxu0 %v3607
    %5953 = vmatpush.bf16.msra.mxu0 %v3603
    %5954 = vmatpush.bf16.msra.mxu0 %v3599
    %5955 = vmatpush.bf16.msra.mxu0 %v3595
    %5956 = vmatmul.bf16.gmra.mxu0 %v877
    %v5957 = vpop.f32.mrf.mxu0
    %v5958 = vadd.f32 %v5945, %v5957
    %v5959 = vpop.f32.mrf.mxu0
    %5960 = vdwg.mxu0
    %5961 = vmatpush.bf16.msra.mxu0 %v3655
    %5962 = vmatpush.bf16.msra.mxu0 %v3651
    %5963 = vmatpush.bf16.msra.mxu0 %v3647
    %5964 = vmatpush.bf16.msra.mxu0 %v3643
    %5965 = vmatpush.bf16.msra.mxu0 %v3639
    %5966 = vmatpush.bf16.msra.mxu0 %v3635
    %5967 = vmatpush.bf16.msra.mxu0 %v3631
    %5968 = vmatpush.bf16.msra.mxu0 %v3627
    %5969 = vmatmul.bf16.gmra.mxu0 %v878
    %v5970 = vpop.f32.mrf.mxu0
    %v5971 = vadd.f32 %v5958, %v5970
    %v5972 = vpop.f32.mrf.mxu0
    %5973 = vdwg.mxu0
    %5974 = vmatpush.bf16.msra.mxu0 %v3687
    %5975 = vmatpush.bf16.msra.mxu0 %v3683
    %5976 = vmatpush.bf16.msra.mxu0 %v3679
    %5977 = vmatpush.bf16.msra.mxu0 %v3675
    %5978 = vmatpush.bf16.msra.mxu0 %v3671
    %5979 = vmatpush.bf16.msra.mxu0 %v3667
    %5980 = vmatpush.bf16.msra.mxu0 %v3663
    %5981 = vmatpush.bf16.msra.mxu0 %v3659
    %5982 = vmatmul.bf16.gmra.mxu0 %v879
    %v5983 = vpop.f32.mrf.mxu0
    %v5984 = vadd.f32 %v5971, %v5983
    %v5985 = vpop.f32.mrf.mxu0
    %5986 = vdwg.mxu0
    %5987 = vmatpush.bf16.msra.mxu0 %v3719
    %5988 = vmatpush.bf16.msra.mxu0 %v3715
    %5989 = vmatpush.bf16.msra.mxu0 %v3711
    %5990 = vmatpush.bf16.msra.mxu0 %v3707
    %5991 = vmatpush.bf16.msra.mxu0 %v3703
    %5992 = vmatpush.bf16.msra.mxu0 %v3699
    %5993 = vmatpush.bf16.msra.mxu0 %v3695
    %5994 = vmatpush.bf16.msra.mxu0 %v3691
    %5995 = vmatmul.bf16.gmra.mxu0 %v880
    %v5996 = vpop.f32.mrf.mxu0
    %v5997 = vadd.f32 %v5984, %v5996
    %v5998 = vpop.f32.mrf.mxu0
    %5999 = vdwg.mxu0
    %6000 = vmatpush.bf16.msra.mxu0 %v3751
    %6001 = vmatpush.bf16.msra.mxu0 %v3747
    %6002 = vmatpush.bf16.msra.mxu0 %v3743
    %6003 = vmatpush.bf16.msra.mxu0 %v3739
    %6004 = vmatpush.bf16.msra.mxu0 %v3735
    %6005 = vmatpush.bf16.msra.mxu0 %v3731
    %6006 = vmatpush.bf16.msra.mxu0 %v3727
    %6007 = vmatpush.bf16.msra.mxu0 %v3723
    %6008 = vmatmul.bf16.gmra.mxu0 %v881
    %v6009 = vpop.f32.mrf.mxu0
    %v6010 = vadd.f32 %v5997, %v6009
    %v6011 = vpop.f32.mrf.mxu0
    %6012 = vdwg.mxu0
    %6013 = vmatpush.bf16.msra.mxu0 %v3783
    %6014 = vmatpush.bf16.msra.mxu0 %v3779
    %6015 = vmatpush.bf16.msra.mxu0 %v3775
    %6016 = vmatpush.bf16.msra.mxu0 %v3771
    %6017 = vmatpush.bf16.msra.mxu0 %v3767
    %6018 = vmatpush.bf16.msra.mxu0 %v3763
    %6019 = vmatpush.bf16.msra.mxu0 %v3759
    %6020 = vmatpush.bf16.msra.mxu0 %v3755
    %6021 = vmatmul.bf16.gmra.mxu0 %v882
    %v6022 = vpop.f32.mrf.mxu0
    %v6023 = vadd.f32 %v6010, %v6022
    %v6024 = vpop.f32.mrf.mxu0
    %6025 = vdwg.mxu0
    %6026 = vmatpush.bf16.msra.mxu0 %v3815
    %6027 = vmatpush.bf16.msra.mxu0 %v3811
    %6028 = vmatpush.bf16.msra.mxu0 %v3807
    %6029 = vmatpush.bf16.msra.mxu0 %v3803
    %6030 = vmatpush.bf16.msra.mxu0 %v3799
    %6031 = vmatpush.bf16.msra.mxu0 %v3795
    %6032 = vmatpush.bf16.msra.mxu0 %v3791
    %6033 = vmatpush.bf16.msra.mxu0 %v3787
    %6034 = vmatmul.bf16.gmra.mxu0 %v885
    %v6035 = vpop.f32.mrf.mxu0
    %v6036 = vadd.f32 %v6023, %v6035
    %v6037 = vpop.f32.mrf.mxu0
    %6038 = vdwg.mxu0
    %6039 = vmatpush.bf16.msra.mxu0 %v3847
    %6040 = vmatpush.bf16.msra.mxu0 %v3843
    %6041 = vmatpush.bf16.msra.mxu0 %v3839
    %6042 = vmatpush.bf16.msra.mxu0 %v3835
    %6043 = vmatpush.bf16.msra.mxu0 %v3831
    %6044 = vmatpush.bf16.msra.mxu0 %v3827
    %6045 = vmatpush.bf16.msra.mxu0 %v3823
    %6046 = vmatpush.bf16.msra.mxu0 %v3819
    %6047 = vmatmul.bf16.gmra.mxu0 %v886
    %v6048 = vpop.f32.mrf.mxu0
    %v6049 = vadd.f32 %v6036, %v6048
    %v6050 = vpop.f32.mrf.mxu0
    %6051 = vdwg.mxu0
    %6052 = vmatpush.bf16.msra.mxu0 %v3879
    %6053 = vmatpush.bf16.msra.mxu0 %v3875
    %6054 = vmatpush.bf16.msra.mxu0 %v3871
    %6055 = vmatpush.bf16.msra.mxu0 %v3867
    %6056 = vmatpush.bf16.msra.mxu0 %v3863
    %6057 = vmatpush.bf16.msra.mxu0 %v3859
    %6058 = vmatpush.bf16.msra.mxu0 %v3855
    %6059 = vmatpush.bf16.msra.mxu0 %v3851
    %6060 = vmatmul.bf16.gmra.mxu0 %v887
    %v6061 = vpop.f32.mrf.mxu0
    %v6062 = vadd.f32 %v6049, %v6061
    %v6063 = vpop.f32.mrf.mxu0
    %6064 = vdwg.mxu0
    %6065 = vmatpush.bf16.msra.mxu0 %v3911
    %6066 = vmatpush.bf16.msra.mxu0 %v3907
    %6067 = vmatpush.bf16.msra.mxu0 %v3903
    %6068 = vmatpush.bf16.msra.mxu0 %v3899
    %6069 = vmatpush.bf16.msra.mxu0 %v3895
    %6070 = vmatpush.bf16.msra.mxu0 %v3891
    %6071 = vmatpush.bf16.msra.mxu0 %v3887
    %6072 = vmatpush.bf16.msra.mxu0 %v3883
    %6073 = vmatmul.bf16.gmra.mxu0 %v888
    %v6074 = vpop.f32.mrf.mxu0
    %v6075 = vadd.f32 %v6062, %v6074
    %v6076 = vpop.f32.mrf.mxu0
    %6077 = vdwg.mxu0
    %6078 = vmatpush.bf16.msra.mxu0 %v3943
    %6079 = vmatpush.bf16.msra.mxu0 %v3939
    %6080 = vmatpush.bf16.msra.mxu0 %v3935
    %6081 = vmatpush.bf16.msra.mxu0 %v3931
    %6082 = vmatpush.bf16.msra.mxu0 %v3927
    %6083 = vmatpush.bf16.msra.mxu0 %v3923
    %6084 = vmatpush.bf16.msra.mxu0 %v3919
    %6085 = vmatpush.bf16.msra.mxu0 %v3915
    %6086 = vmatmul.bf16.gmra.mxu0 %v889
    %v6087 = vpop.f32.mrf.mxu0
    %v6088 = vadd.f32 %v6075, %v6087
    %v6089 = vpop.f32.mrf.mxu0
    %6090 = vdwg.mxu0
    %6091 = vmatpush.bf16.msra.mxu0 %v3975
    %6092 = vmatpush.bf16.msra.mxu0 %v3971
    %6093 = vmatpush.bf16.msra.mxu0 %v3967
    %6094 = vmatpush.bf16.msra.mxu0 %v3963
    %6095 = vmatpush.bf16.msra.mxu0 %v3959
    %6096 = vmatpush.bf16.msra.mxu0 %v3955
    %6097 = vmatpush.bf16.msra.mxu0 %v3951
    %6098 = vmatpush.bf16.msra.mxu0 %v3947
    %6099 = vmatmul.bf16.gmra.mxu0 %v890
    %v6100 = vpop.f32.mrf.mxu0
    %v6101 = vadd.f32 %v6088, %v6100
    %v6102 = vpop.f32.mrf.mxu0
    %6103 = vdwg.mxu0
    %6104 = vmatpush.bf16.msra.mxu0 %v4007
    %6105 = vmatpush.bf16.msra.mxu0 %v4003
    %6106 = vmatpush.bf16.msra.mxu0 %v3999
    %6107 = vmatpush.bf16.msra.mxu0 %v3995
    %6108 = vmatpush.bf16.msra.mxu0 %v3991
    %6109 = vmatpush.bf16.msra.mxu0 %v3987
    %6110 = vmatpush.bf16.msra.mxu0 %v3983
    %6111 = vmatpush.bf16.msra.mxu0 %v3979
    %6112 = vmatmul.bf16.gmra.mxu0 %v891
    %v6113 = vpop.f32.mrf.mxu0
    %v6114 = vadd.f32 %v6101, %v6113
    %v6115 = vpop.f32.mrf.mxu0
    %6116 = vdwg.mxu0
    %6117 = vmatpush.bf16.msra.mxu0 %v4039
    %6118 = vmatpush.bf16.msra.mxu0 %v4035
    %6119 = vmatpush.bf16.msra.mxu0 %v4031
    %6120 = vmatpush.bf16.msra.mxu0 %v4027
    %6121 = vmatpush.bf16.msra.mxu0 %v4023
    %6122 = vmatpush.bf16.msra.mxu0 %v4019
    %6123 = vmatpush.bf16.msra.mxu0 %v4015
    %6124 = vmatpush.bf16.msra.mxu0 %v4011
    %6125 = vmatmul.bf16.gmra.mxu0 %v892
    %v6126 = vpop.f32.mrf.mxu0
    %v6127 = vadd.f32 %v6114, %v6126
    %v6128 = vpop.f32.mrf.mxu0
    %6129 = vdwg.mxu0
    %6130 = vmatpush.bf16.msra.mxu0 0
    %6131 = vmatpush.bf16.msra.mxu0 0
    %6132 = vmatpush.bf16.msra.mxu0 0
    %6133 = vmatpush.bf16.msra.mxu0 0
    %6134 = vmatpush.bf16.msra.mxu0 %v4055
    %6135 = vmatpush.bf16.msra.mxu0 %v4051
    %6136 = vmatpush.bf16.msra.mxu0 %v4047
    %6137 = vmatpush.bf16.msra.mxu0 %v4043
    %6138 = vmatmul.bf16.gmra.mxu0 %v4841
    %v6139 = vpop.f32.mrf.mxu0
    %v6140 = vadd.f32 %v6127, %v6139
    %v6141 = vpop.f32.mrf.mxu0
    %6142 = vdwg.mxu0
    %v6143 = vmax.f32 %v5165, 0.0
    %v6144 = vmax.f32 %v5490, 0.0
    %v6145 = vmax.f32 %v5815, 0.0
    %v6146 = vmax.f32 %v6140, 0.0
    %v6147 = vpack.c.bf16 %v6143, %v6143
    %v6148 = vpack.c.bf16 %v6144, %v6144
    %v6149 = vpack.c.bf16 %v6145, %v6145
    %v6150 = vpack.c.bf16 %v6146, %v6146
    %v6151 = vld [vmem:[%s5] sm:$0xf]
    %v6152 = vld [vmem:[%s5 + $0x4] sm:$0xf]
    %v6153 = vld [vmem:[%s5 + $0x8] sm:$0xf]
    %v6154 = vld [vmem:[%s5 + $0xc] sm:$0xf]
    %v6155 = vld [vmem:[%s5 + $0x10] sm:$0xf]
    %v6156 = vld [vmem:[%s5 + $0x14] sm:$0xf]
    %v6157 = vld [vmem:[%s5 + $0x18] sm:$0xf]
    %v6158 = vld [vmem:[%s5 + $0x1c] sm:$0xf]
    %v6159 = vld [vmem:[%s5 + $0x20] sm:$0xf]
    %v6160 = vld [vmem:[%s5 + $0x24] sm:$0xf]
    %v6161 = vld [vmem:[%s5 + $0x28] sm:$0xf]
    %v6162 = vld [vmem:[%s5 + $0x2c] sm:$0xf]
    %v6163 = vld [vmem:[%s5 + $0x30] sm:$0xf]
    %v6164 = vld [vmem:[%s5 + $0x34] sm:$0xf]
    %v6165 = vld [vmem:[%s5 + $0x38] sm:$0xf]
    %v6166 = vld [vmem:[%s5 + $0x3c] sm:$0xf]
    %v6167 = vld [vmem:[%s5 + $0x40] sm:$0xf]
    %v6168 = vld [vmem:[%s5 + $0x44] sm:$0xf]
    %v6169 = vld [vmem:[%s5 + $0x48] sm:$0xf]
    %v6170 = vld [vmem:[%s5 + $0x4c] sm:$0xf]
    %v6171 = vld [vmem:[%s5 + $0x50] sm:$0xf]
    %v6172 = vld [vmem:[%s5 + $0x54] sm:$0xf]
    %v6173 = vld [vmem:[%s5 + $0x58] sm:$0xf]
    %v6174 = vld [vmem:[%s5 + $0x5c] sm:$0xf]
    %v6175 = vld [vmem:[%s5 + $0x60] sm:$0xf]
    %v6176 = vld [vmem:[%s5 + $0x64] sm:$0xf]
    %v6177 = vld [vmem:[%s5 + $0x68] sm:$0xf]
    %v6178 = vld [vmem:[%s5 + $0x6c] sm:$0xf]
    %v6179 = vld [vmem:[%s5 + $0x70] sm:$0xf]
    %v6180 = vld [vmem:[%s5 + $0x74] sm:$0xf]
    %v6181 = vld [vmem:[%s5 + $0x78] sm:$0xf]
    %v6182 = vld [vmem:[%s5 + $0x7c] sm:$0xf]
    %v6183 = vld [vmem:[%s5 + $0x80] sm:$0xf]
    %v6184 = vld [vmem:[%s5 + $0x84] sm:$0xf]
    %v6185 = vld [vmem:[%s5 + $0x88] sm:$0xf]
    %v6186 = vld [vmem:[%s5 + $0x8c] sm:$0xf]
    %v6187 = vld [vmem:[%s5 + $0x90] sm:$0xf]
    %v6188 = vld [vmem:[%s5 + $0x94] sm:$0xf]
    %v6189 = vld [vmem:[%s5 + $0x98] sm:$0xf]
    %v6190 = vld [vmem:[%s5 + $0x9c] sm:$0xf]
    %v6191 = vld [vmem:[%s5 + $0xa0] sm:$0xf]
    %v6192 = vld [vmem:[%s5 + $0xa4] sm:$0xf]
    %v6193 = vld [vmem:[%s5 + $0xa8] sm:$0xf]
    %v6194 = vld [vmem:[%s5 + $0xac] sm:$0xf]
    %v6195 = vld [vmem:[%s5 + $0xb0] sm:$0xf]
    %v6196 = vld [vmem:[%s5 + $0xb4] sm:$0xf]
    %v6197 = vld [vmem:[%s5 + $0xb8] sm:$0xf]
    %v6198 = vld [vmem:[%s5 + $0xbc] sm:$0xf]
    %v6199 = vld [vmem:[%s5 + $0xc0] sm:$0xf]
    %v6200 = vld [vmem:[%s5 + $0xc4] sm:$0xf]
    %v6201 = vld [vmem:[%s5 + $0xc8] sm:$0xf]
    %v6202 = vld [vmem:[%s5 + $0xcc] sm:$0xf]
    %v6203 = vld [vmem:[%s5 + $0xd0] sm:$0xf]
    %v6204 = vld [vmem:[%s5 + $0xd4] sm:$0xf]
    %v6205 = vld [vmem:[%s5 + $0xd8] sm:$0xf]
    %v6206 = vld [vmem:[%s5 + $0xdc] sm:$0xf]
    %v6207 = vld [vmem:[%s5 + $0xe0] sm:$0xf]
    %v6208 = vld [vmem:[%s5 + $0xe4] sm:$0xf]
    %v6209 = vld [vmem:[%s5 + $0xe8] sm:$0xf]
    %v6210 = vld [vmem:[%s5 + $0xec] sm:$0xf]
    %v6211 = vld [vmem:[%s5 + $0xf0] sm:$0xf]
    %v6212 = vld [vmem:[%s5 + $0xf4] sm:$0xf]
    %v6213 = vld [vmem:[%s5 + $0xf8] sm:$0xf]
    %v6214 = vld [vmem:[%s5 + $0xfc] sm:$0xf]
    %v6215 = vld [vmem:[%s6] sm:$0x1]
    %v6217 = vperm.slane %v6215, 0
    %v6283 = vunpack.c.l.b16 %v6151
    %v6284 = vunpack.c.l.b16 %v6152
    %v6285 = vunpack.c.l.b16 %v6153
    %v6286 = vunpack.c.l.b16 %v6154
    %v6287 = vunpack.c.l.b16 %v6155
    %v6288 = vunpack.c.l.b16 %v6156
    %v6289 = vunpack.c.l.b16 %v6157
    %v6290 = vunpack.c.l.b16 %v6158
    %v6291 = vunpack.c.l.b16 %v6159
    %v6292 = vunpack.c.l.b16 %v6160
    %v6293 = vunpack.c.l.b16 %v6161
    %v6294 = vunpack.c.l.b16 %v6162
    %v6295 = vunpack.c.l.b16 %v6163
    %v6296 = vunpack.c.l.b16 %v6164
    %v6297 = vunpack.c.l.b16 %v6165
    %v6298 = vunpack.c.l.b16 %v6166
    %v6299 = vunpack.c.l.b16 %v6167
    %v6300 = vunpack.c.l.b16 %v6168
    %v6301 = vunpack.c.l.b16 %v6169
    %v6302 = vunpack.c.l.b16 %v6170
    %v6303 = vunpack.c.l.b16 %v6171
    %v6304 = vunpack.c.l.b16 %v6172
    %v6305 = vunpack.c.l.b16 %v6173
    %v6306 = vunpack.c.l.b16 %v6174
    %v6307 = vunpack.c.l.b16 %v6175
    %v6308 = vunpack.c.l.b16 %v6176
    %v6309 = vunpack.c.l.b16 %v6177
    %v6310 = vunpack.c.l.b16 %v6178
    %v6311 = vunpack.c.l.b16 %v6179
    %v6312 = vunpack.c.l.b16 %v6180
    %v6313 = vunpack.c.l.b16 %v6181
    %v6314 = vunpack.c.l.b16 %v6182
    %v6315 = vunpack.c.l.b16 %v6183
    %v6316 = vunpack.c.l.b16 %v6184
    %v6317 = vunpack.c.l.b16 %v6185
    %v6318 = vunpack.c.l.b16 %v6186
    %v6319 = vunpack.c.l.b16 %v6187
    %v6320 = vunpack.c.l.b16 %v6188
    %v6321 = vunpack.c.l.b16 %v6189
    %v6322 = vunpack.c.l.b16 %v6190
    %v6323 = vunpack.c.l.b16 %v6191
    %v6324 = vunpack.c.l.b16 %v6192
    %v6325 = vunpack.c.l.b16 %v6193
    %v6326 = vunpack.c.l.b16 %v6194
    %v6327 = vunpack.c.l.b16 %v6195
    %v6328 = vunpack.c.l.b16 %v6196
    %v6329 = vunpack.c.l.b16 %v6197
    %v6330 = vunpack.c.l.b16 %v6198
    %v6331 = vunpack.c.l.b16 %v6199
    %v6332 = vunpack.c.l.b16 %v6200
    %v6333 = vunpack.c.l.b16 %v6201
    %v6334 = vunpack.c.l.b16 %v6202
    %v6335 = vunpack.c.l.b16 %v6203
    %v6336 = vunpack.c.l.b16 %v6204
    %v6337 = vunpack.c.l.b16 %v6205
    %v6338 = vunpack.c.l.b16 %v6206
    %v6339 = vunpack.c.l.b16 %v6207
    %v6340 = vunpack.c.l.b16 %v6208
    %v6341 = vunpack.c.l.b16 %v6209
    %v6342 = vunpack.c.l.b16 %v6210
    %v6343 = vunpack.c.l.b16 %v6211
    %v6344 = vunpack.c.l.b16 %v6212
    %v6345 = vunpack.c.l.b16 %v6213
    %v6346 = vunpack.c.l.b16 %v6214
    %v6347 = vpack.c.b16 %v6284, %v6283
    %v6348 = vpack.c.b16 %v6286, %v6285
    %v6349 = vpack.c.b16 %v6288, %v6287
    %v6350 = vpack.c.b16 %v6290, %v6289
    %v6351 = vpack.c.b16 %v6292, %v6291
    %v6352 = vpack.c.b16 %v6294, %v6293
    %v6353 = vpack.c.b16 %v6296, %v6295
    %v6354 = vpack.c.b16 %v6298, %v6297
    %v6355 = vpack.c.b16 %v6300, %v6299
    %v6356 = vpack.c.b16 %v6302, %v6301
    %v6357 = vpack.c.b16 %v6304, %v6303
    %v6358 = vpack.c.b16 %v6306, %v6305
    %v6359 = vpack.c.b16 %v6308, %v6307
    %v6360 = vpack.c.b16 %v6310, %v6309
    %v6361 = vpack.c.b16 %v6312, %v6311
    %v6362 = vpack.c.b16 %v6314, %v6313
    %v6363 = vpack.c.b16 %v6316, %v6315
    %v6364 = vpack.c.b16 %v6318, %v6317
    %v6365 = vpack.c.b16 %v6320, %v6319
    %v6366 = vpack.c.b16 %v6322, %v6321
    %v6367 = vpack.c.b16 %v6324, %v6323
    %v6368 = vpack.c.b16 %v6326, %v6325
    %v6369 = vpack.c.b16 %v6328, %v6327
    %v6370 = vpack.c.b16 %v6330, %v6329
    %v6371 = vpack.c.b16 %v6332, %v6331
    %v6372 = vpack.c.b16 %v6334, %v6333
    %v6373 = vpack.c.b16 %v6336, %v6335
    %v6374 = vpack.c.b16 %v6338, %v6337
    %v6375 = vpack.c.b16 %v6340, %v6339
    %v6376 = vpack.c.b16 %v6342, %v6341
    %v6377 = vpack.c.b16 %v6344, %v6343
    %v6378 = vpack.c.b16 %v6346, %v6345
    %6411 = vmatpush.bf16.msra.mxu0 %v6354
    %6412 = vmatpush.bf16.msra.mxu0 %v6353
    %6413 = vmatpush.bf16.msra.mxu0 %v6352
    %6414 = vmatpush.bf16.msra.mxu0 %v6351
    %6415 = vmatpush.bf16.msra.mxu0 %v6350
    %6416 = vmatpush.bf16.msra.mxu0 %v6349
    %6417 = vmatpush.bf16.msra.mxu0 %v6348
    %6418 = vmatpush.bf16.msra.mxu0 %v6347
    %6419 = vmatmul.bf16.gmra.mxu0 %v6147
    %v6420 = vpop.f32.mrf.mxu0
    %v6421 = vadd.f32 %v6217, %v6420
    %v6422 = vpop.f32.mrf.mxu0
    %6423 = vdwg.mxu0
    %6424 = vmatpush.bf16.msra.mxu0 %v6362
    %6425 = vmatpush.bf16.msra.mxu0 %v6361
    %6426 = vmatpush.bf16.msra.mxu0 %v6360
    %6427 = vmatpush.bf16.msra.mxu0 %v6359
    %6428 = vmatpush.bf16.msra.mxu0 %v6358
    %6429 = vmatpush.bf16.msra.mxu0 %v6357
    %6430 = vmatpush.bf16.msra.mxu0 %v6356
    %6431 = vmatpush.bf16.msra.mxu0 %v6355
    %6432 = vmatmul.bf16.gmra.mxu0 %v6148
    %v6433 = vpop.f32.mrf.mxu0
    %v6434 = vadd.f32 %v6421, %v6433
    %v6435 = vpop.f32.mrf.mxu0
    %6436 = vdwg.mxu0
    %6437 = vmatpush.bf16.msra.mxu0 %v6370
    %6438 = vmatpush.bf16.msra.mxu0 %v6369
    %6439 = vmatpush.bf16.msra.mxu0 %v6368
    %6440 = vmatpush.bf16.msra.mxu0 %v6367
    %6441 = vmatpush.bf16.msra.mxu0 %v6366
    %6442 = vmatpush.bf16.msra.mxu0 %v6365
    %6443 = vmatpush.bf16.msra.mxu0 %v6364
    %6444 = vmatpush.bf16.msra.mxu0 %v6363
    %6445 = vmatmul.bf16.gmra.mxu0 %v6149
    %v6446 = vpop.f32.mrf.mxu0
    %v6447 = vadd.f32 %v6434, %v6446
    %v6448 = vpop.f32.mrf.mxu0
    %6449 = vdwg.mxu0
    %6450 = vmatpush.bf16.msra.mxu0 %v6378
    %6451 = vmatpush.bf16.msra.mxu0 %v6377
    %6452 = vmatpush.bf16.msra.mxu0 %v6376
    %6453 = vmatpush.bf16.msra.mxu0 %v6375
    %6454 = vmatpush.bf16.msra.mxu0 %v6374
    %6455 = vmatpush.bf16.msra.mxu0 %v6373
    %6456 = vmatpush.bf16.msra.mxu0 %v6372
    %6457 = vmatpush.bf16.msra.mxu0 %v6371
    %6458 = vmatmul.bf16.gmra.mxu0 %v6150
    %v6459 = vpop.f32.mrf.mxu0
    %v6460 = vadd.f32 %v6447, %v6459
    %v6461 = vpop.f32.mrf.mxu0
    %6462 = vdwg.mxu0
    %v6463 = vmax.f32 %v6460, 0.0
    %v6464 = vpack.c.bf16 %v6463, %v6463
    %v6465 = vld [vmem:[%s7] sm:$0xf]
    %v6466 = vld [vmem:[%s7 + $0x4] sm:$0xf]
    %v6467 = vld [vmem:[%s7 + $0x8] sm:$0xf]
    %v6468 = vld [vmem:[%s7 + $0xc] sm:$0xf]
    %v6469 = vld [vmem:[%s7 + $0x10] sm:$0xf]
    %v6470 = vld [vmem:[%s7 + $0x14] sm:$0xf]
    %v6471 = vld [vmem:[%s7 + $0x18] sm:$0xf]
    %v6472 = vld [vmem:[%s7 + $0x1c] sm:$0xf]
    %v6473 = vld [vmem:[%s7 + $0x20] sm:$0xf]
    %v6474 = vld [vmem:[%s7 + $0x24] sm:$0xf]
    %v6475 = vld [vmem:[%s7 + $0x28] sm:$0xf]
    %v6476 = vld [vmem:[%s7 + $0x2c] sm:$0xf]
    %v6477 = vld [vmem:[%s7 + $0x30] sm:$0xf]
    %v6478 = vld [vmem:[%s7 + $0x34] sm:$0xf]
    %v6479 = vld [vmem:[%s7 + $0x38] sm:$0xf]
    %v6480 = vld [vmem:[%s7 + $0x3c] sm:$0xf]
    %v6481 = vld [vmem:[%s8] sm:$0x1]
    %v6483 = vperm.slane %v6481, 0
    %v6501 = vunpack.c.l.b16 %v6465
    %v6502 = vunpack.c.l.b16 %v6466
    %v6503 = vunpack.c.l.b16 %v6467
    %v6504 = vunpack.c.l.b16 %v6468
    %v6505 = vunpack.c.l.b16 %v6469
    %v6506 = vunpack.c.l.b16 %v6470
    %v6507 = vunpack.c.l.b16 %v6471
    %v6508 = vunpack.c.l.b16 %v6472
    %v6509 = vunpack.c.l.b16 %v6473
    %v6510 = vunpack.c.l.b16 %v6474
    %v6511 = vunpack.c.l.b16 %v6475
    %v6512 = vunpack.c.l.b16 %v6476
    %v6513 = vunpack.c.l.b16 %v6477
    %v6514 = vunpack.c.l.b16 %v6478
    %v6515 = vunpack.c.l.b16 %v6479
    %v6516 = vunpack.c.l.b16 %v6480
    %v6517 = vpack.c.b16 %v6502, %v6501
    %v6518 = vpack.c.b16 %v6504, %v6503
    %v6519 = vpack.c.b16 %v6506, %v6505
    %v6520 = vpack.c.b16 %v6508, %v6507
    %v6521 = vpack.c.b16 %v6510, %v6509
    %v6522 = vpack.c.b16 %v6512, %v6511
    %v6523 = vpack.c.b16 %v6514, %v6513
    %v6524 = vpack.c.b16 %v6516, %v6515
    %6533 = vmatpush.bf16.msra.mxu0 %v6524
    %6534 = vmatpush.bf16.msra.mxu0 %v6523
    %6535 = vmatpush.bf16.msra.mxu0 %v6522
    %6536 = vmatpush.bf16.msra.mxu0 %v6521
    %6537 = vmatpush.bf16.msra.mxu0 %v6520
    %6538 = vmatpush.bf16.msra.mxu0 %v6519
    %6539 = vmatpush.bf16.msra.mxu0 %v6518
    %6540 = vmatpush.bf16.msra.mxu0 %v6517
    %6541 = vmatmul.bf16.gmra.mxu0 %v6464
    %v6542 = vpop.f32.mrf.mxu0
    %v6543 = vadd.f32 %v6483, %v6542
    %v6544 = vpop.f32.mrf.mxu0
    %6545 = vdwg.mxu0
    %vm6546 = vcmask 41984
    %v6547 = vsel %vm6546, %v6543, -inf
    %6548 = vmax.xlane.f32.xlu0 %v6547
    %v6549 = vpop.xlane.xlu0 %6548
    %v6550 = vsub.f32 %v6543, %v6549
    %v6551 = vmul.f32 %v6550, 1.442695
    %v6552 = vpow.pop %v6551
    %v6553 = vsel %vm6546, %v6552, 0.0
    %6554 = vadd.xlane.f32.xlu0 %v6553
    %v6555 = vpop.xlane.xlu0 %6554
    %v6556 = vrcp.pop %v6555
    %v6557 = vmul.f32 %v6552, %v6556
    %6558 = vst.msk [vmem:[#allocation3] sm:$0x3] %vm6546, %v6557
    %v6559 = vld [vmem:[%s9] sm:$0xf]
    %v6560 = vld [vmem:[%s9 + $0x4] sm:$0xf]
    %v6561 = vld [vmem:[%s9 + $0x8] sm:$0xf]
    %v6562 = vld [vmem:[%s9 + $0xc] sm:$0xf]
    %v6563 = vld [vmem:[%s9 + $0x10] sm:$0xf]
    %v6564 = vld [vmem:[%s9 + $0x14] sm:$0xf]
    %v6565 = vld [vmem:[%s9 + $0x18] sm:$0xf]
    %v6566 = vld [vmem:[%s9 + $0x1c] sm:$0xf]
    %v6567 = vld [vmem:[%s9 + $0x20] sm:$0xf]
    %v6568 = vld [vmem:[%s9 + $0x24] sm:$0xf]
    %v6569 = vld [vmem:[%s9 + $0x28] sm:$0xf]
    %v6570 = vld [vmem:[%s9 + $0x2c] sm:$0xf]
    %v6571 = vld [vmem:[%s9 + $0x30] sm:$0xf]
    %v6572 = vld [vmem:[%s9 + $0x34] sm:$0xf]
    %v6573 = vld [vmem:[%s9 + $0x38] sm:$0xf]
    %v6574 = vld [vmem:[%s9 + $0x3c] sm:$0xf]
    %v6575 = vld [vmem:[%s9 + $0x40] sm:$0xf]
    %v6576 = vld [vmem:[%s9 + $0x44] sm:$0xf]
    %v6577 = vld [vmem:[%s9 + $0x48] sm:$0xf]
    %v6578 = vld [vmem:[%s9 + $0x4c] sm:$0xf]
    %v6579 = vld [vmem:[%s9 + $0x50] sm:$0xf]
    %v6580 = vld [vmem:[%s9 + $0x54] sm:$0xf]
    %v6581 = vld [vmem:[%s9 + $0x58] sm:$0xf]
    %v6582 = vld [vmem:[%s9 + $0x5c] sm:$0xf]
    %v6583 = vld [vmem:[%s9 + $0x60] sm:$0xf]
    %v6584 = vld [vmem:[%s9 + $0x64] sm:$0xf]
    %v6585 = vld [vmem:[%s9 + $0x68] sm:$0xf]
    %v6586 = vld [vmem:[%s9 + $0x6c] sm:$0xf]
    %v6587 = vld [vmem:[%s9 + $0x70] sm:$0xf]
    %v6588 = vld [vmem:[%s9 + $0x74] sm:$0xf]
    %v6589 = vld [vmem:[%s9 + $0x78] sm:$0xf]
    %v6590 = vld [vmem:[%s9 + $0x7c] sm:$0xf]
    %v6591 = vld [vmem:[%s9 + $0x80] sm:$0xf]
    %v6592 = vld [vmem:[%s9 + $0x84] sm:$0xf]
    %v6593 = vld [vmem:[%s9 + $0x88] sm:$0xf]
    %v6594 = vld [vmem:[%s9 + $0x8c] sm:$0xf]
    %v6595 = vld [vmem:[%s9 + $0x90] sm:$0xf]
    %v6596 = vld [vmem:[%s9 + $0x94] sm:$0xf]
    %v6597 = vld [vmem:[%s9 + $0x98] sm:$0xf]
    %v6598 = vld [vmem:[%s9 + $0x9c] sm:$0xf]
    %v6599 = vld [vmem:[%s9 + $0xa0] sm:$0xf]
    %v6600 = vld [vmem:[%s9 + $0xa4] sm:$0xf]
    %v6601 = vld [vmem:[%s9 + $0xa8] sm:$0xf]
    %v6602 = vld [vmem:[%s9 + $0xac] sm:$0xf]
    %v6603 = vld [vmem:[%s9 + $0xb0] sm:$0xf]
    %v6604 = vld [vmem:[%s9 + $0xb4] sm:$0xf]
    %v6605 = vld [vmem:[%s9 + $0xb8] sm:$0xf]
    %v6606 = vld [vmem:[%s9 + $0xbc] sm:$0xf]
    %v6607 = vld [vmem:[%s9 + $0xc0] sm:$0xf]
    %v6608 = vld [vmem:[%s9 + $0xc4] sm:$0xf]
    %v6609 = vld [vmem:[%s9 + $0xc8] sm:$0xf]
    %v6610 = vld [vmem:[%s9 + $0xcc] sm:$0xf]
    %v6611 = vld [vmem:[%s9 + $0xd0] sm:$0xf]
    %v6612 = vld [vmem:[%s9 + $0xd4] sm:$0xf]
    %v6613 = vld [vmem:[%s9 + $0xd8] sm:$0xf]
    %v6614 = vld [vmem:[%s9 + $0xdc] sm:$0xf]
    %v6615 = vld [vmem:[%s9 + $0xe0] sm:$0xf]
    %v6616 = vld [vmem:[%s9 + $0xe4] sm:$0xf]
    %v6617 = vld [vmem:[%s9 + $0xe8] sm:$0xf]
    %v6618 = vld [vmem:[%s9 + $0xec] sm:$0xf]
    %v6619 = vld [vmem:[%s9 + $0xf0] sm:$0xf]
    %v6620 = vld [vmem:[%s9 + $0xf4] sm:$0xf]
    %v6621 = vld [vmem:[%s9 + $0xf8] sm:$0xf]
    %v6622 = vld [vmem:[%s9 + $0xfc] sm:$0xf]
    %v6623 = vld [vmem:[%s10] sm:$0x1]
    %v6625 = vperm.slane %v6623, 0
    %v6691 = vunpack.c.l.b16 %v6559
    %v6692 = vunpack.c.l.b16 %v6560
    %v6693 = vunpack.c.l.b16 %v6561
    %v6694 = vunpack.c.l.b16 %v6562
    %v6695 = vunpack.c.l.b16 %v6563
    %v6696 = vunpack.c.l.b16 %v6564
    %v6697 = vunpack.c.l.b16 %v6565
    %v6698 = vunpack.c.l.b16 %v6566
    %v6699 = vunpack.c.l.b16 %v6567
    %v6700 = vunpack.c.l.b16 %v6568
    %v6701 = vunpack.c.l.b16 %v6569
    %v6702 = vunpack.c.l.b16 %v6570
    %v6703 = vunpack.c.l.b16 %v6571
    %v6704 = vunpack.c.l.b16 %v6572
    %v6705 = vunpack.c.l.b16 %v6573
    %v6706 = vunpack.c.l.b16 %v6574
    %v6707 = vunpack.c.l.b16 %v6575
    %v6708 = vunpack.c.l.b16 %v6576
    %v6709 = vunpack.c.l.b16 %v6577
    %v6710 = vunpack.c.l.b16 %v6578
    %v6711 = vunpack.c.l.b16 %v6579
    %v6712 = vunpack.c.l.b16 %v6580
    %v6713 = vunpack.c.l.b16 %v6581
    %v6714 = vunpack.c.l.b16 %v6582
    %v6715 = vunpack.c.l.b16 %v6583
    %v6716 = vunpack.c.l.b16 %v6584
    %v6717 = vunpack.c.l.b16 %v6585
    %v6718 = vunpack.c.l.b16 %v6586
    %v6719 = vunpack.c.l.b16 %v6587
    %v6720 = vunpack.c.l.b16 %v6588
    %v6721 = vunpack.c.l.b16 %v6589
    %v6722 = vunpack.c.l.b16 %v6590
    %v6723 = vunpack.c.l.b16 %v6591
    %v6724 = vunpack.c.l.b16 %v6592
    %v6725 = vunpack.c.l.b16 %v6593
    %v6726 = vunpack.c.l.b16 %v6594
    %v6727 = vunpack.c.l.b16 %v6595
    %v6728 = vunpack.c.l.b16 %v6596
    %v6729 = vunpack.c.l.b16 %v6597
    %v6730 = vunpack.c.l.b16 %v6598
    %v6731 = vunpack.c.l.b16 %v6599
    %v6732 = vunpack.c.l.b16 %v6600
    %v6733 = vunpack.c.l.b16 %v6601
    %v6734 = vunpack.c.l.b16 %v6602
    %v6735 = vunpack.c.l.b16 %v6603
    %v6736 = vunpack.c.l.b16 %v6604
    %v6737 = vunpack.c.l.b16 %v6605
    %v6738 = vunpack.c.l.b16 %v6606
    %v6739 = vunpack.c.l.b16 %v6607
    %v6740 = vunpack.c.l.b16 %v6608
    %v6741 = vunpack.c.l.b16 %v6609
    %v6742 = vunpack.c.l.b16 %v6610
    %v6743 = vunpack.c.l.b16 %v6611
    %v6744 = vunpack.c.l.b16 %v6612
    %v6745 = vunpack.c.l.b16 %v6613
    %v6746 = vunpack.c.l.b16 %v6614
    %v6747 = vunpack.c.l.b16 %v6615
    %v6748 = vunpack.c.l.b16 %v6616
    %v6749 = vunpack.c.l.b16 %v6617
    %v6750 = vunpack.c.l.b16 %v6618
    %v6751 = vunpack.c.l.b16 %v6619
    %v6752 = vunpack.c.l.b16 %v6620
    %v6753 = vunpack.c.l.b16 %v6621
    %v6754 = vunpack.c.l.b16 %v6622
    %v6755 = vpack.c.b16 %v6692, %v6691
    %v6756 = vpack.c.b16 %v6694, %v6693
    %v6757 = vpack.c.b16 %v6696, %v6695
    %v6758 = vpack.c.b16 %v6698, %v6697
    %v6759 = vpack.c.b16 %v6700, %v6699
    %v6760 = vpack.c.b16 %v6702, %v6701
    %v6761 = vpack.c.b16 %v6704, %v6703
    %v6762 = vpack.c.b16 %v6706, %v6705
    %v6763 = vpack.c.b16 %v6708, %v6707
    %v6764 = vpack.c.b16 %v6710, %v6709
    %v6765 = vpack.c.b16 %v6712, %v6711
    %v6766 = vpack.c.b16 %v6714, %v6713
    %v6767 = vpack.c.b16 %v6716, %v6715
    %v6768 = vpack.c.b16 %v6718, %v6717
    %v6769 = vpack.c.b16 %v6720, %v6719
    %v6770 = vpack.c.b16 %v6722, %v6721
    %v6771 = vpack.c.b16 %v6724, %v6723
    %v6772 = vpack.c.b16 %v6726, %v6725
    %v6773 = vpack.c.b16 %v6728, %v6727
    %v6774 = vpack.c.b16 %v6730, %v6729
    %v6775 = vpack.c.b16 %v6732, %v6731
    %v6776 = vpack.c.b16 %v6734, %v6733
    %v6777 = vpack.c.b16 %v6736, %v6735
    %v6778 = vpack.c.b16 %v6738, %v6737
    %v6779 = vpack.c.b16 %v6740, %v6739
    %v6780 = vpack.c.b16 %v6742, %v6741
    %v6781 = vpack.c.b16 %v6744, %v6743
    %v6782 = vpack.c.b16 %v6746, %v6745
    %v6783 = vpack.c.b16 %v6748, %v6747
    %v6784 = vpack.c.b16 %v6750, %v6749
    %v6785 = vpack.c.b16 %v6752, %v6751
    %v6786 = vpack.c.b16 %v6754, %v6753
    %6819 = vmatpush.bf16.msra.mxu0 %v6762
    %6820 = vmatpush.bf16.msra.mxu0 %v6761
    %6821 = vmatpush.bf16.msra.mxu0 %v6760
    %6822 = vmatpush.bf16.msra.mxu0 %v6759
    %6823 = vmatpush.bf16.msra.mxu0 %v6758
    %6824 = vmatpush.bf16.msra.mxu0 %v6757
    %6825 = vmatpush.bf16.msra.mxu0 %v6756
    %6826 = vmatpush.bf16.msra.mxu0 %v6755
    %6827 = vmatmul.bf16.gmra.mxu0 %v6147
    %v6828 = vpop.f32.mrf.mxu0
    %v6829 = vadd.f32 %v6625, %v6828
    %v6830 = vpop.f32.mrf.mxu0
    %6831 = vdwg.mxu0
    %6832 = vmatpush.bf16.msra.mxu0 %v6770
    %6833 = vmatpush.bf16.msra.mxu0 %v6769
    %6834 = vmatpush.bf16.msra.mxu0 %v6768
    %6835 = vmatpush.bf16.msra.mxu0 %v6767
    %6836 = vmatpush.bf16.msra.mxu0 %v6766
    %6837 = vmatpush.bf16.msra.mxu0 %v6765
    %6838 = vmatpush.bf16.msra.mxu0 %v6764
    %6839 = vmatpush.bf16.msra.mxu0 %v6763
    %6840 = vmatmul.bf16.gmra.mxu0 %v6148
    %v6841 = vpop.f32.mrf.mxu0
    %v6842 = vadd.f32 %v6829, %v6841
    %v6843 = vpop.f32.mrf.mxu0
    %6844 = vdwg.mxu0
    %6845 = vmatpush.bf16.msra.mxu0 %v6778
    %6846 = vmatpush.bf16.msra.mxu0 %v6777
    %6847 = vmatpush.bf16.msra.mxu0 %v6776
    %6848 = vmatpush.bf16.msra.mxu0 %v6775
    %6849 = vmatpush.bf16.msra.mxu0 %v6774
    %6850 = vmatpush.bf16.msra.mxu0 %v6773
    %6851 = vmatpush.bf16.msra.mxu0 %v6772
    %6852 = vmatpush.bf16.msra.mxu0 %v6771
    %6853 = vmatmul.bf16.gmra.mxu0 %v6149
    %v6854 = vpop.f32.mrf.mxu0
    %v6855 = vadd.f32 %v6842, %v6854
    %v6856 = vpop.f32.mrf.mxu0
    %6857 = vdwg.mxu0
    %6858 = vmatpush.bf16.msra.mxu0 %v6786
    %6859 = vmatpush.bf16.msra.mxu0 %v6785
    %6860 = vmatpush.bf16.msra.mxu0 %v6784
    %6861 = vmatpush.bf16.msra.mxu0 %v6783
    %6862 = vmatpush.bf16.msra.mxu0 %v6782
    %6863 = vmatpush.bf16.msra.mxu0 %v6781
    %6864 = vmatpush.bf16.msra.mxu0 %v6780
    %6865 = vmatpush.bf16.msra.mxu0 %v6779
    %6866 = vmatmul.bf16.gmra.mxu0 %v6150
    %v6867 = vpop.f32.mrf.mxu0
    %v6868 = vadd.f32 %v6855, %v6867
    %v6869 = vpop.f32.mrf.mxu0
    %6870 = vdwg.mxu0
    %v6871 = vmax.f32 %v6868, 0.0
    %v6872 = vpack.c.bf16 %v6871, %v6871
    %v6873 = vld [vmem:[%s1] sm:$0x3f]
    %6875 = vst [vmem:[#allocation1] ss:$4 sm:$0xff] %v6873
    %v6876 = vld.sshfl [vmem:[#allocation1] sm:$0xff pattern:$0x73625140]
    %v6877 = vld.sshfl [vmem:[#allocation1 + $0x8] sm:$0xff pattern:$0x73625140]
    %v6878 = vld.sshfl [vmem:[#allocation1 + $0x10] sm:$0xff pattern:$0x73625140]
    %v6882 = vpack.c.bf16 %v6877, %v6876
    %v6883 = vpack.c.bf16 %v6878, %v6878
    %v6886 = vunpack.c.l.b16 %v6882
    %v6887 = vunpack.c.h.b16 %v6882
    %v6888 = vunpack.c.l.b16 %v6883
    %v6889 = vpack.c.b16 %v6886, %v6886
    %v6890 = vpack.c.b16 %v6887, %v6887
    %v6891 = vpack.c.b16 %v6888, %v6888
    %v6895 = vld [vmem:[%s11] sm:$0xff]
    %v6896 = vld [vmem:[%s11 + $0x8] sm:$0xff]
    %v6897 = vld [vmem:[%s11 + $0x10] sm:$0xff]
    %v6898 = vld [vmem:[%s11 + $0x18] sm:$0xff]
    %v6899 = vld [vmem:[%s11 + $0x20] sm:$0xff]
    %v6900 = vld [vmem:[%s11 + $0x28] sm:$0xff]
    %v6901 = vld [vmem:[%s11 + $0x30] sm:$0xff]
    %v6902 = vld [vmem:[%s11 + $0x38] sm:$0xff]
    %v6903 = vld [vmem:[%s11 + $0x40] sm:$0xff]
    %v6904 = vld [vmem:[%s11 + $0x48] sm:$0xff]
    %v6905 = vld [vmem:[%s11 + $0x50] sm:$0xff]
    %v6906 = vld [vmem:[%s11 + $0x58] sm:$0xff]
    %v6907 = vld [vmem:[%s11 + $0x60] sm:$0xff]
    %v6908 = vld [vmem:[%s11 + $0x68] sm:$0xff]
    %v6909 = vld [vmem:[%s11 + $0x70] sm:$0xff]
    %v6910 = vld [vmem:[%s11 + $0x78] sm:$0xff]
    %v6911 = vld [vmem:[%s11 + $0x80] sm:$0xff]
    %v6912 = vld [vmem:[%s11 + $0x88] sm:$0xff]
    %v6913 = vld [vmem:[%s11 + $0x90] sm:$0xff]
    %v6914 = vld [vmem:[%s11 + $0x98] sm:$0xff]
    %v6915 = vld [vmem:[%s11 + $0xa0] sm:$0xff]
    %v6916 = vld [vmem:[%s11 + $0xa8] sm:$0xff]
    %v6917 = vld [vmem:[%s11 + $0xb0] sm:$0xff]
    %v6918 = vld [vmem:[%s11 + $0xb8] sm:$0xff]
    %v6919 = vld [vmem:[%s11 + $0xc0] sm:$0xff]
    %v6920 = vld [vmem:[%s11 + $0xc8] sm:$0xff]
    %v6921 = vld [vmem:[%s11 + $0xd0] sm:$0xff]
    %v6922 = vld [vmem:[%s11 + $0xd8] sm:$0xff]
    %v6923 = vld [vmem:[%s11 + $0xe0] sm:$0xff]
    %v6924 = vld [vmem:[%s11 + $0xe8] sm:$0xff]
    %v6925 = vld [vmem:[%s11 + $0xf0] sm:$0xff]
    %v6926 = vld [vmem:[%s11 + $0xf8] sm:$0xff]
    %v6927 = vld [vmem:[%s11 + $0x100] sm:$0xff]
    %v6928 = vld [vmem:[%s11 + $0x108] sm:$0xff]
    %v6929 = vld [vmem:[%s11 + $0x110] sm:$0xff]
    %v6930 = vld [vmem:[%s11 + $0x118] sm:$0xff]
    %v6931 = vld [vmem:[%s11 + $0x120] sm:$0xff]
    %v6932 = vld [vmem:[%s11 + $0x128] sm:$0xff]
    %v6933 = vld [vmem:[%s11 + $0x130] sm:$0xff]
    %v6934 = vld [vmem:[%s11 + $0x138] sm:$0xff]
    %v6935 = vld [vmem:[%s11 + $0x140] sm:$0xff]
    %v6936 = vld [vmem:[%s11 + $0x148] sm:$0xff]
    %v6937 = vld [vmem:[%s11 + $0x150] sm:$0xff]
    %v6938 = vld [vmem:[%s11 + $0x158] sm:$0xff]
    %v6939 = vld [vmem:[%s11 + $0x160] sm:$0xff]
    %v6940 = vld [vmem:[%s11 + $0x168] sm:$0xff]
    %v6941 = vld [vmem:[%s11 + $0x170] sm:$0xff]
    %v6942 = vld [vmem:[%s11 + $0x178] sm:$0xff]
    %v6943 = vld [vmem:[%s11 + $0x180] sm:$0xff]
    %v6944 = vld [vmem:[%s11 + $0x188] sm:$0xff]
    %v6945 = vld [vmem:[%s11 + $0x190] sm:$0xff]
    %v6946 = vld [vmem:[%s11 + $0x198] sm:$0xff]
    %v6947 = vld [vmem:[%s11 + $0x1a0] sm:$0xff]
    %v6948 = vld [vmem:[%s11 + $0x1a8] sm:$0xff]
    %v6949 = vld [vmem:[%s11 + $0x1b0] sm:$0xff]
    %v6950 = vld [vmem:[%s11 + $0x1b8] sm:$0xff]
    %v6951 = vld [vmem:[%s11 + $0x1c0] sm:$0xff]
    %v6952 = vld [vmem:[%s11 + $0x1c8] sm:$0xff]
    %v6953 = vld [vmem:[%s11 + $0x1d0] sm:$0xff]
    %v6954 = vld [vmem:[%s11 + $0x1d8] sm:$0xff]
    %v6955 = vld [vmem:[%s11 + $0x1e0] sm:$0xff]
    %v6956 = vld [vmem:[%s11 + $0x1e8] sm:$0xff]
    %v6957 = vld [vmem:[%s11 + $0x1f0] sm:$0xff]
    %v6958 = vld [vmem:[%s11 + $0x1f8] sm:$0xff]
    %v6959 = vld [vmem:[%s11 + $0x200] sm:$0xff]
    %v6960 = vld [vmem:[%s11 + $0x208] sm:$0xff]
    %v6961 = vld [vmem:[%s11 + $0x210] sm:$0xff]
    %v6962 = vld [vmem:[%s11 + $0x218] sm:$0xff]
    %v6963 = vld [vmem:[%s11 + $0x220] sm:$0xff]
    %v6964 = vld [vmem:[%s11 + $0x228] sm:$0xff]
    %v6965 = vld [vmem:[%s11 + $0x230] sm:$0xff]
    %v6966 = vld [vmem:[%s11 + $0x238] sm:$0xff]
    %v6967 = vld [vmem:[%s11 + $0x240] sm:$0xff]
    %v6968 = vld [vmem:[%s11 + $0x248] sm:$0xff]
    %v6969 = vld [vmem:[%s11 + $0x250] sm:$0xff]
    %v6970 = vld [vmem:[%s11 + $0x258] sm:$0xff]
    %v6971 = vld [vmem:[%s11 + $0x260] sm:$0xff]
    %v6972 = vld [vmem:[%s11 + $0x268] sm:$0xff]
    %v6973 = vld [vmem:[%s11 + $0x270] sm:$0xff]
    %v6974 = vld [vmem:[%s11 + $0x278] sm:$0xff]
    %v6975 = vld [vmem:[%s11 + $0x280] sm:$0xff]
    %v6976 = vld [vmem:[%s11 + $0x288] sm:$0xff]
    %v6977 = vld [vmem:[%s11 + $0x290] sm:$0xff]
    %v6978 = vld [vmem:[%s11 + $0x298] sm:$0xff]
    %v6979 = vld [vmem:[%s11 + $0x2a0] sm:$0xff]
    %v6980 = vld [vmem:[%s11 + $0x2a8] sm:$0xff]
    %v6981 = vld [vmem:[%s11 + $0x2b0] sm:$0xff]
    %v6982 = vld [vmem:[%s11 + $0x2b8] sm:$0xff]
    %v6983 = vld [vmem:[%s11 + $0x2c0] sm:$0xff]
    %v6984 = vld [vmem:[%s11 + $0x2c8] sm:$0xff]
    %v6985 = vld [vmem:[%s11 + $0x2d0] sm:$0xff]
    %v6986 = vld [vmem:[%s11 + $0x2d8] sm:$0xff]
    %v6987 = vld [vmem:[%s11 + $0x2e0] sm:$0xff]
    %v6988 = vld [vmem:[%s11 + $0x2e8] sm:$0xff]
    %v6989 = vld [vmem:[%s11 + $0x2f0] sm:$0xff]
    %v6990 = vld [vmem:[%s11 + $0x2f8] sm:$0xff]
    %v6991 = vld [vmem:[%s11 + $0x300] sm:$0xff]
    %v6992 = vld [vmem:[%s11 + $0x308] sm:$0xff]
    %v6993 = vld [vmem:[%s11 + $0x310] sm:$0xff]
    %v6994 = vld [vmem:[%s11 + $0x318] sm:$0xff]
    %v6995 = vld [vmem:[%s11 + $0x320] sm:$0xff]
    %v6996 = vld [vmem:[%s11 + $0x328] sm:$0xff]
    %v6997 = vld [vmem:[%s11 + $0x330] sm:$0xff]
    %v6998 = vld [vmem:[%s11 + $0x338] sm:$0xff]
    %v6999 = vld [vmem:[%s11 + $0x340] sm:$0xff]
    %v7000 = vld [vmem:[%s11 + $0x348] sm:$0xff]
    %v7001 = vld [vmem:[%s11 + $0x350] sm:$0xff]
    %v7002 = vld [vmem:[%s11 + $0x358] sm:$0xff]
    %v7003 = vld [vmem:[%s11 + $0x360] sm:$0xff]
    %v7004 = vld [vmem:[%s11 + $0x368] sm:$0xff]
    %v7005 = vld [vmem:[%s11 + $0x370] sm:$0xff]
    %v7006 = vld [vmem:[%s11 + $0x378] sm:$0xff]
    %v7007 = vld [vmem:[%s11 + $0x380] sm:$0xff]
    %v7008 = vld [vmem:[%s11 + $0x388] sm:$0xff]
    %v7009 = vld [vmem:[%s11 + $0x390] sm:$0xff]
    %v7010 = vld [vmem:[%s11 + $0x398] sm:$0xff]
    %v7011 = vld [vmem:[%s11 + $0x3a0] sm:$0xff]
    %v7012 = vld [vmem:[%s11 + $0x3a8] sm:$0xff]
    %v7013 = vld [vmem:[%s11 + $0x3b0] sm:$0xff]
    %v7014 = vld [vmem:[%s11 + $0x3b8] sm:$0xff]
    %v7015 = vld [vmem:[%s11 + $0x3c0] sm:$0xff]
    %v7016 = vld [vmem:[%s11 + $0x3c8] sm:$0xff]
    %v7017 = vld [vmem:[%s11 + $0x3d0] sm:$0xff]
    %v7018 = vld [vmem:[%s11 + $0x3d8] sm:$0xff]
    %v7019 = vld [vmem:[%s11 + $0x3e0] sm:$0xff]
    %v7020 = vld [vmem:[%s11 + $0x3e8] sm:$0xff]
    %v7021 = vld [vmem:[%s11 + $0x3f0] sm:$0xff]
    %v7022 = vld [vmem:[%s11 + $0x3f8] sm:$0xff]
    %v7023 = vld [vmem:[%s11 + $0x400] sm:$0xff]
    %v7024 = vld [vmem:[%s11 + $0x408] sm:$0xff]
    %v7025 = vld [vmem:[%s11 + $0x410] sm:$0xff]
    %v7026 = vld [vmem:[%s11 + $0x418] sm:$0xff]
    %v7027 = vld [vmem:[%s11 + $0x420] sm:$0xff]
    %v7028 = vld [vmem:[%s11 + $0x428] sm:$0xff]
    %v7029 = vld [vmem:[%s11 + $0x430] sm:$0xff]
    %v7030 = vld [vmem:[%s11 + $0x438] sm:$0xff]
    %v7031 = vld [vmem:[%s11 + $0x440] sm:$0xff]
    %v7032 = vld [vmem:[%s11 + $0x448] sm:$0xff]
    %v7033 = vld [vmem:[%s11 + $0x450] sm:$0xff]
    %v7034 = vld [vmem:[%s11 + $0x458] sm:$0xff]
    %v7035 = vld [vmem:[%s11 + $0x460] sm:$0xff]
    %v7036 = vld [vmem:[%s11 + $0x468] sm:$0xff]
    %v7037 = vld [vmem:[%s11 + $0x470] sm:$0xff]
    %v7038 = vld [vmem:[%s11 + $0x478] sm:$0xff]
    %v7039 = vld [vmem:[%s11 + $0x480] sm:$0xff]
    %v7040 = vld [vmem:[%s11 + $0x488] sm:$0xff]
    %v7041 = vld [vmem:[%s11 + $0x490] sm:$0xff]
    %v7042 = vld [vmem:[%s11 + $0x498] sm:$0xff]
    %v7043 = vld [vmem:[%s11 + $0x4a0] sm:$0xff]
    %v7044 = vld [vmem:[%s11 + $0x4a8] sm:$0xff]
    %v7045 = vld [vmem:[%s11 + $0x4b0] sm:$0xff]
    %v7046 = vld [vmem:[%s11 + $0x4b8] sm:$0xff]
    %v7047 = vld [vmem:[%s11 + $0x4c0] sm:$0xff]
    %v7048 = vld [vmem:[%s11 + $0x4c8] sm:$0xff]
    %v7049 = vld [vmem:[%s11 + $0x4d0] sm:$0xff]
    %v7050 = vld [vmem:[%s11 + $0x4d8] sm:$0xff]
    %v7051 = vld [vmem:[%s11 + $0x4e0] sm:$0xff]
    %v7052 = vld [vmem:[%s11 + $0x4e8] sm:$0xff]
    %v7053 = vld [vmem:[%s11 + $0x4f0] sm:$0xff]
    %v7054 = vld [vmem:[%s11 + $0x4f8] sm:$0xff]
    %v7055 = vld [vmem:[%s11 + $0x500] sm:$0xff]
    %v7056 = vld [vmem:[%s11 + $0x508] sm:$0xff]
    %v7057 = vld [vmem:[%s11 + $0x510] sm:$0xff]
    %v7058 = vld [vmem:[%s11 + $0x518] sm:$0xff]
    %v7059 = vld [vmem:[%s11 + $0x520] sm:$0xff]
    %v7060 = vld [vmem:[%s11 + $0x528] sm:$0xff]
    %v7061 = vld [vmem:[%s11 + $0x530] sm:$0xff]
    %v7062 = vld [vmem:[%s11 + $0x538] sm:$0xff]
    %v7063 = vld [vmem:[%s11 + $0x540] sm:$0xff]
    %v7064 = vld [vmem:[%s11 + $0x548] sm:$0xff]
    %v7065 = vld [vmem:[%s11 + $0x550] sm:$0xff]
    %v7066 = vld [vmem:[%s11 + $0x558] sm:$0xff]
    %v7067 = vld [vmem:[%s11 + $0x560] sm:$0xff]
    %v7068 = vld [vmem:[%s11 + $0x568] sm:$0xff]
    %v7069 = vld [vmem:[%s11 + $0x570] sm:$0xff]
    %v7070 = vld [vmem:[%s11 + $0x578] sm:$0xff]
    %v7071 = vld [vmem:[%s11 + $0x580] sm:$0xff]
    %v7072 = vld [vmem:[%s11 + $0x588] sm:$0xff]
    %v7073 = vld [vmem:[%s11 + $0x590] sm:$0xff]
    %v7074 = vld [vmem:[%s11 + $0x598] sm:$0xff]
    %v7075 = vld [vmem:[%s11 + $0x5a0] sm:$0xff]
    %v7076 = vld [vmem:[%s11 + $0x5a8] sm:$0xff]
    %v7077 = vld [vmem:[%s11 + $0x5b0] sm:$0xff]
    %v7078 = vld [vmem:[%s11 + $0x5b8] sm:$0xff]
    %v7079 = vld [vmem:[%s11 + $0x5c0] sm:$0xff]
    %v7080 = vld [vmem:[%s11 + $0x5c8] sm:$0xff]
    %v7081 = vld [vmem:[%s11 + $0x5d0] sm:$0xff]
    %v7082 = vld [vmem:[%s11 + $0x5d8] sm:$0xff]
    %v7083 = vld [vmem:[%s11 + $0x5e0] sm:$0xff]
    %v7084 = vld [vmem:[%s11 + $0x5e8] sm:$0xff]
    %v7085 = vld [vmem:[%s11 + $0x5f0] sm:$0xff]
    %v7086 = vld [vmem:[%s11 + $0x5f8] sm:$0xff]
    %v7087 = vld [vmem:[%s11 + $0x600] sm:$0xff]
    %v7088 = vld [vmem:[%s11 + $0x608] sm:$0xff]
    %v7089 = vld [vmem:[%s11 + $0x610] sm:$0xff]
    %v7090 = vld [vmem:[%s11 + $0x618] sm:$0xff]
    %v7091 = vld [vmem:[%s11 + $0x620] sm:$0xff]
    %v7092 = vld [vmem:[%s11 + $0x628] sm:$0xff]
    %v7093 = vld [vmem:[%s11 + $0x630] sm:$0xff]
    %v7094 = vld [vmem:[%s11 + $0x638] sm:$0xff]
    %v7095 = vld [vmem:[%s11 + $0x640] sm:$0xff]
    %v7096 = vld [vmem:[%s11 + $0x648] sm:$0xff]
    %v7097 = vld [vmem:[%s11 + $0x650] sm:$0xff]
    %v7098 = vld [vmem:[%s11 + $0x658] sm:$0xff]
    %v7099 = vld [vmem:[%s11 + $0x660] sm:$0xff]
    %v7100 = vld [vmem:[%s11 + $0x668] sm:$0xff]
    %v7101 = vld [vmem:[%s11 + $0x670] sm:$0xff]
    %v7102 = vld [vmem:[%s11 + $0x678] sm:$0xff]
    %v7103 = vld [vmem:[%s11 + $0x680] sm:$0xff]
    %v7104 = vld [vmem:[%s11 + $0x688] sm:$0xff]
    %v7105 = vld [vmem:[%s11 + $0x690] sm:$0xff]
    %v7106 = vld [vmem:[%s11 + $0x698] sm:$0xff]
    %v7107 = vld [vmem:[%s11 + $0x6a0] sm:$0xff]
    %v7108 = vld [vmem:[%s11 + $0x6a8] sm:$0xff]
    %v7109 = vld [vmem:[%s11 + $0x6b0] sm:$0xff]
    %v7110 = vld [vmem:[%s11 + $0x6b8] sm:$0xff]
    %v7111 = vld [vmem:[%s11 + $0x6c0] sm:$0xff]
    %v7112 = vld [vmem:[%s11 + $0x6c8] sm:$0xff]
    %v7113 = vld [vmem:[%s11 + $0x6d0] sm:$0xff]
    %v7114 = vld [vmem:[%s11 + $0x6d8] sm:$0xff]
    %v7115 = vld [vmem:[%s11 + $0x6e0] sm:$0xff]
    %v7116 = vld [vmem:[%s11 + $0x6e8] sm:$0xff]
    %v7117 = vld [vmem:[%s11 + $0x6f0] sm:$0xff]
    %v7118 = vld [vmem:[%s11 + $0x6f8] sm:$0xff]
    %v7119 = vld [vmem:[%s11 + $0x700] sm:$0xff]
    %v7120 = vld [vmem:[%s11 + $0x708] sm:$0xff]
    %v7121 = vld [vmem:[%s11 + $0x710] sm:$0xff]
    %v7122 = vld [vmem:[%s11 + $0x718] sm:$0xff]
    %v7123 = vld [vmem:[%s11 + $0x720] sm:$0xff]
    %v7124 = vld [vmem:[%s11 + $0x728] sm:$0xff]
    %v7125 = vld [vmem:[%s11 + $0x730] sm:$0xff]
    %v7126 = vld [vmem:[%s11 + $0x738] sm:$0xff]
    %v7127 = vld [vmem:[%s11 + $0x740] sm:$0xff]
    %v7128 = vld [vmem:[%s11 + $0x748] sm:$0xff]
    %v7129 = vld [vmem:[%s11 + $0x750] sm:$0xff]
    %v7130 = vld [vmem:[%s11 + $0x758] sm:$0xff]
    %v7131 = vld [vmem:[%s11 + $0x760] sm:$0xff]
    %v7132 = vld [vmem:[%s11 + $0x768] sm:$0xff]
    %v7133 = vld [vmem:[%s11 + $0x770] sm:$0xff]
    %v7134 = vld [vmem:[%s11 + $0x778] sm:$0xff]
    %v7135 = vld [vmem:[%s11 + $0x780] sm:$0xff]
    %v7136 = vld [vmem:[%s11 + $0x788] sm:$0xff]
    %v7137 = vld [vmem:[%s11 + $0x790] sm:$0xff]
    %v7138 = vld [vmem:[%s11 + $0x798] sm:$0xff]
    %v7139 = vld [vmem:[%s11 + $0x7a0] sm:$0xff]
    %v7140 = vld [vmem:[%s11 + $0x7a8] sm:$0xff]
    %v7141 = vld [vmem:[%s11 + $0x7b0] sm:$0xff]
    %v7142 = vld [vmem:[%s11 + $0x7b8] sm:$0xff]
    %v7143 = vld [vmem:[%s11 + $0x7c0] sm:$0xff]
    %v7144 = vld [vmem:[%s11 + $0x7c8] sm:$0xff]
    %v7145 = vld [vmem:[%s11 + $0x7d0] sm:$0xff]
    %v7146 = vld [vmem:[%s11 + $0x7d8] sm:$0xff]
    %v7147 = vld [vmem:[%s11 + $0x7e0] sm:$0xff]
    %v7148 = vld [vmem:[%s11 + $0x7e8] sm:$0xff]
    %v7149 = vld [vmem:[%s11 + $0x7f0] sm:$0xff]
    %v7150 = vld [vmem:[%s11 + $0x7f8] sm:$0xff]
    %v7151 = vld [vmem:[%s11 + $0x800] sm:$0xff]
    %v7152 = vld [vmem:[%s11 + $0x808] sm:$0xff]
    %v7153 = vld [vmem:[%s11 + $0x810] sm:$0xff]
    %v7154 = vld [vmem:[%s11 + $0x818] sm:$0xff]
    %v7155 = vld [vmem:[%s11 + $0x820] sm:$0xff]
    %v7156 = vld [vmem:[%s11 + $0x828] sm:$0xff]
    %v7157 = vld [vmem:[%s11 + $0x830] sm:$0xff]
    %v7158 = vld [vmem:[%s11 + $0x838] sm:$0xff]
    %v7159 = vld [vmem:[%s11 + $0x840] sm:$0xff]
    %v7160 = vld [vmem:[%s11 + $0x848] sm:$0xff]
    %v7161 = vld [vmem:[%s11 + $0x850] sm:$0xff]
    %v7162 = vld [vmem:[%s11 + $0x858] sm:$0xff]
    %v7163 = vld [vmem:[%s11 + $0x860] sm:$0xff]
    %v7164 = vld [vmem:[%s11 + $0x868] sm:$0xff]
    %v7165 = vld [vmem:[%s11 + $0x870] sm:$0xff]
    %v7166 = vld [vmem:[%s11 + $0x878] sm:$0xff]
    %v7167 = vld [vmem:[%s11 + $0x880] sm:$0xff]
    %v7168 = vld [vmem:[%s11 + $0x888] sm:$0xff]
    %v7169 = vld [vmem:[%s11 + $0x890] sm:$0xff]
    %v7170 = vld [vmem:[%s11 + $0x898] sm:$0xff]
    %v7171 = vld [vmem:[%s11 + $0x8a0] sm:$0xff]
    %v7172 = vld [vmem:[%s11 + $0x8a8] sm:$0xff]
    %v7173 = vld [vmem:[%s11 + $0x8b0] sm:$0xff]
    %v7174 = vld [vmem:[%s11 + $0x8b8] sm:$0xff]
    %v7175 = vld [vmem:[%s11 + $0x8c0] sm:$0xff]
    %v7176 = vld [vmem:[%s11 + $0x8c8] sm:$0xff]
    %v7177 = vld [vmem:[%s11 + $0x8d0] sm:$0xff]
    %v7178 = vld [vmem:[%s11 + $0x8d8] sm:$0xff]
    %v7179 = vld [vmem:[%s11 + $0x8e0] sm:$0xff]
    %v7180 = vld [vmem:[%s11 + $0x8e8] sm:$0xff]
    %v7181 = vld [vmem:[%s11 + $0x8f0] sm:$0xff]
    %v7182 = vld [vmem:[%s11 + $0x8f8] sm:$0xff]
    %v7183 = vld [vmem:[%s11 + $0x900] sm:$0xff]
    %v7184 = vld [vmem:[%s11 + $0x908] sm:$0xff]
    %v7185 = vld [vmem:[%s11 + $0x910] sm:$0xff]
    %v7186 = vld [vmem:[%s11 + $0x918] sm:$0xff]
    %v7187 = vld [vmem:[%s11 + $0x920] sm:$0xff]
    %v7188 = vld [vmem:[%s11 + $0x928] sm:$0xff]
    %v7189 = vld [vmem:[%s11 + $0x930] sm:$0xff]
    %v7190 = vld [vmem:[%s11 + $0x938] sm:$0xff]
    %v7191 = vld [vmem:[%s11 + $0x940] sm:$0xff]
    %v7192 = vld [vmem:[%s11 + $0x948] sm:$0xff]
    %v7193 = vld [vmem:[%s11 + $0x950] sm:$0xff]
    %v7194 = vld [vmem:[%s11 + $0x958] sm:$0xff]
    %v7195 = vld [vmem:[%s11 + $0x960] sm:$0xff]
    %v7196 = vld [vmem:[%s11 + $0x968] sm:$0xff]
    %v7197 = vld [vmem:[%s11 + $0x970] sm:$0xff]
    %v7198 = vld [vmem:[%s11 + $0x978] sm:$0xff]
    %v7199 = vld [vmem:[%s11 + $0x980] sm:$0xff]
    %v7200 = vld [vmem:[%s11 + $0x988] sm:$0xff]
    %v7201 = vld [vmem:[%s11 + $0x990] sm:$0xff]
    %v7202 = vld [vmem:[%s11 + $0x998] sm:$0xff]
    %v7203 = vld [vmem:[%s11 + $0x9a0] sm:$0xff]
    %v7204 = vld [vmem:[%s11 + $0x9a8] sm:$0xff]
    %v7205 = vld [vmem:[%s11 + $0x9b0] sm:$0xff]
    %v7206 = vld [vmem:[%s11 + $0x9b8] sm:$0xff]
    %v7207 = vld [vmem:[%s11 + $0x9c0] sm:$0xff]
    %v7208 = vld [vmem:[%s11 + $0x9c8] sm:$0xff]
    %v7209 = vld [vmem:[%s11 + $0x9d0] sm:$0xff]
    %v7210 = vld [vmem:[%s11 + $0x9d8] sm:$0xff]
    %v7211 = vld [vmem:[%s11 + $0x9e0] sm:$0xff]
    %v7212 = vld [vmem:[%s11 + $0x9e8] sm:$0xff]
    %v7213 = vld [vmem:[%s11 + $0x9f0] sm:$0xff]
    %v7214 = vld [vmem:[%s11 + $0x9f8] sm:$0xff]
    %v7215 = vld [vmem:[%s11 + $0xa00] sm:$0xff]
    %v7216 = vld [vmem:[%s11 + $0xa08] sm:$0xff]
    %v7217 = vld [vmem:[%s11 + $0xa10] sm:$0xff]
    %v7218 = vld [vmem:[%s11 + $0xa18] sm:$0xff]
    %v7219 = vld [vmem:[%s11 + $0xa20] sm:$0xff]
    %v7220 = vld [vmem:[%s11 + $0xa28] sm:$0xff]
    %v7221 = vld [vmem:[%s11 + $0xa30] sm:$0xff]
    %v7222 = vld [vmem:[%s11 + $0xa38] sm:$0xff]
    %v7223 = vld [vmem:[%s11 + $0xa40] sm:$0xff]
    %v7224 = vld [vmem:[%s11 + $0xa48] sm:$0xff]
    %v7225 = vld [vmem:[%s11 + $0xa50] sm:$0xff]
    %v7226 = vld [vmem:[%s11 + $0xa58] sm:$0xff]
    %v7227 = vld [vmem:[%s11 + $0xa60] sm:$0xff]
    %v7228 = vld [vmem:[%s11 + $0xa68] sm:$0xff]
    %v7229 = vld [vmem:[%s11 + $0xa70] sm:$0xff]
    %v7230 = vld [vmem:[%s11 + $0xa78] sm:$0xff]
    %v7231 = vld [vmem:[%s11 + $0xa80] sm:$0xff]
    %v7232 = vld [vmem:[%s11 + $0xa88] sm:$0xff]
    %v7233 = vld [vmem:[%s11 + $0xa90] sm:$0xff]
    %v7234 = vld [vmem:[%s11 + $0xa98] sm:$0xff]
    %v7235 = vld [vmem:[%s11 + $0xaa0] sm:$0xff]
    %v7236 = vld [vmem:[%s11 + $0xaa8] sm:$0xff]
    %v7237 = vld [vmem:[%s11 + $0xab0] sm:$0xff]
    %v7238 = vld [vmem:[%s11 + $0xab8] sm:$0xff]
    %v7239 = vld [vmem:[%s11 + $0xac0] sm:$0xff]
    %v7240 = vld [vmem:[%s11 + $0xac8] sm:$0xff]
    %v7241 = vld [vmem:[%s11 + $0xad0] sm:$0xff]
    %v7242 = vld [vmem:[%s11 + $0xad8] sm:$0xff]
    %v7243 = vld [vmem:[%s11 + $0xae0] sm:$0xff]
    %v7244 = vld [vmem:[%s11 + $0xae8] sm:$0xff]
    %v7245 = vld [vmem:[%s11 + $0xaf0] sm:$0xff]
    %v7246 = vld [vmem:[%s11 + $0xaf8] sm:$0xff]
    %v7247 = vld [vmem:[%s11 + $0xb00] sm:$0xff]
    %v7248 = vld [vmem:[%s11 + $0xb08] sm:$0xff]
    %v7249 = vld [vmem:[%s11 + $0xb10] sm:$0xff]
    %v7250 = vld [vmem:[%s11 + $0xb18] sm:$0xff]
    %v7251 = vld [vmem:[%s11 + $0xb20] sm:$0xff]
    %v7252 = vld [vmem:[%s11 + $0xb28] sm:$0xff]
    %v7253 = vld [vmem:[%s11 + $0xb30] sm:$0xff]
    %v7254 = vld [vmem:[%s11 + $0xb38] sm:$0xff]
    %v7255 = vld [vmem:[%s11 + $0xb40] sm:$0xff]
    %v7256 = vld [vmem:[%s11 + $0xb48] sm:$0xff]
    %v7257 = vld [vmem:[%s11 + $0xb50] sm:$0xff]
    %v7258 = vld [vmem:[%s11 + $0xb58] sm:$0xff]
    %v7259 = vld [vmem:[%s11 + $0xb60] sm:$0xff]
    %v7260 = vld [vmem:[%s11 + $0xb68] sm:$0xff]
    %v7261 = vld [vmem:[%s11 + $0xb70] sm:$0xff]
    %v7262 = vld [vmem:[%s11 + $0xb78] sm:$0xff]
    %v7263 = vld [vmem:[%s11 + $0xb80] sm:$0xff]
    %v7264 = vld [vmem:[%s11 + $0xb88] sm:$0xff]
    %v7265 = vld [vmem:[%s11 + $0xb90] sm:$0xff]
    %v7266 = vld [vmem:[%s11 + $0xb98] sm:$0xff]
    %v7267 = vld [vmem:[%s11 + $0xba0] sm:$0xff]
    %v7268 = vld [vmem:[%s11 + $0xba8] sm:$0xff]
    %v7269 = vld [vmem:[%s11 + $0xbb0] sm:$0xff]
    %v7270 = vld [vmem:[%s11 + $0xbb8] sm:$0xff]
    %v7271 = vld [vmem:[%s11 + $0xbc0] sm:$0xff]
    %v7272 = vld [vmem:[%s11 + $0xbc8] sm:$0xff]
    %v7273 = vld [vmem:[%s11 + $0xbd0] sm:$0xff]
    %v7274 = vld [vmem:[%s11 + $0xbd8] sm:$0xff]
    %v7275 = vld [vmem:[%s11 + $0xbe0] sm:$0xff]
    %v7276 = vld [vmem:[%s11 + $0xbe8] sm:$0xff]
    %v7277 = vld [vmem:[%s11 + $0xbf0] sm:$0xff]
    %v7278 = vld [vmem:[%s11 + $0xbf8] sm:$0xff]
    %v7279 = vld [vmem:[%s12] sm:$0xff]
    %v7280 = vld [vmem:[%s12 + $0x8] sm:$0xf]
    %v7283 = vperm.slane %v7279, 0
    %v7284 = vperm.slane %v7279, 1
    %v7285 = vperm.slane %v7279, 2
    %v7286 = vperm.slane %v7279, 3
    %v7287 = vperm.slane %v7279, 4
    %v7288 = vperm.slane %v7279, 5
    %v7289 = vperm.slane %v7279, 6
    %v7290 = vperm.slane %v7279, 7
    %v7291 = vperm.slane %v7280, 0
    %v7292 = vperm.slane %v7280, 1
    %v7293 = vperm.slane %v7280, 2
    %v7294 = vperm.slane %v7280, 3
    %v7691 = vunpack.c.l.b16 %v6895
    %v7692 = vunpack.c.h.b16 %v6895
    %v7693 = vunpack.c.l.b16 %v6896
    %v7694 = vunpack.c.h.b16 %v6896
    %v7695 = vunpack.c.l.b16 %v6897
    %v7696 = vunpack.c.h.b16 %v6897
    %v7697 = vunpack.c.l.b16 %v6898
    %v7698 = vunpack.c.h.b16 %v6898
    %v7699 = vunpack.c.l.b16 %v6899
    %v7700 = vunpack.c.h.b16 %v6899
    %v7701 = vunpack.c.l.b16 %v6900
    %v7702 = vunpack.c.h.b16 %v6900
    %v7703 = vunpack.c.l.b16 %v6901
    %v7704 = vunpack.c.h.b16 %v6901
    %v7705 = vunpack.c.l.b16 %v6902
    %v7706 = vunpack.c.h.b16 %v6902
    %v7707 = vunpack.c.l.b16 %v6903
    %v7708 = vunpack.c.h.b16 %v6903
    %v7709 = vunpack.c.l.b16 %v6904
    %v7710 = vunpack.c.h.b16 %v6904
    %v7711 = vunpack.c.l.b16 %v6905
    %v7712 = vunpack.c.h.b16 %v6905
    %v7713 = vunpack.c.l.b16 %v6906
    %v7714 = vunpack.c.h.b16 %v6906
    %v7715 = vunpack.c.l.b16 %v6907
    %v7716 = vunpack.c.h.b16 %v6907
    %v7717 = vunpack.c.l.b16 %v6908
    %v7718 = vunpack.c.h.b16 %v6908
    %v7719 = vunpack.c.l.b16 %v6909
    %v7720 = vunpack.c.h.b16 %v6909
    %v7721 = vunpack.c.l.b16 %v6910
    %v7722 = vunpack.c.h.b16 %v6910
    %v7723 = vunpack.c.l.b16 %v6911
    %v7724 = vunpack.c.h.b16 %v6911
    %v7725 = vunpack.c.l.b16 %v6912
    %v7726 = vunpack.c.h.b16 %v6912
    %v7727 = vunpack.c.l.b16 %v6913
    %v7728 = vunpack.c.h.b16 %v6913
    %v7729 = vunpack.c.l.b16 %v6914
    %v7730 = vunpack.c.h.b16 %v6914
    %v7731 = vunpack.c.l.b16 %v6915
    %v7732 = vunpack.c.h.b16 %v6915
    %v7733 = vunpack.c.l.b16 %v6916
    %v7734 = vunpack.c.h.b16 %v6916
    %v7735 = vunpack.c.l.b16 %v6917
    %v7736 = vunpack.c.h.b16 %v6917
    %v7737 = vunpack.c.l.b16 %v6918
    %v7738 = vunpack.c.h.b16 %v6918
    %v7739 = vunpack.c.l.b16 %v6919
    %v7740 = vunpack.c.h.b16 %v6919
    %v7741 = vunpack.c.l.b16 %v6920
    %v7742 = vunpack.c.h.b16 %v6920
    %v7743 = vunpack.c.l.b16 %v6921
    %v7744 = vunpack.c.h.b16 %v6921
    %v7745 = vunpack.c.l.b16 %v6922
    %v7746 = vunpack.c.h.b16 %v6922
    %v7747 = vunpack.c.l.b16 %v6923
    %v7748 = vunpack.c.h.b16 %v6923
    %v7749 = vunpack.c.l.b16 %v6924
    %v7750 = vunpack.c.h.b16 %v6924
    %v7751 = vunpack.c.l.b16 %v6925
    %v7752 = vunpack.c.h.b16 %v6925
    %v7753 = vunpack.c.l.b16 %v6926
    %v7754 = vunpack.c.h.b16 %v6926
    %v7755 = vunpack.c.l.b16 %v6927
    %v7756 = vunpack.c.h.b16 %v6927
    %v7757 = vunpack.c.l.b16 %v6928
    %v7758 = vunpack.c.h.b16 %v6928
    %v7759 = vunpack.c.l.b16 %v6929
    %v7760 = vunpack.c.h.b16 %v6929
    %v7761 = vunpack.c.l.b16 %v6930
    %v7762 = vunpack.c.h.b16 %v6930
    %v7763 = vunpack.c.l.b16 %v6931
    %v7764 = vunpack.c.h.b16 %v6931
    %v7765 = vunpack.c.l.b16 %v6932
    %v7766 = vunpack.c.h.b16 %v6932
    %v7767 = vunpack.c.l.b16 %v6933
    %v7768 = vunpack.c.h.b16 %v6933
    %v7769 = vunpack.c.l.b16 %v6934
    %v7770 = vunpack.c.h.b16 %v6934
    %v7771 = vunpack.c.l.b16 %v6935
    %v7772 = vunpack.c.h.b16 %v6935
    %v7773 = vunpack.c.l.b16 %v6936
    %v7774 = vunpack.c.h.b16 %v6936
    %v7775 = vunpack.c.l.b16 %v6937
    %v7776 = vunpack.c.h.b16 %v6937
    %v7777 = vunpack.c.l.b16 %v6938
    %v7778 = vunpack.c.h.b16 %v6938
    %v7779 = vunpack.c.l.b16 %v6939
    %v7780 = vunpack.c.h.b16 %v6939
    %v7781 = vunpack.c.l.b16 %v6940
    %v7782 = vunpack.c.h.b16 %v6940
    %v7783 = vunpack.c.l.b16 %v6941
    %v7784 = vunpack.c.h.b16 %v6941
    %v7785 = vunpack.c.l.b16 %v6942
    %v7786 = vunpack.c.h.b16 %v6942
    %v7787 = vunpack.c.l.b16 %v6943
    %v7788 = vunpack.c.h.b16 %v6943
    %v7789 = vunpack.c.l.b16 %v6944
    %v7790 = vunpack.c.h.b16 %v6944
    %v7791 = vunpack.c.l.b16 %v6945
    %v7792 = vunpack.c.h.b16 %v6945
    %v7793 = vunpack.c.l.b16 %v6946
    %v7794 = vunpack.c.h.b16 %v6946
    %v7795 = vunpack.c.l.b16 %v6947
    %v7796 = vunpack.c.h.b16 %v6947
    %v7797 = vunpack.c.l.b16 %v6948
    %v7798 = vunpack.c.h.b16 %v6948
    %v7799 = vunpack.c.l.b16 %v6949
    %v7800 = vunpack.c.h.b16 %v6949
    %v7801 = vunpack.c.l.b16 %v6950
    %v7802 = vunpack.c.h.b16 %v6950
    %v7803 = vunpack.c.l.b16 %v6951
    %v7804 = vunpack.c.h.b16 %v6951
    %v7805 = vunpack.c.l.b16 %v6952
    %v7806 = vunpack.c.h.b16 %v6952
    %v7807 = vunpack.c.l.b16 %v6953
    %v7808 = vunpack.c.h.b16 %v6953
    %v7809 = vunpack.c.l.b16 %v6954
    %v7810 = vunpack.c.h.b16 %v6954
    %v7811 = vunpack.c.l.b16 %v6955
    %v7812 = vunpack.c.h.b16 %v6955
    %v7813 = vunpack.c.l.b16 %v6956
    %v7814 = vunpack.c.h.b16 %v6956
    %v7815 = vunpack.c.l.b16 %v6957
    %v7816 = vunpack.c.h.b16 %v6957
    %v7817 = vunpack.c.l.b16 %v6958
    %v7818 = vunpack.c.h.b16 %v6958
    %v7819 = vunpack.c.l.b16 %v6959
    %v7820 = vunpack.c.h.b16 %v6959
    %v7821 = vunpack.c.l.b16 %v6960
    %v7822 = vunpack.c.h.b16 %v6960
    %v7823 = vunpack.c.l.b16 %v6961
    %v7824 = vunpack.c.h.b16 %v6961
    %v7825 = vunpack.c.l.b16 %v6962
    %v7826 = vunpack.c.h.b16 %v6962
    %v7827 = vunpack.c.l.b16 %v6963
    %v7828 = vunpack.c.h.b16 %v6963
    %v7829 = vunpack.c.l.b16 %v6964
    %v7830 = vunpack.c.h.b16 %v6964
    %v7831 = vunpack.c.l.b16 %v6965
    %v7832 = vunpack.c.h.b16 %v6965
    %v7833 = vunpack.c.l.b16 %v6966
    %v7834 = vunpack.c.h.b16 %v6966
    %v7835 = vunpack.c.l.b16 %v6967
    %v7836 = vunpack.c.h.b16 %v6967
    %v7837 = vunpack.c.l.b16 %v6968
    %v7838 = vunpack.c.h.b16 %v6968
    %v7839 = vunpack.c.l.b16 %v6969
    %v7840 = vunpack.c.h.b16 %v6969
    %v7841 = vunpack.c.l.b16 %v6970
    %v7842 = vunpack.c.h.b16 %v6970
    %v7843 = vunpack.c.l.b16 %v6971
    %v7844 = vunpack.c.h.b16 %v6971
    %v7845 = vunpack.c.l.b16 %v6972
    %v7846 = vunpack.c.h.b16 %v6972
    %v7847 = vunpack.c.l.b16 %v6973
    %v7848 = vunpack.c.h.b16 %v6973
    %v7849 = vunpack.c.l.b16 %v6974
    %v7850 = vunpack.c.h.b16 %v6974
    %v7851 = vunpack.c.l.b16 %v6975
    %v7852 = vunpack.c.h.b16 %v6975
    %v7853 = vunpack.c.l.b16 %v6976
    %v7854 = vunpack.c.h.b16 %v6976
    %v7855 = vunpack.c.l.b16 %v6977
    %v7856 = vunpack.c.h.b16 %v6977
    %v7857 = vunpack.c.l.b16 %v6978
    %v7858 = vunpack.c.h.b16 %v6978
    %v7859 = vunpack.c.l.b16 %v6979
    %v7860 = vunpack.c.h.b16 %v6979
    %v7861 = vunpack.c.l.b16 %v6980
    %v7862 = vunpack.c.h.b16 %v6980
    %v7863 = vunpack.c.l.b16 %v6981
    %v7864 = vunpack.c.h.b16 %v6981
    %v7865 = vunpack.c.l.b16 %v6982
    %v7866 = vunpack.c.h.b16 %v6982
    %v7867 = vunpack.c.l.b16 %v6983
    %v7868 = vunpack.c.h.b16 %v6983
    %v7869 = vunpack.c.l.b16 %v6984
    %v7870 = vunpack.c.h.b16 %v6984
    %v7871 = vunpack.c.l.b16 %v6985
    %v7872 = vunpack.c.h.b16 %v6985
    %v7873 = vunpack.c.l.b16 %v6986
    %v7874 = vunpack.c.h.b16 %v6986
    %v7875 = vunpack.c.l.b16 %v6987
    %v7876 = vunpack.c.h.b16 %v6987
    %v7877 = vunpack.c.l.b16 %v6988
    %v7878 = vunpack.c.h.b16 %v6988
    %v7879 = vunpack.c.l.b16 %v6989
    %v7880 = vunpack.c.h.b16 %v6989
    %v7881 = vunpack.c.l.b16 %v6990
    %v7882 = vunpack.c.h.b16 %v6990
    %v7883 = vunpack.c.l.b16 %v6991
    %v7884 = vunpack.c.h.b16 %v6991
    %v7885 = vunpack.c.l.b16 %v6992
    %v7886 = vunpack.c.h.b16 %v6992
    %v7887 = vunpack.c.l.b16 %v6993
    %v7888 = vunpack.c.h.b16 %v6993
    %v7889 = vunpack.c.l.b16 %v6994
    %v7890 = vunpack.c.h.b16 %v6994
    %v7891 = vunpack.c.l.b16 %v6995
    %v7892 = vunpack.c.h.b16 %v6995
    %v7893 = vunpack.c.l.b16 %v6996
    %v7894 = vunpack.c.h.b16 %v6996
    %v7895 = vunpack.c.l.b16 %v6997
    %v7896 = vunpack.c.h.b16 %v6997
    %v7897 = vunpack.c.l.b16 %v6998
    %v7898 = vunpack.c.h.b16 %v6998
    %v7899 = vunpack.c.l.b16 %v6999
    %v7900 = vunpack.c.h.b16 %v6999
    %v7901 = vunpack.c.l.b16 %v7000
    %v7902 = vunpack.c.h.b16 %v7000
    %v7903 = vunpack.c.l.b16 %v7001
    %v7904 = vunpack.c.h.b16 %v7001
    %v7905 = vunpack.c.l.b16 %v7002
    %v7906 = vunpack.c.h.b16 %v7002
    %v7907 = vunpack.c.l.b16 %v7003
    %v7908 = vunpack.c.h.b16 %v7003
    %v7909 = vunpack.c.l.b16 %v7004
    %v7910 = vunpack.c.h.b16 %v7004
    %v7911 = vunpack.c.l.b16 %v7005
    %v7912 = vunpack.c.h.b16 %v7005
    %v7913 = vunpack.c.l.b16 %v7006
    %v7914 = vunpack.c.h.b16 %v7006
    %v7915 = vunpack.c.l.b16 %v7007
    %v7916 = vunpack.c.h.b16 %v7007
    %v7917 = vunpack.c.l.b16 %v7008
    %v7918 = vunpack.c.h.b16 %v7008
    %v7919 = vunpack.c.l.b16 %v7009
    %v7920 = vunpack.c.h.b16 %v7009
    %v7921 = vunpack.c.l.b16 %v7010
    %v7922 = vunpack.c.h.b16 %v7010
    %v7923 = vunpack.c.l.b16 %v7011
    %v7924 = vunpack.c.h.b16 %v7011
    %v7925 = vunpack.c.l.b16 %v7012
    %v7926 = vunpack.c.h.b16 %v7012
    %v7927 = vunpack.c.l.b16 %v7013
    %v7928 = vunpack.c.h.b16 %v7013
    %v7929 = vunpack.c.l.b16 %v7014
    %v7930 = vunpack.c.h.b16 %v7014
    %v7931 = vunpack.c.l.b16 %v7015
    %v7932 = vunpack.c.h.b16 %v7015
    %v7933 = vunpack.c.l.b16 %v7016
    %v7934 = vunpack.c.h.b16 %v7016
    %v7935 = vunpack.c.l.b16 %v7017
    %v7936 = vunpack.c.h.b16 %v7017
    %v7937 = vunpack.c.l.b16 %v7018
    %v7938 = vunpack.c.h.b16 %v7018
    %v7939 = vunpack.c.l.b16 %v7019
    %v7940 = vunpack.c.h.b16 %v7019
    %v7941 = vunpack.c.l.b16 %v7020
    %v7942 = vunpack.c.h.b16 %v7020
    %v7943 = vunpack.c.l.b16 %v7021
    %v7944 = vunpack.c.h.b16 %v7021
    %v7945 = vunpack.c.l.b16 %v7022
    %v7946 = vunpack.c.h.b16 %v7022
    %v7947 = vunpack.c.l.b16 %v7023
    %v7948 = vunpack.c.h.b16 %v7023
    %v7949 = vunpack.c.l.b16 %v7024
    %v7950 = vunpack.c.h.b16 %v7024
    %v7951 = vunpack.c.l.b16 %v7025
    %v7952 = vunpack.c.h.b16 %v7025
    %v7953 = vunpack.c.l.b16 %v7026
    %v7954 = vunpack.c.h.b16 %v7026
    %v7955 = vunpack.c.l.b16 %v7027
    %v7956 = vunpack.c.h.b16 %v7027
    %v7957 = vunpack.c.l.b16 %v7028
    %v7958 = vunpack.c.h.b16 %v7028
    %v7959 = vunpack.c.l.b16 %v7029
    %v7960 = vunpack.c.h.b16 %v7029
    %v7961 = vunpack.c.l.b16 %v7030
    %v7962 = vunpack.c.h.b16 %v7030
    %v7963 = vunpack.c.l.b16 %v7031
    %v7964 = vunpack.c.h.b16 %v7031
    %v7965 = vunpack.c.l.b16 %v7032
    %v7966 = vunpack.c.h.b16 %v7032
    %v7967 = vunpack.c.l.b16 %v7033
    %v7968 = vunpack.c.h.b16 %v7033
    %v7969 = vunpack.c.l.b16 %v7034
    %v7970 = vunpack.c.h.b16 %v7034
    %v7971 = vunpack.c.l.b16 %v7035
    %v7972 = vunpack.c.h.b16 %v7035
    %v7973 = vunpack.c.l.b16 %v7036
    %v7974 = vunpack.c.h.b16 %v7036
    %v7975 = vunpack.c.l.b16 %v7037
    %v7976 = vunpack.c.h.b16 %v7037
    %v7977 = vunpack.c.l.b16 %v7038
    %v7978 = vunpack.c.h.b16 %v7038
    %v7979 = vunpack.c.l.b16 %v7039
    %v7980 = vunpack.c.h.b16 %v7039
    %v7981 = vunpack.c.l.b16 %v7040
    %v7982 = vunpack.c.h.b16 %v7040
    %v7983 = vunpack.c.l.b16 %v7041
    %v7984 = vunpack.c.h.b16 %v7041
    %v7985 = vunpack.c.l.b16 %v7042
    %v7986 = vunpack.c.h.b16 %v7042
    %v7987 = vunpack.c.l.b16 %v7043
    %v7988 = vunpack.c.h.b16 %v7043
    %v7989 = vunpack.c.l.b16 %v7044
    %v7990 = vunpack.c.h.b16 %v7044
    %v7991 = vunpack.c.l.b16 %v7045
    %v7992 = vunpack.c.h.b16 %v7045
    %v7993 = vunpack.c.l.b16 %v7046
    %v7994 = vunpack.c.h.b16 %v7046
    %v7995 = vunpack.c.l.b16 %v7047
    %v7996 = vunpack.c.h.b16 %v7047
    %v7997 = vunpack.c.l.b16 %v7048
    %v7998 = vunpack.c.h.b16 %v7048
    %v7999 = vunpack.c.l.b16 %v7049
    %v8000 = vunpack.c.h.b16 %v7049
    %v8001 = vunpack.c.l.b16 %v7050
    %v8002 = vunpack.c.h.b16 %v7050
    %v8003 = vunpack.c.l.b16 %v7051
    %v8004 = vunpack.c.h.b16 %v7051
    %v8005 = vunpack.c.l.b16 %v7052
    %v8006 = vunpack.c.h.b16 %v7052
    %v8007 = vunpack.c.l.b16 %v7053
    %v8008 = vunpack.c.h.b16 %v7053
    %v8009 = vunpack.c.l.b16 %v7054
    %v8010 = vunpack.c.h.b16 %v7054
    %v8011 = vunpack.c.l.b16 %v7055
    %v8012 = vunpack.c.h.b16 %v7055
    %v8013 = vunpack.c.l.b16 %v7056
    %v8014 = vunpack.c.h.b16 %v7056
    %v8015 = vunpack.c.l.b16 %v7057
    %v8016 = vunpack.c.h.b16 %v7057
    %v8017 = vunpack.c.l.b16 %v7058
    %v8018 = vunpack.c.h.b16 %v7058
    %v8019 = vunpack.c.l.b16 %v7059
    %v8020 = vunpack.c.h.b16 %v7059
    %v8021 = vunpack.c.l.b16 %v7060
    %v8022 = vunpack.c.h.b16 %v7060
    %v8023 = vunpack.c.l.b16 %v7061
    %v8024 = vunpack.c.h.b16 %v7061
    %v8025 = vunpack.c.l.b16 %v7062
    %v8026 = vunpack.c.h.b16 %v7062
    %v8027 = vunpack.c.l.b16 %v7063
    %v8028 = vunpack.c.h.b16 %v7063
    %v8029 = vunpack.c.l.b16 %v7064
    %v8030 = vunpack.c.h.b16 %v7064
    %v8031 = vunpack.c.l.b16 %v7065
    %v8032 = vunpack.c.h.b16 %v7065
    %v8033 = vunpack.c.l.b16 %v7066
    %v8034 = vunpack.c.h.b16 %v7066
    %v8035 = vunpack.c.l.b16 %v7067
    %v8036 = vunpack.c.h.b16 %v7067
    %v8037 = vunpack.c.l.b16 %v7068
    %v8038 = vunpack.c.h.b16 %v7068
    %v8039 = vunpack.c.l.b16 %v7069
    %v8040 = vunpack.c.h.b16 %v7069
    %v8041 = vunpack.c.l.b16 %v7070
    %v8042 = vunpack.c.h.b16 %v7070
    %v8043 = vunpack.c.l.b16 %v7071
    %v8044 = vunpack.c.h.b16 %v7071
    %v8045 = vunpack.c.l.b16 %v7072
    %v8046 = vunpack.c.h.b16 %v7072
    %v8047 = vunpack.c.l.b16 %v7073
    %v8048 = vunpack.c.h.b16 %v7073
    %v8049 = vunpack.c.l.b16 %v7074
    %v8050 = vunpack.c.h.b16 %v7074
    %v8051 = vunpack.c.l.b16 %v7075
    %v8052 = vunpack.c.h.b16 %v7075
    %v8053 = vunpack.c.l.b16 %v7076
    %v8054 = vunpack.c.h.b16 %v7076
    %v8055 = vunpack.c.l.b16 %v7077
    %v8056 = vunpack.c.h.b16 %v7077
    %v8057 = vunpack.c.l.b16 %v7078
    %v8058 = vunpack.c.h.b16 %v7078
    %v8059 = vunpack.c.l.b16 %v7079
    %v8060 = vunpack.c.h.b16 %v7079
    %v8061 = vunpack.c.l.b16 %v7080
    %v8062 = vunpack.c.h.b16 %v7080
    %v8063 = vunpack.c.l.b16 %v7081
    %v8064 = vunpack.c.h.b16 %v7081
    %v8065 = vunpack.c.l.b16 %v7082
    %v8066 = vunpack.c.h.b16 %v7082
    %v8067 = vunpack.c.l.b16 %v7083
    %v8068 = vunpack.c.h.b16 %v7083
    %v8069 = vunpack.c.l.b16 %v7084
    %v8070 = vunpack.c.h.b16 %v7084
    %v8071 = vunpack.c.l.b16 %v7085
    %v8072 = vunpack.c.h.b16 %v7085
    %v8073 = vunpack.c.l.b16 %v7086
    %v8074 = vunpack.c.h.b16 %v7086
    %v8075 = vunpack.c.l.b16 %v7087
    %v8076 = vunpack.c.h.b16 %v7087
    %v8077 = vunpack.c.l.b16 %v7088
    %v8078 = vunpack.c.h.b16 %v7088
    %v8079 = vunpack.c.l.b16 %v7089
    %v8080 = vunpack.c.h.b16 %v7089
    %v8081 = vunpack.c.l.b16 %v7090
    %v8082 = vunpack.c.h.b16 %v7090
    %v8083 = vunpack.c.l.b16 %v7091
    %v8084 = vunpack.c.h.b16 %v7091
    %v8085 = vunpack.c.l.b16 %v7092
    %v8086 = vunpack.c.h.b16 %v7092
    %v8087 = vunpack.c.l.b16 %v7093
    %v8088 = vunpack.c.h.b16 %v7093
    %v8089 = vunpack.c.l.b16 %v7094
    %v8090 = vunpack.c.h.b16 %v7094
    %v8091 = vunpack.c.l.b16 %v7095
    %v8092 = vunpack.c.h.b16 %v7095
    %v8093 = vunpack.c.l.b16 %v7096
    %v8094 = vunpack.c.h.b16 %v7096
    %v8095 = vunpack.c.l.b16 %v7097
    %v8096 = vunpack.c.h.b16 %v7097
    %v8097 = vunpack.c.l.b16 %v7098
    %v8098 = vunpack.c.h.b16 %v7098
    %v8099 = vunpack.c.l.b16 %v7099
    %v8100 = vunpack.c.h.b16 %v7099
    %v8101 = vunpack.c.l.b16 %v7100
    %v8102 = vunpack.c.h.b16 %v7100
    %v8103 = vunpack.c.l.b16 %v7101
    %v8104 = vunpack.c.h.b16 %v7101
    %v8105 = vunpack.c.l.b16 %v7102
    %v8106 = vunpack.c.h.b16 %v7102
    %v8107 = vunpack.c.l.b16 %v7103
    %v8108 = vunpack.c.h.b16 %v7103
    %v8109 = vunpack.c.l.b16 %v7104
    %v8110 = vunpack.c.h.b16 %v7104
    %v8111 = vunpack.c.l.b16 %v7105
    %v8112 = vunpack.c.h.b16 %v7105
    %v8113 = vunpack.c.l.b16 %v7106
    %v8114 = vunpack.c.h.b16 %v7106
    %v8115 = vunpack.c.l.b16 %v7107
    %v8116 = vunpack.c.h.b16 %v7107
    %v8117 = vunpack.c.l.b16 %v7108
    %v8118 = vunpack.c.h.b16 %v7108
    %v8119 = vunpack.c.l.b16 %v7109
    %v8120 = vunpack.c.h.b16 %v7109
    %v8121 = vunpack.c.l.b16 %v7110
    %v8122 = vunpack.c.h.b16 %v7110
    %v8123 = vunpack.c.l.b16 %v7111
    %v8124 = vunpack.c.h.b16 %v7111
    %v8125 = vunpack.c.l.b16 %v7112
    %v8126 = vunpack.c.h.b16 %v7112
    %v8127 = vunpack.c.l.b16 %v7113
    %v8128 = vunpack.c.h.b16 %v7113
    %v8129 = vunpack.c.l.b16 %v7114
    %v8130 = vunpack.c.h.b16 %v7114
    %v8131 = vunpack.c.l.b16 %v7115
    %v8132 = vunpack.c.h.b16 %v7115
    %v8133 = vunpack.c.l.b16 %v7116
    %v8134 = vunpack.c.h.b16 %v7116
    %v8135 = vunpack.c.l.b16 %v7117
    %v8136 = vunpack.c.h.b16 %v7117
    %v8137 = vunpack.c.l.b16 %v7118
    %v8138 = vunpack.c.h.b16 %v7118
    %v8139 = vunpack.c.l.b16 %v7119
    %v8140 = vunpack.c.h.b16 %v7119
    %v8141 = vunpack.c.l.b16 %v7120
    %v8142 = vunpack.c.h.b16 %v7120
    %v8143 = vunpack.c.l.b16 %v7121
    %v8144 = vunpack.c.h.b16 %v7121
    %v8145 = vunpack.c.l.b16 %v7122
    %v8146 = vunpack.c.h.b16 %v7122
    %v8147 = vunpack.c.l.b16 %v7123
    %v8148 = vunpack.c.h.b16 %v7123
    %v8149 = vunpack.c.l.b16 %v7124
    %v8150 = vunpack.c.h.b16 %v7124
    %v8151 = vunpack.c.l.b16 %v7125
    %v8152 = vunpack.c.h.b16 %v7125
    %v8153 = vunpack.c.l.b16 %v7126
    %v8154 = vunpack.c.h.b16 %v7126
    %v8155 = vunpack.c.l.b16 %v7127
    %v8156 = vunpack.c.h.b16 %v7127
    %v8157 = vunpack.c.l.b16 %v7128
    %v8158 = vunpack.c.h.b16 %v7128
    %v8159 = vunpack.c.l.b16 %v7129
    %v8160 = vunpack.c.h.b16 %v7129
    %v8161 = vunpack.c.l.b16 %v7130
    %v8162 = vunpack.c.h.b16 %v7130
    %v8163 = vunpack.c.l.b16 %v7131
    %v8164 = vunpack.c.h.b16 %v7131
    %v8165 = vunpack.c.l.b16 %v7132
    %v8166 = vunpack.c.h.b16 %v7132
    %v8167 = vunpack.c.l.b16 %v7133
    %v8168 = vunpack.c.h.b16 %v7133
    %v8169 = vunpack.c.l.b16 %v7134
    %v8170 = vunpack.c.h.b16 %v7134
    %v8171 = vunpack.c.l.b16 %v7135
    %v8172 = vunpack.c.h.b16 %v7135
    %v8173 = vunpack.c.l.b16 %v7136
    %v8174 = vunpack.c.h.b16 %v7136
    %v8175 = vunpack.c.l.b16 %v7137
    %v8176 = vunpack.c.h.b16 %v7137
    %v8177 = vunpack.c.l.b16 %v7138
    %v8178 = vunpack.c.h.b16 %v7138
    %v8179 = vunpack.c.l.b16 %v7139
    %v8180 = vunpack.c.h.b16 %v7139
    %v8181 = vunpack.c.l.b16 %v7140
    %v8182 = vunpack.c.h.b16 %v7140
    %v8183 = vunpack.c.l.b16 %v7141
    %v8184 = vunpack.c.h.b16 %v7141
    %v8185 = vunpack.c.l.b16 %v7142
    %v8186 = vunpack.c.h.b16 %v7142
    %v8187 = vunpack.c.l.b16 %v7143
    %v8188 = vunpack.c.h.b16 %v7143
    %v8189 = vunpack.c.l.b16 %v7144
    %v8190 = vunpack.c.h.b16 %v7144
    %v8191 = vunpack.c.l.b16 %v7145
    %v8192 = vunpack.c.h.b16 %v7145
    %v8193 = vunpack.c.l.b16 %v7146
    %v8194 = vunpack.c.h.b16 %v7146
    %v8195 = vunpack.c.l.b16 %v7147
    %v8196 = vunpack.c.h.b16 %v7147
    %v8197 = vunpack.c.l.b16 %v7148
    %v8198 = vunpack.c.h.b16 %v7148
    %v8199 = vunpack.c.l.b16 %v7149
    %v8200 = vunpack.c.h.b16 %v7149
    %v8201 = vunpack.c.l.b16 %v7150
    %v8202 = vunpack.c.h.b16 %v7150
    %v8203 = vunpack.c.l.b16 %v7151
    %v8204 = vunpack.c.h.b16 %v7151
    %v8205 = vunpack.c.l.b16 %v7152
    %v8206 = vunpack.c.h.b16 %v7152
    %v8207 = vunpack.c.l.b16 %v7153
    %v8208 = vunpack.c.h.b16 %v7153
    %v8209 = vunpack.c.l.b16 %v7154
    %v8210 = vunpack.c.h.b16 %v7154
    %v8211 = vunpack.c.l.b16 %v7155
    %v8212 = vunpack.c.h.b16 %v7155
    %v8213 = vunpack.c.l.b16 %v7156
    %v8214 = vunpack.c.h.b16 %v7156
    %v8215 = vunpack.c.l.b16 %v7157
    %v8216 = vunpack.c.h.b16 %v7157
    %v8217 = vunpack.c.l.b16 %v7158
    %v8218 = vunpack.c.h.b16 %v7158
    %v8219 = vunpack.c.l.b16 %v7159
    %v8220 = vunpack.c.h.b16 %v7159
    %v8221 = vunpack.c.l.b16 %v7160
    %v8222 = vunpack.c.h.b16 %v7160
    %v8223 = vunpack.c.l.b16 %v7161
    %v8224 = vunpack.c.h.b16 %v7161
    %v8225 = vunpack.c.l.b16 %v7162
    %v8226 = vunpack.c.h.b16 %v7162
    %v8227 = vunpack.c.l.b16 %v7163
    %v8228 = vunpack.c.h.b16 %v7163
    %v8229 = vunpack.c.l.b16 %v7164
    %v8230 = vunpack.c.h.b16 %v7164
    %v8231 = vunpack.c.l.b16 %v7165
    %v8232 = vunpack.c.h.b16 %v7165
    %v8233 = vunpack.c.l.b16 %v7166
    %v8234 = vunpack.c.h.b16 %v7166
    %v8235 = vunpack.c.l.b16 %v7167
    %v8236 = vunpack.c.h.b16 %v7167
    %v8237 = vunpack.c.l.b16 %v7168
    %v8238 = vunpack.c.h.b16 %v7168
    %v8239 = vunpack.c.l.b16 %v7169
    %v8240 = vunpack.c.h.b16 %v7169
    %v8241 = vunpack.c.l.b16 %v7170
    %v8242 = vunpack.c.h.b16 %v7170
    %v8243 = vunpack.c.l.b16 %v7171
    %v8244 = vunpack.c.h.b16 %v7171
    %v8245 = vunpack.c.l.b16 %v7172
    %v8246 = vunpack.c.h.b16 %v7172
    %v8247 = vunpack.c.l.b16 %v7173
    %v8248 = vunpack.c.h.b16 %v7173
    %v8249 = vunpack.c.l.b16 %v7174
    %v8250 = vunpack.c.h.b16 %v7174
    %v8251 = vunpack.c.l.b16 %v7175
    %v8252 = vunpack.c.h.b16 %v7175
    %v8253 = vunpack.c.l.b16 %v7176
    %v8254 = vunpack.c.h.b16 %v7176
    %v8255 = vunpack.c.l.b16 %v7177
    %v8256 = vunpack.c.h.b16 %v7177
    %v8257 = vunpack.c.l.b16 %v7178
    %v8258 = vunpack.c.h.b16 %v7178
    %v8259 = vunpack.c.l.b16 %v7179
    %v8260 = vunpack.c.h.b16 %v7179
    %v8261 = vunpack.c.l.b16 %v7180
    %v8262 = vunpack.c.h.b16 %v7180
    %v8263 = vunpack.c.l.b16 %v7181
    %v8264 = vunpack.c.h.b16 %v7181
    %v8265 = vunpack.c.l.b16 %v7182
    %v8266 = vunpack.c.h.b16 %v7182
    %v8267 = vunpack.c.l.b16 %v7183
    %v8268 = vunpack.c.h.b16 %v7183
    %v8269 = vunpack.c.l.b16 %v7184
    %v8270 = vunpack.c.h.b16 %v7184
    %v8271 = vunpack.c.l.b16 %v7185
    %v8272 = vunpack.c.h.b16 %v7185
    %v8273 = vunpack.c.l.b16 %v7186
    %v8274 = vunpack.c.h.b16 %v7186
    %v8275 = vunpack.c.l.b16 %v7187
    %v8276 = vunpack.c.h.b16 %v7187
    %v8277 = vunpack.c.l.b16 %v7188
    %v8278 = vunpack.c.h.b16 %v7188
    %v8279 = vunpack.c.l.b16 %v7189
    %v8280 = vunpack.c.h.b16 %v7189
    %v8281 = vunpack.c.l.b16 %v7190
    %v8282 = vunpack.c.h.b16 %v7190
    %v8283 = vunpack.c.l.b16 %v7191
    %v8284 = vunpack.c.h.b16 %v7191
    %v8285 = vunpack.c.l.b16 %v7192
    %v8286 = vunpack.c.h.b16 %v7192
    %v8287 = vunpack.c.l.b16 %v7193
    %v8288 = vunpack.c.h.b16 %v7193
    %v8289 = vunpack.c.l.b16 %v7194
    %v8290 = vunpack.c.h.b16 %v7194
    %v8291 = vunpack.c.l.b16 %v7195
    %v8292 = vunpack.c.h.b16 %v7195
    %v8293 = vunpack.c.l.b16 %v7196
    %v8294 = vunpack.c.h.b16 %v7196
    %v8295 = vunpack.c.l.b16 %v7197
    %v8296 = vunpack.c.h.b16 %v7197
    %v8297 = vunpack.c.l.b16 %v7198
    %v8298 = vunpack.c.h.b16 %v7198
    %v8299 = vunpack.c.l.b16 %v7199
    %v8300 = vunpack.c.h.b16 %v7199
    %v8301 = vunpack.c.l.b16 %v7200
    %v8302 = vunpack.c.h.b16 %v7200
    %v8303 = vunpack.c.l.b16 %v7201
    %v8304 = vunpack.c.h.b16 %v7201
    %v8305 = vunpack.c.l.b16 %v7202
    %v8306 = vunpack.c.h.b16 %v7202
    %v8307 = vunpack.c.l.b16 %v7203
    %v8308 = vunpack.c.h.b16 %v7203
    %v8309 = vunpack.c.l.b16 %v7204
    %v8310 = vunpack.c.h.b16 %v7204
    %v8311 = vunpack.c.l.b16 %v7205
    %v8312 = vunpack.c.h.b16 %v7205
    %v8313 = vunpack.c.l.b16 %v7206
    %v8314 = vunpack.c.h.b16 %v7206
    %v8315 = vunpack.c.l.b16 %v7207
    %v8316 = vunpack.c.h.b16 %v7207
    %v8317 = vunpack.c.l.b16 %v7208
    %v8318 = vunpack.c.h.b16 %v7208
    %v8319 = vunpack.c.l.b16 %v7209
    %v8320 = vunpack.c.h.b16 %v7209
    %v8321 = vunpack.c.l.b16 %v7210
    %v8322 = vunpack.c.h.b16 %v7210
    %v8323 = vunpack.c.l.b16 %v7211
    %v8324 = vunpack.c.h.b16 %v7211
    %v8325 = vunpack.c.l.b16 %v7212
    %v8326 = vunpack.c.h.b16 %v7212
    %v8327 = vunpack.c.l.b16 %v7213
    %v8328 = vunpack.c.h.b16 %v7213
    %v8329 = vunpack.c.l.b16 %v7214
    %v8330 = vunpack.c.h.b16 %v7214
    %v8331 = vunpack.c.l.b16 %v7215
    %v8332 = vunpack.c.h.b16 %v7215
    %v8333 = vunpack.c.l.b16 %v7216
    %v8334 = vunpack.c.h.b16 %v7216
    %v8335 = vunpack.c.l.b16 %v7217
    %v8336 = vunpack.c.h.b16 %v7217
    %v8337 = vunpack.c.l.b16 %v7218
    %v8338 = vunpack.c.h.b16 %v7218
    %v8339 = vunpack.c.l.b16 %v7219
    %v8340 = vunpack.c.h.b16 %v7219
    %v8341 = vunpack.c.l.b16 %v7220
    %v8342 = vunpack.c.h.b16 %v7220
    %v8343 = vunpack.c.l.b16 %v7221
    %v8344 = vunpack.c.h.b16 %v7221
    %v8345 = vunpack.c.l.b16 %v7222
    %v8346 = vunpack.c.h.b16 %v7222
    %v8347 = vunpack.c.l.b16 %v7223
    %v8348 = vunpack.c.h.b16 %v7223
    %v8349 = vunpack.c.l.b16 %v7224
    %v8350 = vunpack.c.h.b16 %v7224
    %v8351 = vunpack.c.l.b16 %v7225
    %v8352 = vunpack.c.h.b16 %v7225
    %v8353 = vunpack.c.l.b16 %v7226
    %v8354 = vunpack.c.h.b16 %v7226
    %v8355 = vunpack.c.l.b16 %v7227
    %v8356 = vunpack.c.h.b16 %v7227
    %v8357 = vunpack.c.l.b16 %v7228
    %v8358 = vunpack.c.h.b16 %v7228
    %v8359 = vunpack.c.l.b16 %v7229
    %v8360 = vunpack.c.h.b16 %v7229
    %v8361 = vunpack.c.l.b16 %v7230
    %v8362 = vunpack.c.h.b16 %v7230
    %v8363 = vunpack.c.l.b16 %v7231
    %v8364 = vunpack.c.h.b16 %v7231
    %v8365 = vunpack.c.l.b16 %v7232
    %v8366 = vunpack.c.h.b16 %v7232
    %v8367 = vunpack.c.l.b16 %v7233
    %v8368 = vunpack.c.h.b16 %v7233
    %v8369 = vunpack.c.l.b16 %v7234
    %v8370 = vunpack.c.h.b16 %v7234
    %v8371 = vunpack.c.l.b16 %v7235
    %v8372 = vunpack.c.h.b16 %v7235
    %v8373 = vunpack.c.l.b16 %v7236
    %v8374 = vunpack.c.h.b16 %v7236
    %v8375 = vunpack.c.l.b16 %v7237
    %v8376 = vunpack.c.h.b16 %v7237
    %v8377 = vunpack.c.l.b16 %v7238
    %v8378 = vunpack.c.h.b16 %v7238
    %v8379 = vunpack.c.l.b16 %v7239
    %v8380 = vunpack.c.h.b16 %v7239
    %v8381 = vunpack.c.l.b16 %v7240
    %v8382 = vunpack.c.h.b16 %v7240
    %v8383 = vunpack.c.l.b16 %v7241
    %v8384 = vunpack.c.h.b16 %v7241
    %v8385 = vunpack.c.l.b16 %v7242
    %v8386 = vunpack.c.h.b16 %v7242
    %v8387 = vunpack.c.l.b16 %v7243
    %v8388 = vunpack.c.h.b16 %v7243
    %v8389 = vunpack.c.l.b16 %v7244
    %v8390 = vunpack.c.h.b16 %v7244
    %v8391 = vunpack.c.l.b16 %v7245
    %v8392 = vunpack.c.h.b16 %v7245
    %v8393 = vunpack.c.l.b16 %v7246
    %v8394 = vunpack.c.h.b16 %v7246
    %v8395 = vunpack.c.l.b16 %v7247
    %v8396 = vunpack.c.h.b16 %v7247
    %v8397 = vunpack.c.l.b16 %v7248
    %v8398 = vunpack.c.h.b16 %v7248
    %v8399 = vunpack.c.l.b16 %v7249
    %v8400 = vunpack.c.h.b16 %v7249
    %v8401 = vunpack.c.l.b16 %v7250
    %v8402 = vunpack.c.h.b16 %v7250
    %v8403 = vunpack.c.l.b16 %v7251
    %v8404 = vunpack.c.h.b16 %v7251
    %v8405 = vunpack.c.l.b16 %v7252
    %v8406 = vunpack.c.h.b16 %v7252
    %v8407 = vunpack.c.l.b16 %v7253
    %v8408 = vunpack.c.h.b16 %v7253
    %v8409 = vunpack.c.l.b16 %v7254
    %v8410 = vunpack.c.h.b16 %v7254
    %v8411 = vunpack.c.l.b16 %v7255
    %v8412 = vunpack.c.h.b16 %v7255
    %v8413 = vunpack.c.l.b16 %v7256
    %v8414 = vunpack.c.h.b16 %v7256
    %v8415 = vunpack.c.l.b16 %v7257
    %v8416 = vunpack.c.h.b16 %v7257
    %v8417 = vunpack.c.l.b16 %v7258
    %v8418 = vunpack.c.h.b16 %v7258
    %v8419 = vunpack.c.l.b16 %v7259
    %v8420 = vunpack.c.h.b16 %v7259
    %v8421 = vunpack.c.l.b16 %v7260
    %v8422 = vunpack.c.h.b16 %v7260
    %v8423 = vunpack.c.l.b16 %v7261
    %v8424 = vunpack.c.h.b16 %v7261
    %v8425 = vunpack.c.l.b16 %v7262
    %v8426 = vunpack.c.h.b16 %v7262
    %v8427 = vunpack.c.l.b16 %v7263
    %v8428 = vunpack.c.h.b16 %v7263
    %v8429 = vunpack.c.l.b16 %v7264
    %v8430 = vunpack.c.h.b16 %v7264
    %v8431 = vunpack.c.l.b16 %v7265
    %v8432 = vunpack.c.h.b16 %v7265
    %v8433 = vunpack.c.l.b16 %v7266
    %v8434 = vunpack.c.h.b16 %v7266
    %v8435 = vunpack.c.l.b16 %v7267
    %v8436 = vunpack.c.h.b16 %v7267
    %v8437 = vunpack.c.l.b16 %v7268
    %v8438 = vunpack.c.h.b16 %v7268
    %v8439 = vunpack.c.l.b16 %v7269
    %v8440 = vunpack.c.h.b16 %v7269
    %v8441 = vunpack.c.l.b16 %v7270
    %v8442 = vunpack.c.h.b16 %v7270
    %v8443 = vunpack.c.l.b16 %v7271
    %v8444 = vunpack.c.h.b16 %v7271
    %v8445 = vunpack.c.l.b16 %v7272
    %v8446 = vunpack.c.h.b16 %v7272
    %v8447 = vunpack.c.l.b16 %v7273
    %v8448 = vunpack.c.h.b16 %v7273
    %v8449 = vunpack.c.l.b16 %v7274
    %v8450 = vunpack.c.h.b16 %v7274
    %v8451 = vunpack.c.l.b16 %v7275
    %v8452 = vunpack.c.h.b16 %v7275
    %v8453 = vunpack.c.l.b16 %v7276
    %v8454 = vunpack.c.h.b16 %v7276
    %v8455 = vunpack.c.l.b16 %v7277
    %v8456 = vunpack.c.h.b16 %v7277
    %v8457 = vunpack.c.l.b16 %v7278
    %v8458 = vunpack.c.h.b16 %v7278
    %v8459 = vpack.c.b16 %v7703, %v7691
    %v8460 = vpack.c.b16 %v7704, %v7692
    %v8461 = vpack.c.b16 %v7705, %v7693
    %v8462 = vpack.c.b16 %v7706, %v7694
    %v8463 = vpack.c.b16 %v7707, %v7695
    %v8464 = vpack.c.b16 %v7708, %v7696
    %v8465 = vpack.c.b16 %v7709, %v7697
    %v8466 = vpack.c.b16 %v7710, %v7698
    %v8467 = vpack.c.b16 %v7711, %v7699
    %v8468 = vpack.c.b16 %v7712, %v7700
    %v8469 = vpack.c.b16 %v7713, %v7701
    %v8470 = vpack.c.b16 %v7714, %v7702
    %v8471 = vpack.c.b16 %v7727, %v7715
    %v8472 = vpack.c.b16 %v7728, %v7716
    %v8473 = vpack.c.b16 %v7729, %v7717
    %v8474 = vpack.c.b16 %v7730, %v7718
    %v8475 = vpack.c.b16 %v7731, %v7719
    %v8476 = vpack.c.b16 %v7732, %v7720
    %v8477 = vpack.c.b16 %v7733, %v7721
    %v8478 = vpack.c.b16 %v7734, %v7722
    %v8479 = vpack.c.b16 %v7735, %v7723
    %v8480 = vpack.c.b16 %v7736, %v7724
    %v8481 = vpack.c.b16 %v7737, %v7725
    %v8482 = vpack.c.b16 %v7738, %v7726
    %v8483 = vpack.c.b16 %v7751, %v7739
    %v8484 = vpack.c.b16 %v7752, %v7740
    %v8485 = vpack.c.b16 %v7753, %v7741
    %v8486 = vpack.c.b16 %v7754, %v7742
    %v8487 = vpack.c.b16 %v7755, %v7743
    %v8488 = vpack.c.b16 %v7756, %v7744
    %v8489 = vpack.c.b16 %v7757, %v7745
    %v8490 = vpack.c.b16 %v7758, %v7746
    %v8491 = vpack.c.b16 %v7759, %v7747
    %v8492 = vpack.c.b16 %v7760, %v7748
    %v8493 = vpack.c.b16 %v7761, %v7749
    %v8494 = vpack.c.b16 %v7762, %v7750
    %v8495 = vpack.c.b16 %v7775, %v7763
    %v8496 = vpack.c.b16 %v7776, %v7764
    %v8497 = vpack.c.b16 %v7777, %v7765
    %v8498 = vpack.c.b16 %v7778, %v7766
    %v8499 = vpack.c.b16 %v7779, %v7767
    %v8500 = vpack.c.b16 %v7780, %v7768
    %v8501 = vpack.c.b16 %v7781, %v7769
    %v8502 = vpack.c.b16 %v7782, %v7770
    %v8503 = vpack.c.b16 %v7783, %v7771
    %v8504 = vpack.c.b16 %v7784, %v7772
    %v8505 = vpack.c.b16 %v7785, %v7773
    %v8506 = vpack.c.b16 %v7786, %v7774
    %v8507 = vpack.c.b16 %v7799, %v7787
    %v8508 = vpack.c.b16 %v7800, %v7788
    %v8509 = vpack.c.b16 %v7801, %v7789
    %v8510 = vpack.c.b16 %v7802, %v7790
    %v8511 = vpack.c.b16 %v7803, %v7791
    %v8512 = vpack.c.b16 %v7804, %v7792
    %v8513 = vpack.c.b16 %v7805, %v7793
    %v8514 = vpack.c.b16 %v7806, %v7794
    %v8515 = vpack.c.b16 %v7807, %v7795
    %v8516 = vpack.c.b16 %v7808, %v7796
    %v8517 = vpack.c.b16 %v7809, %v7797
    %v8518 = vpack.c.b16 %v7810, %v7798
    %v8519 = vpack.c.b16 %v7823, %v7811
    %v8520 = vpack.c.b16 %v7824, %v7812
    %v8521 = vpack.c.b16 %v7825, %v7813
    %v8522 = vpack.c.b16 %v7826, %v7814
    %v8523 = vpack.c.b16 %v7827, %v7815
    %v8524 = vpack.c.b16 %v7828, %v7816
    %v8525 = vpack.c.b16 %v7829, %v7817
    %v8526 = vpack.c.b16 %v7830, %v7818
    %v8527 = vpack.c.b16 %v7831, %v7819
    %v8528 = vpack.c.b16 %v7832, %v7820
    %v8529 = vpack.c.b16 %v7833, %v7821
    %v8530 = vpack.c.b16 %v7834, %v7822
    %v8531 = vpack.c.b16 %v7847, %v7835
    %v8532 = vpack.c.b16 %v7848, %v7836
    %v8533 = vpack.c.b16 %v7849, %v7837
    %v8534 = vpack.c.b16 %v7850, %v7838
    %v8535 = vpack.c.b16 %v7851, %v7839
    %v8536 = vpack.c.b16 %v7852, %v7840
    %v8537 = vpack.c.b16 %v7853, %v7841
    %v8538 = vpack.c.b16 %v7854, %v7842
    %v8539 = vpack.c.b16 %v7855, %v7843
    %v8540 = vpack.c.b16 %v7856, %v7844
    %v8541 = vpack.c.b16 %v7857, %v7845
    %v8542 = vpack.c.b16 %v7858, %v7846
    %v8543 = vpack.c.b16 %v7871, %v7859
    %v8544 = vpack.c.b16 %v7872, %v7860
    %v8545 = vpack.c.b16 %v7873, %v7861
    %v8546 = vpack.c.b16 %v7874, %v7862
    %v8547 = vpack.c.b16 %v7875, %v7863
    %v8548 = vpack.c.b16 %v7876, %v7864
    %v8549 = vpack.c.b16 %v7877, %v7865
    %v8550 = vpack.c.b16 %v7878, %v7866
    %v8551 = vpack.c.b16 %v7879, %v7867
    %v8552 = vpack.c.b16 %v7880, %v7868
    %v8553 = vpack.c.b16 %v7881, %v7869
    %v8554 = vpack.c.b16 %v7882, %v7870
    %v8555 = vpack.c.b16 %v7895, %v7883
    %v8556 = vpack.c.b16 %v7896, %v7884
    %v8557 = vpack.c.b16 %v7897, %v7885
    %v8558 = vpack.c.b16 %v7898, %v7886
    %v8559 = vpack.c.b16 %v7899, %v7887
    %v8560 = vpack.c.b16 %v7900, %v7888
    %v8561 = vpack.c.b16 %v7901, %v7889
    %v8562 = vpack.c.b16 %v7902, %v7890
    %v8563 = vpack.c.b16 %v7903, %v7891
    %v8564 = vpack.c.b16 %v7904, %v7892
    %v8565 = vpack.c.b16 %v7905, %v7893
    %v8566 = vpack.c.b16 %v7906, %v7894
    %v8567 = vpack.c.b16 %v7919, %v7907
    %v8568 = vpack.c.b16 %v7920, %v7908
    %v8569 = vpack.c.b16 %v7921, %v7909
    %v8570 = vpack.c.b16 %v7922, %v7910
    %v8571 = vpack.c.b16 %v7923, %v7911
    %v8572 = vpack.c.b16 %v7924, %v7912
    %v8573 = vpack.c.b16 %v7925, %v7913
    %v8574 = vpack.c.b16 %v7926, %v7914
    %v8575 = vpack.c.b16 %v7927, %v7915
    %v8576 = vpack.c.b16 %v7928, %v7916
    %v8577 = vpack.c.b16 %v7929, %v7917
    %v8578 = vpack.c.b16 %v7930, %v7918
    %v8579 = vpack.c.b16 %v7943, %v7931
    %v8580 = vpack.c.b16 %v7944, %v7932
    %v8581 = vpack.c.b16 %v7945, %v7933
    %v8582 = vpack.c.b16 %v7946, %v7934
    %v8583 = vpack.c.b16 %v7947, %v7935
    %v8584 = vpack.c.b16 %v7948, %v7936
    %v8585 = vpack.c.b16 %v7949, %v7937
    %v8586 = vpack.c.b16 %v7950, %v7938
    %v8587 = vpack.c.b16 %v7951, %v7939
    %v8588 = vpack.c.b16 %v7952, %v7940
    %v8589 = vpack.c.b16 %v7953, %v7941
    %v8590 = vpack.c.b16 %v7954, %v7942
    %v8591 = vpack.c.b16 %v7967, %v7955
    %v8592 = vpack.c.b16 %v7968, %v7956
    %v8593 = vpack.c.b16 %v7969, %v7957
    %v8594 = vpack.c.b16 %v7970, %v7958
    %v8595 = vpack.c.b16 %v7971, %v7959
    %v8596 = vpack.c.b16 %v7972, %v7960
    %v8597 = vpack.c.b16 %v7973, %v7961
    %v8598 = vpack.c.b16 %v7974, %v7962
    %v8599 = vpack.c.b16 %v7975, %v7963
    %v8600 = vpack.c.b16 %v7976, %v7964
    %v8601 = vpack.c.b16 %v7977, %v7965
    %v8602 = vpack.c.b16 %v7978, %v7966
    %v8603 = vpack.c.b16 %v7991, %v7979
    %v8604 = vpack.c.b16 %v7992, %v7980
    %v8605 = vpack.c.b16 %v7993, %v7981
    %v8606 = vpack.c.b16 %v7994, %v7982
    %v8607 = vpack.c.b16 %v7995, %v7983
    %v8608 = vpack.c.b16 %v7996, %v7984
    %v8609 = vpack.c.b16 %v7997, %v7985
    %v8610 = vpack.c.b16 %v7998, %v7986
    %v8611 = vpack.c.b16 %v7999, %v7987
    %v8612 = vpack.c.b16 %v8000, %v7988
    %v8613 = vpack.c.b16 %v8001, %v7989
    %v8614 = vpack.c.b16 %v8002, %v7990
    %v8615 = vpack.c.b16 %v8015, %v8003
    %v8616 = vpack.c.b16 %v8016, %v8004
    %v8617 = vpack.c.b16 %v8017, %v8005
    %v8618 = vpack.c.b16 %v8018, %v8006
    %v8619 = vpack.c.b16 %v8019, %v8007
    %v8620 = vpack.c.b16 %v8020, %v8008
    %v8621 = vpack.c.b16 %v8021, %v8009
    %v8622 = vpack.c.b16 %v8022, %v8010
    %v8623 = vpack.c.b16 %v8023, %v8011
    %v8624 = vpack.c.b16 %v8024, %v8012
    %v8625 = vpack.c.b16 %v8025, %v8013
    %v8626 = vpack.c.b16 %v8026, %v8014
    %v8627 = vpack.c.b16 %v8039, %v8027
    %v8628 = vpack.c.b16 %v8040, %v8028
    %v8629 = vpack.c.b16 %v8041, %v8029
    %v8630 = vpack.c.b16 %v8042, %v8030
    %v8631 = vpack.c.b16 %v8043, %v8031
    %v8632 = vpack.c.b16 %v8044, %v8032
    %v8633 = vpack.c.b16 %v8045, %v8033
    %v8634 = vpack.c.b16 %v8046, %v8034
    %v8635 = vpack.c.b16 %v8047, %v8035
    %v8636 = vpack.c.b16 %v8048, %v8036
    %v8637 = vpack.c.b16 %v8049, %v8037
    %v8638 = vpack.c.b16 %v8050, %v8038
    %v8639 = vpack.c.b16 %v8063, %v8051
    %v8640 = vpack.c.b16 %v8064, %v8052
    %v8641 = vpack.c.b16 %v8065, %v8053
    %v8642 = vpack.c.b16 %v8066, %v8054
    %v8643 = vpack.c.b16 %v8067, %v8055
    %v8644 = vpack.c.b16 %v8068, %v8056
    %v8645 = vpack.c.b16 %v8069, %v8057
    %v8646 = vpack.c.b16 %v8070, %v8058
    %v8647 = vpack.c.b16 %v8071, %v8059
    %v8648 = vpack.c.b16 %v8072, %v8060
    %v8649 = vpack.c.b16 %v8073, %v8061
    %v8650 = vpack.c.b16 %v8074, %v8062
    %v8651 = vpack.c.b16 %v8087, %v8075
    %v8652 = vpack.c.b16 %v8088, %v8076
    %v8653 = vpack.c.b16 %v8089, %v8077
    %v8654 = vpack.c.b16 %v8090, %v8078
    %v8655 = vpack.c.b16 %v8091, %v8079
    %v8656 = vpack.c.b16 %v8092, %v8080
    %v8657 = vpack.c.b16 %v8093, %v8081
    %v8658 = vpack.c.b16 %v8094, %v8082
    %v8659 = vpack.c.b16 %v8095, %v8083
    %v8660 = vpack.c.b16 %v8096, %v8084
    %v8661 = vpack.c.b16 %v8097, %v8085
    %v8662 = vpack.c.b16 %v8098, %v8086
    %v8663 = vpack.c.b16 %v8111, %v8099
    %v8664 = vpack.c.b16 %v8112, %v8100
    %v8665 = vpack.c.b16 %v8113, %v8101
    %v8666 = vpack.c.b16 %v8114, %v8102
    %v8667 = vpack.c.b16 %v8115, %v8103
    %v8668 = vpack.c.b16 %v8116, %v8104
    %v8669 = vpack.c.b16 %v8117, %v8105
    %v8670 = vpack.c.b16 %v8118, %v8106
    %v8671 = vpack.c.b16 %v8119, %v8107
    %v8672 = vpack.c.b16 %v8120, %v8108
    %v8673 = vpack.c.b16 %v8121, %v8109
    %v8674 = vpack.c.b16 %v8122, %v8110
    %v8675 = vpack.c.b16 %v8135, %v8123
    %v8676 = vpack.c.b16 %v8136, %v8124
    %v8677 = vpack.c.b16 %v8137, %v8125
    %v8678 = vpack.c.b16 %v8138, %v8126
    %v8679 = vpack.c.b16 %v8139, %v8127
    %v8680 = vpack.c.b16 %v8140, %v8128
    %v8681 = vpack.c.b16 %v8141, %v8129
    %v8682 = vpack.c.b16 %v8142, %v8130
    %v8683 = vpack.c.b16 %v8143, %v8131
    %v8684 = vpack.c.b16 %v8144, %v8132
    %v8685 = vpack.c.b16 %v8145, %v8133
    %v8686 = vpack.c.b16 %v8146, %v8134
    %v8687 = vpack.c.b16 %v8159, %v8147
    %v8688 = vpack.c.b16 %v8160, %v8148
    %v8689 = vpack.c.b16 %v8161, %v8149
    %v8690 = vpack.c.b16 %v8162, %v8150
    %v8691 = vpack.c.b16 %v8163, %v8151
    %v8692 = vpack.c.b16 %v8164, %v8152
    %v8693 = vpack.c.b16 %v8165, %v8153
    %v8694 = vpack.c.b16 %v8166, %v8154
    %v8695 = vpack.c.b16 %v8167, %v8155
    %v8696 = vpack.c.b16 %v8168, %v8156
    %v8697 = vpack.c.b16 %v8169, %v8157
    %v8698 = vpack.c.b16 %v8170, %v8158
    %v8699 = vpack.c.b16 %v8183, %v8171
    %v8700 = vpack.c.b16 %v8184, %v8172
    %v8701 = vpack.c.b16 %v8185, %v8173
    %v8702 = vpack.c.b16 %v8186, %v8174
    %v8703 = vpack.c.b16 %v8187, %v8175
    %v8704 = vpack.c.b16 %v8188, %v8176
    %v8705 = vpack.c.b16 %v8189, %v8177
    %v8706 = vpack.c.b16 %v8190, %v8178
    %v8707 = vpack.c.b16 %v8191, %v8179
    %v8708 = vpack.c.b16 %v8192, %v8180
    %v8709 = vpack.c.b16 %v8193, %v8181
    %v8710 = vpack.c.b16 %v8194, %v8182
    %v8711 = vpack.c.b16 %v8207, %v8195
    %v8712 = vpack.c.b16 %v8208, %v8196
    %v8713 = vpack.c.b16 %v8209, %v8197
    %v8714 = vpack.c.b16 %v8210, %v8198
    %v8715 = vpack.c.b16 %v8211, %v8199
    %v8716 = vpack.c.b16 %v8212, %v8200
    %v8717 = vpack.c.b16 %v8213, %v8201
    %v8718 = vpack.c.b16 %v8214, %v8202
    %v8719 = vpack.c.b16 %v8215, %v8203
    %v8720 = vpack.c.b16 %v8216, %v8204
    %v8721 = vpack.c.b16 %v8217, %v8205
    %v8722 = vpack.c.b16 %v8218, %v8206
    %v8723 = vpack.c.b16 %v8231, %v8219
    %v8724 = vpack.c.b16 %v8232, %v8220
    %v8725 = vpack.c.b16 %v8233, %v8221
    %v8726 = vpack.c.b16 %v8234, %v8222
    %v8727 = vpack.c.b16 %v8235, %v8223
    %v8728 = vpack.c.b16 %v8236, %v8224
    %v8729 = vpack.c.b16 %v8237, %v8225
    %v8730 = vpack.c.b16 %v8238, %v8226
    %v8731 = vpack.c.b16 %v8239, %v8227
    %v8732 = vpack.c.b16 %v8240, %v8228
    %v8733 = vpack.c.b16 %v8241, %v8229
    %v8734 = vpack.c.b16 %v8242, %v8230
    %v8735 = vpack.c.b16 %v8255, %v8243
    %v8736 = vpack.c.b16 %v8256, %v8244
    %v8737 = vpack.c.b16 %v8257, %v8245
    %v8738 = vpack.c.b16 %v8258, %v8246
    %v8739 = vpack.c.b16 %v8259, %v8247
    %v8740 = vpack.c.b16 %v8260, %v8248
    %v8741 = vpack.c.b16 %v8261, %v8249
    %v8742 = vpack.c.b16 %v8262, %v8250
    %v8743 = vpack.c.b16 %v8263, %v8251
    %v8744 = vpack.c.b16 %v8264, %v8252
    %v8745 = vpack.c.b16 %v8265, %v8253
    %v8746 = vpack.c.b16 %v8266, %v8254
    %v8747 = vpack.c.b16 %v8279, %v8267
    %v8748 = vpack.c.b16 %v8280, %v8268
    %v8749 = vpack.c.b16 %v8281, %v8269
    %v8750 = vpack.c.b16 %v8282, %v8270
    %v8751 = vpack.c.b16 %v8283, %v8271
    %v8752 = vpack.c.b16 %v8284, %v8272
    %v8753 = vpack.c.b16 %v8285, %v8273
    %v8754 = vpack.c.b16 %v8286, %v8274
    %v8755 = vpack.c.b16 %v8287, %v8275
    %v8756 = vpack.c.b16 %v8288, %v8276
    %v8757 = vpack.c.b16 %v8289, %v8277
    %v8758 = vpack.c.b16 %v8290, %v8278
    %v8759 = vpack.c.b16 %v8303, %v8291
    %v8760 = vpack.c.b16 %v8304, %v8292
    %v8761 = vpack.c.b16 %v8305, %v8293
    %v8762 = vpack.c.b16 %v8306, %v8294
    %v8763 = vpack.c.b16 %v8307, %v8295
    %v8764 = vpack.c.b16 %v8308, %v8296
    %v8765 = vpack.c.b16 %v8309, %v8297
    %v8766 = vpack.c.b16 %v8310, %v8298
    %v8767 = vpack.c.b16 %v8311, %v8299
    %v8768 = vpack.c.b16 %v8312, %v8300
    %v8769 = vpack.c.b16 %v8313, %v8301
    %v8770 = vpack.c.b16 %v8314, %v8302
    %v8771 = vpack.c.b16 %v8327, %v8315
    %v8772 = vpack.c.b16 %v8328, %v8316
    %v8773 = vpack.c.b16 %v8329, %v8317
    %v8774 = vpack.c.b16 %v8330, %v8318
    %v8775 = vpack.c.b16 %v8331, %v8319
    %v8776 = vpack.c.b16 %v8332, %v8320
    %v8777 = vpack.c.b16 %v8333, %v8321
    %v8778 = vpack.c.b16 %v8334, %v8322
    %v8779 = vpack.c.b16 %v8335, %v8323
    %v8780 = vpack.c.b16 %v8336, %v8324
    %v8781 = vpack.c.b16 %v8337, %v8325
    %v8782 = vpack.c.b16 %v8338, %v8326
    %v8783 = vpack.c.b16 %v8351, %v8339
    %v8784 = vpack.c.b16 %v8352, %v8340
    %v8785 = vpack.c.b16 %v8353, %v8341
    %v8786 = vpack.c.b16 %v8354, %v8342
    %v8787 = vpack.c.b16 %v8355, %v8343
    %v8788 = vpack.c.b16 %v8356, %v8344
    %v8789 = vpack.c.b16 %v8357, %v8345
    %v8790 = vpack.c.b16 %v8358, %v8346
    %v8791 = vpack.c.b16 %v8359, %v8347
    %v8792 = vpack.c.b16 %v8360, %v8348
    %v8793 = vpack.c.b16 %v8361, %v8349
    %v8794 = vpack.c.b16 %v8362, %v8350
    %v8795 = vpack.c.b16 %v8375, %v8363
    %v8796 = vpack.c.b16 %v8376, %v8364
    %v8797 = vpack.c.b16 %v8377, %v8365
    %v8798 = vpack.c.b16 %v8378, %v8366
    %v8799 = vpack.c.b16 %v8379, %v8367
    %v8800 = vpack.c.b16 %v8380, %v8368
    %v8801 = vpack.c.b16 %v8381, %v8369
    %v8802 = vpack.c.b16 %v8382, %v8370
    %v8803 = vpack.c.b16 %v8383, %v8371
    %v8804 = vpack.c.b16 %v8384, %v8372
    %v8805 = vpack.c.b16 %v8385, %v8373
    %v8806 = vpack.c.b16 %v8386, %v8374
    %v8807 = vpack.c.b16 %v8399, %v8387
    %v8808 = vpack.c.b16 %v8400, %v8388
    %v8809 = vpack.c.b16 %v8401, %v8389
    %v8810 = vpack.c.b16 %v8402, %v8390
    %v8811 = vpack.c.b16 %v8403, %v8391
    %v8812 = vpack.c.b16 %v8404, %v8392
    %v8813 = vpack.c.b16 %v8405, %v8393
    %v8814 = vpack.c.b16 %v8406, %v8394
    %v8815 = vpack.c.b16 %v8407, %v8395
    %v8816 = vpack.c.b16 %v8408, %v8396
    %v8817 = vpack.c.b16 %v8409, %v8397
    %v8818 = vpack.c.b16 %v8410, %v8398
    %v8819 = vpack.c.b16 %v8423, %v8411
    %v8820 = vpack.c.b16 %v8424, %v8412
    %v8821 = vpack.c.b16 %v8425, %v8413
    %v8822 = vpack.c.b16 %v8426, %v8414
    %v8823 = vpack.c.b16 %v8427, %v8415
    %v8824 = vpack.c.b16 %v8428, %v8416
    %v8825 = vpack.c.b16 %v8429, %v8417
    %v8826 = vpack.c.b16 %v8430, %v8418
    %v8827 = vpack.c.b16 %v8431, %v8419
    %v8828 = vpack.c.b16 %v8432, %v8420
    %v8829 = vpack.c.b16 %v8433, %v8421
    %v8830 = vpack.c.b16 %v8434, %v8422
    %v8831 = vpack.c.b16 %v8447, %v8435
    %v8832 = vpack.c.b16 %v8448, %v8436
    %v8833 = vpack.c.b16 %v8449, %v8437
    %v8834 = vpack.c.b16 %v8450, %v8438
    %v8835 = vpack.c.b16 %v8451, %v8439
    %v8836 = vpack.c.b16 %v8452, %v8440
    %v8837 = vpack.c.b16 %v8453, %v8441
    %v8838 = vpack.c.b16 %v8454, %v8442
    %v8839 = vpack.c.b16 %v8455, %v8443
    %v8840 = vpack.c.b16 %v8456, %v8444
    %v8841 = vpack.c.b16 %v8457, %v8445
    %v8842 = vpack.c.b16 %v8458, %v8446
    %9227 = vmatpush.bf16.msra.mxu0 %v8543
    %9228 = vmatpush.bf16.msra.mxu0 %v8531
    %9229 = vmatpush.bf16.msra.mxu0 %v8519
    %9230 = vmatpush.bf16.msra.mxu0 %v8507
    %9231 = vmatpush.bf16.msra.mxu0 %v8495
    %9232 = vmatpush.bf16.msra.mxu0 %v8483
    %9233 = vmatpush.bf16.msra.mxu0 %v8471
    %9234 = vmatpush.bf16.msra.mxu0 %v8459
    %9235 = vmatmul.bf16.gmra.mxu0 %v6872
    %v9236 = vpop.f32.mrf.mxu0
    %v9237 = vadd.f32 %v7283, %v9236
    %v9238 = vpop.f32.mrf.mxu0
    %9239 = vdwg.mxu0
    %9240 = vmatpush.bf16.msra.mxu0 %v8639
    %9241 = vmatpush.bf16.msra.mxu0 %v8627
    %9242 = vmatpush.bf16.msra.mxu0 %v8615
    %9243 = vmatpush.bf16.msra.mxu0 %v8603
    %9244 = vmatpush.bf16.msra.mxu0 %v8591
    %9245 = vmatpush.bf16.msra.mxu0 %v8579
    %9246 = vmatpush.bf16.msra.mxu0 %v8567
    %9247 = vmatpush.bf16.msra.mxu0 %v8555
    %9248 = vmatmul.bf16.gmra.mxu0 %v6889
    %v9249 = vpop.f32.mrf.mxu0
    %v9250 = vadd.f32 %v9237, %v9249
    %v9251 = vpop.f32.mrf.mxu0
    %9252 = vdwg.mxu0
    %9253 = vmatpush.bf16.msra.mxu0 %v8735
    %9254 = vmatpush.bf16.msra.mxu0 %v8723
    %9255 = vmatpush.bf16.msra.mxu0 %v8711
    %9256 = vmatpush.bf16.msra.mxu0 %v8699
    %9257 = vmatpush.bf16.msra.mxu0 %v8687
    %9258 = vmatpush.bf16.msra.mxu0 %v8675
    %9259 = vmatpush.bf16.msra.mxu0 %v8663
    %9260 = vmatpush.bf16.msra.mxu0 %v8651
    %9261 = vmatmul.bf16.gmra.mxu0 %v6890
    %v9262 = vpop.f32.mrf.mxu0
    %v9263 = vadd.f32 %v9250, %v9262
    %v9264 = vpop.f32.mrf.mxu0
    %9265 = vdwg.mxu0
    %9266 = vmatpush.bf16.msra.mxu0 %v8831
    %9267 = vmatpush.bf16.msra.mxu0 %v8819
    %9268 = vmatpush.bf16.msra.mxu0 %v8807
    %9269 = vmatpush.bf16.msra.mxu0 %v8795
    %9270 = vmatpush.bf16.msra.mxu0 %v8783
    %9271 = vmatpush.bf16.msra.mxu0 %v8771
    %9272 = vmatpush.bf16.msra.mxu0 %v8759
    %9273 = vmatpush.bf16.msra.mxu0 %v8747
    %9274 = vmatmul.bf16.gmra.mxu0 %v6891
    %v9275 = vpop.f32.mrf.mxu0
    %v9276 = vadd.f32 %v9263, %v9275
    %v9277 = vpop.f32.mrf.mxu0
    %9278 = vdwg.mxu0
    %9279 = vmatpush.bf16.msra.mxu0 %v8544
    %9280 = vmatpush.bf16.msra.mxu0 %v8532
    %9281 = vmatpush.bf16.msra.mxu0 %v8520
    %9282 = vmatpush.bf16.msra.mxu0 %v8508
    %9283 = vmatpush.bf16.msra.mxu0 %v8496
    %9284 = vmatpush.bf16.msra.mxu0 %v8484
    %9285 = vmatpush.bf16.msra.mxu0 %v8472
    %9286 = vmatpush.bf16.msra.mxu0 %v8460
    %9287 = vmatmul.bf16.gmra.mxu0 %v6872
    %v9288 = vpop.f32.mrf.mxu0
    %v9289 = vadd.f32 %v7284, %v9288
    %v9290 = vpop.f32.mrf.mxu0
    %9291 = vdwg.mxu0
    %9292 = vmatpush.bf16.msra.mxu0 %v8640
    %9293 = vmatpush.bf16.msra.mxu0 %v8628
    %9294 = vmatpush.bf16.msra.mxu0 %v8616
    %9295 = vmatpush.bf16.msra.mxu0 %v8604
    %9296 = vmatpush.bf16.msra.mxu0 %v8592
    %9297 = vmatpush.bf16.msra.mxu0 %v8580
    %9298 = vmatpush.bf16.msra.mxu0 %v8568
    %9299 = vmatpush.bf16.msra.mxu0 %v8556
    %9300 = vmatmul.bf16.gmra.mxu0 %v6889
    %v9301 = vpop.f32.mrf.mxu0
    %v9302 = vadd.f32 %v9289, %v9301
    %v9303 = vpop.f32.mrf.mxu0
    %9304 = vdwg.mxu0
    %9305 = vmatpush.bf16.msra.mxu0 %v8736
    %9306 = vmatpush.bf16.msra.mxu0 %v8724
    %9307 = vmatpush.bf16.msra.mxu0 %v8712
    %9308 = vmatpush.bf16.msra.mxu0 %v8700
    %9309 = vmatpush.bf16.msra.mxu0 %v8688
    %9310 = vmatpush.bf16.msra.mxu0 %v8676
    %9311 = vmatpush.bf16.msra.mxu0 %v8664
    %9312 = vmatpush.bf16.msra.mxu0 %v8652
    %9313 = vmatmul.bf16.gmra.mxu0 %v6890
    %v9314 = vpop.f32.mrf.mxu0
    %v9315 = vadd.f32 %v9302, %v9314
    %v9316 = vpop.f32.mrf.mxu0
    %9317 = vdwg.mxu0
    %9318 = vmatpush.bf16.msra.mxu0 %v8832
    %9319 = vmatpush.bf16.msra.mxu0 %v8820
    %9320 = vmatpush.bf16.msra.mxu0 %v8808
    %9321 = vmatpush.bf16.msra.mxu0 %v8796
    %9322 = vmatpush.bf16.msra.mxu0 %v8784
    %9323 = vmatpush.bf16.msra.mxu0 %v8772
    %9324 = vmatpush.bf16.msra.mxu0 %v8760
    %9325 = vmatpush.bf16.msra.mxu0 %v8748
    %9326 = vmatmul.bf16.gmra.mxu0 %v6891
    %v9327 = vpop.f32.mrf.mxu0
    %v9328 = vadd.f32 %v9315, %v9327
    %v9329 = vpop.f32.mrf.mxu0
    %9330 = vdwg.mxu0
    %9331 = vmatpush.bf16.msra.mxu0 %v8545
    %9332 = vmatpush.bf16.msra.mxu0 %v8533
    %9333 = vmatpush.bf16.msra.mxu0 %v8521
    %9334 = vmatpush.bf16.msra.mxu0 %v8509
    %9335 = vmatpush.bf16.msra.mxu0 %v8497
    %9336 = vmatpush.bf16.msra.mxu0 %v8485
    %9337 = vmatpush.bf16.msra.mxu0 %v8473
    %9338 = vmatpush.bf16.msra.mxu0 %v8461
    %9339 = vmatmul.bf16.gmra.mxu0 %v6872
    %v9340 = vpop.f32.mrf.mxu0
    %v9341 = vadd.f32 %v7285, %v9340
    %v9342 = vpop.f32.mrf.mxu0
    %9343 = vdwg.mxu0
    %9344 = vmatpush.bf16.msra.mxu0 %v8641
    %9345 = vmatpush.bf16.msra.mxu0 %v8629
    %9346 = vmatpush.bf16.msra.mxu0 %v8617
    %9347 = vmatpush.bf16.msra.mxu0 %v8605
    %9348 = vmatpush.bf16.msra.mxu0 %v8593
    %9349 = vmatpush.bf16.msra.mxu0 %v8581
    %9350 = vmatpush.bf16.msra.mxu0 %v8569
    %9351 = vmatpush.bf16.msra.mxu0 %v8557
    %9352 = vmatmul.bf16.gmra.mxu0 %v6889
    %v9353 = vpop.f32.mrf.mxu0
    %v9354 = vadd.f32 %v9341, %v9353
    %v9355 = vpop.f32.mrf.mxu0
    %9356 = vdwg.mxu0
    %9357 = vmatpush.bf16.msra.mxu0 %v8737
    %9358 = vmatpush.bf16.msra.mxu0 %v8725
    %9359 = vmatpush.bf16.msra.mxu0 %v8713
    %9360 = vmatpush.bf16.msra.mxu0 %v8701
    %9361 = vmatpush.bf16.msra.mxu0 %v8689
    %9362 = vmatpush.bf16.msra.mxu0 %v8677
    %9363 = vmatpush.bf16.msra.mxu0 %v8665
    %9364 = vmatpush.bf16.msra.mxu0 %v8653
    %9365 = vmatmul.bf16.gmra.mxu0 %v6890
    %v9366 = vpop.f32.mrf.mxu0
    %v9367 = vadd.f32 %v9354, %v9366
    %v9368 = vpop.f32.mrf.mxu0
    %9369 = vdwg.mxu0
    %9370 = vmatpush.bf16.msra.mxu0 %v8833
    %9371 = vmatpush.bf16.msra.mxu0 %v8821
    %9372 = vmatpush.bf16.msra.mxu0 %v8809
    %9373 = vmatpush.bf16.msra.mxu0 %v8797
    %9374 = vmatpush.bf16.msra.mxu0 %v8785
    %9375 = vmatpush.bf16.msra.mxu0 %v8773
    %9376 = vmatpush.bf16.msra.mxu0 %v8761
    %9377 = vmatpush.bf16.msra.mxu0 %v8749
    %9378 = vmatmul.bf16.gmra.mxu0 %v6891
    %v9379 = vpop.f32.mrf.mxu0
    %v9380 = vadd.f32 %v9367, %v9379
    %v9381 = vpop.f32.mrf.mxu0
    %9382 = vdwg.mxu0
    %9383 = vmatpush.bf16.msra.mxu0 %v8546
    %9384 = vmatpush.bf16.msra.mxu0 %v8534
    %9385 = vmatpush.bf16.msra.mxu0 %v8522
    %9386 = vmatpush.bf16.msra.mxu0 %v8510
    %9387 = vmatpush.bf16.msra.mxu0 %v8498
    %9388 = vmatpush.bf16.msra.mxu0 %v8486
    %9389 = vmatpush.bf16.msra.mxu0 %v8474
    %9390 = vmatpush.bf16.msra.mxu0 %v8462
    %9391 = vmatmul.bf16.gmra.mxu0 %v6872
    %v9392 = vpop.f32.mrf.mxu0
    %v9393 = vadd.f32 %v7286, %v9392
    %v9394 = vpop.f32.mrf.mxu0
    %9395 = vdwg.mxu0
    %9396 = vmatpush.bf16.msra.mxu0 %v8642
    %9397 = vmatpush.bf16.msra.mxu0 %v8630
    %9398 = vmatpush.bf16.msra.mxu0 %v8618
    %9399 = vmatpush.bf16.msra.mxu0 %v8606
    %9400 = vmatpush.bf16.msra.mxu0 %v8594
    %9401 = vmatpush.bf16.msra.mxu0 %v8582
    %9402 = vmatpush.bf16.msra.mxu0 %v8570
    %9403 = vmatpush.bf16.msra.mxu0 %v8558
    %9404 = vmatmul.bf16.gmra.mxu0 %v6889
    %v9405 = vpop.f32.mrf.mxu0
    %v9406 = vadd.f32 %v9393, %v9405
    %v9407 = vpop.f32.mrf.mxu0
    %9408 = vdwg.mxu0
    %9409 = vmatpush.bf16.msra.mxu0 %v8738
    %9410 = vmatpush.bf16.msra.mxu0 %v8726
    %9411 = vmatpush.bf16.msra.mxu0 %v8714
    %9412 = vmatpush.bf16.msra.mxu0 %v8702
    %9413 = vmatpush.bf16.msra.mxu0 %v8690
    %9414 = vmatpush.bf16.msra.mxu0 %v8678
    %9415 = vmatpush.bf16.msra.mxu0 %v8666
    %9416 = vmatpush.bf16.msra.mxu0 %v8654
    %9417 = vmatmul.bf16.gmra.mxu0 %v6890
    %v9418 = vpop.f32.mrf.mxu0
    %v9419 = vadd.f32 %v9406, %v9418
    %v9420 = vpop.f32.mrf.mxu0
    %9421 = vdwg.mxu0
    %9422 = vmatpush.bf16.msra.mxu0 %v8834
    %9423 = vmatpush.bf16.msra.mxu0 %v8822
    %9424 = vmatpush.bf16.msra.mxu0 %v8810
    %9425 = vmatpush.bf16.msra.mxu0 %v8798
    %9426 = vmatpush.bf16.msra.mxu0 %v8786
    %9427 = vmatpush.bf16.msra.mxu0 %v8774
    %9428 = vmatpush.bf16.msra.mxu0 %v8762
    %9429 = vmatpush.bf16.msra.mxu0 %v8750
    %9430 = vmatmul.bf16.gmra.mxu0 %v6891
    %v9431 = vpop.f32.mrf.mxu0
    %v9432 = vadd.f32 %v9419, %v9431
    %v9433 = vpop.f32.mrf.mxu0
    %9434 = vdwg.mxu0
    %9435 = vmatpush.bf16.msra.mxu0 %v8547
    %9436 = vmatpush.bf16.msra.mxu0 %v8535
    %9437 = vmatpush.bf16.msra.mxu0 %v8523
    %9438 = vmatpush.bf16.msra.mxu0 %v8511
    %9439 = vmatpush.bf16.msra.mxu0 %v8499
    %9440 = vmatpush.bf16.msra.mxu0 %v8487
    %9441 = vmatpush.bf16.msra.mxu0 %v8475
    %9442 = vmatpush.bf16.msra.mxu0 %v8463
    %9443 = vmatmul.bf16.gmra.mxu0 %v6872
    %v9444 = vpop.f32.mrf.mxu0
    %v9445 = vadd.f32 %v7287, %v9444
    %v9446 = vpop.f32.mrf.mxu0
    %9447 = vdwg.mxu0
    %9448 = vmatpush.bf16.msra.mxu0 %v8643
    %9449 = vmatpush.bf16.msra.mxu0 %v8631
    %9450 = vmatpush.bf16.msra.mxu0 %v8619
    %9451 = vmatpush.bf16.msra.mxu0 %v8607
    %9452 = vmatpush.bf16.msra.mxu0 %v8595
    %9453 = vmatpush.bf16.msra.mxu0 %v8583
    %9454 = vmatpush.bf16.msra.mxu0 %v8571
    %9455 = vmatpush.bf16.msra.mxu0 %v8559
    %9456 = vmatmul.bf16.gmra.mxu0 %v6889
    %v9457 = vpop.f32.mrf.mxu0
    %v9458 = vadd.f32 %v9445, %v9457
    %v9459 = vpop.f32.mrf.mxu0
    %9460 = vdwg.mxu0
    %9461 = vmatpush.bf16.msra.mxu0 %v8739
    %9462 = vmatpush.bf16.msra.mxu0 %v8727
    %9463 = vmatpush.bf16.msra.mxu0 %v8715
    %9464 = vmatpush.bf16.msra.mxu0 %v8703
    %9465 = vmatpush.bf16.msra.mxu0 %v8691
    %9466 = vmatpush.bf16.msra.mxu0 %v8679
    %9467 = vmatpush.bf16.msra.mxu0 %v8667
    %9468 = vmatpush.bf16.msra.mxu0 %v8655
    %9469 = vmatmul.bf16.gmra.mxu0 %v6890
    %v9470 = vpop.f32.mrf.mxu0
    %v9471 = vadd.f32 %v9458, %v9470
    %v9472 = vpop.f32.mrf.mxu0
    %9473 = vdwg.mxu0
    %9474 = vmatpush.bf16.msra.mxu0 %v8835
    %9475 = vmatpush.bf16.msra.mxu0 %v8823
    %9476 = vmatpush.bf16.msra.mxu0 %v8811
    %9477 = vmatpush.bf16.msra.mxu0 %v8799
    %9478 = vmatpush.bf16.msra.mxu0 %v8787
    %9479 = vmatpush.bf16.msra.mxu0 %v8775
    %9480 = vmatpush.bf16.msra.mxu0 %v8763
    %9481 = vmatpush.bf16.msra.mxu0 %v8751
    %9482 = vmatmul.bf16.gmra.mxu0 %v6891
    %v9483 = vpop.f32.mrf.mxu0
    %v9484 = vadd.f32 %v9471, %v9483
    %v9485 = vpop.f32.mrf.mxu0
    %9486 = vdwg.mxu0
    %9487 = vmatpush.bf16.msra.mxu0 %v8548
    %9488 = vmatpush.bf16.msra.mxu0 %v8536
    %9489 = vmatpush.bf16.msra.mxu0 %v8524
    %9490 = vmatpush.bf16.msra.mxu0 %v8512
    %9491 = vmatpush.bf16.msra.mxu0 %v8500
    %9492 = vmatpush.bf16.msra.mxu0 %v8488
    %9493 = vmatpush.bf16.msra.mxu0 %v8476
    %9494 = vmatpush.bf16.msra.mxu0 %v8464
    %9495 = vmatmul.bf16.gmra.mxu0 %v6872
    %v9496 = vpop.f32.mrf.mxu0
    %v9497 = vadd.f32 %v7288, %v9496
    %v9498 = vpop.f32.mrf.mxu0
    %9499 = vdwg.mxu0
    %9500 = vmatpush.bf16.msra.mxu0 %v8644
    %9501 = vmatpush.bf16.msra.mxu0 %v8632
    %9502 = vmatpush.bf16.msra.mxu0 %v8620
    %9503 = vmatpush.bf16.msra.mxu0 %v8608
    %9504 = vmatpush.bf16.msra.mxu0 %v8596
    %9505 = vmatpush.bf16.msra.mxu0 %v8584
    %9506 = vmatpush.bf16.msra.mxu0 %v8572
    %9507 = vmatpush.bf16.msra.mxu0 %v8560
    %9508 = vmatmul.bf16.gmra.mxu0 %v6889
    %v9509 = vpop.f32.mrf.mxu0
    %v9510 = vadd.f32 %v9497, %v9509
    %v9511 = vpop.f32.mrf.mxu0
    %9512 = vdwg.mxu0
    %9513 = vmatpush.bf16.msra.mxu0 %v8740
    %9514 = vmatpush.bf16.msra.mxu0 %v8728
    %9515 = vmatpush.bf16.msra.mxu0 %v8716
    %9516 = vmatpush.bf16.msra.mxu0 %v8704
    %9517 = vmatpush.bf16.msra.mxu0 %v8692
    %9518 = vmatpush.bf16.msra.mxu0 %v8680
    %9519 = vmatpush.bf16.msra.mxu0 %v8668
    %9520 = vmatpush.bf16.msra.mxu0 %v8656
    %9521 = vmatmul.bf16.gmra.mxu0 %v6890
    %v9522 = vpop.f32.mrf.mxu0
    %v9523 = vadd.f32 %v9510, %v9522
    %v9524 = vpop.f32.mrf.mxu0
    %9525 = vdwg.mxu0
    %9526 = vmatpush.bf16.msra.mxu0 %v8836
    %9527 = vmatpush.bf16.msra.mxu0 %v8824
    %9528 = vmatpush.bf16.msra.mxu0 %v8812
    %9529 = vmatpush.bf16.msra.mxu0 %v8800
    %9530 = vmatpush.bf16.msra.mxu0 %v8788
    %9531 = vmatpush.bf16.msra.mxu0 %v8776
    %9532 = vmatpush.bf16.msra.mxu0 %v8764
    %9533 = vmatpush.bf16.msra.mxu0 %v8752
    %9534 = vmatmul.bf16.gmra.mxu0 %v6891
    %v9535 = vpop.f32.mrf.mxu0
    %v9536 = vadd.f32 %v9523, %v9535
    %v9537 = vpop.f32.mrf.mxu0
    %9538 = vdwg.mxu0
    %9539 = vmatpush.bf16.msra.mxu0 %v8549
    %9540 = vmatpush.bf16.msra.mxu0 %v8537
    %9541 = vmatpush.bf16.msra.mxu0 %v8525
    %9542 = vmatpush.bf16.msra.mxu0 %v8513
    %9543 = vmatpush.bf16.msra.mxu0 %v8501
    %9544 = vmatpush.bf16.msra.mxu0 %v8489
    %9545 = vmatpush.bf16.msra.mxu0 %v8477
    %9546 = vmatpush.bf16.msra.mxu0 %v8465
    %9547 = vmatmul.bf16.gmra.mxu0 %v6872
    %v9548 = vpop.f32.mrf.mxu0
    %v9549 = vadd.f32 %v7289, %v9548
    %v9550 = vpop.f32.mrf.mxu0
    %9551 = vdwg.mxu0
    %9552 = vmatpush.bf16.msra.mxu0 %v8645
    %9553 = vmatpush.bf16.msra.mxu0 %v8633
    %9554 = vmatpush.bf16.msra.mxu0 %v8621
    %9555 = vmatpush.bf16.msra.mxu0 %v8609
    %9556 = vmatpush.bf16.msra.mxu0 %v8597
    %9557 = vmatpush.bf16.msra.mxu0 %v8585
    %9558 = vmatpush.bf16.msra.mxu0 %v8573
    %9559 = vmatpush.bf16.msra.mxu0 %v8561
    %9560 = vmatmul.bf16.gmra.mxu0 %v6889
    %v9561 = vpop.f32.mrf.mxu0
    %v9562 = vadd.f32 %v9549, %v9561
    %v9563 = vpop.f32.mrf.mxu0
    %9564 = vdwg.mxu0
    %9565 = vmatpush.bf16.msra.mxu0 %v8741
    %9566 = vmatpush.bf16.msra.mxu0 %v8729
    %9567 = vmatpush.bf16.msra.mxu0 %v8717
    %9568 = vmatpush.bf16.msra.mxu0 %v8705
    %9569 = vmatpush.bf16.msra.mxu0 %v8693
    %9570 = vmatpush.bf16.msra.mxu0 %v8681
    %9571 = vmatpush.bf16.msra.mxu0 %v8669
    %9572 = vmatpush.bf16.msra.mxu0 %v8657
    %9573 = vmatmul.bf16.gmra.mxu0 %v6890
    %v9574 = vpop.f32.mrf.mxu0
    %v9575 = vadd.f32 %v9562, %v9574
    %v9576 = vpop.f32.mrf.mxu0
    %9577 = vdwg.mxu0
    %9578 = vmatpush.bf16.msra.mxu0 %v8837
    %9579 = vmatpush.bf16.msra.mxu0 %v8825
    %9580 = vmatpush.bf16.msra.mxu0 %v8813
    %9581 = vmatpush.bf16.msra.mxu0 %v8801
    %9582 = vmatpush.bf16.msra.mxu0 %v8789
    %9583 = vmatpush.bf16.msra.mxu0 %v8777
    %9584 = vmatpush.bf16.msra.mxu0 %v8765
    %9585 = vmatpush.bf16.msra.mxu0 %v8753
    %9586 = vmatmul.bf16.gmra.mxu0 %v6891
    %v9587 = vpop.f32.mrf.mxu0
    %v9588 = vadd.f32 %v9575, %v9587
    %v9589 = vpop.f32.mrf.mxu0
    %9590 = vdwg.mxu0
    %9591 = vmatpush.bf16.msra.mxu0 %v8550
    %9592 = vmatpush.bf16.msra.mxu0 %v8538
    %9593 = vmatpush.bf16.msra.mxu0 %v8526
    %9594 = vmatpush.bf16.msra.mxu0 %v8514
    %9595 = vmatpush.bf16.msra.mxu0 %v8502
    %9596 = vmatpush.bf16.msra.mxu0 %v8490
    %9597 = vmatpush.bf16.msra.mxu0 %v8478
    %9598 = vmatpush.bf16.msra.mxu0 %v8466
    %9599 = vmatmul.bf16.gmra.mxu0 %v6872
    %v9600 = vpop.f32.mrf.mxu0
    %v9601 = vadd.f32 %v7290, %v9600
    %v9602 = vpop.f32.mrf.mxu0
    %9603 = vdwg.mxu0
    %9604 = vmatpush.bf16.msra.mxu0 %v8646
    %9605 = vmatpush.bf16.msra.mxu0 %v8634
    %9606 = vmatpush.bf16.msra.mxu0 %v8622
    %9607 = vmatpush.bf16.msra.mxu0 %v8610
    %9608 = vmatpush.bf16.msra.mxu0 %v8598
    %9609 = vmatpush.bf16.msra.mxu0 %v8586
    %9610 = vmatpush.bf16.msra.mxu0 %v8574
    %9611 = vmatpush.bf16.msra.mxu0 %v8562
    %9612 = vmatmul.bf16.gmra.mxu0 %v6889
    %v9613 = vpop.f32.mrf.mxu0
    %v9614 = vadd.f32 %v9601, %v9613
    %v9615 = vpop.f32.mrf.mxu0
    %9616 = vdwg.mxu0
    %9617 = vmatpush.bf16.msra.mxu0 %v8742
    %9618 = vmatpush.bf16.msra.mxu0 %v8730
    %9619 = vmatpush.bf16.msra.mxu0 %v8718
    %9620 = vmatpush.bf16.msra.mxu0 %v8706
    %9621 = vmatpush.bf16.msra.mxu0 %v8694
    %9622 = vmatpush.bf16.msra.mxu0 %v8682
    %9623 = vmatpush.bf16.msra.mxu0 %v8670
    %9624 = vmatpush.bf16.msra.mxu0 %v8658
    %9625 = vmatmul.bf16.gmra.mxu0 %v6890
    %v9626 = vpop.f32.mrf.mxu0
    %v9627 = vadd.f32 %v9614, %v9626
    %v9628 = vpop.f32.mrf.mxu0
    %9629 = vdwg.mxu0
    %9630 = vmatpush.bf16.msra.mxu0 %v8838
    %9631 = vmatpush.bf16.msra.mxu0 %v8826
    %9632 = vmatpush.bf16.msra.mxu0 %v8814
    %9633 = vmatpush.bf16.msra.mxu0 %v8802
    %9634 = vmatpush.bf16.msra.mxu0 %v8790
    %9635 = vmatpush.bf16.msra.mxu0 %v8778
    %9636 = vmatpush.bf16.msra.mxu0 %v8766
    %9637 = vmatpush.bf16.msra.mxu0 %v8754
    %9638 = vmatmul.bf16.gmra.mxu0 %v6891
    %v9639 = vpop.f32.mrf.mxu0
    %v9640 = vadd.f32 %v9627, %v9639
    %v9641 = vpop.f32.mrf.mxu0
    %9642 = vdwg.mxu0
    %9643 = vmatpush.bf16.msra.mxu0 %v8551
    %9644 = vmatpush.bf16.msra.mxu0 %v8539
    %9645 = vmatpush.bf16.msra.mxu0 %v8527
    %9646 = vmatpush.bf16.msra.mxu0 %v8515
    %9647 = vmatpush.bf16.msra.mxu0 %v8503
    %9648 = vmatpush.bf16.msra.mxu0 %v8491
    %9649 = vmatpush.bf16.msra.mxu0 %v8479
    %9650 = vmatpush.bf16.msra.mxu0 %v8467
    %9651 = vmatmul.bf16.gmra.mxu0 %v6872
    %v9652 = vpop.f32.mrf.mxu0
    %v9653 = vadd.f32 %v7291, %v9652
    %v9654 = vpop.f32.mrf.mxu0
    %9655 = vdwg.mxu0
    %9656 = vmatpush.bf16.msra.mxu0 %v8647
    %9657 = vmatpush.bf16.msra.mxu0 %v8635
    %9658 = vmatpush.bf16.msra.mxu0 %v8623
    %9659 = vmatpush.bf16.msra.mxu0 %v8611
    %9660 = vmatpush.bf16.msra.mxu0 %v8599
    %9661 = vmatpush.bf16.msra.mxu0 %v8587
    %9662 = vmatpush.bf16.msra.mxu0 %v8575
    %9663 = vmatpush.bf16.msra.mxu0 %v8563
    %9664 = vmatmul.bf16.gmra.mxu0 %v6889
    %v9665 = vpop.f32.mrf.mxu0
    %v9666 = vadd.f32 %v9653, %v9665
    %v9667 = vpop.f32.mrf.mxu0
    %9668 = vdwg.mxu0
    %9669 = vmatpush.bf16.msra.mxu0 %v8743
    %9670 = vmatpush.bf16.msra.mxu0 %v8731
    %9671 = vmatpush.bf16.msra.mxu0 %v8719
    %9672 = vmatpush.bf16.msra.mxu0 %v8707
    %9673 = vmatpush.bf16.msra.mxu0 %v8695
    %9674 = vmatpush.bf16.msra.mxu0 %v8683
    %9675 = vmatpush.bf16.msra.mxu0 %v8671
    %9676 = vmatpush.bf16.msra.mxu0 %v8659
    %9677 = vmatmul.bf16.gmra.mxu0 %v6890
    %v9678 = vpop.f32.mrf.mxu0
    %v9679 = vadd.f32 %v9666, %v9678
    %v9680 = vpop.f32.mrf.mxu0
    %9681 = vdwg.mxu0
    %9682 = vmatpush.bf16.msra.mxu0 %v8839
    %9683 = vmatpush.bf16.msra.mxu0 %v8827
    %9684 = vmatpush.bf16.msra.mxu0 %v8815
    %9685 = vmatpush.bf16.msra.mxu0 %v8803
    %9686 = vmatpush.bf16.msra.mxu0 %v8791
    %9687 = vmatpush.bf16.msra.mxu0 %v8779
    %9688 = vmatpush.bf16.msra.mxu0 %v8767
    %9689 = vmatpush.bf16.msra.mxu0 %v8755
    %9690 = vmatmul.bf16.gmra.mxu0 %v6891
    %v9691 = vpop.f32.mrf.mxu0
    %v9692 = vadd.f32 %v9679, %v9691
    %v9693 = vpop.f32.mrf.mxu0
    %9694 = vdwg.mxu0
    %9695 = vmatpush.bf16.msra.mxu0 %v8552
    %9696 = vmatpush.bf16.msra.mxu0 %v8540
    %9697 = vmatpush.bf16.msra.mxu0 %v8528
    %9698 = vmatpush.bf16.msra.mxu0 %v8516
    %9699 = vmatpush.bf16.msra.mxu0 %v8504
    %9700 = vmatpush.bf16.msra.mxu0 %v8492
    %9701 = vmatpush.bf16.msra.mxu0 %v8480
    %9702 = vmatpush.bf16.msra.mxu0 %v8468
    %9703 = vmatmul.bf16.gmra.mxu0 %v6872
    %v9704 = vpop.f32.mrf.mxu0
    %v9705 = vadd.f32 %v7292, %v9704
    %v9706 = vpop.f32.mrf.mxu0
    %9707 = vdwg.mxu0
    %9708 = vmatpush.bf16.msra.mxu0 %v8648
    %9709 = vmatpush.bf16.msra.mxu0 %v8636
    %9710 = vmatpush.bf16.msra.mxu0 %v8624
    %9711 = vmatpush.bf16.msra.mxu0 %v8612
    %9712 = vmatpush.bf16.msra.mxu0 %v8600
    %9713 = vmatpush.bf16.msra.mxu0 %v8588
    %9714 = vmatpush.bf16.msra.mxu0 %v8576
    %9715 = vmatpush.bf16.msra.mxu0 %v8564
    %9716 = vmatmul.bf16.gmra.mxu0 %v6889
    %v9717 = vpop.f32.mrf.mxu0
    %v9718 = vadd.f32 %v9705, %v9717
    %v9719 = vpop.f32.mrf.mxu0
    %9720 = vdwg.mxu0
    %9721 = vmatpush.bf16.msra.mxu0 %v8744
    %9722 = vmatpush.bf16.msra.mxu0 %v8732
    %9723 = vmatpush.bf16.msra.mxu0 %v8720
    %9724 = vmatpush.bf16.msra.mxu0 %v8708
    %9725 = vmatpush.bf16.msra.mxu0 %v8696
    %9726 = vmatpush.bf16.msra.mxu0 %v8684
    %9727 = vmatpush.bf16.msra.mxu0 %v8672
    %9728 = vmatpush.bf16.msra.mxu0 %v8660
    %9729 = vmatmul.bf16.gmra.mxu0 %v6890
    %v9730 = vpop.f32.mrf.mxu0
    %v9731 = vadd.f32 %v9718, %v9730
    %v9732 = vpop.f32.mrf.mxu0
    %9733 = vdwg.mxu0
    %9734 = vmatpush.bf16.msra.mxu0 %v8840
    %9735 = vmatpush.bf16.msra.mxu0 %v8828
    %9736 = vmatpush.bf16.msra.mxu0 %v8816
    %9737 = vmatpush.bf16.msra.mxu0 %v8804
    %9738 = vmatpush.bf16.msra.mxu0 %v8792
    %9739 = vmatpush.bf16.msra.mxu0 %v8780
    %9740 = vmatpush.bf16.msra.mxu0 %v8768
    %9741 = vmatpush.bf16.msra.mxu0 %v8756
    %9742 = vmatmul.bf16.gmra.mxu0 %v6891
    %v9743 = vpop.f32.mrf.mxu0
    %v9744 = vadd.f32 %v9731, %v9743
    %v9745 = vpop.f32.mrf.mxu0
    %9746 = vdwg.mxu0
    %9747 = vmatpush.bf16.msra.mxu0 %v8553
    %9748 = vmatpush.bf16.msra.mxu0 %v8541
    %9749 = vmatpush.bf16.msra.mxu0 %v8529
    %9750 = vmatpush.bf16.msra.mxu0 %v8517
    %9751 = vmatpush.bf16.msra.mxu0 %v8505
    %9752 = vmatpush.bf16.msra.mxu0 %v8493
    %9753 = vmatpush.bf16.msra.mxu0 %v8481
    %9754 = vmatpush.bf16.msra.mxu0 %v8469
    %9755 = vmatmul.bf16.gmra.mxu0 %v6872
    %v9756 = vpop.f32.mrf.mxu0
    %v9757 = vadd.f32 %v7293, %v9756
    %v9758 = vpop.f32.mrf.mxu0
    %9759 = vdwg.mxu0
    %9760 = vmatpush.bf16.msra.mxu0 %v8649
    %9761 = vmatpush.bf16.msra.mxu0 %v8637
    %9762 = vmatpush.bf16.msra.mxu0 %v8625
    %9763 = vmatpush.bf16.msra.mxu0 %v8613
    %9764 = vmatpush.bf16.msra.mxu0 %v8601
    %9765 = vmatpush.bf16.msra.mxu0 %v8589
    %9766 = vmatpush.bf16.msra.mxu0 %v8577
    %9767 = vmatpush.bf16.msra.mxu0 %v8565
    %9768 = vmatmul.bf16.gmra.mxu0 %v6889
    %v9769 = vpop.f32.mrf.mxu0
    %v9770 = vadd.f32 %v9757, %v9769
    %v9771 = vpop.f32.mrf.mxu0
    %9772 = vdwg.mxu0
    %9773 = vmatpush.bf16.msra.mxu0 %v8745
    %9774 = vmatpush.bf16.msra.mxu0 %v8733
    %9775 = vmatpush.bf16.msra.mxu0 %v8721
    %9776 = vmatpush.bf16.msra.mxu0 %v8709
    %9777 = vmatpush.bf16.msra.mxu0 %v8697
    %9778 = vmatpush.bf16.msra.mxu0 %v8685
    %9779 = vmatpush.bf16.msra.mxu0 %v8673
    %9780 = vmatpush.bf16.msra.mxu0 %v8661
    %9781 = vmatmul.bf16.gmra.mxu0 %v6890
    %v9782 = vpop.f32.mrf.mxu0
    %v9783 = vadd.f32 %v9770, %v9782
    %v9784 = vpop.f32.mrf.mxu0
    %9785 = vdwg.mxu0
    %9786 = vmatpush.bf16.msra.mxu0 %v8841
    %9787 = vmatpush.bf16.msra.mxu0 %v8829
    %9788 = vmatpush.bf16.msra.mxu0 %v8817
    %9789 = vmatpush.bf16.msra.mxu0 %v8805
    %9790 = vmatpush.bf16.msra.mxu0 %v8793
    %9791 = vmatpush.bf16.msra.mxu0 %v8781
    %9792 = vmatpush.bf16.msra.mxu0 %v8769
    %9793 = vmatpush.bf16.msra.mxu0 %v8757
    %9794 = vmatmul.bf16.gmra.mxu0 %v6891
    %v9795 = vpop.f32.mrf.mxu0
    %v9796 = vadd.f32 %v9783, %v9795
    %v9797 = vpop.f32.mrf.mxu0
    %9798 = vdwg.mxu0
    %9799 = vmatpush.bf16.msra.mxu0 %v8554
    %9800 = vmatpush.bf16.msra.mxu0 %v8542
    %9801 = vmatpush.bf16.msra.mxu0 %v8530
    %9802 = vmatpush.bf16.msra.mxu0 %v8518
    %9803 = vmatpush.bf16.msra.mxu0 %v8506
    %9804 = vmatpush.bf16.msra.mxu0 %v8494
    %9805 = vmatpush.bf16.msra.mxu0 %v8482
    %9806 = vmatpush.bf16.msra.mxu0 %v8470
    %9807 = vmatmul.bf16.gmra.mxu0 %v6872
    %v9808 = vpop.f32.mrf.mxu0
    %v9809 = vadd.f32 %v7294, %v9808
    %v9810 = vpop.f32.mrf.mxu0
    %9811 = vdwg.mxu0
    %9812 = vmatpush.bf16.msra.mxu0 %v8650
    %9813 = vmatpush.bf16.msra.mxu0 %v8638
    %9814 = vmatpush.bf16.msra.mxu0 %v8626
    %9815 = vmatpush.bf16.msra.mxu0 %v8614
    %9816 = vmatpush.bf16.msra.mxu0 %v8602
    %9817 = vmatpush.bf16.msra.mxu0 %v8590
    %9818 = vmatpush.bf16.msra.mxu0 %v8578
    %9819 = vmatpush.bf16.msra.mxu0 %v8566
    %9820 = vmatmul.bf16.gmra.mxu0 %v6889
    %v9821 = vpop.f32.mrf.mxu0
    %v9822 = vadd.f32 %v9809, %v9821
    %v9823 = vpop.f32.mrf.mxu0
    %9824 = vdwg.mxu0
    %9825 = vmatpush.bf16.msra.mxu0 %v8746
    %9826 = vmatpush.bf16.msra.mxu0 %v8734
    %9827 = vmatpush.bf16.msra.mxu0 %v8722
    %9828 = vmatpush.bf16.msra.mxu0 %v8710
    %9829 = vmatpush.bf16.msra.mxu0 %v8698
    %9830 = vmatpush.bf16.msra.mxu0 %v8686
    %9831 = vmatpush.bf16.msra.mxu0 %v8674
    %9832 = vmatpush.bf16.msra.mxu0 %v8662
    %9833 = vmatmul.bf16.gmra.mxu0 %v6890
    %v9834 = vpop.f32.mrf.mxu0
    %v9835 = vadd.f32 %v9822, %v9834
    %v9836 = vpop.f32.mrf.mxu0
    %9837 = vdwg.mxu0
    %9838 = vmatpush.bf16.msra.mxu0 %v8842
    %9839 = vmatpush.bf16.msra.mxu0 %v8830
    %9840 = vmatpush.bf16.msra.mxu0 %v8818
    %9841 = vmatpush.bf16.msra.mxu0 %v8806
    %9842 = vmatpush.bf16.msra.mxu0 %v8794
    %9843 = vmatpush.bf16.msra.mxu0 %v8782
    %9844 = vmatpush.bf16.msra.mxu0 %v8770
    %9845 = vmatpush.bf16.msra.mxu0 %v8758
    %9846 = vmatmul.bf16.gmra.mxu0 %v6891
    %v9847 = vpop.f32.mrf.mxu0
    %v9848 = vadd.f32 %v9835, %v9847
    %v9849 = vpop.f32.mrf.mxu0
    %9850 = vdwg.mxu0
    %v9851 = vxor.u32 %v9276, 2147483648
    %v9852 = vxor.u32 %v9328, 2147483648
    %v9853 = vxor.u32 %v9380, 2147483648
    %v9854 = vmul.f32 %v9851, 1.442695
    %v9855 = vpow.pop %v9854
    %v9856 = vmul.f32 %v9852, 1.442695
    %v9857 = vpow.pop %v9856
    %v9858 = vmul.f32 %v9853, 1.442695
    %v9859 = vpow.pop %v9858
    %v9860 = vadd.f32 %v9855, 1.0
    %v9861 = vadd.f32 %v9857, 1.0
    %v9862 = vadd.f32 %v9859, 1.0
    %v9863 = vrcp.pop %v9860
    %v9864 = vmul.f32 %v9860, %v9863
    %v9865 = vsub.f32 1.0, %v9864
    %v9866 = vmul.f32 %v9863, %v9865
    %v9867 = vadd.f32 %v9863, %v9866
    %vm9868 = vweird.f32 %v9860
    %vm9869 = vweird.f32 %v9863
    %vm9870 = vmor %vm9868, %vm9869
    %v9871 = vsel %vm9870, %v9863, %v9867
    %v9872 = vand.u32 2147483647, %v9860
    %vm9873 = vcmp.eq.f32.partialorder %v9872, 8.507059e+37
    %v9874 = vand.u32 %v9860, 2147483648
    %v9875 = vor.u32 1.1754944e-38, %v9874
    %v9876 = vsel %vm9873, %v9875, %v9871
    %v9877 = vmul.f32 1.0, %v9876
    %v9878 = vrcp.pop %v9861
    %v9879 = vmul.f32 %v9861, %v9878
    %v9880 = vsub.f32 1.0, %v9879
    %v9881 = vmul.f32 %v9878, %v9880
    %v9882 = vadd.f32 %v9878, %v9881
    %vm9883 = vweird.f32 %v9861
    %vm9884 = vweird.f32 %v9878
    %vm9885 = vmor %vm9883, %vm9884
    %v9886 = vsel %vm9885, %v9878, %v9882
    %v9887 = vand.u32 2147483647, %v9861
    %vm9888 = vcmp.eq.f32.partialorder %v9887, 8.507059e+37
    %v9889 = vand.u32 %v9861, 2147483648
    %v9890 = vor.u32 1.1754944e-38, %v9889
    %v9891 = vsel %vm9888, %v9890, %v9886
    %v9892 = vmul.f32 1.0, %v9891
    %v9893 = vrcp.pop %v9862
    %v9894 = vmul.f32 %v9862, %v9893
    %v9895 = vsub.f32 1.0, %v9894
    %v9896 = vmul.f32 %v9893, %v9895
    %v9897 = vadd.f32 %v9893, %v9896
    %vm9898 = vweird.f32 %v9862
    %vm9899 = vweird.f32 %v9893
    %vm9900 = vmor %vm9898, %vm9899
    %v9901 = vsel %vm9900, %v9893, %v9897
    %v9902 = vand.u32 2147483647, %v9862
    %vm9903 = vcmp.eq.f32.partialorder %v9902, 8.507059e+37
    %v9904 = vand.u32 %v9862, 2147483648
    %v9905 = vor.u32 1.1754944e-38, %v9904
    %v9906 = vsel %vm9903, %v9905, %v9901
    %v9907 = vmul.f32 1.0, %v9906
    %v9908 = vxor.u32 %v9432, 2147483648
    %v9909 = vxor.u32 %v9484, 2147483648
    %v9910 = vxor.u32 %v9536, 2147483648
    %v9911 = vmul.f32 %v9908, 1.442695
    %v9912 = vpow.pop %v9911
    %v9913 = vmul.f32 %v9909, 1.442695
    %v9914 = vpow.pop %v9913
    %v9915 = vmul.f32 %v9910, 1.442695
    %v9916 = vpow.pop %v9915
    %v9917 = vadd.f32 %v9912, 1.0
    %v9918 = vadd.f32 %v9914, 1.0
    %v9919 = vadd.f32 %v9916, 1.0
    %v9920 = vrcp.pop %v9917
    %v9921 = vmul.f32 %v9917, %v9920
    %v9922 = vsub.f32 1.0, %v9921
    %v9923 = vmul.f32 %v9920, %v9922
    %v9924 = vadd.f32 %v9920, %v9923
    %vm9925 = vweird.f32 %v9917
    %vm9926 = vweird.f32 %v9920
    %vm9927 = vmor %vm9925, %vm9926
    %v9928 = vsel %vm9927, %v9920, %v9924
    %v9929 = vand.u32 2147483647, %v9917
    %vm9930 = vcmp.eq.f32.partialorder %v9929, 8.507059e+37
    %v9931 = vand.u32 %v9917, 2147483648
    %v9932 = vor.u32 1.1754944e-38, %v9931
    %v9933 = vsel %vm9930, %v9932, %v9928
    %v9934 = vmul.f32 1.0, %v9933
    %v9935 = vrcp.pop %v9918
    %v9936 = vmul.f32 %v9918, %v9935
    %v9937 = vsub.f32 1.0, %v9936
    %v9938 = vmul.f32 %v9935, %v9937
    %v9939 = vadd.f32 %v9935, %v9938
    %vm9940 = vweird.f32 %v9918
    %vm9941 = vweird.f32 %v9935
    %vm9942 = vmor %vm9940, %vm9941
    %v9943 = vsel %vm9942, %v9935, %v9939
    %v9944 = vand.u32 2147483647, %v9918
    %vm9945 = vcmp.eq.f32.partialorder %v9944, 8.507059e+37
    %v9946 = vand.u32 %v9918, 2147483648
    %v9947 = vor.u32 1.1754944e-38, %v9946
    %v9948 = vsel %vm9945, %v9947, %v9943
    %v9949 = vmul.f32 1.0, %v9948
    %v9950 = vrcp.pop %v9919
    %v9951 = vmul.f32 %v9919, %v9950
    %v9952 = vsub.f32 1.0, %v9951
    %v9953 = vmul.f32 %v9950, %v9952
    %v9954 = vadd.f32 %v9950, %v9953
    %vm9955 = vweird.f32 %v9919
    %vm9956 = vweird.f32 %v9950
    %vm9957 = vmor %vm9955, %vm9956
    %v9958 = vsel %vm9957, %v9950, %v9954
    %v9959 = vand.u32 2147483647, %v9919
    %vm9960 = vcmp.eq.f32.partialorder %v9959, 8.507059e+37
    %v9961 = vand.u32 %v9919, 2147483648
    %v9962 = vor.u32 1.1754944e-38, %v9961
    %v9963 = vsel %vm9960, %v9962, %v9958
    %v9964 = vmul.f32 1.0, %v9963
    %v9965 = vtanh.pop %v9588
    %v9966 = vtanh.pop %v9640
    %v9967 = vtanh.pop %v9692
    %v9968 = vxor.u32 %v9744, 2147483648
    %v9969 = vxor.u32 %v9796, 2147483648
    %v9970 = vxor.u32 %v9848, 2147483648
    %v9971 = vmul.f32 %v9968, 1.442695
    %v9972 = vpow.pop %v9971
    %v9973 = vmul.f32 %v9969, 1.442695
    %v9974 = vpow.pop %v9973
    %v9975 = vmul.f32 %v9970, 1.442695
    %v9976 = vpow.pop %v9975
    %v9977 = vadd.f32 %v9972, 1.0
    %v9978 = vadd.f32 %v9974, 1.0
    %v9979 = vadd.f32 %v9976, 1.0
    %v9980 = vrcp.pop %v9977
    %v9981 = vmul.f32 %v9977, %v9980
    %v9982 = vsub.f32 1.0, %v9981
    %v9983 = vmul.f32 %v9980, %v9982
    %v9984 = vadd.f32 %v9980, %v9983
    %vm9985 = vweird.f32 %v9977
    %vm9986 = vweird.f32 %v9980
    %vm9987 = vmor %vm9985, %vm9986
    %v9988 = vsel %vm9987, %v9980, %v9984
    %v9989 = vand.u32 2147483647, %v9977
    %vm9990 = vcmp.eq.f32.partialorder %v9989, 8.507059e+37
    %v9991 = vand.u32 %v9977, 2147483648
    %v9992 = vor.u32 1.1754944e-38, %v9991
    %v9993 = vsel %vm9990, %v9992, %v9988
    %v9994 = vmul.f32 1.0, %v9993
    %v9995 = vrcp.pop %v9978
    %v9996 = vmul.f32 %v9978, %v9995
    %v9997 = vsub.f32 1.0, %v9996
    %v9998 = vmul.f32 %v9995, %v9997
    %v9999 = vadd.f32 %v9995, %v9998
    %vm10000 = vweird.f32 %v9978
    %vm10001 = vweird.f32 %v9995
    %vm10002 = vmor %vm10000, %vm10001
    %v10003 = vsel %vm10002, %v9995, %v9999
    %v10004 = vand.u32 2147483647, %v9978
    %vm10005 = vcmp.eq.f32.partialorder %v10004, 8.507059e+37
    %v10006 = vand.u32 %v9978, 2147483648
    %v10007 = vor.u32 1.1754944e-38, %v10006
    %v10008 = vsel %vm10005, %v10007, %v10003
    %v10009 = vmul.f32 1.0, %v10008
    %v10010 = vrcp.pop %v9979
    %v10011 = vmul.f32 %v9979, %v10010
    %v10012 = vsub.f32 1.0, %v10011
    %v10013 = vmul.f32 %v10010, %v10012
    %v10014 = vadd.f32 %v10010, %v10013
    %vm10015 = vweird.f32 %v9979
    %vm10016 = vweird.f32 %v10010
    %vm10017 = vmor %vm10015, %vm10016
    %v10018 = vsel %vm10017, %v10010, %v10014
    %v10019 = vand.u32 2147483647, %v9979
    %vm10020 = vcmp.eq.f32.partialorder %v10019, 8.507059e+37
    %v10021 = vand.u32 %v9979, 2147483648
    %v10022 = vor.u32 1.1754944e-38, %v10021
    %v10023 = vsel %vm10020, %v10022, %v10018
    %v10024 = vmul.f32 1.0, %v10023
    %v10025 = vld [vmem:[%s2] sm:$0x3f]
    %10027 = vst [vmem:[#allocation1] ss:$4 sm:$0xff] %v10025
    %v10028 = vld.sshfl [vmem:[#allocation1] sm:$0xff pattern:$0x73625140]
    %v10029 = vld.sshfl [vmem:[#allocation1 + $0x8] sm:$0xff pattern:$0x73625140]
    %v10030 = vld.sshfl [vmem:[#allocation1 + $0x10] sm:$0xff pattern:$0x73625140]
    %v10034 = vmul.f32 %v9934, %v10028
    %v10035 = vmul.f32 %v9949, %v10029
    %v10036 = vmul.f32 %v9964, %v10030
    %v10037 = vmul.f32 %v9877, %v9965
    %v10038 = vmul.f32 %v9892, %v9966
    %v10039 = vmul.f32 %v9907, %v9967
    %v10040 = vadd.f32 %v10034, %v10037
    %v10041 = vadd.f32 %v10035, %v10038
    %v10042 = vadd.f32 %v10036, %v10039
    %v10043 = vtanh.pop %v10040
    %v10044 = vtanh.pop %v10041
    %v10045 = vtanh.pop %v10042
    %v10046 = vmul.f32 %v9994, %v10043
    %v10047 = vmul.f32 %v10009, %v10044
    %v10048 = vmul.f32 %v10024, %v10045
    %v10052 = vrot.slane %v10041, 6
    %v10053 = vrot.slane %v10042, 4
    %vm10054 = vcmask 1041408
    %v10055 = vsel %vm10054, %v10040, %v10052
    %vm10056 = vcmask 1043456
    %v10057 = vsel %vm10056, %v10055, %v10053
    %10059 = vst [vmem:[#allocation7] sm:$0x3f] %v10057
    %v10063 = vrot.slane %v10047, 6
    %v10064 = vrot.slane %v10048, 4
    %v10065 = vsel %vm10054, %v10046, %v10063
    %v10066 = vsel %vm10056, %v10065, %v10064
    %10068 = vst [vmem:[#allocation5] sm:$0x3f] %v10066
    %v10069 = vpack.c.bf16 %v10046, %v10046
    %v10070 = vpack.c.bf16 %v10047, %v10047
    %v10071 = vpack.c.bf16 %v10048, %v10048
    %v10072 = vld [vmem:[%s13] sm:$0xf]
    %v10073 = vld [vmem:[%s13 + $0x4] sm:$0xf]
    %v10074 = vld [vmem:[%s13 + $0x8] sm:$0xf]
    %v10075 = vld [vmem:[%s13 + $0xc] sm:$0xf]
    %v10076 = vld [vmem:[%s13 + $0x10] sm:$0xf]
    %v10077 = vld [vmem:[%s13 + $0x14] sm:$0xf]
    %v10078 = vld [vmem:[%s13 + $0x18] sm:$0xf]
    %v10079 = vld [vmem:[%s13 + $0x1c] sm:$0xf]
    %v10080 = vld [vmem:[%s13 + $0x20] sm:$0xf]
    %v10081 = vld [vmem:[%s13 + $0x24] sm:$0xf]
    %v10082 = vld [vmem:[%s13 + $0x28] sm:$0xf]
    %v10083 = vld [vmem:[%s13 + $0x2c] sm:$0xf]
    %v10084 = vld [vmem:[%s13 + $0x30] sm:$0xf]
    %v10085 = vld [vmem:[%s13 + $0x34] sm:$0xf]
    %v10086 = vld [vmem:[%s13 + $0x38] sm:$0xf]
    %v10087 = vld [vmem:[%s13 + $0x3c] sm:$0xf]
    %v10088 = vld [vmem:[%s13 + $0x40] sm:$0xf]
    %v10089 = vld [vmem:[%s13 + $0x44] sm:$0xf]
    %v10090 = vld [vmem:[%s13 + $0x48] sm:$0xf]
    %v10091 = vld [vmem:[%s13 + $0x4c] sm:$0xf]
    %v10092 = vld [vmem:[%s13 + $0x50] sm:$0xf]
    %v10093 = vld [vmem:[%s13 + $0x54] sm:$0xf]
    %v10094 = vld [vmem:[%s13 + $0x58] sm:$0xf]
    %v10095 = vld [vmem:[%s13 + $0x5c] sm:$0xf]
    %v10096 = vld [vmem:[%s13 + $0x60] sm:$0xf]
    %v10097 = vld [vmem:[%s13 + $0x64] sm:$0xf]
    %v10098 = vld [vmem:[%s13 + $0x68] sm:$0xf]
    %v10099 = vld [vmem:[%s13 + $0x6c] sm:$0xf]
    %v10100 = vld [vmem:[%s13 + $0x70] sm:$0xf]
    %v10101 = vld [vmem:[%s13 + $0x74] sm:$0xf]
    %v10102 = vld [vmem:[%s13 + $0x78] sm:$0xf]
    %v10103 = vld [vmem:[%s13 + $0x7c] sm:$0xf]
    %v10104 = vld [vmem:[%s13 + $0x80] sm:$0xf]
    %v10105 = vld [vmem:[%s13 + $0x84] sm:$0xf]
    %v10106 = vld [vmem:[%s13 + $0x88] sm:$0xf]
    %v10107 = vld [vmem:[%s13 + $0x8c] sm:$0xf]
    %v10108 = vld [vmem:[%s13 + $0x90] sm:$0xf]
    %v10109 = vld [vmem:[%s13 + $0x94] sm:$0xf]
    %v10110 = vld [vmem:[%s13 + $0x98] sm:$0xf]
    %v10111 = vld [vmem:[%s13 + $0x9c] sm:$0xf]
    %v10112 = vld [vmem:[%s13 + $0xa0] sm:$0xf]
    %v10113 = vld [vmem:[%s13 + $0xa4] sm:$0xf]
    %v10114 = vld [vmem:[%s13 + $0xa8] sm:$0xf]
    %v10115 = vld [vmem:[%s13 + $0xac] sm:$0xf]
    %v10116 = vld [vmem:[%s13 + $0xb0] sm:$0xf]
    %v10117 = vld [vmem:[%s13 + $0xb4] sm:$0xf]
    %v10118 = vld [vmem:[%s13 + $0xb8] sm:$0xf]
    %v10119 = vld [vmem:[%s13 + $0xbc] sm:$0xf]
    %v10120 = vld [vmem:[%s14] sm:$0x1]
    %v10122 = vperm.slane %v10120, 0
    %v10172 = vunpack.c.l.b16 %v10072
    %v10173 = vunpack.c.l.b16 %v10073
    %v10174 = vunpack.c.l.b16 %v10074
    %v10175 = vunpack.c.l.b16 %v10075
    %v10176 = vunpack.c.l.b16 %v10076
    %v10177 = vunpack.c.l.b16 %v10077
    %v10178 = vunpack.c.l.b16 %v10078
    %v10179 = vunpack.c.l.b16 %v10079
    %v10180 = vunpack.c.l.b16 %v10080
    %v10181 = vunpack.c.l.b16 %v10081
    %v10182 = vunpack.c.l.b16 %v10082
    %v10183 = vunpack.c.l.b16 %v10083
    %v10184 = vunpack.c.l.b16 %v10084
    %v10185 = vunpack.c.l.b16 %v10085
    %v10186 = vunpack.c.l.b16 %v10086
    %v10187 = vunpack.c.l.b16 %v10087
    %v10188 = vunpack.c.l.b16 %v10088
    %v10189 = vunpack.c.l.b16 %v10089
    %v10190 = vunpack.c.l.b16 %v10090
    %v10191 = vunpack.c.l.b16 %v10091
    %v10192 = vunpack.c.l.b16 %v10092
    %v10193 = vunpack.c.l.b16 %v10093
    %v10194 = vunpack.c.l.b16 %v10094
    %v10195 = vunpack.c.l.b16 %v10095
    %v10196 = vunpack.c.l.b16 %v10096
    %v10197 = vunpack.c.l.b16 %v10097
    %v10198 = vunpack.c.l.b16 %v10098
    %v10199 = vunpack.c.l.b16 %v10099
    %v10200 = vunpack.c.l.b16 %v10100
    %v10201 = vunpack.c.l.b16 %v10101
    %v10202 = vunpack.c.l.b16 %v10102
    %v10203 = vunpack.c.l.b16 %v10103
    %v10204 = vunpack.c.l.b16 %v10104
    %v10205 = vunpack.c.l.b16 %v10105
    %v10206 = vunpack.c.l.b16 %v10106
    %v10207 = vunpack.c.l.b16 %v10107
    %v10208 = vunpack.c.l.b16 %v10108
    %v10209 = vunpack.c.l.b16 %v10109
    %v10210 = vunpack.c.l.b16 %v10110
    %v10211 = vunpack.c.l.b16 %v10111
    %v10212 = vunpack.c.l.b16 %v10112
    %v10213 = vunpack.c.l.b16 %v10113
    %v10214 = vunpack.c.l.b16 %v10114
    %v10215 = vunpack.c.l.b16 %v10115
    %v10216 = vunpack.c.l.b16 %v10116
    %v10217 = vunpack.c.l.b16 %v10117
    %v10218 = vunpack.c.l.b16 %v10118
    %v10219 = vunpack.c.l.b16 %v10119
    %v10220 = vpack.c.b16 %v10173, %v10172
    %v10221 = vpack.c.b16 %v10175, %v10174
    %v10222 = vpack.c.b16 %v10177, %v10176
    %v10223 = vpack.c.b16 %v10179, %v10178
    %v10224 = vpack.c.b16 %v10181, %v10180
    %v10225 = vpack.c.b16 %v10183, %v10182
    %v10226 = vpack.c.b16 %v10185, %v10184
    %v10227 = vpack.c.b16 %v10187, %v10186
    %v10228 = vpack.c.b16 %v10189, %v10188
    %v10229 = vpack.c.b16 %v10191, %v10190
    %v10230 = vpack.c.b16 %v10193, %v10192
    %v10231 = vpack.c.b16 %v10195, %v10194
    %v10232 = vpack.c.b16 %v10197, %v10196
    %v10233 = vpack.c.b16 %v10199, %v10198
    %v10234 = vpack.c.b16 %v10201, %v10200
    %v10235 = vpack.c.b16 %v10203, %v10202
    %v10236 = vpack.c.b16 %v10205, %v10204
    %v10237 = vpack.c.b16 %v10207, %v10206
    %v10238 = vpack.c.b16 %v10209, %v10208
    %v10239 = vpack.c.b16 %v10211, %v10210
    %v10240 = vpack.c.b16 %v10213, %v10212
    %v10241 = vpack.c.b16 %v10215, %v10214
    %v10242 = vpack.c.b16 %v10217, %v10216
    %v10243 = vpack.c.b16 %v10219, %v10218
    %10268 = vmatpush.bf16.msra.mxu0 %v10227
    %10269 = vmatpush.bf16.msra.mxu0 %v10226
    %10270 = vmatpush.bf16.msra.mxu0 %v10225
    %10271 = vmatpush.bf16.msra.mxu0 %v10224
    %10272 = vmatpush.bf16.msra.mxu0 %v10223
    %10273 = vmatpush.bf16.msra.mxu0 %v10222
    %10274 = vmatpush.bf16.msra.mxu0 %v10221
    %10275 = vmatpush.bf16.msra.mxu0 %v10220
    %10276 = vmatmul.bf16.gmra.mxu0 %v10069
    %v10277 = vpop.f32.mrf.mxu0
    %v10278 = vadd.f32 %v10122, %v10277
    %v10279 = vpop.f32.mrf.mxu0
    %10280 = vdwg.mxu0
    %10281 = vmatpush.bf16.msra.mxu0 %v10235
    %10282 = vmatpush.bf16.msra.mxu0 %v10234
    %10283 = vmatpush.bf16.msra.mxu0 %v10233
    %10284 = vmatpush.bf16.msra.mxu0 %v10232
    %10285 = vmatpush.bf16.msra.mxu0 %v10231
    %10286 = vmatpush.bf16.msra.mxu0 %v10230
    %10287 = vmatpush.bf16.msra.mxu0 %v10229
    %10288 = vmatpush.bf16.msra.mxu0 %v10228
    %10289 = vmatmul.bf16.gmra.mxu0 %v10070
    %v10290 = vpop.f32.mrf.mxu0
    %v10291 = vadd.f32 %v10278, %v10290
    %v10292 = vpop.f32.mrf.mxu0
    %10293 = vdwg.mxu0
    %10294 = vmatpush.bf16.msra.mxu0 %v10243
    %10295 = vmatpush.bf16.msra.mxu0 %v10242
    %10296 = vmatpush.bf16.msra.mxu0 %v10241
    %10297 = vmatpush.bf16.msra.mxu0 %v10240
    %10298 = vmatpush.bf16.msra.mxu0 %v10239
    %10299 = vmatpush.bf16.msra.mxu0 %v10238
    %10300 = vmatpush.bf16.msra.mxu0 %v10237
    %10301 = vmatpush.bf16.msra.mxu0 %v10236
    %10302 = vmatmul.bf16.gmra.mxu0 %v10071
    %v10303 = vpop.f32.mrf.mxu0
    %v10304 = vadd.f32 %v10291, %v10303
    %v10305 = vpop.f32.mrf.mxu0
    %10306 = vdwg.mxu0
    %v10307 = vmax.f32 %v10304, 0.0
    %v10308 = vpack.c.bf16 %v10307, %v10307
    %v10309 = vld [vmem:[%s15] sm:$0xf]
    %v10310 = vld [vmem:[%s15 + $0x4] sm:$0xf]
    %v10311 = vld [vmem:[%s15 + $0x8] sm:$0xf]
    %v10312 = vld [vmem:[%s15 + $0xc] sm:$0xf]
    %v10313 = vld [vmem:[%s15 + $0x10] sm:$0xf]
    %v10314 = vld [vmem:[%s15 + $0x14] sm:$0xf]
    %v10315 = vld [vmem:[%s15 + $0x18] sm:$0xf]
    %v10316 = vld [vmem:[%s15 + $0x1c] sm:$0xf]
    %v10317 = vld [vmem:[%s15 + $0x20] sm:$0xf]
    %v10318 = vld [vmem:[%s15 + $0x24] sm:$0xf]
    %v10319 = vld [vmem:[%s15 + $0x28] sm:$0xf]
    %v10320 = vld [vmem:[%s15 + $0x2c] sm:$0xf]
    %v10321 = vld [vmem:[%s15 + $0x30] sm:$0xf]
    %v10322 = vld [vmem:[%s15 + $0x34] sm:$0xf]
    %v10323 = vld [vmem:[%s15 + $0x38] sm:$0xf]
    %v10324 = vld [vmem:[%s15 + $0x3c] sm:$0xf]
    %v10325 = vld [vmem:[#allocation2] sm:$0x1]
    %v10327 = vperm.slane %v10325, 0
    %v10345 = vunpack.c.l.b16 %v10309
    %v10346 = vunpack.c.l.b16 %v10310
    %v10347 = vunpack.c.l.b16 %v10311
    %v10348 = vunpack.c.l.b16 %v10312
    %v10349 = vunpack.c.l.b16 %v10313
    %v10350 = vunpack.c.l.b16 %v10314
    %v10351 = vunpack.c.l.b16 %v10315
    %v10352 = vunpack.c.l.b16 %v10316
    %v10353 = vunpack.c.l.b16 %v10317
    %v10354 = vunpack.c.l.b16 %v10318
    %v10355 = vunpack.c.l.b16 %v10319
    %v10356 = vunpack.c.l.b16 %v10320
    %v10357 = vunpack.c.l.b16 %v10321
    %v10358 = vunpack.c.l.b16 %v10322
    %v10359 = vunpack.c.l.b16 %v10323
    %v10360 = vunpack.c.l.b16 %v10324
    %v10361 = vpack.c.b16 %v10346, %v10345
    %v10362 = vpack.c.b16 %v10348, %v10347
    %v10363 = vpack.c.b16 %v10350, %v10349
    %v10364 = vpack.c.b16 %v10352, %v10351
    %v10365 = vpack.c.b16 %v10354, %v10353
    %v10366 = vpack.c.b16 %v10356, %v10355
    %v10367 = vpack.c.b16 %v10358, %v10357
    %v10368 = vpack.c.b16 %v10360, %v10359
    %10377 = vmatpush.bf16.msra.mxu0 %v10368
    %10378 = vmatpush.bf16.msra.mxu0 %v10367
    %10379 = vmatpush.bf16.msra.mxu0 %v10366
    %10380 = vmatpush.bf16.msra.mxu0 %v10365
    %10381 = vmatpush.bf16.msra.mxu0 %v10364
    %10382 = vmatpush.bf16.msra.mxu0 %v10363
    %10383 = vmatpush.bf16.msra.mxu0 %v10362
    %10384 = vmatpush.bf16.msra.mxu0 %v10361
    %10385 = vmatmul.bf16.gmra.mxu0 %v10308
    %v10386 = vpop.f32.mrf.mxu0
    %v10387 = vadd.f32 %v10327, %v10386
    %v10388 = vpop.f32.mrf.mxu0
    %10389 = vdwg.mxu0
    %vm10390 = vcmask 1024
    %10391 = vst.msk [vmem:[%s17] sm:$0x3] %vm10390, %v10387
    // Predicated region
    $region70: #{forward.5} parent=1 // pred_check
      _
    $region71: #{forward.5} parent=1 // pred_check_branch
      %10393 = sbr.rel (0) target = $region73
    $region72: #{forward.5} parent=1 // pred_region
      _
    $region73: #{forward.5} parent=1 // pred_fallthru
      _
    // Predicated region
    $region74: #{forward.5} parent=1 // pred_check
      _
    $region75: #{forward.5} parent=1 // pred_check_branch
      %10395 = sbr.rel (0) target = $region77
    $region76: #{forward.5} parent=1 // pred_region
      %10397 = vsyncadd [#allocation4], 0
      %s10399 = sshll.u32 [#allocation3], 4
      %s10400 = int_to_ptr.vmem [resolvable:$true] %s10399
      %s10401 = sshll.u32 %s18, 4
      %s10402 = int_to_ptr.hbm [resolvable:$true] %s10401
      %10404 = dma.vmem_to_hbm [thread:$0]  %s10400, 32, %s10402, [#allocation4]
    $region77: #{forward.5} parent=1 // pred_fallthru
      _
    // Predicated region
    $region78: #{forward.5} parent=1 // pred_check
      _
    $region79: #{forward.5} parent=1 // pred_check_branch
      %10406 = sbr.rel (0) target = $region81
    $region80: #{forward.5} parent=1 // pred_region
      %10408 = vsyncadd [#allocation6], 0
      %s10410 = sshll.u32 [#allocation5], 4
      %s10411 = int_to_ptr.vmem [resolvable:$true] %s10410
      %s10412 = sshll.u32 %s19, 4
      %s10413 = int_to_ptr.hbm [resolvable:$true] %s10412
      %10415 = dma.vmem_to_hbm [thread:$0]  %s10411, 96, %s10413, [#allocation6]
    $region81: #{forward.5} parent=1 // pred_fallthru
      _
    // Predicated region
    $region82: #{forward.5} parent=1 // pred_check
      _
    $region83: #{forward.5} parent=1 // pred_check_branch
      %10417 = sbr.rel (0) target = $region85
    $region84: #{forward.5} parent=1 // pred_region
      %10419 = vsyncadd [#allocation6], 0
      %s10421 = sshll.u32 [#allocation7], 4
      %s10422 = int_to_ptr.vmem [resolvable:$true] %s10421
      %s10423 = sshll.u32 %s20, 4
      %s10424 = int_to_ptr.hbm [resolvable:$true] %s10423
      %10426 = dma.vmem_to_hbm [thread:$0]  %s10422, 96, %s10424, [#allocation6]
    $region85: #{forward.5} parent=1 // pred_fallthru
      _
    // Predicated region
    $region86: #{forward.5} parent=1 // pred_check
      _
    $region87: #{forward.5} parent=1 // pred_check_branch
      %10428 = sbr.rel (0) target = $region89
    $region88: #{forward.5} parent=1 // pred_region
      _
    $region89: #{forward.5} parent=1 // pred_fallthru
      _
    // Predicated region
    $region90: #{forward.5} parent=1 // pred_check
      _
    $region91: #{forward.5} parent=1 // pred_check_branch
      %10430 = sbr.rel (0) target = $region93
    $region92: #{forward.5} parent=1 // pred_region
      %10432 = dma.done [#allocation4], 32
    $region93: #{forward.5} parent=1 // pred_fallthru
      _
    // Predicated region
    $region94: #{forward.5} parent=1 // pred_check
      _
    $region95: #{forward.5} parent=1 // pred_check_branch
      %10434 = sbr.rel (0) target = $region97
    $region96: #{forward.5} parent=1 // pred_region
      %10436 = dma.done [#allocation6], 96
    $region97: #{forward.5} parent=1 // pred_fallthru
      _
    // Predicated region
    $region98: #{forward.5} parent=1 // pred_check
      _
    $region99: #{forward.5} parent=1 // pred_check_branch
      %10438 = sbr.rel (0) target = $region101
    $region100: #{forward.5} parent=1 // pred_region
      %10440 = dma.done [#allocation6], 96
    $region101: #{forward.5} parent=1 // pred_fallthru
      _
    %10441 = vsyncpa [#allocation4], 1
    %10442 = vsyncpa [#allocation6], 1

</llo_original>
